<compile_context>
chip_gen: v5e
topology: v5e:2x2
jax: 0.10.0
libtpu: 0.0.40
codegen_flags: <defaults>
</compile_context>

<pallas_src>
import functools

import numpy as np
import jax
import jax.numpy as jnp
from jax import lax
from jax.experimental import pallas as pl
from jax.experimental.pallas import tpu as pltpu


# ----------------------------------------------------------------------------
# Geometry (fixed by the PyTorch module: 3x32x32 input, fc1 = Linear(16*8*8, .))
# ----------------------------------------------------------------------------
K, PAD = 5, 2
C0, C1, C2 = 3, 6, 16                     # input / conv1 / conv2 channels
H1 = W1 = 32                              # conv1 spatial size
WP1 = W1 + 2 * PAD                        # 36  (padded grid width for conv1)
HP1 = H1 + 2 * PAD                        # 36
NP1 = HP1 * WP1                           # 1296 flat width of conv1 output
MARG1 = 2 * WP1 + 2                       # 74  = max |tap shift| for 5x5 kernel
XPAD_TOP, XPAD_BOT, XPAD_LEFT = 4, 5, 4   # puts the image at flat offset MARG1+PAD*WP1+PAD
NXE = (H1 + XPAD_TOP + XPAD_BOT) * WP1    # 1476 input buffer width (>= NP1 + 2*MARG1)
L1 = NP1 - (WP1 + 1)                      # 1259 truncated width for pool1 pairing

H2 = W2 = 16                              # spatial size after pool1
WP2 = W2 + 2 * PAD                        # 20
HP2 = H2 + 2 * PAD                        # 20
NP2 = HP2 * WP2                           # 400 flat width of conv2 output
MARG2 = 2 * WP2 + 2                       # 42
NP2E = NP2 + 2 * MARG2                    # 484 conv2 input buffer width
L2 = NP2 - (WP2 + 1)                      # 379 truncated width for pool2 pairing

H3 = W3 = 8                               # spatial size after pool2
NH1, NH2, NOUT = 120, 84, 10


# ----------------------------------------------------------------------------
# Exact 0/1 selection matrices (compaction of 2x2-pool results + re-padding)
# ----------------------------------------------------------------------------
@functools.lru_cache(maxsize=None)
def _pool1_selector():
    # maps conv1-flat index of the top-left pixel of each 2x2 block
    # -> conv2's padded-flat (with +/-MARG2 slack) input position; all other
    # columns are zero, which recreates conv2's zero padding exactly.
    s = np.zeros((L1, NP2E), np.float32)
    for a in range(H2):
        for b in range(W2):
            src = (2 * a + PAD) * WP1 + (2 * b + PAD)
            dst = MARG2 + (a + PAD) * WP2 + (b + PAD)
            s[src, dst] = 1.0
    return s


@functools.lru_cache(maxsize=None)
def _pool2_selector():
    # maps conv2-flat index of each 2x2 block's top-left pixel -> h*8 + w, i.e.
    # exactly the (C, H, W) flatten order PyTorch's x.view(B, -1) uses.
    s = np.zeros((L2, H3 * W3), np.float32)
    for a in range(H3):
        for b in range(W3):
            src = (2 * a + PAD) * WP2 + (2 * b + PAD)
            dst = a * W3 + b
            s[src, dst] = 1.0
    return s


# ----------------------------------------------------------------------------
# Fused whole-network kernel (one grid step == one image)
# ----------------------------------------------------------------------------
def _net_kernel(x_ref, w1_ref, b1_ref, sel1_ref, w2_ref, b2_ref, sel2_ref,
                fw1_ref, fb1_ref, fw2_ref, fb2_ref, fw3_ref, fb3_ref,
                out_ref, ic1_ref, ic2_ref):
    f32 = jnp.float32

    # ---- conv1: im2col (25 shifted lane slices of the padded-flat image) + one MXU matmul
    for kh in range(K):
        for kw in range(K):
            tap = kh * K + kw
            s = MARG1 + (kh - PAD) * WP1 + (kw - PAD)
            ic1_ref[tap * C0:(tap + 1) * C0, :] = x_ref[0, :, s:s + NP1]
    y1 = jnp.dot(w1_ref[...], ic1_ref[...], preferred_element_type=f32)   # [C1, NP1]
    y1 = jnp.maximum(y1 + b1_ref[...], 0.0)

    # ---- pool1: 2x2 max via shifted slices, then exact selection matmul that
    #      compacts the pooled pixels and re-pads them for conv2.
    m1 = jnp.maximum(jnp.maximum(y1[:, 0:L1], y1[:, 1:L1 + 1]),
                     jnp.maximum(y1[:, WP1:WP1 + L1], y1[:, WP1 + 1:WP1 + 1 + L1]))
    a1 = jnp.dot(m1, sel1_ref[...], preferred_element_type=f32)           # [C1, NP2E]

    # ---- conv2: im2col + one MXU matmul
    for kh in range(K):
        for kw in range(K):
            tap = kh * K + kw
            s = MARG2 + (kh - PAD) * WP2 + (kw - PAD)
            ic2_ref[tap * C1:(tap + 1) * C1, :] = a1[:, s:s + NP2]
    y2 = jnp.dot(w2_ref[...], ic2_ref[...], preferred_element_type=f32)   # [C2, NP2]
    y2 = jnp.maximum(y2 + b2_ref[...], 0.0)

    # ---- pool2 + compaction into the (c, h, w) flatten order
    m2 = jnp.maximum(jnp.maximum(y2[:, 0:L2], y2[:, 1:L2 + 1]),
                     jnp.maximum(y2[:, WP2:WP2 + L2], y2[:, WP2 + 1:WP2 + 1 + L2]))
    p2 = jnp.dot(m2, sel2_ref[...], preferred_element_type=f32)           # [C2, H3*W3]

    # ---- fused 3-layer MLP (channel loop folds the NCHW flatten into the contraction)
    h = fb1_ref[...]                                                      # [1, 120]
    for c in range(C2):
        h = h + jnp.dot(p2[c:c + 1, :], fw1_ref[c], preferred_element_type=f32)
    h = jnp.maximum(h, 0.0)
    h = jnp.maximum(jnp.dot(h, fw2_ref[...], preferred_element_type=f32) + fb2_ref[...],
                    0.0)
    out_ref[0] = jnp.dot(h, fw3_ref[...], preferred_element_type=f32) + fb3_ref[...]


def _const_spec(shape):
    zero = (0,) * len(shape)
    return pl.BlockSpec(shape, lambda b: zero)


# ----------------------------------------------------------------------------
# Full Net forward (single fused pallas_call)
# ----------------------------------------------------------------------------
@jax.jit
def net_forward(x, params):
    B = x.shape[0]
    f32 = jnp.float32

    # Parameter re-layouts (tiny, trace-time / fused by XLA):
    w1m = jnp.transpose(params["cw1"], (0, 2, 3, 1)).reshape(C1, K * K * C0)
    w2m = jnp.transpose(params["cw2"], (0, 2, 3, 1)).reshape(C2, K * K * C1)
    b1 = params["cb1"].reshape(C1, 1)
    b2 = params["cb2"].reshape(C2, 1)
    fw1 = params["fw1"].reshape(C2, H3 * W3, NH1)    # rows ordered (c, h, w) == torch .view
    fb1 = params["fb1"].reshape(1, NH1)
    fw2 = params["fw2"]
    fb2 = params["fb2"].reshape(1, NH2)
    fw3 = params["fw3"]
    fb3 = params["fb3"].reshape(1, NOUT)

    # Padded-flat input with +/-MARG1 slack so every conv1 tap is a plain slice.
    xe = jnp.pad(x, ((0, 0), (0, 0), (XPAD_TOP, XPAD_BOT), (XPAD_LEFT, 0)))
    xe = xe.reshape(B, C0, NXE)

    sel1 = jnp.asarray(_pool1_selector(), f32)
    sel2 = jnp.asarray(_pool2_selector(), f32)

    out = pl.pallas_call(
        _net_kernel,
        out_shape=jax.ShapeDtypeStruct((B, 1, NOUT), f32),
        grid=(B,),
        in_specs=[
            pl.BlockSpec((1, C0, NXE), lambda b: (b, 0, 0)),
            _const_spec(w1m.shape),
            _const_spec(b1.shape),
            _const_spec(sel1.shape),
            _const_spec(w2m.shape),
            _const_spec(b2.shape),
            _const_spec(sel2.shape),
            _const_spec(fw1.shape),
            _const_spec(fb1.shape),
            _const_spec(fw2.shape),
            _const_spec(fb2.shape),
            _const_spec(fw3.shape),
            _const_spec(fb3.shape),
        ],
        out_specs=pl.BlockSpec((1, 1, NOUT), lambda b: (b, 0, 0)),
        scratch_shapes=[
            pltpu.VMEM((K * K * C0, NP1), f32),   # conv1 im2col
            pltpu.VMEM((K * K * C1, NP2), f32),   # conv2 im2col
        ],
        compiler_params=pltpu.CompilerParams(dimension_semantics=("parallel",)),
    )(xe, w1m, b1, sel1, w2m, b2, sel2, fw1, fb1, fw2, fb2, fw3, fb3)
    return out.reshape(B, NOUT)


# ----------------------------------------------------------------------------
# Pure-JAX reference (high precision) for the correctness check
# ----------------------------------------------------------------------------
def net_reference(x, p):
    prec = lax.Precision.HIGHEST

    def conv(x, w, b):
        y = lax.conv_general_dilated(
            x, w, (1, 1), ((PAD, PAD), (PAD, PAD)),
            dimension_numbers=("NCHW", "OIHW", "NCHW"), precision=prec)
        return y + b[None, :, None, None]

    def pool(x):
        return lax.reduce_window(x, -jnp.inf, lax.max,
                                 (1, 1, 2, 2), (1, 1, 2, 2), "VALID")

    y = pool(jnp.maximum(conv(x, p["cw1"], p["cb1"]), 0.0))
    y = pool(jnp.maximum(conv(y, p["cw2"], p["cb2"]), 0.0))
    y = y.reshape(y.shape[0], -1)
    y = jnp.maximum(jnp.dot(y, p["fw1"], precision=prec) + p["fb1"], 0.0)
    y = jnp.maximum(jnp.dot(y, p["fw2"], precision=prec) + p["fb2"], 0.0)
    return jnp.dot(y, p["fw3"], precision=prec) + p["fb3"]


def init_params(key):
    ks = jax.random.split(key, 10)

    def n(k, shape, scale):
        return (jax.random.normal(k, shape, jnp.float32) * scale).astype(jnp.float32)

    return {
        "cw1": n(ks[0], (C1, C0, K, K), 1.0 / np.sqrt(C0 * K * K)),
        "cb1": n(ks[1], (C1,), 0.01),
        "cw2": n(ks[2], (C2, C1, K, K), 1.0 / np.sqrt(C1 * K * K)),
        "cb2": n(ks[3], (C2,), 0.01),
        "fw1": n(ks[4], (C2 * H3 * W3, NH1), 1.0 / np.sqrt(C2 * H3 * W3)),
        "fb1": n(ks[5], (NH1,), 0.01),
        "fw2": n(ks[6], (NH1, NH2), 1.0 / np.sqrt(NH1)),
        "fb2": n(ks[7], (NH2,), 0.01),
        "fw3": n(ks[8], (NH2, NOUT), 1.0 / np.sqrt(NH2)),
        "fb3": n(ks[9], (NOUT,), 0.01),
    }


if __name__ == "__main__":
    key = jax.random.PRNGKey(0)
    kx, kp = jax.random.split(key)
    # Input implied by fc1 = Linear(16*8*8, ...): 3x32x32 images. Batch = 2.
    x = jax.random.normal(kx, (2, C0, H1, W1), jnp.float32)
    params = init_params(kp)

    out = jax.block_until_ready(net_forward(x, params))
    assert out.shape == (2, NOUT) and out.dtype == jnp.float32

    ref = jax.block_until_ready(net_reference(x, params))
    np.testing.assert_allclose(np.asarray(out), np.asarray(ref), rtol=1e-2, atol=1e-2)

    print("KERNEL_OK")
</pallas_src>

<mosaic_0001>
module attributes {stable_mosaic.version = 11 : i64} {
  func.func @_net_kernel(%arg0: i32, %arg1: memref<1x3x1476xf32, #tpu.memory_space<vmem>>, %arg2: memref<6x75xf32, #tpu.memory_space<vmem>>, %arg3: memref<6x1xf32, #tpu.memory_space<vmem>>, %arg4: memref<1259x484xf32, #tpu.memory_space<vmem>>, %arg5: memref<16x150xf32, #tpu.memory_space<vmem>>, %arg6: memref<16x1xf32, #tpu.memory_space<vmem>>, %arg7: memref<379x64xf32, #tpu.memory_space<vmem>>, %arg8: memref<16x64x120xf32, #tpu.memory_space<vmem>>, %arg9: memref<1x120xf32, #tpu.memory_space<vmem>>, %arg10: memref<120x84xf32, #tpu.memory_space<vmem>>, %arg11: memref<1x84xf32, #tpu.memory_space<vmem>>, %arg12: memref<84x10xf32, #tpu.memory_space<vmem>>, %arg13: memref<1x10xf32, #tpu.memory_space<vmem>>, %arg14: memref<1x1x10xf32, #tpu.memory_space<vmem>>, %arg15: memref<75x1296xf32, #tpu.memory_space<vmem>>, %arg16: memref<150x400xf32, #tpu.memory_space<vmem>>) attributes {dimension_semantics = [#tpu.dimension_semantics<parallel>], iteration_bounds = array<i64: 2>, scalar_prefetch = 0 : i64, scratch_operands = 2 : i64, tpu.core_type = #tpu.core_type<tc>, window_params = [{transform_indices = @transform_0, window_bounds = array<i64: 1, 3, 1476>}, {pipeline_mode = #tpu.pipeline_mode<synchronous>, transform_indices = @transform_1, window_bounds = array<i64: 6, 75>}, {pipeline_mode = #tpu.pipeline_mode<synchronous>, transform_indices = @transform_2, window_bounds = array<i64: 6, 1>}, {pipeline_mode = #tpu.pipeline_mode<synchronous>, transform_indices = @transform_3, window_bounds = array<i64: 1259, 484>}, {pipeline_mode = #tpu.pipeline_mode<synchronous>, transform_indices = @transform_4, window_bounds = array<i64: 16, 150>}, {pipeline_mode = #tpu.pipeline_mode<synchronous>, transform_indices = @transform_5, window_bounds = array<i64: 16, 1>}, {pipeline_mode = #tpu.pipeline_mode<synchronous>, transform_indices = @transform_6, window_bounds = array<i64: 379, 64>}, {pipeline_mode = #tpu.pipeline_mode<synchronous>, transform_indices = @transform_7, window_bounds = array<i64: 16, 64, 120>}, {pipeline_mode = #tpu.pipeline_mode<synchronous>, transform_indices = @transform_8, window_bounds = array<i64: 1, 120>}, {pipeline_mode = #tpu.pipeline_mode<synchronous>, transform_indices = @transform_9, window_bounds = array<i64: 120, 84>}, {pipeline_mode = #tpu.pipeline_mode<synchronous>, transform_indices = @transform_10, window_bounds = array<i64: 1, 84>}, {pipeline_mode = #tpu.pipeline_mode<synchronous>, transform_indices = @transform_11, window_bounds = array<i64: 84, 10>}, {pipeline_mode = #tpu.pipeline_mode<synchronous>, transform_indices = @transform_12, window_bounds = array<i64: 1, 10>}, {transform_indices = @transform_13, window_bounds = array<i64: 1, 1, 10>}]} {
    %c0 = arith.constant 0 : index
    %c0_0 = arith.constant 0 : index
    %c0_1 = arith.constant 0 : index
    %0 = vector.load %arg1[%c0, %c0_0, %c0_1] : memref<1x3x1476xf32, #tpu.memory_space<vmem>>, vector<1x3x1296xf32>
    %1 = vector.shape_cast %0 : vector<1x3x1296xf32> to vector<3x1296xf32>
    %c0_2 = arith.constant 0 : index
    %c0_3 = arith.constant 0 : index
    %2 = vector.load %arg15[%c0_2, %c0_3] : memref<75x1296xf32, #tpu.memory_space<vmem>>, vector<3x1296xf32>
    tpu.vector_store %arg15[%c0_2, %c0_3], %1 {strides = array<i32>} : memref<75x1296xf32, #tpu.memory_space<vmem>>, vector<3x1296xf32>,
    %c0_4 = arith.constant 0 : index
    %c0_5 = arith.constant 0 : index
    %c1 = arith.constant 1 : index
    %3 = vector.load %arg1[%c0_4, %c0_5, %c1] : memref<1x3x1476xf32, #tpu.memory_space<vmem>>, vector<1x3x1296xf32>
    %4 = vector.shape_cast %3 : vector<1x3x1296xf32> to vector<3x1296xf32>
    %c3 = arith.constant 3 : index
    %c0_6 = arith.constant 0 : index
    %5 = vector.load %arg15[%c3, %c0_6] : memref<75x1296xf32, #tpu.memory_space<vmem>>, vector<3x1296xf32>
    tpu.vector_store %arg15[%c3, %c0_6], %4 {strides = array<i32>} : memref<75x1296xf32, #tpu.memory_space<vmem>>, vector<3x1296xf32>,
    %c0_7 = arith.constant 0 : index
    %c0_8 = arith.constant 0 : index
    %c2 = arith.constant 2 : index
    %6 = vector.load %arg1[%c0_7, %c0_8, %c2] : memref<1x3x1476xf32, #tpu.memory_space<vmem>>, vector<1x3x1296xf32>
    %7 = vector.shape_cast %6 : vector<1x3x1296xf32> to vector<3x1296xf32>
    %c6 = arith.constant 6 : index
    %c0_9 = arith.constant 0 : index
    %8 = vector.load %arg15[%c6, %c0_9] : memref<75x1296xf32, #tpu.memory_space<vmem>>, vector<3x1296xf32>
    tpu.vector_store %arg15[%c6, %c0_9], %7 {strides = array<i32>} : memref<75x1296xf32, #tpu.memory_space<vmem>>, vector<3x1296xf32>,
    %c0_10 = arith.constant 0 : index
    %c0_11 = arith.constant 0 : index
    %c3_12 = arith.constant 3 : index
    %9 = vector.load %arg1[%c0_10, %c0_11, %c3_12] : memref<1x3x1476xf32, #tpu.memory_space<vmem>>, vector<1x3x1296xf32>
    %10 = vector.shape_cast %9 : vector<1x3x1296xf32> to vector<3x1296xf32>
    %c9 = arith.constant 9 : index
    %c0_13 = arith.constant 0 : index
    %11 = vector.load %arg15[%c9, %c0_13] : memref<75x1296xf32, #tpu.memory_space<vmem>>, vector<3x1296xf32>
    tpu.vector_store %arg15[%c9, %c0_13], %10 {strides = array<i32>} : memref<75x1296xf32, #tpu.memory_space<vmem>>, vector<3x1296xf32>,
    %c0_14 = arith.constant 0 : index
    %c0_15 = arith.constant 0 : index
    %c4 = arith.constant 4 : index
    %12 = vector.load %arg1[%c0_14, %c0_15, %c4] : memref<1x3x1476xf32, #tpu.memory_space<vmem>>, vector<1x3x1296xf32>
    %13 = vector.shape_cast %12 : vector<1x3x1296xf32> to vector<3x1296xf32>
    %c12 = arith.constant 12 : index
    %c0_16 = arith.constant 0 : index
    %14 = vector.load %arg15[%c12, %c0_16] : memref<75x1296xf32, #tpu.memory_space<vmem>>, vector<3x1296xf32>
    tpu.vector_store %arg15[%c12, %c0_16], %13 {strides = array<i32>} : memref<75x1296xf32, #tpu.memory_space<vmem>>, vector<3x1296xf32>,
    %c0_17 = arith.constant 0 : index
    %c0_18 = arith.constant 0 : index
    %c36 = arith.constant 36 : index
    %15 = vector.load %arg1[%c0_17, %c0_18, %c36] : memref<1x3x1476xf32, #tpu.memory_space<vmem>>, vector<1x3x1296xf32>
    %16 = vector.shape_cast %15 : vector<1x3x1296xf32> to vector<3x1296xf32>
    %c15 = arith.constant 15 : index
    %c0_19 = arith.constant 0 : index
    %17 = vector.load %arg15[%c15, %c0_19] : memref<75x1296xf32, #tpu.memory_space<vmem>>, vector<3x1296xf32>
    tpu.vector_store %arg15[%c15, %c0_19], %16 {strides = array<i32>} : memref<75x1296xf32, #tpu.memory_space<vmem>>, vector<3x1296xf32>,
    %c0_20 = arith.constant 0 : index
    %c0_21 = arith.constant 0 : index
    %c37 = arith.constant 37 : index
    %18 = vector.load %arg1[%c0_20, %c0_21, %c37] : memref<1x3x1476xf32, #tpu.memory_space<vmem>>, vector<1x3x1296xf32>
    %19 = vector.shape_cast %18 : vector<1x3x1296xf32> to vector<3x1296xf32>
    %c18 = arith.constant 18 : index
    %c0_22 = arith.constant 0 : index
    %20 = vector.load %arg15[%c18, %c0_22] : memref<75x1296xf32, #tpu.memory_space<vmem>>, vector<3x1296xf32>
    tpu.vector_store %arg15[%c18, %c0_22], %19 {strides = array<i32>} : memref<75x1296xf32, #tpu.memory_space<vmem>>, vector<3x1296xf32>,
    %c0_23 = arith.constant 0 : index
    %c0_24 = arith.constant 0 : index
    %c38 = arith.constant 38 : index
    %21 = vector.load %arg1[%c0_23, %c0_24, %c38] : memref<1x3x1476xf32, #tpu.memory_space<vmem>>, vector<1x3x1296xf32>
    %22 = vector.shape_cast %21 : vector<1x3x1296xf32> to vector<3x1296xf32>
    %c21 = arith.constant 21 : index
    %c0_25 = arith.constant 0 : index
    %23 = vector.load %arg15[%c21, %c0_25] : memref<75x1296xf32, #tpu.memory_space<vmem>>, vector<3x1296xf32>
    tpu.vector_store %arg15[%c21, %c0_25], %22 {strides = array<i32>} : memref<75x1296xf32, #tpu.memory_space<vmem>>, vector<3x1296xf32>,
    %c0_26 = arith.constant 0 : index
    %c0_27 = arith.constant 0 : index
    %c39 = arith.constant 39 : index
    %24 = vector.load %arg1[%c0_26, %c0_27, %c39] : memref<1x3x1476xf32, #tpu.memory_space<vmem>>, vector<1x3x1296xf32>
    %25 = vector.shape_cast %24 : vector<1x3x1296xf32> to vector<3x1296xf32>
    %c24 = arith.constant 24 : index
    %c0_28 = arith.constant 0 : index
    %26 = vector.load %arg15[%c24, %c0_28] : memref<75x1296xf32, #tpu.memory_space<vmem>>, vector<3x1296xf32>
    tpu.vector_store %arg15[%c24, %c0_28], %25 {strides = array<i32>} : memref<75x1296xf32, #tpu.memory_space<vmem>>, vector<3x1296xf32>,
    %c0_29 = arith.constant 0 : index
    %c0_30 = arith.constant 0 : index
    %c40 = arith.constant 40 : index
    %27 = vector.load %arg1[%c0_29, %c0_30, %c40] : memref<1x3x1476xf32, #tpu.memory_space<vmem>>, vector<1x3x1296xf32>
    %28 = vector.shape_cast %27 : vector<1x3x1296xf32> to vector<3x1296xf32>
    %c27 = arith.constant 27 : index
    %c0_31 = arith.constant 0 : index
    %29 = vector.load %arg15[%c27, %c0_31] : memref<75x1296xf32, #tpu.memory_space<vmem>>, vector<3x1296xf32>
    tpu.vector_store %arg15[%c27, %c0_31], %28 {strides = array<i32>} : memref<75x1296xf32, #tpu.memory_space<vmem>>, vector<3x1296xf32>,
    %c0_32 = arith.constant 0 : index
    %c0_33 = arith.constant 0 : index
    %c72 = arith.constant 72 : index
    %30 = vector.load %arg1[%c0_32, %c0_33, %c72] : memref<1x3x1476xf32, #tpu.memory_space<vmem>>, vector<1x3x1296xf32>
    %31 = vector.shape_cast %30 : vector<1x3x1296xf32> to vector<3x1296xf32>
    %c30 = arith.constant 30 : index
    %c0_34 = arith.constant 0 : index
    %32 = vector.load %arg15[%c30, %c0_34] : memref<75x1296xf32, #tpu.memory_space<vmem>>, vector<3x1296xf32>
    tpu.vector_store %arg15[%c30, %c0_34], %31 {strides = array<i32>} : memref<75x1296xf32, #tpu.memory_space<vmem>>, vector<3x1296xf32>,
    %c0_35 = arith.constant 0 : index
    %c0_36 = arith.constant 0 : index
    %c73 = arith.constant 73 : index
    %33 = vector.load %arg1[%c0_35, %c0_36, %c73] : memref<1x3x1476xf32, #tpu.memory_space<vmem>>, vector<1x3x1296xf32>
    %34 = vector.shape_cast %33 : vector<1x3x1296xf32> to vector<3x1296xf32>
    %c33 = arith.constant 33 : index
    %c0_37 = arith.constant 0 : index
    %35 = vector.load %arg15[%c33, %c0_37] : memref<75x1296xf32, #tpu.memory_space<vmem>>, vector<3x1296xf32>
    tpu.vector_store %arg15[%c33, %c0_37], %34 {strides = array<i32>} : memref<75x1296xf32, #tpu.memory_space<vmem>>, vector<3x1296xf32>,
    %c0_38 = arith.constant 0 : index
    %c0_39 = arith.constant 0 : index
    %c74 = arith.constant 74 : index
    %36 = vector.load %arg1[%c0_38, %c0_39, %c74] : memref<1x3x1476xf32, #tpu.memory_space<vmem>>, vector<1x3x1296xf32>
    %37 = vector.shape_cast %36 : vector<1x3x1296xf32> to vector<3x1296xf32>
    %c36_40 = arith.constant 36 : index
    %c0_41 = arith.constant 0 : index
    %38 = vector.load %arg15[%c36_40, %c0_41] : memref<75x1296xf32, #tpu.memory_space<vmem>>, vector<3x1296xf32>
    tpu.vector_store %arg15[%c36_40, %c0_41], %37 {strides = array<i32>} : memref<75x1296xf32, #tpu.memory_space<vmem>>, vector<3x1296xf32>,
    %c0_42 = arith.constant 0 : index
    %c0_43 = arith.constant 0 : index
    %c75 = arith.constant 75 : index
    %39 = vector.load %arg1[%c0_42, %c0_43, %c75] : memref<1x3x1476xf32, #tpu.memory_space<vmem>>, vector<1x3x1296xf32>
    %40 = vector.shape_cast %39 : vector<1x3x1296xf32> to vector<3x1296xf32>
    %c39_44 = arith.constant 39 : index
    %c0_45 = arith.constant 0 : index
    %41 = vector.load %arg15[%c39_44, %c0_45] : memref<75x1296xf32, #tpu.memory_space<vmem>>, vector<3x1296xf32>
    tpu.vector_store %arg15[%c39_44, %c0_45], %40 {strides = array<i32>} : memref<75x1296xf32, #tpu.memory_space<vmem>>, vector<3x1296xf32>,
    %c0_46 = arith.constant 0 : index
    %c0_47 = arith.constant 0 : index
    %c76 = arith.constant 76 : index
    %42 = vector.load %arg1[%c0_46, %c0_47, %c76] : memref<1x3x1476xf32, #tpu.memory_space<vmem>>, vector<1x3x1296xf32>
    %43 = vector.shape_cast %42 : vector<1x3x1296xf32> to vector<3x1296xf32>
    %c42 = arith.constant 42 : index
    %c0_48 = arith.constant 0 : index
    %44 = vector.load %arg15[%c42, %c0_48] : memref<75x1296xf32, #tpu.memory_space<vmem>>, vector<3x1296xf32>
    tpu.vector_store %arg15[%c42, %c0_48], %43 {strides = array<i32>} : memref<75x1296xf32, #tpu.memory_space<vmem>>, vector<3x1296xf32>,
    %c0_49 = arith.constant 0 : index
    %c0_50 = arith.constant 0 : index
    %c108 = arith.constant 108 : index
    %45 = vector.load %arg1[%c0_49, %c0_50, %c108] : memref<1x3x1476xf32, #tpu.memory_space<vmem>>, vector<1x3x1296xf32>
    %46 = vector.shape_cast %45 : vector<1x3x1296xf32> to vector<3x1296xf32>
    %c45 = arith.constant 45 : index
    %c0_51 = arith.constant 0 : index
    %47 = vector.load %arg15[%c45, %c0_51] : memref<75x1296xf32, #tpu.memory_space<vmem>>, vector<3x1296xf32>
    tpu.vector_store %arg15[%c45, %c0_51], %46 {strides = array<i32>} : memref<75x1296xf32, #tpu.memory_space<vmem>>, vector<3x1296xf32>,
    %c0_52 = arith.constant 0 : index
    %c0_53 = arith.constant 0 : index
    %c109 = arith.constant 109 : index
    %48 = vector.load %arg1[%c0_52, %c0_53, %c109] : memref<1x3x1476xf32, #tpu.memory_space<vmem>>, vector<1x3x1296xf32>
    %49 = vector.shape_cast %48 : vector<1x3x1296xf32> to vector<3x1296xf32>
    %c48 = arith.constant 48 : index
    %c0_54 = arith.constant 0 : index
    %50 = vector.load %arg15[%c48, %c0_54] : memref<75x1296xf32, #tpu.memory_space<vmem>>, vector<3x1296xf32>
    tpu.vector_store %arg15[%c48, %c0_54], %49 {strides = array<i32>} : memref<75x1296xf32, #tpu.memory_space<vmem>>, vector<3x1296xf32>,
    %c0_55 = arith.constant 0 : index
    %c0_56 = arith.constant 0 : index
    %c110 = arith.constant 110 : index
    %51 = vector.load %arg1[%c0_55, %c0_56, %c110] : memref<1x3x1476xf32, #tpu.memory_space<vmem>>, vector<1x3x1296xf32>
    %52 = vector.shape_cast %51 : vector<1x3x1296xf32> to vector<3x1296xf32>
    %c51 = arith.constant 51 : index
    %c0_57 = arith.constant 0 : index
    %53 = vector.load %arg15[%c51, %c0_57] : memref<75x1296xf32, #tpu.memory_space<vmem>>, vector<3x1296xf32>
    tpu.vector_store %arg15[%c51, %c0_57], %52 {strides = array<i32>} : memref<75x1296xf32, #tpu.memory_space<vmem>>, vector<3x1296xf32>,
    %c0_58 = arith.constant 0 : index
    %c0_59 = arith.constant 0 : index
    %c111 = arith.constant 111 : index
    %54 = vector.load %arg1[%c0_58, %c0_59, %c111] : memref<1x3x1476xf32, #tpu.memory_space<vmem>>, vector<1x3x1296xf32>
    %55 = vector.shape_cast %54 : vector<1x3x1296xf32> to vector<3x1296xf32>
    %c54 = arith.constant 54 : index
    %c0_60 = arith.constant 0 : index
    %56 = vector.load %arg15[%c54, %c0_60] : memref<75x1296xf32, #tpu.memory_space<vmem>>, vector<3x1296xf32>
    tpu.vector_store %arg15[%c54, %c0_60], %55 {strides = array<i32>} : memref<75x1296xf32, #tpu.memory_space<vmem>>, vector<3x1296xf32>,
    %c0_61 = arith.constant 0 : index
    %c0_62 = arith.constant 0 : index
    %c112 = arith.constant 112 : index
    %57 = vector.load %arg1[%c0_61, %c0_62, %c112] : memref<1x3x1476xf32, #tpu.memory_space<vmem>>, vector<1x3x1296xf32>
    %58 = vector.shape_cast %57 : vector<1x3x1296xf32> to vector<3x1296xf32>
    %c57 = arith.constant 57 : index
    %c0_63 = arith.constant 0 : index
    %59 = vector.load %arg15[%c57, %c0_63] : memref<75x1296xf32, #tpu.memory_space<vmem>>, vector<3x1296xf32>
    tpu.vector_store %arg15[%c57, %c0_63], %58 {strides = array<i32>} : memref<75x1296xf32, #tpu.memory_space<vmem>>, vector<3x1296xf32>,
    %c0_64 = arith.constant 0 : index
    %c0_65 = arith.constant 0 : index
    %c144 = arith.constant 144 : index
    %60 = vector.load %arg1[%c0_64, %c0_65, %c144] : memref<1x3x1476xf32, #tpu.memory_space<vmem>>, vector<1x3x1296xf32>
    %61 = vector.shape_cast %60 : vector<1x3x1296xf32> to vector<3x1296xf32>
    %c60 = arith.constant 60 : index
    %c0_66 = arith.constant 0 : index
    %62 = vector.load %arg15[%c60, %c0_66] : memref<75x1296xf32, #tpu.memory_space<vmem>>, vector<3x1296xf32>
    tpu.vector_store %arg15[%c60, %c0_66], %61 {strides = array<i32>} : memref<75x1296xf32, #tpu.memory_space<vmem>>, vector<3x1296xf32>,
    %c0_67 = arith.constant 0 : index
    %c0_68 = arith.constant 0 : index
    %c145 = arith.constant 145 : index
    %63 = vector.load %arg1[%c0_67, %c0_68, %c145] : memref<1x3x1476xf32, #tpu.memory_space<vmem>>, vector<1x3x1296xf32>
    %64 = vector.shape_cast %63 : vector<1x3x1296xf32> to vector<3x1296xf32>
    %c63 = arith.constant 63 : index
    %c0_69 = arith.constant 0 : index
    %65 = vector.load %arg15[%c63, %c0_69] : memref<75x1296xf32, #tpu.memory_space<vmem>>, vector<3x1296xf32>
    tpu.vector_store %arg15[%c63, %c0_69], %64 {strides = array<i32>} : memref<75x1296xf32, #tpu.memory_space<vmem>>, vector<3x1296xf32>,
    %c0_70 = arith.constant 0 : index
    %c0_71 = arith.constant 0 : index
    %c146 = arith.constant 146 : index
    %66 = vector.load %arg1[%c0_70, %c0_71, %c146] : memref<1x3x1476xf32, #tpu.memory_space<vmem>>, vector<1x3x1296xf32>
    %67 = vector.shape_cast %66 : vector<1x3x1296xf32> to vector<3x1296xf32>
    %c66 = arith.constant 66 : index
    %c0_72 = arith.constant 0 : index
    %68 = vector.load %arg15[%c66, %c0_72] : memref<75x1296xf32, #tpu.memory_space<vmem>>, vector<3x1296xf32>
    tpu.vector_store %arg15[%c66, %c0_72], %67 {strides = array<i32>} : memref<75x1296xf32, #tpu.memory_space<vmem>>, vector<3x1296xf32>,
    %c0_73 = arith.constant 0 : index
    %c0_74 = arith.constant 0 : index
    %c147 = arith.constant 147 : index
    %69 = vector.load %arg1[%c0_73, %c0_74, %c147] : memref<1x3x1476xf32, #tpu.memory_space<vmem>>, vector<1x3x1296xf32>
    %70 = vector.shape_cast %69 : vector<1x3x1296xf32> to vector<3x1296xf32>
    %c69 = arith.constant 69 : index
    %c0_75 = arith.constant 0 : index
    %71 = vector.load %arg15[%c69, %c0_75] : memref<75x1296xf32, #tpu.memory_space<vmem>>, vector<3x1296xf32>
    tpu.vector_store %arg15[%c69, %c0_75], %70 {strides = array<i32>} : memref<75x1296xf32, #tpu.memory_space<vmem>>, vector<3x1296xf32>,
    %c0_76 = arith.constant 0 : index
    %c0_77 = arith.constant 0 : index
    %c148 = arith.constant 148 : index
    %72 = vector.load %arg1[%c0_76, %c0_77, %c148] : memref<1x3x1476xf32, #tpu.memory_space<vmem>>, vector<1x3x1296xf32>
    %73 = vector.shape_cast %72 : vector<1x3x1296xf32> to vector<3x1296xf32>
    %c72_78 = arith.constant 72 : index
    %c0_79 = arith.constant 0 : index
    %74 = vector.load %arg15[%c72_78, %c0_79] : memref<75x1296xf32, #tpu.memory_space<vmem>>, vector<3x1296xf32>
    tpu.vector_store %arg15[%c72_78, %c0_79], %73 {strides = array<i32>} : memref<75x1296xf32, #tpu.memory_space<vmem>>, vector<3x1296xf32>,
    %c0_80 = arith.constant 0 : index
    %c0_81 = arith.constant 0 : index
    %75 = vector.load %arg2[%c0_80, %c0_81] : memref<6x75xf32, #tpu.memory_space<vmem>>, vector<6x75xf32>
    %c0_82 = arith.constant 0 : index
    %c0_83 = arith.constant 0 : index
    %76 = vector.load %arg15[%c0_82, %c0_83] : memref<75x1296xf32, #tpu.memory_space<vmem>>, vector<75x1296xf32>
    %cst = arith.constant dense<0.000000e+00> : vector<6x1296xf32>
    %77 = tpu.matmul %75, %76, %cst {dimension_numbers = #tpu.dot_dimension_numbers<[1], [0], [0], [1], [0, 0, 1, 1], [], []>} : vector<6x75xf32>, vector<75x1296xf32>, vector<6x1296xf32> -> vector<6x1296xf32>
    %c0_84 = arith.constant 0 : index
    %c0_85 = arith.constant 0 : index
    %78 = vector.load %arg3[%c0_84, %c0_85] : memref<6x1xf32, #tpu.memory_space<vmem>>, vector<6x1xf32>
    %79 = vector.broadcast %78 : vector<6x1xf32> to vector<6x1296xf32>
    %80 = arith.addf %77, %79 : vector<6x1296xf32>
    %cst_86 = arith.constant 0.000000e+00 : f32
    %81 = vector.broadcast %cst_86 : f32 to vector<6x1296xf32>
    %82 = arith.maximumf %80, %81 : vector<6x1296xf32>
    %83 = vector.extract_strided_slice %82 {offsets = [0, 0], sizes = [6, 1259], strides = [1, 1]} : vector<6x1296xf32> to vector<6x1259xf32>
    %84 = vector.extract_strided_slice %82 {offsets = [0, 1], sizes = [6, 1259], strides = [1, 1]} : vector<6x1296xf32> to vector<6x1259xf32>
    %85 = arith.maximumf %83, %84 : vector<6x1259xf32>
    %86 = vector.extract_strided_slice %82 {offsets = [0, 36], sizes = [6, 1259], strides = [1, 1]} : vector<6x1296xf32> to vector<6x1259xf32>
    %87 = vector.extract_strided_slice %82 {offsets = [0, 37], sizes = [6, 1259], strides = [1, 1]} : vector<6x1296xf32> to vector<6x1259xf32>
    %88 = arith.maximumf %86, %87 : vector<6x1259xf32>
    %89 = arith.maximumf %85, %88 : vector<6x1259xf32>
    %c0_87 = arith.constant 0 : index
    %c0_88 = arith.constant 0 : index
    %90 = vector.load %arg4[%c0_87, %c0_88] : memref<1259x484xf32, #tpu.memory_space<vmem>>, vector<1259x484xf32>
    %cst_89 = arith.constant dense<0.000000e+00> : vector<6x484xf32>
    %91 = tpu.matmul %89, %90, %cst_89 {dimension_numbers = #tpu.dot_dimension_numbers<[1], [0], [0], [1], [0, 0, 1, 1], [], []>} : vector<6x1259xf32>, vector<1259x484xf32>, vector<6x484xf32> -> vector<6x484xf32>
    %92 = vector.extract_strided_slice %91 {offsets = [0, 0], sizes = [6, 400], strides = [1, 1]} : vector<6x484xf32> to vector<6x400xf32>
    %c0_90 = arith.constant 0 : index
    %c0_91 = arith.constant 0 : index
    %93 = vector.load %arg16[%c0_90, %c0_91] : memref<150x400xf32, #tpu.memory_space<vmem>>, vector<6x400xf32>
    tpu.vector_store %arg16[%c0_90, %c0_91], %92 {strides = array<i32>} : memref<150x400xf32, #tpu.memory_space<vmem>>, vector<6x400xf32>,
    %94 = vector.extract_strided_slice %91 {offsets = [0, 1], sizes = [6, 400], strides = [1, 1]} : vector<6x484xf32> to vector<6x400xf32>
    %c6_92 = arith.constant 6 : index
    %c0_93 = arith.constant 0 : index
    %95 = vector.load %arg16[%c6_92, %c0_93] : memref<150x400xf32, #tpu.memory_space<vmem>>, vector<6x400xf32>
    tpu.vector_store %arg16[%c6_92, %c0_93], %94 {strides = array<i32>} : memref<150x400xf32, #tpu.memory_space<vmem>>, vector<6x400xf32>,
    %96 = vector.extract_strided_slice %91 {offsets = [0, 2], sizes = [6, 400], strides = [1, 1]} : vector<6x484xf32> to vector<6x400xf32>
    %c12_94 = arith.constant 12 : index
    %c0_95 = arith.constant 0 : index
    %97 = vector.load %arg16[%c12_94, %c0_95] : memref<150x400xf32, #tpu.memory_space<vmem>>, vector<6x400xf32>
    tpu.vector_store %arg16[%c12_94, %c0_95], %96 {strides = array<i32>} : memref<150x400xf32, #tpu.memory_space<vmem>>, vector<6x400xf32>,
    %98 = vector.extract_strided_slice %91 {offsets = [0, 3], sizes = [6, 400], strides = [1, 1]} : vector<6x484xf32> to vector<6x400xf32>
    %c18_96 = arith.constant 18 : index
    %c0_97 = arith.constant 0 : index
    %99 = vector.load %arg16[%c18_96, %c0_97] : memref<150x400xf32, #tpu.memory_space<vmem>>, vector<6x400xf32>
    tpu.vector_store %arg16[%c18_96, %c0_97], %98 {strides = array<i32>} : memref<150x400xf32, #tpu.memory_space<vmem>>, vector<6x400xf32>,
    %100 = vector.extract_strided_slice %91 {offsets = [0, 4], sizes = [6, 400], strides = [1, 1]} : vector<6x484xf32> to vector<6x400xf32>
    %c24_98 = arith.constant 24 : index
    %c0_99 = arith.constant 0 : index
    %101 = vector.load %arg16[%c24_98, %c0_99] : memref<150x400xf32, #tpu.memory_space<vmem>>, vector<6x400xf32>
    tpu.vector_store %arg16[%c24_98, %c0_99], %100 {strides = array<i32>} : memref<150x400xf32, #tpu.memory_space<vmem>>, vector<6x400xf32>,
    %102 = vector.extract_strided_slice %91 {offsets = [0, 20], sizes = [6, 400], strides = [1, 1]} : vector<6x484xf32> to vector<6x400xf32>
    %c30_100 = arith.constant 30 : index
    %c0_101 = arith.constant 0 : index
    %103 = vector.load %arg16[%c30_100, %c0_101] : memref<150x400xf32, #tpu.memory_space<vmem>>, vector<6x400xf32>
    tpu.vector_store %arg16[%c30_100, %c0_101], %102 {strides = array<i32>} : memref<150x400xf32, #tpu.memory_space<vmem>>, vector<6x400xf32>,
    %104 = vector.extract_strided_slice %91 {offsets = [0, 21], sizes = [6, 400], strides = [1, 1]} : vector<6x484xf32> to vector<6x400xf32>
    %c36_102 = arith.constant 36 : index
    %c0_103 = arith.constant 0 : index
    %105 = vector.load %arg16[%c36_102, %c0_103] : memref<150x400xf32, #tpu.memory_space<vmem>>, vector<6x400xf32>
    tpu.vector_store %arg16[%c36_102, %c0_103], %104 {strides = array<i32>} : memref<150x400xf32, #tpu.memory_space<vmem>>, vector<6x400xf32>,
    %106 = vector.extract_strided_slice %91 {offsets = [0, 22], sizes = [6, 400], strides = [1, 1]} : vector<6x484xf32> to vector<6x400xf32>
    %c42_104 = arith.constant 42 : index
    %c0_105 = arith.constant 0 : index
    %107 = vector.load %arg16[%c42_104, %c0_105] : memref<150x400xf32, #tpu.memory_space<vmem>>, vector<6x400xf32>
    tpu.vector_store %arg16[%c42_104, %c0_105], %106 {strides = array<i32>} : memref<150x400xf32, #tpu.memory_space<vmem>>, vector<6x400xf32>,
    %108 = vector.extract_strided_slice %91 {offsets = [0, 23], sizes = [6, 400], strides = [1, 1]} : vector<6x484xf32> to vector<6x400xf32>
    %c48_106 = arith.constant 48 : index
    %c0_107 = arith.constant 0 : index
    %109 = vector.load %arg16[%c48_106, %c0_107] : memref<150x400xf32, #tpu.memory_space<vmem>>, vector<6x400xf32>
    tpu.vector_store %arg16[%c48_106, %c0_107], %108 {strides = array<i32>} : memref<150x400xf32, #tpu.memory_space<vmem>>, vector<6x400xf32>,
    %110 = vector.extract_strided_slice %91 {offsets = [0, 24], sizes = [6, 400], strides = [1, 1]} : vector<6x484xf32> to vector<6x400xf32>
    %c54_108 = arith.constant 54 : index
    %c0_109 = arith.constant 0 : index
    %111 = vector.load %arg16[%c54_108, %c0_109] : memref<150x400xf32, #tpu.memory_space<vmem>>, vector<6x400xf32>
    tpu.vector_store %arg16[%c54_108, %c0_109], %110 {strides = array<i32>} : memref<150x400xf32, #tpu.memory_space<vmem>>, vector<6x400xf32>,
    %112 = vector.extract_strided_slice %91 {offsets = [0, 40], sizes = [6, 400], strides = [1, 1]} : vector<6x484xf32> to vector<6x400xf32>
    %c60_110 = arith.constant 60 : index
    %c0_111 = arith.constant 0 : index
    %113 = vector.load %arg16[%c60_110, %c0_111] : memref<150x400xf32, #tpu.memory_space<vmem>>, vector<6x400xf32>
    tpu.vector_store %arg16[%c60_110, %c0_111], %112 {strides = array<i32>} : memref<150x400xf32, #tpu.memory_space<vmem>>, vector<6x400xf32>,
    %114 = vector.extract_strided_slice %91 {offsets = [0, 41], sizes = [6, 400], strides = [1, 1]} : vector<6x484xf32> to vector<6x400xf32>
    %c66_112 = arith.constant 66 : index
    %c0_113 = arith.constant 0 : index
    %115 = vector.load %arg16[%c66_112, %c0_113] : memref<150x400xf32, #tpu.memory_space<vmem>>, vector<6x400xf32>
    tpu.vector_store %arg16[%c66_112, %c0_113], %114 {strides = array<i32>} : memref<150x400xf32, #tpu.memory_space<vmem>>, vector<6x400xf32>,
    %116 = vector.extract_strided_slice %91 {offsets = [0, 42], sizes = [6, 400], strides = [1, 1]} : vector<6x484xf32> to vector<6x400xf32>
    %c72_114 = arith.constant 72 : index
    %c0_115 = arith.constant 0 : index
    %117 = vector.load %arg16[%c72_114, %c0_115] : memref<150x400xf32, #tpu.memory_space<vmem>>, vector<6x400xf32>
    tpu.vector_store %arg16[%c72_114, %c0_115], %116 {strides = array<i32>} : memref<150x400xf32, #tpu.memory_space<vmem>>, vector<6x400xf32>,
    %118 = vector.extract_strided_slice %91 {offsets = [0, 43], sizes = [6, 400], strides = [1, 1]} : vector<6x484xf32> to vector<6x400xf32>
    %c78 = arith.constant 78 : index
    %c0_116 = arith.constant 0 : index
    %119 = vector.load %arg16[%c78, %c0_116] : memref<150x400xf32, #tpu.memory_space<vmem>>, vector<6x400xf32>
    tpu.vector_store %arg16[%c78, %c0_116], %118 {strides = array<i32>} : memref<150x400xf32, #tpu.memory_space<vmem>>, vector<6x400xf32>,
    %120 = vector.extract_strided_slice %91 {offsets = [0, 44], sizes = [6, 400], strides = [1, 1]} : vector<6x484xf32> to vector<6x400xf32>
    %c84 = arith.constant 84 : index
    %c0_117 = arith.constant 0 : index
    %121 = vector.load %arg16[%c84, %c0_117] : memref<150x400xf32, #tpu.memory_space<vmem>>, vector<6x400xf32>
    tpu.vector_store %arg16[%c84, %c0_117], %120 {strides = array<i32>} : memref<150x400xf32, #tpu.memory_space<vmem>>, vector<6x400xf32>,
    %122 = vector.extract_strided_slice %91 {offsets = [0, 60], sizes = [6, 400], strides = [1, 1]} : vector<6x484xf32> to vector<6x400xf32>
    %c90 = arith.constant 90 : index
    %c0_118 = arith.constant 0 : index
    %123 = vector.load %arg16[%c90, %c0_118] : memref<150x400xf32, #tpu.memory_space<vmem>>, vector<6x400xf32>
    tpu.vector_store %arg16[%c90, %c0_118], %122 {strides = array<i32>} : memref<150x400xf32, #tpu.memory_space<vmem>>, vector<6x400xf32>,
    %124 = vector.extract_strided_slice %91 {offsets = [0, 61], sizes = [6, 400], strides = [1, 1]} : vector<6x484xf32> to vector<6x400xf32>
    %c96 = arith.constant 96 : index
    %c0_119 = arith.constant 0 : index
    %125 = vector.load %arg16[%c96, %c0_119] : memref<150x400xf32, #tpu.memory_space<vmem>>, vector<6x400xf32>
    tpu.vector_store %arg16[%c96, %c0_119], %124 {strides = array<i32>} : memref<150x400xf32, #tpu.memory_space<vmem>>, vector<6x400xf32>,
    %126 = vector.extract_strided_slice %91 {offsets = [0, 62], sizes = [6, 400], strides = [1, 1]} : vector<6x484xf32> to vector<6x400xf32>
    %c102 = arith.constant 102 : index
    %c0_120 = arith.constant 0 : index
    %127 = vector.load %arg16[%c102, %c0_120] : memref<150x400xf32, #tpu.memory_space<vmem>>, vector<6x400xf32>
    tpu.vector_store %arg16[%c102, %c0_120], %126 {strides = array<i32>} : memref<150x400xf32, #tpu.memory_space<vmem>>, vector<6x400xf32>,
    %128 = vector.extract_strided_slice %91 {offsets = [0, 63], sizes = [6, 400], strides = [1, 1]} : vector<6x484xf32> to vector<6x400xf32>
    %c108_121 = arith.constant 108 : index
    %c0_122 = arith.constant 0 : index
    %129 = vector.load %arg16[%c108_121, %c0_122] : memref<150x400xf32, #tpu.memory_space<vmem>>, vector<6x400xf32>
    tpu.vector_store %arg16[%c108_121, %c0_122], %128 {strides = array<i32>} : memref<150x400xf32, #tpu.memory_space<vmem>>, vector<6x400xf32>,
    %130 = vector.extract_strided_slice %91 {offsets = [0, 64], sizes = [6, 400], strides = [1, 1]} : vector<6x484xf32> to vector<6x400xf32>
    %c114 = arith.constant 114 : index
    %c0_123 = arith.constant 0 : index
    %131 = vector.load %arg16[%c114, %c0_123] : memref<150x400xf32, #tpu.memory_space<vmem>>, vector<6x400xf32>
    tpu.vector_store %arg16[%c114, %c0_123], %130 {strides = array<i32>} : memref<150x400xf32, #tpu.memory_space<vmem>>, vector<6x400xf32>,
    %132 = vector.extract_strided_slice %91 {offsets = [0, 80], sizes = [6, 400], strides = [1, 1]} : vector<6x484xf32> to vector<6x400xf32>
    %c120 = arith.constant 120 : index
    %c0_124 = arith.constant 0 : index
    %133 = vector.load %arg16[%c120, %c0_124] : memref<150x400xf32, #tpu.memory_space<vmem>>, vector<6x400xf32>
    tpu.vector_store %arg16[%c120, %c0_124], %132 {strides = array<i32>} : memref<150x400xf32, #tpu.memory_space<vmem>>, vector<6x400xf32>,
    %134 = vector.extract_strided_slice %91 {offsets = [0, 81], sizes = [6, 400], strides = [1, 1]} : vector<6x484xf32> to vector<6x400xf32>
    %c126 = arith.constant 126 : index
    %c0_125 = arith.constant 0 : index
    %135 = vector.load %arg16[%c126, %c0_125] : memref<150x400xf32, #tpu.memory_space<vmem>>, vector<6x400xf32>
    tpu.vector_store %arg16[%c126, %c0_125], %134 {strides = array<i32>} : memref<150x400xf32, #tpu.memory_space<vmem>>, vector<6x400xf32>,
    %136 = vector.extract_strided_slice %91 {offsets = [0, 82], sizes = [6, 400], strides = [1, 1]} : vector<6x484xf32> to vector<6x400xf32>
    %c132 = arith.constant 132 : index
    %c0_126 = arith.constant 0 : index
    %137 = vector.load %arg16[%c132, %c0_126] : memref<150x400xf32, #tpu.memory_space<vmem>>, vector<6x400xf32>
    tpu.vector_store %arg16[%c132, %c0_126], %136 {strides = array<i32>} : memref<150x400xf32, #tpu.memory_space<vmem>>, vector<6x400xf32>,
    %138 = vector.extract_strided_slice %91 {offsets = [0, 83], sizes = [6, 400], strides = [1, 1]} : vector<6x484xf32> to vector<6x400xf32>
    %c138 = arith.constant 138 : index
    %c0_127 = arith.constant 0 : index
    %139 = vector.load %arg16[%c138, %c0_127] : memref<150x400xf32, #tpu.memory_space<vmem>>, vector<6x400xf32>
    tpu.vector_store %arg16[%c138, %c0_127], %138 {strides = array<i32>} : memref<150x400xf32, #tpu.memory_space<vmem>>, vector<6x400xf32>,
    %140 = vector.extract_strided_slice %91 {offsets = [0, 84], sizes = [6, 400], strides = [1, 1]} : vector<6x484xf32> to vector<6x400xf32>
    %c144_128 = arith.constant 144 : index
    %c0_129 = arith.constant 0 : index
    %141 = vector.load %arg16[%c144_128, %c0_129] : memref<150x400xf32, #tpu.memory_space<vmem>>, vector<6x400xf32>
    tpu.vector_store %arg16[%c144_128, %c0_129], %140 {strides = array<i32>} : memref<150x400xf32, #tpu.memory_space<vmem>>, vector<6x400xf32>,
    %c0_130 = arith.constant 0 : index
    %c0_131 = arith.constant 0 : index
    %142 = vector.load %arg5[%c0_130, %c0_131] : memref<16x150xf32, #tpu.memory_space<vmem>>, vector<16x150xf32>
    %c0_132 = arith.constant 0 : index
    %c0_133 = arith.constant 0 : index
    %143 = vector.load %arg16[%c0_132, %c0_133] : memref<150x400xf32, #tpu.memory_space<vmem>>, vector<150x400xf32>
    %cst_134 = arith.constant dense<0.000000e+00> : vector<16x400xf32>
    %144 = tpu.matmul %142, %143, %cst_134 {dimension_numbers = #tpu.dot_dimension_numbers<[1], [0], [0], [1], [0, 0, 1, 1], [], []>} : vector<16x150xf32>, vector<150x400xf32>, vector<16x400xf32> -> vector<16x400xf32>
    %c0_135 = arith.constant 0 : index
    %c0_136 = arith.constant 0 : index
    %145 = vector.load %arg6[%c0_135, %c0_136] : memref<16x1xf32, #tpu.memory_space<vmem>>, vector<16x1xf32>
    %146 = vector.broadcast %145 : vector<16x1xf32> to vector<16x400xf32>
    %147 = arith.addf %144, %146 : vector<16x400xf32>
    %cst_137 = arith.constant 0.000000e+00 : f32
    %148 = vector.broadcast %cst_137 : f32 to vector<16x400xf32>
    %149 = arith.maximumf %147, %148 : vector<16x400xf32>
    %150 = vector.extract_strided_slice %149 {offsets = [0, 0], sizes = [16, 379], strides = [1, 1]} : vector<16x400xf32> to vector<16x379xf32>
    %151 = vector.extract_strided_slice %149 {offsets = [0, 1], sizes = [16, 379], strides = [1, 1]} : vector<16x400xf32> to vector<16x379xf32>
    %152 = arith.maximumf %150, %151 : vector<16x379xf32>
    %153 = vector.extract_strided_slice %149 {offsets = [0, 20], sizes = [16, 379], strides = [1, 1]} : vector<16x400xf32> to vector<16x379xf32>
    %154 = vector.extract_strided_slice %149 {offsets = [0, 21], sizes = [16, 379], strides = [1, 1]} : vector<16x400xf32> to vector<16x379xf32>
    %155 = arith.maximumf %153, %154 : vector<16x379xf32>
    %156 = arith.maximumf %152, %155 : vector<16x379xf32>
    %c0_138 = arith.constant 0 : index
    %c0_139 = arith.constant 0 : index
    %157 = vector.load %arg7[%c0_138, %c0_139] : memref<379x64xf32, #tpu.memory_space<vmem>>, vector<379x64xf32>
    %cst_140 = arith.constant dense<0.000000e+00> : vector<16x64xf32>
    %158 = tpu.matmul %156, %157, %cst_140 {dimension_numbers = #tpu.dot_dimension_numbers<[1], [0], [0], [1], [0, 0, 1, 1], [], []>} : vector<16x379xf32>, vector<379x64xf32>, vector<16x64xf32> -> vector<16x64xf32>
    %c0_141 = arith.constant 0 : index
    %c0_142 = arith.constant 0 : index
    %159 = vector.load %arg9[%c0_141, %c0_142] : memref<1x120xf32, #tpu.memory_space<vmem>>, vector<1x120xf32>
    %160 = vector.extract_strided_slice %158 {offsets = [0, 0], sizes = [1, 64], strides = [1, 1]} : vector<16x64xf32> to vector<1x64xf32>
    %c0_143 = arith.constant 0 : index
    %c0_144 = arith.constant 0 : index
    %c0_145 = arith.constant 0 : index
    %161 = vector.load %arg8[%c0_143, %c0_144, %c0_145] : memref<16x64x120xf32, #tpu.memory_space<vmem>>, vector<1x64x120xf32>
    %162 = vector.shape_cast %161 : vector<1x64x120xf32> to vector<64x120xf32>
    %cst_146 = arith.constant dense<0.000000e+00> : vector<1x120xf32>
    %163 = tpu.matmul %160, %162, %cst_146 {dimension_numbers = #tpu.dot_dimension_numbers<[1], [0], [0], [1], [0, 0, 1, 1], [], []>} : vector<1x64xf32>, vector<64x120xf32>, vector<1x120xf32> -> vector<1x120xf32>
    %164 = arith.addf %159, %163 : vector<1x120xf32>
    %165 = vector.extract_strided_slice %158 {offsets = [1, 0], sizes = [1, 64], strides = [1, 1]} : vector<16x64xf32> to vector<1x64xf32>
    %c1_147 = arith.constant 1 : index
    %c0_148 = arith.constant 0 : index
    %c0_149 = arith.constant 0 : index
    %166 = vector.load %arg8[%c1_147, %c0_148, %c0_149] : memref<16x64x120xf32, #tpu.memory_space<vmem>>, vector<1x64x120xf32>
    %167 = vector.shape_cast %166 : vector<1x64x120xf32> to vector<64x120xf32>
    %cst_150 = arith.constant dense<0.000000e+00> : vector<1x120xf32>
    %168 = tpu.matmul %165, %167, %cst_150 {dimension_numbers = #tpu.dot_dimension_numbers<[1], [0], [0], [1], [0, 0, 1, 1], [], []>} : vector<1x64xf32>, vector<64x120xf32>, vector<1x120xf32> -> vector<1x120xf32>
    %169 = arith.addf %164, %168 : vector<1x120xf32>
    %170 = vector.extract_strided_slice %158 {offsets = [2, 0], sizes = [1, 64], strides = [1, 1]} : vector<16x64xf32> to vector<1x64xf32>
    %c2_151 = arith.constant 2 : index
    %c0_152 = arith.constant 0 : index
    %c0_153 = arith.constant 0 : index
    %171 = vector.load %arg8[%c2_151, %c0_152, %c0_153] : memref<16x64x120xf32, #tpu.memory_space<vmem>>, vector<1x64x120xf32>
    %172 = vector.shape_cast %171 : vector<1x64x120xf32> to vector<64x120xf32>
    %cst_154 = arith.constant dense<0.000000e+00> : vector<1x120xf32>
    %173 = tpu.matmul %170, %172, %cst_154 {dimension_numbers = #tpu.dot_dimension_numbers<[1], [0], [0], [1], [0, 0, 1, 1], [], []>} : vector<1x64xf32>, vector<64x120xf32>, vector<1x120xf32> -> vector<1x120xf32>
    %174 = arith.addf %169, %173 : vector<1x120xf32>
    %175 = vector.extract_strided_slice %158 {offsets = [3, 0], sizes = [1, 64], strides = [1, 1]} : vector<16x64xf32> to vector<1x64xf32>
    %c3_155 = arith.constant 3 : index
    %c0_156 = arith.constant 0 : index
    %c0_157 = arith.constant 0 : index
    %176 = vector.load %arg8[%c3_155, %c0_156, %c0_157] : memref<16x64x120xf32, #tpu.memory_space<vmem>>, vector<1x64x120xf32>
    %177 = vector.shape_cast %176 : vector<1x64x120xf32> to vector<64x120xf32>
    %cst_158 = arith.constant dense<0.000000e+00> : vector<1x120xf32>
    %178 = tpu.matmul %175, %177, %cst_158 {dimension_numbers = #tpu.dot_dimension_numbers<[1], [0], [0], [1], [0, 0, 1, 1], [], []>} : vector<1x64xf32>, vector<64x120xf32>, vector<1x120xf32> -> vector<1x120xf32>
    %179 = arith.addf %174, %178 : vector<1x120xf32>
    %180 = vector.extract_strided_slice %158 {offsets = [4, 0], sizes = [1, 64], strides = [1, 1]} : vector<16x64xf32> to vector<1x64xf32>
    %c4_159 = arith.constant 4 : index
    %c0_160 = arith.constant 0 : index
    %c0_161 = arith.constant 0 : index
    %181 = vector.load %arg8[%c4_159, %c0_160, %c0_161] : memref<16x64x120xf32, #tpu.memory_space<vmem>>, vector<1x64x120xf32>
    %182 = vector.shape_cast %181 : vector<1x64x120xf32> to vector<64x120xf32>
    %cst_162 = arith.constant dense<0.000000e+00> : vector<1x120xf32>
    %183 = tpu.matmul %180, %182, %cst_162 {dimension_numbers = #tpu.dot_dimension_numbers<[1], [0], [0], [1], [0, 0, 1, 1], [], []>} : vector<1x64xf32>, vector<64x120xf32>, vector<1x120xf32> -> vector<1x120xf32>
    %184 = arith.addf %179, %183 : vector<1x120xf32>
    %185 = vector.extract_strided_slice %158 {offsets = [5, 0], sizes = [1, 64], strides = [1, 1]} : vector<16x64xf32> to vector<1x64xf32>
    %c5 = arith.constant 5 : index
    %c0_163 = arith.constant 0 : index
    %c0_164 = arith.constant 0 : index
    %186 = vector.load %arg8[%c5, %c0_163, %c0_164] : memref<16x64x120xf32, #tpu.memory_space<vmem>>, vector<1x64x120xf32>
    %187 = vector.shape_cast %186 : vector<1x64x120xf32> to vector<64x120xf32>
    %cst_165 = arith.constant dense<0.000000e+00> : vector<1x120xf32>
    %188 = tpu.matmul %185, %187, %cst_165 {dimension_numbers = #tpu.dot_dimension_numbers<[1], [0], [0], [1], [0, 0, 1, 1], [], []>} : vector<1x64xf32>, vector<64x120xf32>, vector<1x120xf32> -> vector<1x120xf32>
    %189 = arith.addf %184, %188 : vector<1x120xf32>
    %190 = vector.extract_strided_slice %158 {offsets = [6, 0], sizes = [1, 64], strides = [1, 1]} : vector<16x64xf32> to vector<1x64xf32>
    %c6_166 = arith.constant 6 : index
    %c0_167 = arith.constant 0 : index
    %c0_168 = arith.constant 0 : index
    %191 = vector.load %arg8[%c6_166, %c0_167, %c0_168] : memref<16x64x120xf32, #tpu.memory_space<vmem>>, vector<1x64x120xf32>
    %192 = vector.shape_cast %191 : vector<1x64x120xf32> to vector<64x120xf32>
    %cst_169 = arith.constant dense<0.000000e+00> : vector<1x120xf32>
    %193 = tpu.matmul %190, %192, %cst_169 {dimension_numbers = #tpu.dot_dimension_numbers<[1], [0], [0], [1], [0, 0, 1, 1], [], []>} : vector<1x64xf32>, vector<64x120xf32>, vector<1x120xf32> -> vector<1x120xf32>
    %194 = arith.addf %189, %193 : vector<1x120xf32>
    %195 = vector.extract_strided_slice %158 {offsets = [7, 0], sizes = [1, 64], strides = [1, 1]} : vector<16x64xf32> to vector<1x64xf32>
    %c7 = arith.constant 7 : index
    %c0_170 = arith.constant 0 : index
    %c0_171 = arith.constant 0 : index
    %196 = vector.load %arg8[%c7, %c0_170, %c0_171] : memref<16x64x120xf32, #tpu.memory_space<vmem>>, vector<1x64x120xf32>
    %197 = vector.shape_cast %196 : vector<1x64x120xf32> to vector<64x120xf32>
    %cst_172 = arith.constant dense<0.000000e+00> : vector<1x120xf32>
    %198 = tpu.matmul %195, %197, %cst_172 {dimension_numbers = #tpu.dot_dimension_numbers<[1], [0], [0], [1], [0, 0, 1, 1], [], []>} : vector<1x64xf32>, vector<64x120xf32>, vector<1x120xf32> -> vector<1x120xf32>
    %199 = arith.addf %194, %198 : vector<1x120xf32>
    %200 = vector.extract_strided_slice %158 {offsets = [8, 0], sizes = [1, 64], strides = [1, 1]} : vector<16x64xf32> to vector<1x64xf32>
    %c8 = arith.constant 8 : index
    %c0_173 = arith.constant 0 : index
    %c0_174 = arith.constant 0 : index
    %201 = vector.load %arg8[%c8, %c0_173, %c0_174] : memref<16x64x120xf32, #tpu.memory_space<vmem>>, vector<1x64x120xf32>
    %202 = vector.shape_cast %201 : vector<1x64x120xf32> to vector<64x120xf32>
    %cst_175 = arith.constant dense<0.000000e+00> : vector<1x120xf32>
    %203 = tpu.matmul %200, %202, %cst_175 {dimension_numbers = #tpu.dot_dimension_numbers<[1], [0], [0], [1], [0, 0, 1, 1], [], []>} : vector<1x64xf32>, vector<64x120xf32>, vector<1x120xf32> -> vector<1x120xf32>
    %204 = arith.addf %199, %203 : vector<1x120xf32>
    %205 = vector.extract_strided_slice %158 {offsets = [9, 0], sizes = [1, 64], strides = [1, 1]} : vector<16x64xf32> to vector<1x64xf32>
    %c9_176 = arith.constant 9 : index
    %c0_177 = arith.constant 0 : index
    %c0_178 = arith.constant 0 : index
    %206 = vector.load %arg8[%c9_176, %c0_177, %c0_178] : memref<16x64x120xf32, #tpu.memory_space<vmem>>, vector<1x64x120xf32>
    %207 = vector.shape_cast %206 : vector<1x64x120xf32> to vector<64x120xf32>
    %cst_179 = arith.constant dense<0.000000e+00> : vector<1x120xf32>
    %208 = tpu.matmul %205, %207, %cst_179 {dimension_numbers = #tpu.dot_dimension_numbers<[1], [0], [0], [1], [0, 0, 1, 1], [], []>} : vector<1x64xf32>, vector<64x120xf32>, vector<1x120xf32> -> vector<1x120xf32>
    %209 = arith.addf %204, %208 : vector<1x120xf32>
    %210 = vector.extract_strided_slice %158 {offsets = [10, 0], sizes = [1, 64], strides = [1, 1]} : vector<16x64xf32> to vector<1x64xf32>
    %c10 = arith.constant 10 : index
    %c0_180 = arith.constant 0 : index
    %c0_181 = arith.constant 0 : index
    %211 = vector.load %arg8[%c10, %c0_180, %c0_181] : memref<16x64x120xf32, #tpu.memory_space<vmem>>, vector<1x64x120xf32>
    %212 = vector.shape_cast %211 : vector<1x64x120xf32> to vector<64x120xf32>
    %cst_182 = arith.constant dense<0.000000e+00> : vector<1x120xf32>
    %213 = tpu.matmul %210, %212, %cst_182 {dimension_numbers = #tpu.dot_dimension_numbers<[1], [0], [0], [1], [0, 0, 1, 1], [], []>} : vector<1x64xf32>, vector<64x120xf32>, vector<1x120xf32> -> vector<1x120xf32>
    %214 = arith.addf %209, %213 : vector<1x120xf32>
    %215 = vector.extract_strided_slice %158 {offsets = [11, 0], sizes = [1, 64], strides = [1, 1]} : vector<16x64xf32> to vector<1x64xf32>
    %c11 = arith.constant 11 : index
    %c0_183 = arith.constant 0 : index
    %c0_184 = arith.constant 0 : index
    %216 = vector.load %arg8[%c11, %c0_183, %c0_184] : memref<16x64x120xf32, #tpu.memory_space<vmem>>, vector<1x64x120xf32>
    %217 = vector.shape_cast %216 : vector<1x64x120xf32> to vector<64x120xf32>
    %cst_185 = arith.constant dense<0.000000e+00> : vector<1x120xf32>
    %218 = tpu.matmul %215, %217, %cst_185 {dimension_numbers = #tpu.dot_dimension_numbers<[1], [0], [0], [1], [0, 0, 1, 1], [], []>} : vector<1x64xf32>, vector<64x120xf32>, vector<1x120xf32> -> vector<1x120xf32>
    %219 = arith.addf %214, %218 : vector<1x120xf32>
    %220 = vector.extract_strided_slice %158 {offsets = [12, 0], sizes = [1, 64], strides = [1, 1]} : vector<16x64xf32> to vector<1x64xf32>
    %c12_186 = arith.constant 12 : index
    %c0_187 = arith.constant 0 : index
    %c0_188 = arith.constant 0 : index
    %221 = vector.load %arg8[%c12_186, %c0_187, %c0_188] : memref<16x64x120xf32, #tpu.memory_space<vmem>>, vector<1x64x120xf32>
    %222 = vector.shape_cast %221 : vector<1x64x120xf32> to vector<64x120xf32>
    %cst_189 = arith.constant dense<0.000000e+00> : vector<1x120xf32>
    %223 = tpu.matmul %220, %222, %cst_189 {dimension_numbers = #tpu.dot_dimension_numbers<[1], [0], [0], [1], [0, 0, 1, 1], [], []>} : vector<1x64xf32>, vector<64x120xf32>, vector<1x120xf32> -> vector<1x120xf32>
    %224 = arith.addf %219, %223 : vector<1x120xf32>
    %225 = vector.extract_strided_slice %158 {offsets = [13, 0], sizes = [1, 64], strides = [1, 1]} : vector<16x64xf32> to vector<1x64xf32>
    %c13 = arith.constant 13 : index
    %c0_190 = arith.constant 0 : index
    %c0_191 = arith.constant 0 : index
    %226 = vector.load %arg8[%c13, %c0_190, %c0_191] : memref<16x64x120xf32, #tpu.memory_space<vmem>>, vector<1x64x120xf32>
    %227 = vector.shape_cast %226 : vector<1x64x120xf32> to vector<64x120xf32>
    %cst_192 = arith.constant dense<0.000000e+00> : vector<1x120xf32>
    %228 = tpu.matmul %225, %227, %cst_192 {dimension_numbers = #tpu.dot_dimension_numbers<[1], [0], [0], [1], [0, 0, 1, 1], [], []>} : vector<1x64xf32>, vector<64x120xf32>, vector<1x120xf32> -> vector<1x120xf32>
    %229 = arith.addf %224, %228 : vector<1x120xf32>
    %230 = vector.extract_strided_slice %158 {offsets = [14, 0], sizes = [1, 64], strides = [1, 1]} : vector<16x64xf32> to vector<1x64xf32>
    %c14 = arith.constant 14 : index
    %c0_193 = arith.constant 0 : index
    %c0_194 = arith.constant 0 : index
    %231 = vector.load %arg8[%c14, %c0_193, %c0_194] : memref<16x64x120xf32, #tpu.memory_space<vmem>>, vector<1x64x120xf32>
    %232 = vector.shape_cast %231 : vector<1x64x120xf32> to vector<64x120xf32>
    %cst_195 = arith.constant dense<0.000000e+00> : vector<1x120xf32>
    %233 = tpu.matmul %230, %232, %cst_195 {dimension_numbers = #tpu.dot_dimension_numbers<[1], [0], [0], [1], [0, 0, 1, 1], [], []>} : vector<1x64xf32>, vector<64x120xf32>, vector<1x120xf32> -> vector<1x120xf32>
    %234 = arith.addf %229, %233 : vector<1x120xf32>
    %235 = vector.extract_strided_slice %158 {offsets = [15, 0], sizes = [1, 64], strides = [1, 1]} : vector<16x64xf32> to vector<1x64xf32>
    %c15_196 = arith.constant 15 : index
    %c0_197 = arith.constant 0 : index
    %c0_198 = arith.constant 0 : index
    %236 = vector.load %arg8[%c15_196, %c0_197, %c0_198] : memref<16x64x120xf32, #tpu.memory_space<vmem>>, vector<1x64x120xf32>
    %237 = vector.shape_cast %236 : vector<1x64x120xf32> to vector<64x120xf32>
    %cst_199 = arith.constant dense<0.000000e+00> : vector<1x120xf32>
    %238 = tpu.matmul %235, %237, %cst_199 {dimension_numbers = #tpu.dot_dimension_numbers<[1], [0], [0], [1], [0, 0, 1, 1], [], []>} : vector<1x64xf32>, vector<64x120xf32>, vector<1x120xf32> -> vector<1x120xf32>
    %239 = arith.addf %234, %238 : vector<1x120xf32>
    %cst_200 = arith.constant 0.000000e+00 : f32
    %240 = vector.broadcast %cst_200 : f32 to vector<1x120xf32>
    %241 = arith.maximumf %239, %240 : vector<1x120xf32>
    %c0_201 = arith.constant 0 : index
    %c0_202 = arith.constant 0 : index
    %242 = vector.load %arg10[%c0_201, %c0_202] : memref<120x84xf32, #tpu.memory_space<vmem>>, vector<120x84xf32>
    %cst_203 = arith.constant dense<0.000000e+00> : vector<1x84xf32>
    %243 = tpu.matmul %241, %242, %cst_203 {dimension_numbers = #tpu.dot_dimension_numbers<[1], [0], [0], [1], [0, 0, 1, 1], [], []>} : vector<1x120xf32>, vector<120x84xf32>, vector<1x84xf32> -> vector<1x84xf32>
    %c0_204 = arith.constant 0 : index
    %c0_205 = arith.constant 0 : index
    %244 = vector.load %arg11[%c0_204, %c0_205] : memref<1x84xf32, #tpu.memory_space<vmem>>, vector<1x84xf32>
    %245 = arith.addf %243, %244 : vector<1x84xf32>
    %cst_206 = arith.constant 0.000000e+00 : f32
    %246 = vector.broadcast %cst_206 : f32 to vector<1x84xf32>
    %247 = arith.maximumf %245, %246 : vector<1x84xf32>
    %c0_207 = arith.constant 0 : index
    %c0_208 = arith.constant 0 : index
    %248 = vector.load %arg12[%c0_207, %c0_208] : memref<84x10xf32, #tpu.memory_space<vmem>>, vector<84x10xf32>
    %cst_209 = arith.constant dense<0.000000e+00> : vector<1x10xf32>
    %249 = tpu.matmul %247, %248, %cst_209 {dimension_numbers = #tpu.dot_dimension_numbers<[1], [0], [0], [1], [0, 0, 1, 1], [], []>} : vector<1x84xf32>, vector<84x10xf32>, vector<1x10xf32> -> vector<1x10xf32>
    %c0_210 = arith.constant 0 : index
    %c0_211 = arith.constant 0 : index
    %250 = vector.load %arg13[%c0_210, %c0_211] : memref<1x10xf32, #tpu.memory_space<vmem>>, vector<1x10xf32>
    %251 = arith.addf %249, %250 : vector<1x10xf32>
    %c0_212 = arith.constant 0 : index
    %c0_213 = arith.constant 0 : index
    %c0_214 = arith.constant 0 : index
    %252 = vector.load %arg14[%c0_212, %c0_213, %c0_214] : memref<1x1x10xf32, #tpu.memory_space<vmem>>, vector<1x1x10xf32>
    %253 = vector.shape_cast %252 : vector<1x1x10xf32> to vector<1x10xf32>
    %254 = vector.shape_cast %251 : vector<1x10xf32> to vector<1x1x10xf32>
    tpu.vector_store %arg14[%c0_212, %c0_213, %c0_214], %254 {strides = array<i32>} : memref<1x1x10xf32, #tpu.memory_space<vmem>>, vector<1x1x10xf32>,
    return
  }
  func.func @transform_0(%arg0: i32) -> (i32, i32, i32) {
    %c0_i32 = arith.constant 0 : i32
    %c0_i32_0 = arith.constant 0 : i32
    %c0_i32_1 = arith.constant 0 : i32
    return %arg0, %c0_i32, %c0_i32_0 : i32, i32, i32
  }
  func.func @transform_1(%arg0: i32) -> (i32, i32) {
    %c0_i32 = arith.constant 0 : i32
    %c0_i32_0 = arith.constant 0 : i32
    %c0_i32_1 = arith.constant 0 : i32
    return %c0_i32, %c0_i32_0 : i32, i32
  }
  func.func @transform_2(%arg0: i32) -> (i32, i32) {
    %c0_i32 = arith.constant 0 : i32
    %c0_i32_0 = arith.constant 0 : i32
    %c0_i32_1 = arith.constant 0 : i32
    return %c0_i32, %c0_i32_0 : i32, i32
  }
  func.func @transform_3(%arg0: i32) -> (i32, i32) {
    %c0_i32 = arith.constant 0 : i32
    %c0_i32_0 = arith.constant 0 : i32
    %c0_i32_1 = arith.constant 0 : i32
    return %c0_i32, %c0_i32_0 : i32, i32
  }
  func.func @transform_4(%arg0: i32) -> (i32, i32) {
    %c0_i32 = arith.constant 0 : i32
    %c0_i32_0 = arith.constant 0 : i32
    %c0_i32_1 = arith.constant 0 : i32
    return %c0_i32, %c0_i32_0 : i32, i32
  }
  func.func @transform_5(%arg0: i32) -> (i32, i32) {
    %c0_i32 = arith.constant 0 : i32
    %c0_i32_0 = arith.constant 0 : i32
    %c0_i32_1 = arith.constant 0 : i32
    return %c0_i32, %c0_i32_0 : i32, i32
  }
  func.func @transform_6(%arg0: i32) -> (i32, i32) {
    %c0_i32 = arith.constant 0 : i32
    %c0_i32_0 = arith.constant 0 : i32
    %c0_i32_1 = arith.constant 0 : i32
    return %c0_i32, %c0_i32_0 : i32, i32
  }
  func.func @transform_7(%arg0: i32) -> (i32, i32, i32) {
    %c0_i32 = arith.constant 0 : i32
    %c0_i32_0 = arith.constant 0 : i32
    %c0_i32_1 = arith.constant 0 : i32
    %c0_i32_2 = arith.constant 0 : i32
    return %c0_i32, %c0_i32_0, %c0_i32_1 : i32, i32, i32
  }
  func.func @transform_8(%arg0: i32) -> (i32, i32) {
    %c0_i32 = arith.constant 0 : i32
    %c0_i32_0 = arith.constant 0 : i32
    %c0_i32_1 = arith.constant 0 : i32
    return %c0_i32, %c0_i32_0 : i32, i32
  }
  func.func @transform_9(%arg0: i32) -> (i32, i32) {
    %c0_i32 = arith.constant 0 : i32
    %c0_i32_0 = arith.constant 0 : i32
    %c0_i32_1 = arith.constant 0 : i32
    return %c0_i32, %c0_i32_0 : i32, i32
  }
  func.func @transform_10(%arg0: i32) -> (i32, i32) {
    %c0_i32 = arith.constant 0 : i32
    %c0_i32_0 = arith.constant 0 : i32
    %c0_i32_1 = arith.constant 0 : i32
    return %c0_i32, %c0_i32_0 : i32, i32
  }
  func.func @transform_11(%arg0: i32) -> (i32, i32) {
    %c0_i32 = arith.constant 0 : i32
    %c0_i32_0 = arith.constant 0 : i32
    %c0_i32_1 = arith.constant 0 : i32
    return %c0_i32, %c0_i32_0 : i32, i32
  }
  func.func @transform_12(%arg0: i32) -> (i32, i32) {
    %c0_i32 = arith.constant 0 : i32
    %c0_i32_0 = arith.constant 0 : i32
    %c0_i32_1 = arith.constant 0 : i32
    return %c0_i32, %c0_i32_0 : i32, i32
  }
  func.func @transform_13(%arg0: i32) -> (i32, i32, i32) {
    %c0_i32 = arith.constant 0 : i32
    %c0_i32_0 = arith.constant 0 : i32
    %c0_i32_1 = arith.constant 0 : i32
    return %arg0, %c0_i32, %c0_i32_0 : i32, i32, i32
  }
}

</mosaic_0001>

<llo_original>
// kernel: net_forward.1
$region0: #{net_forward.1}
  #allocation0 [shape = 'u32[]', space=smem, size = 0x4, offset = 0x4, fixed_abs, tag = 'smem constant byte address 0x4 - core index']
  #allocation1 [shape = 'u32[72,128]{1,0:T(1,128)}', space=vmem, size = 0x9000, scoped, tag = 'internal scratch']
  #allocation2 [shape = 'f32[75,1296]{1,0:T(8,128)}', space=vmem, size = 0x6e000, scoped, tag = 'scratch operand']
  #allocation3 [shape = 'f32[150,400]{1,0:T(8,128)}', space=vmem, size = 0x4c000, scoped, tag = 'scratch operand']
  %s0 = inlined_call_operand.vmem [shape: f32[2,3,1476], index: 0, kind: input, shape index: {}]
  %s1 = inlined_call_operand.vmem [shape: f32[6,75], index: 1, kind: input, shape index: {}]
  %s2 = inlined_call_operand.vmem [shape: f32[6,1], index: 2, kind: input, shape index: {}]
  %s3 = inlined_call_operand.hbm [shape: f32[1259,484], index: 3, kind: input, shape index: {}]
  %s4 = inlined_call_operand.vmem [shape: f32[16,150], index: 4, kind: input, shape index: {}]
  %s5 = inlined_call_operand.vmem [shape: f32[16,1], index: 5, kind: input, shape index: {}]
  %s6 = inlined_call_operand.hbm [shape: f32[379,64], index: 6, kind: input, shape index: {}]
  %s7 = inlined_call_operand.vmem [shape: f32[16,64,120], index: 7, kind: input, shape index: {}]
  %s8 = inlined_call_operand.hbm [shape: f32[1,120], index: 8, kind: input, shape index: {}]
  %s9 = inlined_call_operand.vmem [shape: f32[120,84], index: 9, kind: input, shape index: {}]
  %s10 = inlined_call_operand.hbm [shape: f32[1,84], index: 10, kind: input, shape index: {}]
  %s11 = inlined_call_operand.vmem [shape: f32[84,10], index: 11, kind: input, shape index: {}]
  %s12 = inlined_call_operand.hbm [shape: f32[1,10], index: 12, kind: input, shape index: {}]
  %s13 = inlined_call_operand.hbm [shape: f32[2,1,10], index: 13, kind: output, shape index: {}]
  %s14 = sld [smem:[#allocation0]]
  $region105: #{net_forward.1} parent=0
    _
  %s16 = ssub.s32 1, %s14
  %s17 = scalar_select 0, %s16, %s14
  $region1: #{net_forward.1} parent=0
    #allocation4 [shape = 'u8[2588672]{0}', space=vmem, size = 0x278000, scoped, tag = 'input window, operand 3, single buffered']
    #allocation5 [shape = 's32[2]{0}', space=sflag, size = 0x8, scoped, tag = 'scoped memory for net_forward.1']
    #allocation6 [shape = 's32[2]{0}', space=sflag, size = 0x8, scoped, tag = 'scoped memory for net_forward.1']
    #allocation7 [shape = 'u8[196608]{0}', space=vmem, size = 0x30000, scoped, tag = 'input window, operand 6, single buffered']
    #allocation8 [shape = 's32[1]{0}', space=sflag, size = 0x4, scoped, tag = 'scoped memory for net_forward.1']
    #allocation9 [shape = 'u8[512]{0}', space=vmem, size = 0x400, scoped, tag = 'input window, operand 8, single buffered']
    #allocation10 [shape = 'u8[512]{0}', space=vmem, size = 0x400, scoped, tag = 'input window, operand 10, single buffered']
    #allocation11 [shape = 's32[1]{0}', space=sflag, size = 0x4, scoped, tag = 'scoped memory for net_forward.1']
    #allocation12 [shape = 'u8[512]{0}', space=vmem, size = 0x400, scoped, tag = 'input window, operand 12, single buffered']
    #allocation13 [shape = 'u8[1024]{0}', space=vmem, size = 0x400, scoped, tag = 'output window, operand 0']
    %18 = vsyncpa [#allocation5], 0
    %19 = vsyncpa [#allocation8], 0
    %20 = vsyncpa [#allocation11], 0
    %21 = vsyncpa [#allocation6], 0
    %s22 = scalar_lea.sflag [#allocation6], 1
    %23 = vsyncpa %s22, 0
    loop: start=0, step=1, limit=4
    $region2: #{net_forward.1} parent=1 // loop_pre_header
      _
    $region3: #{net_forward.1} parent=1 // loop_header
      %s25 = sphi 0, %s29
      %p26 = scmp.ge.s32.totalorder %s25, 4
      %s35 = sphi 0, %s37
      %s38 = sphi 0, %s35
      %s39 = sphi 0, %s38
      %s55 = sphi 0, %s39
      %s59 = sphi 0, %s59
      %s61 = sphi 0, %s59
      %s62 = sphi 0, %s61
      %s76 = sphi 0, %s62
      %s80 = sphi 0, %s80
      %s82 = sphi 0, %s80
      %s83 = sphi 0, %s82
      %s97 = sphi 0, %s83
      %s101 = sphi 0, %s101
      %s103 = sphi 0, %s101
      %s104 = sphi 0, %s103
      %s118 = sphi 0, %s104
      %s122 = sphi 0, %s122
      %s124 = sphi 0, %s122
      %s125 = sphi 0, %s124
      %s139 = sphi 0, %s125
      %s143 = sphi 0, %s143
      %s145 = sphi 0, %s143
      %s146 = sphi 0, %s145
      %s160 = sphi 0, %s146
      %s164 = sphi 0, %s164
      %s166 = sphi 0, %s164
      %s167 = sphi 0, %s166
      %s181 = sphi 0, %s167
      %s185 = sphi 0, %s185
      %s187 = sphi 0, %s185
      %s188 = sphi 0, %s187
      %s202 = sphi 0, %s188
      %s206 = sphi 0, %s206
      %s208 = sphi 0, %s206
      %s209 = sphi 0, %s208
      %s223 = sphi 0, %s209
      %s227 = sphi 0, %s227
      %s229 = sphi 0, %s227
      %s230 = sphi 0, %s229
      %s244 = sphi 0, %s230
      %s248 = sphi 0, %s248
      %s250 = sphi 0, %s248
      %s251 = sphi 0, %s250
      %s265 = sphi 0, %s251
      %s269 = sphi 0, %s269
      %s271 = sphi 0, %s269
      %s272 = sphi 0, %s271
      %s286 = sphi 0, %s272
      %s290 = sphi 0, %s290
      %s292 = sphi 0, %s290
      %s293 = sphi 0, %s292
      %s307 = sphi 0, %s293
      %s313 = sphi 0, %s315
      %s316 = sphi 0, %s313
      %s317 = sphi 0, %s316
      %s333 = sphi 0, %s317
    $region4: #{net_forward.1} parent=1 // loop_header_branch
      %28 = sbr.rel (%p26) target = $region8
    $region5: #{net_forward.1} parent=1 // loop_body
      %s30 = ssub.s32 %s25, 1
      %s31 = ssub.s32 %s25, 2
      %s32 = sadd.s32 %s25, 1
      %s33 = ssub.s32 %s25, %s32
      %p34 = scmp.eq.s32.totalorder %s33, 0
      %s36 = sadd.s32 %s35, 1
      %s37 = scalar_select %p34, %s35, %s36
      %p40 = pneg %p34
      %p41 = scmp.eq.s32.totalorder %s25, 1
      %p42 = por %p40, %p41
      %p43 = scmp.ne.s32.totalorder %s35, %s38
      %p44 = scmp.eq.s32.totalorder %s25, 0
      %p45 = por %p43, %p44
      %p46 = scmp.ne.s32.totalorder %s35, %s38
      %p47 = scmp.eq.s32.totalorder %s30, 1
      %p48 = por %p46, %p47
      %p49 = scmp.ne.s32.totalorder %s38, %s39
      %p50 = scmp.eq.s32.totalorder %s30, 0
      %p51 = por %p49, %p50
      %p52 = scmp.ne.s32.totalorder %s38, %s39
      %p53 = scmp.eq.s32.totalorder %s31, 1
      %p54 = por %p52, %p53
      %p56 = scmp.ne.s32.totalorder %s39, %s55
      %p57 = scmp.eq.s32.totalorder %s31, 0
      %p58 = por %p56, %p57
      %s60 = sadd.s32 %s59, 1
      %p63 = scmp.eq.s32.totalorder %s25, 1
      %p64 = scmp.ne.s32.totalorder %s59, %s61
      %p65 = scmp.eq.s32.totalorder %s25, 0
      %p66 = por %p64, %p65
      %p67 = scmp.ne.s32.totalorder %s59, %s61
      %p68 = scmp.eq.s32.totalorder %s30, 1
      %p69 = por %p67, %p68
      %p70 = scmp.ne.s32.totalorder %s61, %s62
      %p71 = scmp.eq.s32.totalorder %s30, 0
      %p72 = por %p70, %p71
      %p73 = scmp.ne.s32.totalorder %s61, %s62
      %p74 = scmp.eq.s32.totalorder %s31, 1
      %p75 = por %p73, %p74
      %p77 = scmp.ne.s32.totalorder %s62, %s76
      %p78 = scmp.eq.s32.totalorder %s31, 0
      %p79 = por %p77, %p78
      %s81 = sadd.s32 %s80, 1
      %p84 = scmp.eq.s32.totalorder %s25, 1
      %p85 = scmp.ne.s32.totalorder %s80, %s82
      %p86 = scmp.eq.s32.totalorder %s25, 0
      %p87 = por %p85, %p86
      %p88 = scmp.ne.s32.totalorder %s80, %s82
      %p89 = scmp.eq.s32.totalorder %s30, 1
      %p90 = por %p88, %p89
      %p91 = scmp.ne.s32.totalorder %s82, %s83
      %p92 = scmp.eq.s32.totalorder %s30, 0
      %p93 = por %p91, %p92
      %p94 = scmp.ne.s32.totalorder %s82, %s83
      %p95 = scmp.eq.s32.totalorder %s31, 1
      %p96 = por %p94, %p95
      %p98 = scmp.ne.s32.totalorder %s83, %s97
      %p99 = scmp.eq.s32.totalorder %s31, 0
      %p100 = por %p98, %p99
      %s102 = sadd.s32 %s101, 1
      %p105 = scmp.eq.s32.totalorder %s25, 1
      %p106 = scmp.ne.s32.totalorder %s101, %s103
      %p107 = scmp.eq.s32.totalorder %s25, 0
      %p108 = por %p106, %p107
      %p109 = scmp.ne.s32.totalorder %s101, %s103
      %p110 = scmp.eq.s32.totalorder %s30, 1
      %p111 = por %p109, %p110
      %p112 = scmp.ne.s32.totalorder %s103, %s104
      %p113 = scmp.eq.s32.totalorder %s30, 0
      %p114 = por %p112, %p113
      %p115 = scmp.ne.s32.totalorder %s103, %s104
      %p116 = scmp.eq.s32.totalorder %s31, 1
      %p117 = por %p115, %p116
      %p119 = scmp.ne.s32.totalorder %s104, %s118
      %p120 = scmp.eq.s32.totalorder %s31, 0
      %p121 = por %p119, %p120
      %s123 = sadd.s32 %s122, 1
      %p126 = scmp.eq.s32.totalorder %s25, 1
      %p127 = scmp.ne.s32.totalorder %s122, %s124
      %p128 = scmp.eq.s32.totalorder %s25, 0
      %p129 = por %p127, %p128
      %p130 = scmp.ne.s32.totalorder %s122, %s124
      %p131 = scmp.eq.s32.totalorder %s30, 1
      %p132 = por %p130, %p131
      %p133 = scmp.ne.s32.totalorder %s124, %s125
      %p134 = scmp.eq.s32.totalorder %s30, 0
      %p135 = por %p133, %p134
      %p136 = scmp.ne.s32.totalorder %s124, %s125
      %p137 = scmp.eq.s32.totalorder %s31, 1
      %p138 = por %p136, %p137
      %p140 = scmp.ne.s32.totalorder %s125, %s139
      %p141 = scmp.eq.s32.totalorder %s31, 0
      %p142 = por %p140, %p141
      %s144 = sadd.s32 %s143, 1
      %p147 = scmp.eq.s32.totalorder %s25, 1
      %p148 = scmp.ne.s32.totalorder %s143, %s145
      %p149 = scmp.eq.s32.totalorder %s25, 0
      %p150 = por %p148, %p149
      %p151 = scmp.ne.s32.totalorder %s143, %s145
      %p152 = scmp.eq.s32.totalorder %s30, 1
      %p153 = por %p151, %p152
      %p154 = scmp.ne.s32.totalorder %s145, %s146
      %p155 = scmp.eq.s32.totalorder %s30, 0
      %p156 = por %p154, %p155
      %p157 = scmp.ne.s32.totalorder %s145, %s146
      %p158 = scmp.eq.s32.totalorder %s31, 1
      %p159 = por %p157, %p158
      %p161 = scmp.ne.s32.totalorder %s146, %s160
      %p162 = scmp.eq.s32.totalorder %s31, 0
      %p163 = por %p161, %p162
      %s165 = sadd.s32 %s164, 1
      %p168 = scmp.eq.s32.totalorder %s25, 1
      %p169 = scmp.ne.s32.totalorder %s164, %s166
      %p170 = scmp.eq.s32.totalorder %s25, 0
      %p171 = por %p169, %p170
      %p172 = scmp.ne.s32.totalorder %s164, %s166
      %p173 = scmp.eq.s32.totalorder %s30, 1
      %p174 = por %p172, %p173
      %p175 = scmp.ne.s32.totalorder %s166, %s167
      %p176 = scmp.eq.s32.totalorder %s30, 0
      %p177 = por %p175, %p176
      %p178 = scmp.ne.s32.totalorder %s166, %s167
      %p179 = scmp.eq.s32.totalorder %s31, 1
      %p180 = por %p178, %p179
      %p182 = scmp.ne.s32.totalorder %s167, %s181
      %p183 = scmp.eq.s32.totalorder %s31, 0
      %p184 = por %p182, %p183
      %s186 = sadd.s32 %s185, 1
      %p189 = scmp.eq.s32.totalorder %s25, 1
      %p190 = scmp.ne.s32.totalorder %s185, %s187
      %p191 = scmp.eq.s32.totalorder %s25, 0
      %p192 = por %p190, %p191
      %p193 = scmp.ne.s32.totalorder %s185, %s187
      %p194 = scmp.eq.s32.totalorder %s30, 1
      %p195 = por %p193, %p194
      %p196 = scmp.ne.s32.totalorder %s187, %s188
      %p197 = scmp.eq.s32.totalorder %s30, 0
      %p198 = por %p196, %p197
      %p199 = scmp.ne.s32.totalorder %s187, %s188
      %p200 = scmp.eq.s32.totalorder %s31, 1
      %p201 = por %p199, %p200
      %p203 = scmp.ne.s32.totalorder %s188, %s202
      %p204 = scmp.eq.s32.totalorder %s31, 0
      %p205 = por %p203, %p204
      %s207 = sadd.s32 %s206, 1
      %p210 = scmp.eq.s32.totalorder %s25, 1
      %p211 = scmp.ne.s32.totalorder %s206, %s208
      %p212 = scmp.eq.s32.totalorder %s25, 0
      %p213 = por %p211, %p212
      %p214 = scmp.ne.s32.totalorder %s206, %s208
      %p215 = scmp.eq.s32.totalorder %s30, 1
      %p216 = por %p214, %p215
      %p217 = scmp.ne.s32.totalorder %s208, %s209
      %p218 = scmp.eq.s32.totalorder %s30, 0
      %p219 = por %p217, %p218
      %p220 = scmp.ne.s32.totalorder %s208, %s209
      %p221 = scmp.eq.s32.totalorder %s31, 1
      %p222 = por %p220, %p221
      %p224 = scmp.ne.s32.totalorder %s209, %s223
      %p225 = scmp.eq.s32.totalorder %s31, 0
      %p226 = por %p224, %p225
      %s228 = sadd.s32 %s227, 1
      %p231 = scmp.eq.s32.totalorder %s25, 1
      %p232 = scmp.ne.s32.totalorder %s227, %s229
      %p233 = scmp.eq.s32.totalorder %s25, 0
      %p234 = por %p232, %p233
      %p235 = scmp.ne.s32.totalorder %s227, %s229
      %p236 = scmp.eq.s32.totalorder %s30, 1
      %p237 = por %p235, %p236
      %p238 = scmp.ne.s32.totalorder %s229, %s230
      %p239 = scmp.eq.s32.totalorder %s30, 0
      %p240 = por %p238, %p239
      %p241 = scmp.ne.s32.totalorder %s229, %s230
      %p242 = scmp.eq.s32.totalorder %s31, 1
      %p243 = por %p241, %p242
      %p245 = scmp.ne.s32.totalorder %s230, %s244
      %p246 = scmp.eq.s32.totalorder %s31, 0
      %p247 = por %p245, %p246
      %s249 = sadd.s32 %s248, 1
      %p252 = scmp.eq.s32.totalorder %s25, 1
      %p253 = scmp.ne.s32.totalorder %s248, %s250
      %p254 = scmp.eq.s32.totalorder %s25, 0
      %p255 = por %p253, %p254
      %p256 = scmp.ne.s32.totalorder %s248, %s250
      %p257 = scmp.eq.s32.totalorder %s30, 1
      %p258 = por %p256, %p257
      %p259 = scmp.ne.s32.totalorder %s250, %s251
      %p260 = scmp.eq.s32.totalorder %s30, 0
      %p261 = por %p259, %p260
      %p262 = scmp.ne.s32.totalorder %s250, %s251
      %p263 = scmp.eq.s32.totalorder %s31, 1
      %p264 = por %p262, %p263
      %p266 = scmp.ne.s32.totalorder %s251, %s265
      %p267 = scmp.eq.s32.totalorder %s31, 0
      %p268 = por %p266, %p267
      %s270 = sadd.s32 %s269, 1
      %p273 = scmp.eq.s32.totalorder %s25, 1
      %p274 = scmp.ne.s32.totalorder %s269, %s271
      %p275 = scmp.eq.s32.totalorder %s25, 0
      %p276 = por %p274, %p275
      %p277 = scmp.ne.s32.totalorder %s269, %s271
      %p278 = scmp.eq.s32.totalorder %s30, 1
      %p279 = por %p277, %p278
      %p280 = scmp.ne.s32.totalorder %s271, %s272
      %p281 = scmp.eq.s32.totalorder %s30, 0
      %p282 = por %p280, %p281
      %p283 = scmp.ne.s32.totalorder %s271, %s272
      %p284 = scmp.eq.s32.totalorder %s31, 1
      %p285 = por %p283, %p284
      %p287 = scmp.ne.s32.totalorder %s272, %s286
      %p288 = scmp.eq.s32.totalorder %s31, 0
      %p289 = por %p287, %p288
      %s291 = sadd.s32 %s290, 1
      %p294 = scmp.eq.s32.totalorder %s25, 1
      %p295 = scmp.ne.s32.totalorder %s290, %s292
      %p296 = scmp.eq.s32.totalorder %s25, 0
      %p297 = por %p295, %p296
      %p298 = scmp.ne.s32.totalorder %s290, %s292
      %p299 = scmp.eq.s32.totalorder %s30, 1
      %p300 = por %p298, %p299
      %p301 = scmp.ne.s32.totalorder %s292, %s293
      %p302 = scmp.eq.s32.totalorder %s30, 0
      %p303 = por %p301, %p302
      %p304 = scmp.ne.s32.totalorder %s292, %s293
      %p305 = scmp.eq.s32.totalorder %s31, 1
      %p306 = por %p304, %p305
      %p308 = scmp.ne.s32.totalorder %s293, %s307
      %p309 = scmp.eq.s32.totalorder %s31, 0
      %p310 = por %p308, %p309
      %s311 = ssub.s32 %s25, %s32
      %p312 = scmp.eq.s32.totalorder %s311, 0
      %s314 = sadd.s32 %s313, 1
      %s315 = scalar_select %p312, %s313, %s314
      %p318 = pneg %p312
      %p319 = scmp.eq.s32.totalorder %s25, 1
      %p320 = por %p318, %p319
      %p321 = scmp.ne.s32.totalorder %s313, %s316
      %p322 = scmp.eq.s32.totalorder %s25, 0
      %p323 = por %p321, %p322
      %p324 = scmp.ne.s32.totalorder %s313, %s316
      %p325 = scmp.eq.s32.totalorder %s30, 1
      %p326 = por %p324, %p325
      %p327 = scmp.ne.s32.totalorder %s316, %s317
      %p328 = scmp.eq.s32.totalorder %s30, 0
      %p329 = por %p327, %p328
      %p330 = scmp.ne.s32.totalorder %s316, %s317
      %p331 = scmp.eq.s32.totalorder %s31, 1
      %p332 = por %p330, %p331
      %p334 = scmp.ne.s32.totalorder %s317, %s333
      %p335 = scmp.eq.s32.totalorder %s31, 0
      %p336 = por %p334, %p335
      %p337 = scmp.le.s32.totalorder 1, %s25
      %p338 = scmp.lt.s32.totalorder %s25, 3
      %p339 = pnand %p337, %p338
      %p340 = pneg %p339
      // Predicated region
      $region9: #{net_forward.1} parent=5 // pred_check
        _
      $region10: #{net_forward.1} parent=5 // pred_check_branch
        %342 = sbr.rel (%p339) target = $region12
      $region11: #{net_forward.1} parent=5 // pred_region
        %s343 = ssub.s32 %s25, 1
        // Predicated region
        $region13: #{net_forward.1} parent=11 // pred_check
          %p344 = pneg %p72
        $region14: #{net_forward.1} parent=11 // pred_check_branch
          %346 = sbr.rel (%p344) target = $region16
        $region15: #{net_forward.1} parent=11 // pred_region
          _
        $region16: #{net_forward.1} parent=11 // pred_fallthru
          _
        // Predicated region
        $region17: #{net_forward.1} parent=11 // pred_check
          %p347 = pneg %p93
        $region18: #{net_forward.1} parent=11 // pred_check_branch
          %349 = sbr.rel (%p347) target = $region20
        $region19: #{net_forward.1} parent=11 // pred_region
          _
        $region20: #{net_forward.1} parent=11 // pred_fallthru
          _
        // Predicated region
        $region21: #{net_forward.1} parent=11 // pred_check
          %p350 = pneg %p114
        $region22: #{net_forward.1} parent=11 // pred_check_branch
          %352 = sbr.rel (%p350) target = $region24
        $region23: #{net_forward.1} parent=11 // pred_region
          %354 = vsyncadd [#allocation5], 0
          %s355 = sshll.u32 %s3, 4
          %s356 = int_to_ptr.hbm [resolvable:$true] %s355
          %s357 = sshll.u32 [#allocation4], 4
          %s358 = int_to_ptr.vmem [resolvable:$true] %s357
          %363 = dma.hbm_to_vmem [thread:$0]  %s356, 80896, %s358, [#allocation5], 512, 512, 32
        $region24: #{net_forward.1} parent=11 // pred_fallthru
          _
        // Predicated region
        $region25: #{net_forward.1} parent=11 // pred_check
          %p364 = pneg %p135
        $region26: #{net_forward.1} parent=11 // pred_check_branch
          %366 = sbr.rel (%p364) target = $region28
        $region27: #{net_forward.1} parent=11 // pred_region
          _
        $region28: #{net_forward.1} parent=11 // pred_fallthru
          _
        // Predicated region
        $region29: #{net_forward.1} parent=11 // pred_check
          %p367 = pneg %p156
        $region30: #{net_forward.1} parent=11 // pred_check_branch
          %369 = sbr.rel (%p367) target = $region32
        $region31: #{net_forward.1} parent=11 // pred_region
          _
        $region32: #{net_forward.1} parent=11 // pred_fallthru
          _
        // Predicated region
        $region33: #{net_forward.1} parent=11 // pred_check
          %p370 = pneg %p177
        $region34: #{net_forward.1} parent=11 // pred_check_branch
          %372 = sbr.rel (%p370) target = $region36
        $region35: #{net_forward.1} parent=11 // pred_region
          %374 = vsyncadd [#allocation8], 0
          %s375 = sshll.u32 %s6, 4
          %s376 = int_to_ptr.hbm [resolvable:$true] %s375
          %s377 = sshll.u32 [#allocation7], 4
          %s378 = int_to_ptr.vmem [resolvable:$true] %s377
          %383 = dma.hbm_to_vmem [thread:$0]  %s376, 6144, %s378, [#allocation8], 128, 128, 8
        $region36: #{net_forward.1} parent=11 // pred_fallthru
          _
        // Predicated region
        $region37: #{net_forward.1} parent=11 // pred_check
          %p384 = pneg %p198
        $region38: #{net_forward.1} parent=11 // pred_check_branch
          %386 = sbr.rel (%p384) target = $region40
        $region39: #{net_forward.1} parent=11 // pred_region
          _
        $region40: #{net_forward.1} parent=11 // pred_fallthru
          _
        // Predicated region
        $region41: #{net_forward.1} parent=11 // pred_check
          %p387 = pneg %p219
        $region42: #{net_forward.1} parent=11 // pred_check_branch
          %389 = sbr.rel (%p387) target = $region44
        $region43: #{net_forward.1} parent=11 // pred_region
          %391 = vsyncadd [#allocation8], 0
          %s393 = sshll.u32 %s8, 4
          %s394 = int_to_ptr.hbm [resolvable:$true] %s393
          %s395 = sshll.u32 [#allocation9], 4
          %s396 = int_to_ptr.vmem [resolvable:$true] %s395
          %398 = dma.hbm_to_vmem [thread:$0]  %s394, 16, %s396, [#allocation8]
        $region44: #{net_forward.1} parent=11 // pred_fallthru
          _
        // Predicated region
        $region45: #{net_forward.1} parent=11 // pred_check
          %p399 = pneg %p240
        $region46: #{net_forward.1} parent=11 // pred_check_branch
          %401 = sbr.rel (%p399) target = $region48
        $region47: #{net_forward.1} parent=11 // pred_region
          _
        $region48: #{net_forward.1} parent=11 // pred_fallthru
          _
        // Predicated region
        $region49: #{net_forward.1} parent=11 // pred_check
          %p402 = pneg %p261
        $region50: #{net_forward.1} parent=11 // pred_check_branch
          %404 = sbr.rel (%p402) target = $region52
        $region51: #{net_forward.1} parent=11 // pred_region
          %406 = vsyncadd [#allocation11], 0
          %s408 = sshll.u32 %s10, 4
          %s409 = int_to_ptr.hbm [resolvable:$true] %s408
          %s410 = sshll.u32 [#allocation10], 4
          %s411 = int_to_ptr.vmem [resolvable:$true] %s410
          %413 = dma.hbm_to_vmem [thread:$0]  %s409, 16, %s411, [#allocation11]
        $region52: #{net_forward.1} parent=11 // pred_fallthru
          _
        // Predicated region
        $region53: #{net_forward.1} parent=11 // pred_check
          %p414 = pneg %p282
        $region54: #{net_forward.1} parent=11 // pred_check_branch
          %416 = sbr.rel (%p414) target = $region56
        $region55: #{net_forward.1} parent=11 // pred_region
          _
        $region56: #{net_forward.1} parent=11 // pred_fallthru
          _
        // Predicated region
        $region57: #{net_forward.1} parent=11 // pred_check
          %p417 = pneg %p303
        $region58: #{net_forward.1} parent=11 // pred_check_branch
          %419 = sbr.rel (%p417) target = $region60
        $region59: #{net_forward.1} parent=11 // pred_region
          %421 = vsyncadd [#allocation11], 0
          %s423 = sshll.u32 %s12, 4
          %s424 = int_to_ptr.hbm [resolvable:$true] %s423
          %s425 = sshll.u32 [#allocation12], 4
          %s426 = int_to_ptr.vmem [resolvable:$true] %s425
          %428 = dma.hbm_to_vmem [thread:$0]  %s424, 16, %s426, [#allocation11]
        $region60: #{net_forward.1} parent=11 // pred_fallthru
          _
      $region12: #{net_forward.1} parent=5 // pred_fallthru
        _
      %p429 = scmp.lt.s32.totalorder %s25, 2
      // Predicated region
      $region61: #{net_forward.1} parent=5 // pred_check
        %p430 = pneg %p429
      $region62: #{net_forward.1} parent=5 // pred_check_branch
        %432 = sbr.rel (%p430) target = $region64
      $region63: #{net_forward.1} parent=5 // pred_region
        // Predicated region
        $region65: #{net_forward.1} parent=63 // pred_check
          %p433 = pneg %p45
        $region66: #{net_forward.1} parent=63 // pred_check_branch
          %435 = sbr.rel (%p433) target = $region68
        $region67: #{net_forward.1} parent=63 // pred_region
          %p436 = scmp.lt.s32.totalorder %s25, 1
          %s437 = scalar_select %p436, %s25, 1
          %s438 = smul.addr %s437, 12
          %s439 = smul.addr %s438, 4
          %s440 = scalar_lea.vmem %s0, %s439
        $region68: #{net_forward.1} parent=63 // pred_fallthru
          _
      $region64: #{net_forward.1} parent=5 // pred_fallthru
        _
      %p441 = scmp.le.s32.totalorder 1, %s25
      %p442 = scmp.lt.s32.totalorder %s25, 3
      %p443 = pnand %p441, %p442
      %p444 = pneg %p443
      // Predicated region
      $region69: #{net_forward.1} parent=5 // pred_check
        _
      $region70: #{net_forward.1} parent=5 // pred_check_branch
        %446 = sbr.rel (%p443) target = $region72
      $region71: #{net_forward.1} parent=5 // pred_region
        %s447 = ssub.s32 %s25, 1
        // Predicated region
        $region73: #{net_forward.1} parent=71 // pred_check
          %p448 = pneg %p114
        $region74: #{net_forward.1} parent=71 // pred_check_branch
          %450 = sbr.rel (%p448) target = $region76
        $region75: #{net_forward.1} parent=71 // pred_region
          %452 = dma.done [#allocation5], 80896
        $region76: #{net_forward.1} parent=71 // pred_fallthru
          _
        // Predicated region
        $region77: #{net_forward.1} parent=71 // pred_check
          %p453 = pneg %p177
        $region78: #{net_forward.1} parent=71 // pred_check_branch
          %455 = sbr.rel (%p453) target = $region80
        $region79: #{net_forward.1} parent=71 // pred_region
          %457 = dma.done [#allocation8], 6144
        $region80: #{net_forward.1} parent=71 // pred_fallthru
          _
        // Predicated region
        $region81: #{net_forward.1} parent=71 // pred_check
          %p458 = pneg %p219
        $region82: #{net_forward.1} parent=71 // pred_check_branch
          %460 = sbr.rel (%p458) target = $region84
        $region83: #{net_forward.1} parent=71 // pred_region
          %462 = dma.done [#allocation8], 16
        $region84: #{net_forward.1} parent=71 // pred_fallthru
          _
        // Predicated region
        $region85: #{net_forward.1} parent=71 // pred_check
          %p463 = pneg %p261
        $region86: #{net_forward.1} parent=71 // pred_check_branch
          %465 = sbr.rel (%p463) target = $region88
        $region87: #{net_forward.1} parent=71 // pred_region
          %467 = dma.done [#allocation11], 16
        $region88: #{net_forward.1} parent=71 // pred_fallthru
          _
        // Predicated region
        $region89: #{net_forward.1} parent=71 // pred_check
          %p468 = pneg %p303
        $region90: #{net_forward.1} parent=71 // pred_check_branch
          %470 = sbr.rel (%p468) target = $region92
        $region91: #{net_forward.1} parent=71 // pred_region
          %472 = dma.done [#allocation11], 16
        $region92: #{net_forward.1} parent=71 // pred_fallthru
          _
        %p473 = scmp.lt.s32.totalorder %s30, 1
        %s474 = scalar_select %p473, %s30, 1
        %s475 = smul.addr %s474, 12
        %s476 = smul.addr %s475, 4
        %s477 = scalar_lea.vmem %s0, %s476
        %p478 = pneg %p51
        %p479 = pneg %p48
        %p480 = pneg %p72
        %p481 = pneg %p69
        %p482 = pneg %p93
        %p483 = pneg %p90
        %p484 = pneg %p114
        %p485 = pneg %p111
        %p486 = pneg %p135
        %p487 = pneg %p132
        %p488 = pneg %p156
        %p489 = pneg %p153
        %p490 = pneg %p177
        %p491 = pneg %p174
        %p492 = pneg %p198
        %p493 = pneg %p195
        %p494 = pneg %p219
        %p495 = pneg %p216
        %p496 = pneg %p240
        %p497 = pneg %p237
        %p498 = pneg %p261
        %p499 = pneg %p258
        %p500 = pneg %p282
        %p501 = pneg %p279
        %p502 = pneg %p303
        %p503 = pneg %p300
        %p504 = pneg %p329
        %p505 = pneg %p326
        %s506 = sand.u32 %s316, 1
        %s507 = scalar_lea.sflag [#allocation6], %s506
        %s508 = sand.u32 %s316, 1
        %s509 = scalar_lea.vmem [#allocation13], %s508
        %p510 = scmp.lt.s32.totalorder %s30, 1
        %s511 = scalar_select %p510, %s30, 1
        %s512 = smul.addr %s511, 12
        %s513 = smul.addr %s512, 4
        %s514 = scalar_lea.vmem %s0, %s513
        %v515 = vld [vmem:[%s514] sm:$0x77]
        %v516 = vld [vmem:[%s514 + $0x8] sm:$0x77]
        %v517 = vld [vmem:[%s514 + $0x10] sm:$0x77]
        %v518 = vld [vmem:[%s514 + $0x18] sm:$0x77]
        %v519 = vld [vmem:[%s514 + $0x20] sm:$0x77]
        %v520 = vld [vmem:[%s514 + $0x28] sm:$0x7]
        %527 = vst [vmem:[#allocation1] ss:$2 sm:$0xff] %v515
        %s528 = scalar_lea.vmem [#allocation1], 16
        %529 = vst [vmem:[%s528] ss:$2 sm:$0xff] %v516
        %s530 = scalar_lea.vmem [#allocation1], 32
        %531 = vst [vmem:[%s530] ss:$2 sm:$0xff] %v517
        %s532 = scalar_lea.vmem [#allocation1], 48
        %533 = vst [vmem:[%s532] ss:$2 sm:$0xff] %v518
        %v534 = vld.sshfl [vmem:[#allocation1] sm:$0xff pattern:$0x75316420]
        %v535 = vld.sshfl [vmem:[#allocation1 + $0x8] sm:$0xff pattern:$0x75316420]
        %v536 = vld.sshfl [vmem:[#allocation1 + $0x10] sm:$0xff pattern:$0x75316420]
        %v537 = vld.sshfl [vmem:[#allocation1 + $0x18] sm:$0xff pattern:$0x75316420]
        %v538 = vld.sshfl [vmem:[#allocation1 + $0x20] sm:$0xff pattern:$0x75316420]
        %v539 = vld.sshfl [vmem:[#allocation1 + $0x28] sm:$0xff pattern:$0x75316420]
        %v540 = vld.sshfl [vmem:[#allocation1 + $0x30] sm:$0xff pattern:$0x75316420]
        %v541 = vld.sshfl [vmem:[#allocation1 + $0x38] sm:$0xff pattern:$0x75316420]
        %542 = vst [vmem:[#allocation1] ss:$2 sm:$0xff] %v519
        %543 = vst [vmem:[%s528] ss:$2 sm:$0xff] %v520
        %v544 = vld.sshfl [vmem:[#allocation1] sm:$0xff pattern:$0x75316420]
        %v545 = vld.sshfl [vmem:[#allocation1 + $0x8] sm:$0xff pattern:$0x75316420]
        %v546 = vld.sshfl [vmem:[#allocation1 + $0x10] sm:$0xff pattern:$0x75316420]
        %558 = vst [vmem:[#allocation2] sm:$0x7] %v534
        %559 = vst [vmem:[#allocation2 + $0x8] sm:$0x7] %v535
        %560 = vst [vmem:[#allocation2 + $0x10] sm:$0x7] %v536
        %561 = vst [vmem:[#allocation2 + $0x18] sm:$0x7] %v537
        %562 = vst [vmem:[#allocation2 + $0x20] sm:$0x7] %v538
        %563 = vst [vmem:[#allocation2 + $0x28] sm:$0x7] %v539
        %564 = vst [vmem:[#allocation2 + $0x30] sm:$0x7] %v540
        %565 = vst [vmem:[#allocation2 + $0x38] sm:$0x7] %v541
        %566 = vst [vmem:[#allocation2 + $0x40] sm:$0x7] %v544
        %567 = vst [vmem:[#allocation2 + $0x48] sm:$0x7] %v545
        %vm568 = vcmask 124928
        %569 = vst.msk [vmem:[#allocation2 + $0x50] sm:$0x7] %vm568, %v546
        %v570 = vld [vmem:[%s514] sm:$0x77]
        %v571 = vld [vmem:[%s514 + $0x8] sm:$0x77]
        %v572 = vld [vmem:[%s514 + $0x10] sm:$0x77]
        %v573 = vld [vmem:[%s514 + $0x18] sm:$0x77]
        %v574 = vld [vmem:[%s514 + $0x20] sm:$0x77]
        %v575 = vld [vmem:[%s514 + $0x28] sm:$0x7]
        %582 = vst [vmem:[#allocation1] ss:$2 sm:$0xff] %v570
        %s583 = scalar_lea.vmem [#allocation1], 16
        %584 = vst [vmem:[%s583] ss:$2 sm:$0xff] %v571
        %s585 = scalar_lea.vmem [#allocation1], 32
        %586 = vst [vmem:[%s585] ss:$2 sm:$0xff] %v572
        %s587 = scalar_lea.vmem [#allocation1], 48
        %588 = vst [vmem:[%s587] ss:$2 sm:$0xff] %v573
        %v589 = vld.sshfl [vmem:[#allocation1] sm:$0xff pattern:$0x75316420]
        %v590 = vld.sshfl [vmem:[#allocation1 + $0x8] sm:$0xff pattern:$0x75316420]
        %v591 = vld.sshfl [vmem:[#allocation1 + $0x10] sm:$0xff pattern:$0x75316420]
        %v592 = vld.sshfl [vmem:[#allocation1 + $0x18] sm:$0xff pattern:$0x75316420]
        %v593 = vld.sshfl [vmem:[#allocation1 + $0x20] sm:$0xff pattern:$0x75316420]
        %v594 = vld.sshfl [vmem:[#allocation1 + $0x28] sm:$0xff pattern:$0x75316420]
        %v595 = vld.sshfl [vmem:[#allocation1 + $0x30] sm:$0xff pattern:$0x75316420]
        %v596 = vld.sshfl [vmem:[#allocation1 + $0x38] sm:$0xff pattern:$0x75316420]
        %597 = vst [vmem:[#allocation1] ss:$2 sm:$0xff] %v574
        %598 = vst [vmem:[%s583] ss:$2 sm:$0xff] %v575
        %v599 = vld.sshfl [vmem:[#allocation1] sm:$0xff pattern:$0x75316420]
        %v600 = vld.sshfl [vmem:[#allocation1 + $0x8] sm:$0xff pattern:$0x75316420]
        %v601 = vld.sshfl [vmem:[#allocation1 + $0x10] sm:$0xff pattern:$0x75316420]
        %v602 = vrot.slane %v589, 5
        %v603 = vrot.slane %v590, 5
        %v604 = vrot.slane %v591, 5
        %v605 = vrot.slane %v592, 5
        %v606 = vrot.slane %v593, 5
        %v607 = vrot.slane %v594, 5
        %v608 = vrot.slane %v595, 5
        %v609 = vrot.slane %v596, 5
        %v610 = vrot.slane %v599, 5
        %v611 = vrot.slane %v600, 5
        %v612 = vrot.slane %v601, 5
        %613 = vrot.lane.b32.xlu0 %v602, 127
        %v614 = vpop.permute.xlu0 %613
        %615 = vrot.lane.b32.xlu0 %v603, 127
        %v616 = vpop.permute.xlu0 %615
        %617 = vrot.lane.b32.xlu0 %v604, 127
        %v618 = vpop.permute.xlu0 %617
        %619 = vrot.lane.b32.xlu0 %v605, 127
        %v620 = vpop.permute.xlu0 %619
        %621 = vrot.lane.b32.xlu0 %v606, 127
        %v622 = vpop.permute.xlu0 %621
        %623 = vrot.lane.b32.xlu0 %v607, 127
        %v624 = vpop.permute.xlu0 %623
        %625 = vrot.lane.b32.xlu0 %v608, 127
        %v626 = vpop.permute.xlu0 %625
        %627 = vrot.lane.b32.xlu0 %v609, 127
        %v628 = vpop.permute.xlu0 %627
        %629 = vrot.lane.b32.xlu0 %v610, 127
        %v630 = vpop.permute.xlu0 %629
        %631 = vrot.lane.b32.xlu0 %v611, 127
        %v632 = vpop.permute.xlu0 %631
        %633 = vrot.lane.b32.xlu0 %v612, 127
        %v634 = vpop.permute.xlu0 %633
        %vm635 = vcmask 1039360
        %v636 = vsel %vm635, %v614, %v616
        %v637 = vsel %vm635, %v616, %v618
        %v638 = vsel %vm635, %v618, %v620
        %v639 = vsel %vm635, %v620, %v622
        %v640 = vsel %vm635, %v622, %v624
        %v641 = vsel %vm635, %v624, %v626
        %v642 = vsel %vm635, %v626, %v628
        %v643 = vsel %vm635, %v628, %v630
        %v644 = vsel %vm635, %v630, %v632
        %v645 = vsel %vm635, %v632, %v634
        %657 = vst [vmem:[#allocation2] sm:$0x38] %v636
        %658 = vst [vmem:[#allocation2 + $0x8] sm:$0x38] %v637
        %659 = vst [vmem:[#allocation2 + $0x10] sm:$0x38] %v638
        %660 = vst [vmem:[#allocation2 + $0x18] sm:$0x38] %v639
        %661 = vst [vmem:[#allocation2 + $0x20] sm:$0x38] %v640
        %662 = vst [vmem:[#allocation2 + $0x28] sm:$0x38] %v641
        %663 = vst [vmem:[#allocation2 + $0x30] sm:$0x38] %v642
        %664 = vst [vmem:[#allocation2 + $0x38] sm:$0x38] %v643
        %665 = vst [vmem:[#allocation2 + $0x40] sm:$0x38] %v644
        %666 = vst [vmem:[#allocation2 + $0x48] sm:$0x38] %v645
        %vm667 = vcmask 128003
        %668 = vst.msk [vmem:[#allocation2 + $0x50] sm:$0x38] %vm667, %v634
        %v669 = vld [vmem:[%s514] sm:$0x77]
        %v670 = vld [vmem:[%s514 + $0x8] sm:$0x77]
        %v671 = vld [vmem:[%s514 + $0x10] sm:$0x77]
        %v672 = vld [vmem:[%s514 + $0x18] sm:$0x77]
        %v673 = vld [vmem:[%s514 + $0x20] sm:$0x77]
        %v674 = vld [vmem:[%s514 + $0x28] sm:$0x7]
        %681 = vst [vmem:[#allocation1] ss:$2 sm:$0xff] %v669
        %s682 = scalar_lea.vmem [#allocation1], 16
        %683 = vst [vmem:[%s682] ss:$2 sm:$0xff] %v670
        %s684 = scalar_lea.vmem [#allocation1], 32
        %685 = vst [vmem:[%s684] ss:$2 sm:$0xff] %v671
        %s686 = scalar_lea.vmem [#allocation1], 48
        %687 = vst [vmem:[%s686] ss:$2 sm:$0xff] %v672
        %v688 = vld.sshfl [vmem:[#allocation1] sm:$0xff pattern:$0x75316420]
        %v689 = vld.sshfl [vmem:[#allocation1 + $0x8] sm:$0xff pattern:$0x75316420]
        %v690 = vld.sshfl [vmem:[#allocation1 + $0x10] sm:$0xff pattern:$0x75316420]
        %v691 = vld.sshfl [vmem:[#allocation1 + $0x18] sm:$0xff pattern:$0x75316420]
        %v692 = vld.sshfl [vmem:[#allocation1 + $0x20] sm:$0xff pattern:$0x75316420]
        %v693 = vld.sshfl [vmem:[#allocation1 + $0x28] sm:$0xff pattern:$0x75316420]
        %v694 = vld.sshfl [vmem:[#allocation1 + $0x30] sm:$0xff pattern:$0x75316420]
        %v695 = vld.sshfl [vmem:[#allocation1 + $0x38] sm:$0xff pattern:$0x75316420]
        %696 = vst [vmem:[#allocation1] ss:$2 sm:$0xff] %v673
        %697 = vst [vmem:[%s682] ss:$2 sm:$0xff] %v674
        %v698 = vld.sshfl [vmem:[#allocation1] sm:$0xff pattern:$0x75316420]
        %v699 = vld.sshfl [vmem:[#allocation1 + $0x8] sm:$0xff pattern:$0x75316420]
        %v700 = vld.sshfl [vmem:[#allocation1 + $0x10] sm:$0xff pattern:$0x75316420]
        %v701 = vrot.slane %v688, 2
        %v702 = vrot.slane %v689, 2
        %v703 = vrot.slane %v690, 2
        %v704 = vrot.slane %v691, 2
        %v705 = vrot.slane %v692, 2
        %v706 = vrot.slane %v693, 2
        %v707 = vrot.slane %v694, 2
        %v708 = vrot.slane %v695, 2
        %v709 = vrot.slane %v698, 2
        %v710 = vrot.slane %v699, 2
        %v711 = vrot.slane %v700, 2
        %712 = vrot.lane.b32.xlu0 %v701, 126
        %v713 = vpop.permute.xlu0 %712
        %714 = vrot.lane.b32.xlu0 %v702, 126
        %v715 = vpop.permute.xlu0 %714
        %716 = vrot.lane.b32.xlu0 %v703, 126
        %v717 = vpop.permute.xlu0 %716
        %718 = vrot.lane.b32.xlu0 %v704, 126
        %v719 = vpop.permute.xlu0 %718
        %720 = vrot.lane.b32.xlu0 %v705, 126
        %v721 = vpop.permute.xlu0 %720
        %722 = vrot.lane.b32.xlu0 %v706, 126
        %v723 = vpop.permute.xlu0 %722
        %724 = vrot.lane.b32.xlu0 %v707, 126
        %v725 = vpop.permute.xlu0 %724
        %726 = vrot.lane.b32.xlu0 %v708, 126
        %v727 = vpop.permute.xlu0 %726
        %728 = vrot.lane.b32.xlu0 %v709, 126
        %v729 = vpop.permute.xlu0 %728
        %730 = vrot.lane.b32.xlu0 %v710, 126
        %v731 = vpop.permute.xlu0 %730
        %732 = vrot.lane.b32.xlu0 %v711, 126
        %v733 = vpop.permute.xlu0 %732
        %vm734 = vcmask 1031168
        %v735 = vsel %vm734, %v713, %v715
        %v736 = vsel %vm734, %v715, %v717
        %v737 = vsel %vm734, %v717, %v719
        %v738 = vsel %vm734, %v719, %v721
        %v739 = vsel %vm734, %v721, %v723
        %v740 = vsel %vm734, %v723, %v725
        %v741 = vsel %vm734, %v725, %v727
        %v742 = vsel %vm734, %v727, %v729
        %v743 = vsel %vm734, %v729, %v731
        %v744 = vsel %vm734, %v731, %v733
        %756 = vst [vmem:[#allocation2] sm:$0xc0] %v735
        %757 = vst [vmem:[#allocation2 + $0x8] sm:$0xc0] %v736
        %758 = vst [vmem:[#allocation2 + $0x10] sm:$0xc0] %v737
        %759 = vst [vmem:[#allocation2 + $0x18] sm:$0xc0] %v738
        %760 = vst [vmem:[#allocation2 + $0x20] sm:$0xc0] %v739
        %761 = vst [vmem:[#allocation2 + $0x28] sm:$0xc0] %v740
        %762 = vst [vmem:[#allocation2 + $0x30] sm:$0xc0] %v741
        %763 = vst [vmem:[#allocation2 + $0x38] sm:$0xc0] %v742
        %764 = vst [vmem:[#allocation2 + $0x40] sm:$0xc0] %v743
        %765 = vst [vmem:[#allocation2 + $0x48] sm:$0xc0] %v744
        %vm766 = vcmask 130054
        %767 = vst.msk [vmem:[#allocation2 + $0x50] sm:$0xc0] %vm766, %v733
        %768 = vst [vmem:[#allocation2 + $0x58] sm:$0x1] %v735
        %769 = vst [vmem:[#allocation2 + $0x60] sm:$0x1] %v736
        %770 = vst [vmem:[#allocation2 + $0x68] sm:$0x1] %v737
        %771 = vst [vmem:[#allocation2 + $0x70] sm:$0x1] %v738
        %772 = vst [vmem:[#allocation2 + $0x78] sm:$0x1] %v739
        %773 = vst [vmem:[#allocation2 + $0x80] sm:$0x1] %v740
        %774 = vst [vmem:[#allocation2 + $0x88] sm:$0x1] %v741
        %775 = vst [vmem:[#allocation2 + $0x90] sm:$0x1] %v742
        %776 = vst [vmem:[#allocation2 + $0x98] sm:$0x1] %v743
        %777 = vst [vmem:[#allocation2 + $0xa0] sm:$0x1] %v744
        %vm778 = vcmask 122880
        %779 = vst.msk [vmem:[#allocation2 + $0xa8] sm:$0x1] %vm778, %v733
        %v780 = vld [vmem:[%s514] sm:$0x77]
        %v781 = vld [vmem:[%s514 + $0x8] sm:$0x77]
        %v782 = vld [vmem:[%s514 + $0x10] sm:$0x77]
        %v783 = vld [vmem:[%s514 + $0x18] sm:$0x77]
        %v784 = vld [vmem:[%s514 + $0x20] sm:$0x77]
        %v785 = vld [vmem:[%s514 + $0x28] sm:$0x7]
        %792 = vst [vmem:[#allocation1] ss:$2 sm:$0xff] %v780
        %s793 = scalar_lea.vmem [#allocation1], 16
        %794 = vst [vmem:[%s793] ss:$2 sm:$0xff] %v781
        %s795 = scalar_lea.vmem [#allocation1], 32
        %796 = vst [vmem:[%s795] ss:$2 sm:$0xff] %v782
        %s797 = scalar_lea.vmem [#allocation1], 48
        %798 = vst [vmem:[%s797] ss:$2 sm:$0xff] %v783
        %v799 = vld.sshfl [vmem:[#allocation1] sm:$0xff pattern:$0x75316420]
        %v800 = vld.sshfl [vmem:[#allocation1 + $0x8] sm:$0xff pattern:$0x75316420]
        %v801 = vld.sshfl [vmem:[#allocation1 + $0x10] sm:$0xff pattern:$0x75316420]
        %v802 = vld.sshfl [vmem:[#allocation1 + $0x18] sm:$0xff pattern:$0x75316420]
        %v803 = vld.sshfl [vmem:[#allocation1 + $0x20] sm:$0xff pattern:$0x75316420]
        %v804 = vld.sshfl [vmem:[#allocation1 + $0x28] sm:$0xff pattern:$0x75316420]
        %v805 = vld.sshfl [vmem:[#allocation1 + $0x30] sm:$0xff pattern:$0x75316420]
        %v806 = vld.sshfl [vmem:[#allocation1 + $0x38] sm:$0xff pattern:$0x75316420]
        %807 = vst [vmem:[#allocation1] ss:$2 sm:$0xff] %v784
        %808 = vst [vmem:[%s793] ss:$2 sm:$0xff] %v785
        %v809 = vld.sshfl [vmem:[#allocation1] sm:$0xff pattern:$0x75316420]
        %v810 = vld.sshfl [vmem:[#allocation1 + $0x8] sm:$0xff pattern:$0x75316420]
        %v811 = vld.sshfl [vmem:[#allocation1 + $0x10] sm:$0xff pattern:$0x75316420]
        %v812 = vrot.slane %v799, 7
        %v813 = vrot.slane %v800, 7
        %v814 = vrot.slane %v801, 7
        %v815 = vrot.slane %v802, 7
        %v816 = vrot.slane %v803, 7
        %v817 = vrot.slane %v804, 7
        %v818 = vrot.slane %v805, 7
        %v819 = vrot.slane %v806, 7
        %v820 = vrot.slane %v809, 7
        %v821 = vrot.slane %v810, 7
        %v822 = vrot.slane %v811, 7
        %823 = vrot.lane.b32.xlu0 %v812, 125
        %v824 = vpop.permute.xlu0 %823
        %825 = vrot.lane.b32.xlu0 %v813, 125
        %v826 = vpop.permute.xlu0 %825
        %827 = vrot.lane.b32.xlu0 %v814, 125
        %v828 = vpop.permute.xlu0 %827
        %829 = vrot.lane.b32.xlu0 %v815, 125
        %v830 = vpop.permute.xlu0 %829
        %831 = vrot.lane.b32.xlu0 %v816, 125
        %v832 = vpop.permute.xlu0 %831
        %833 = vrot.lane.b32.xlu0 %v817, 125
        %v834 = vpop.permute.xlu0 %833
        %835 = vrot.lane.b32.xlu0 %v818, 125
        %v836 = vpop.permute.xlu0 %835
        %837 = vrot.lane.b32.xlu0 %v819, 125
        %v838 = vpop.permute.xlu0 %837
        %839 = vrot.lane.b32.xlu0 %v820, 125
        %v840 = vpop.permute.xlu0 %839
        %841 = vrot.lane.b32.xlu0 %v821, 125
        %v842 = vpop.permute.xlu0 %841
        %843 = vrot.lane.b32.xlu0 %v822, 125
        %v844 = vpop.permute.xlu0 %843
        %vm845 = vcmask 1022976
        %v846 = vsel %vm845, %v824, %v826
        %v847 = vsel %vm845, %v826, %v828
        %v848 = vsel %vm845, %v828, %v830
        %v849 = vsel %vm845, %v830, %v832
        %v850 = vsel %vm845, %v832, %v834
        %v851 = vsel %vm845, %v834, %v836
        %v852 = vsel %vm845, %v836, %v838
        %v853 = vsel %vm845, %v838, %v840
        %v854 = vsel %vm845, %v840, %v842
        %v855 = vsel %vm845, %v842, %v844
        %867 = vst [vmem:[#allocation2 + $0x58] sm:$0xe] %v846
        %868 = vst [vmem:[#allocation2 + $0x60] sm:$0xe] %v847
        %869 = vst [vmem:[#allocation2 + $0x68] sm:$0xe] %v848
        %870 = vst [vmem:[#allocation2 + $0x70] sm:$0xe] %v849
        %871 = vst [vmem:[#allocation2 + $0x78] sm:$0xe] %v850
        %872 = vst [vmem:[#allocation2 + $0x80] sm:$0xe] %v851
        %873 = vst [vmem:[#allocation2 + $0x88] sm:$0xe] %v852
        %874 = vst [vmem:[#allocation2 + $0x90] sm:$0xe] %v853
        %875 = vst [vmem:[#allocation2 + $0x98] sm:$0xe] %v854
        %876 = vst [vmem:[#allocation2 + $0xa0] sm:$0xe] %v855
        %vm877 = vcmask 125953
        %878 = vst.msk [vmem:[#allocation2 + $0xa8] sm:$0xe] %vm877, %v844
        %v879 = vld [vmem:[%s514] sm:$0x77]
        %v880 = vld [vmem:[%s514 + $0x8] sm:$0x77]
        %v881 = vld [vmem:[%s514 + $0x10] sm:$0x77]
        %v882 = vld [vmem:[%s514 + $0x18] sm:$0x77]
        %v883 = vld [vmem:[%s514 + $0x20] sm:$0x77]
        %v884 = vld [vmem:[%s514 + $0x28] sm:$0x7]
        %s891 = scalar_lea.vmem [#allocation1], 1
        %892 = vst [vmem:[%s891] ss:$2 sm:$0xff] %v879
        %s893 = scalar_lea.vmem [#allocation1], 17
        %894 = vst [vmem:[%s893] ss:$2 sm:$0xff] %v880
        %s895 = scalar_lea.vmem [#allocation1], 33
        %896 = vst [vmem:[%s895] ss:$2 sm:$0xff] %v881
        %s897 = scalar_lea.vmem [#allocation1], 49
        %898 = vst [vmem:[%s897] ss:$2 sm:$0xff] %v882
        %v899 = vld.sshfl [vmem:[#allocation1] sm:$0xff pattern:$0x75316420]
        %v900 = vld.sshfl [vmem:[#allocation1 + $0x8] sm:$0xff pattern:$0x75316420]
        %v901 = vld.sshfl [vmem:[#allocation1 + $0x10] sm:$0xff pattern:$0x75316420]
        %v902 = vld.sshfl [vmem:[#allocation1 + $0x18] sm:$0xff pattern:$0x75316420]
        %v903 = vld.sshfl [vmem:[#allocation1 + $0x20] sm:$0xff pattern:$0x75316420]
        %v904 = vld.sshfl [vmem:[#allocation1 + $0x28] sm:$0xff pattern:$0x75316420]
        %v905 = vld.sshfl [vmem:[#allocation1 + $0x30] sm:$0xff pattern:$0x75316420]
        %v906 = vld.sshfl [vmem:[#allocation1 + $0x38] sm:$0xff pattern:$0x75316420]
        %907 = vst [vmem:[%s891] ss:$2 sm:$0xff] %v883
        %908 = vst [vmem:[%s893] ss:$2 sm:$0xff] %v884
        %v909 = vld.sshfl [vmem:[#allocation1] sm:$0xff pattern:$0x75316420]
        %v910 = vld.sshfl [vmem:[#allocation1 + $0x8] sm:$0xff pattern:$0x75316420]
        %v911 = vld.sshfl [vmem:[#allocation1 + $0x10] sm:$0xff pattern:$0x75316420]
        %912 = vrot.lane.b32.xlu0 %v899, 124
        %v913 = vpop.permute.xlu0 %912
        %914 = vrot.lane.b32.xlu0 %v900, 124
        %v915 = vpop.permute.xlu0 %914
        %916 = vrot.lane.b32.xlu0 %v901, 124
        %v917 = vpop.permute.xlu0 %916
        %918 = vrot.lane.b32.xlu0 %v902, 124
        %v919 = vpop.permute.xlu0 %918
        %920 = vrot.lane.b32.xlu0 %v903, 124
        %v921 = vpop.permute.xlu0 %920
        %922 = vrot.lane.b32.xlu0 %v904, 124
        %v923 = vpop.permute.xlu0 %922
        %924 = vrot.lane.b32.xlu0 %v905, 124
        %v925 = vpop.permute.xlu0 %924
        %926 = vrot.lane.b32.xlu0 %v906, 124
        %v927 = vpop.permute.xlu0 %926
        %928 = vrot.lane.b32.xlu0 %v909, 124
        %v929 = vpop.permute.xlu0 %928
        %930 = vrot.lane.b32.xlu0 %v910, 124
        %v931 = vpop.permute.xlu0 %930
        %932 = vrot.lane.b32.xlu0 %v911, 124
        %v933 = vpop.permute.xlu0 %932
        %vm934 = vcmask 1014784
        %v935 = vsel %vm934, %v913, %v915
        %v936 = vsel %vm934, %v915, %v917
        %v937 = vsel %vm934, %v917, %v919
        %v938 = vsel %vm934, %v919, %v921
        %v939 = vsel %vm934, %v921, %v923
        %v940 = vsel %vm934, %v923, %v925
        %v941 = vsel %vm934, %v925, %v927
        %v942 = vsel %vm934, %v927, %v929
        %v943 = vsel %vm934, %v929, %v931
        %v944 = vsel %vm934, %v931, %v933
        %956 = vst [vmem:[#allocation2 + $0x58] sm:$0x70] %v935
        %957 = vst [vmem:[#allocation2 + $0x60] sm:$0x70] %v936
        %958 = vst [vmem:[#allocation2 + $0x68] sm:$0x70] %v937
        %959 = vst [vmem:[#allocation2 + $0x70] sm:$0x70] %v938
        %960 = vst [vmem:[#allocation2 + $0x78] sm:$0x70] %v939
        %961 = vst [vmem:[#allocation2 + $0x80] sm:$0x70] %v940
        %962 = vst [vmem:[#allocation2 + $0x88] sm:$0x70] %v941
        %963 = vst [vmem:[#allocation2 + $0x90] sm:$0x70] %v942
        %964 = vst [vmem:[#allocation2 + $0x98] sm:$0x70] %v943
        %965 = vst [vmem:[#allocation2 + $0xa0] sm:$0x70] %v944
        %vm966 = vcmask 129028
        %967 = vst.msk [vmem:[#allocation2 + $0xa8] sm:$0x70] %vm966, %v933
        %v968 = vld [vmem:[%s514] sm:$0x77]
        %v969 = vld [vmem:[%s514 + $0x8] sm:$0x77]
        %v970 = vld [vmem:[%s514 + $0x10] sm:$0x77]
        %v971 = vld [vmem:[%s514 + $0x18] sm:$0x77]
        %v972 = vld [vmem:[%s514 + $0x20] sm:$0x77]
        %v973 = vld [vmem:[%s514 + $0x28] sm:$0x7]
        %980 = vst [vmem:[#allocation1] ss:$2 sm:$0xff] %v968
        %s981 = scalar_lea.vmem [#allocation1], 16
        %982 = vst [vmem:[%s981] ss:$2 sm:$0xff] %v969
        %s983 = scalar_lea.vmem [#allocation1], 32
        %984 = vst [vmem:[%s983] ss:$2 sm:$0xff] %v970
        %s985 = scalar_lea.vmem [#allocation1], 48
        %986 = vst [vmem:[%s985] ss:$2 sm:$0xff] %v971
        %v987 = vld.sshfl [vmem:[#allocation1] sm:$0xff pattern:$0x75316420]
        %v988 = vld.sshfl [vmem:[#allocation1 + $0x8] sm:$0xff pattern:$0x75316420]
        %v989 = vld.sshfl [vmem:[#allocation1 + $0x10] sm:$0xff pattern:$0x75316420]
        %v990 = vld.sshfl [vmem:[#allocation1 + $0x18] sm:$0xff pattern:$0x75316420]
        %v991 = vld.sshfl [vmem:[#allocation1 + $0x20] sm:$0xff pattern:$0x75316420]
        %v992 = vld.sshfl [vmem:[#allocation1 + $0x28] sm:$0xff pattern:$0x75316420]
        %v993 = vld.sshfl [vmem:[#allocation1 + $0x30] sm:$0xff pattern:$0x75316420]
        %v994 = vld.sshfl [vmem:[#allocation1 + $0x38] sm:$0xff pattern:$0x75316420]
        %995 = vst [vmem:[#allocation1] ss:$2 sm:$0xff] %v972
        %996 = vst [vmem:[%s981] ss:$2 sm:$0xff] %v973
        %v997 = vld.sshfl [vmem:[#allocation1] sm:$0xff pattern:$0x75316420]
        %v998 = vld.sshfl [vmem:[#allocation1 + $0x8] sm:$0xff pattern:$0x75316420]
        %v999 = vld.sshfl [vmem:[#allocation1 + $0x10] sm:$0xff pattern:$0x75316420]
        %v1000 = vrot.slane %v987, 1
        %v1001 = vrot.slane %v988, 1
        %v1002 = vrot.slane %v989, 1
        %v1003 = vrot.slane %v990, 1
        %v1004 = vrot.slane %v991, 1
        %v1005 = vrot.slane %v992, 1
        %v1006 = vrot.slane %v993, 1
        %v1007 = vrot.slane %v994, 1
        %v1008 = vrot.slane %v997, 1
        %v1009 = vrot.slane %v998, 1
        %v1010 = vrot.slane %v999, 1
        %1011 = vrot.lane.b32.xlu0 %v1000, 92
        %v1012 = vpop.permute.xlu0 %1011
        %1013 = vrot.lane.b32.xlu0 %v1001, 92
        %v1014 = vpop.permute.xlu0 %1013
        %1015 = vrot.lane.b32.xlu0 %v1002, 92
        %v1016 = vpop.permute.xlu0 %1015
        %1017 = vrot.lane.b32.xlu0 %v1003, 92
        %v1018 = vpop.permute.xlu0 %1017
        %1019 = vrot.lane.b32.xlu0 %v1004, 92
        %v1020 = vpop.permute.xlu0 %1019
        %1021 = vrot.lane.b32.xlu0 %v1005, 92
        %v1022 = vpop.permute.xlu0 %1021
        %1023 = vrot.lane.b32.xlu0 %v1006, 92
        %v1024 = vpop.permute.xlu0 %1023
        %1025 = vrot.lane.b32.xlu0 %v1007, 92
        %v1026 = vpop.permute.xlu0 %1025
        %1027 = vrot.lane.b32.xlu0 %v1008, 92
        %v1028 = vpop.permute.xlu0 %1027
        %1029 = vrot.lane.b32.xlu0 %v1009, 92
        %v1030 = vpop.permute.xlu0 %1029
        %1031 = vrot.lane.b32.xlu0 %v1010, 92
        %v1032 = vpop.permute.xlu0 %1031
        %vm1033 = vcmask 752640
        %v1034 = vsel %vm1033, %v1012, %v1014
        %v1035 = vsel %vm1033, %v1014, %v1016
        %v1036 = vsel %vm1033, %v1016, %v1018
        %v1037 = vsel %vm1033, %v1018, %v1020
        %v1038 = vsel %vm1033, %v1020, %v1022
        %v1039 = vsel %vm1033, %v1022, %v1024
        %v1040 = vsel %vm1033, %v1024, %v1026
        %v1041 = vsel %vm1033, %v1026, %v1028
        %v1042 = vsel %vm1033, %v1028, %v1030
        %v1043 = vsel %vm1033, %v1030, %v1032
        %1055 = vst [vmem:[#allocation2 + $0x58] sm:$0x80] %v1034
        %1056 = vst [vmem:[#allocation2 + $0x60] sm:$0x80] %v1035
        %1057 = vst [vmem:[#allocation2 + $0x68] sm:$0x80] %v1036
        %1058 = vst [vmem:[#allocation2 + $0x70] sm:$0x80] %v1037
        %1059 = vst [vmem:[#allocation2 + $0x78] sm:$0x80] %v1038
        %1060 = vst [vmem:[#allocation2 + $0x80] sm:$0x80] %v1039
        %1061 = vst [vmem:[#allocation2 + $0x88] sm:$0x80] %v1040
        %1062 = vst [vmem:[#allocation2 + $0x90] sm:$0x80] %v1041
        %1063 = vst [vmem:[#allocation2 + $0x98] sm:$0x80] %v1042
        %1064 = vst [vmem:[#allocation2 + $0xa0] sm:$0x80] %v1043
        %vm1065 = vcmask 130055
        %1066 = vst.msk [vmem:[#allocation2 + $0xa8] sm:$0x80] %vm1065, %v1032
        %1067 = vst [vmem:[#allocation2 + $0xb0] sm:$0x3] %v1034
        %1068 = vst [vmem:[#allocation2 + $0xb8] sm:$0x3] %v1035
        %1069 = vst [vmem:[#allocation2 + $0xc0] sm:$0x3] %v1036
        %1070 = vst [vmem:[#allocation2 + $0xc8] sm:$0x3] %v1037
        %1071 = vst [vmem:[#allocation2 + $0xd0] sm:$0x3] %v1038
        %1072 = vst [vmem:[#allocation2 + $0xd8] sm:$0x3] %v1039
        %1073 = vst [vmem:[#allocation2 + $0xe0] sm:$0x3] %v1040
        %1074 = vst [vmem:[#allocation2 + $0xe8] sm:$0x3] %v1041
        %1075 = vst [vmem:[#allocation2 + $0xf0] sm:$0x3] %v1042
        %1076 = vst [vmem:[#allocation2 + $0xf8] sm:$0x3] %v1043
        %vm1077 = vcmask 123904
        %1078 = vst.msk [vmem:[#allocation2 + $0x100] sm:$0x3] %vm1077, %v1032
        %v1079 = vld [vmem:[%s514] sm:$0x77]
        %v1080 = vld [vmem:[%s514 + $0x8] sm:$0x77]
        %v1081 = vld [vmem:[%s514 + $0x10] sm:$0x77]
        %v1082 = vld [vmem:[%s514 + $0x18] sm:$0x77]
        %v1083 = vld [vmem:[%s514 + $0x20] sm:$0x77]
        %v1084 = vld [vmem:[%s514 + $0x28] sm:$0x7]
        %1091 = vst [vmem:[#allocation1] ss:$2 sm:$0xff] %v1079
        %s1092 = scalar_lea.vmem [#allocation1], 16
        %1093 = vst [vmem:[%s1092] ss:$2 sm:$0xff] %v1080
        %s1094 = scalar_lea.vmem [#allocation1], 32
        %1095 = vst [vmem:[%s1094] ss:$2 sm:$0xff] %v1081
        %s1096 = scalar_lea.vmem [#allocation1], 48
        %1097 = vst [vmem:[%s1096] ss:$2 sm:$0xff] %v1082
        %v1098 = vld.sshfl [vmem:[#allocation1] sm:$0xff pattern:$0x75316420]
        %v1099 = vld.sshfl [vmem:[#allocation1 + $0x8] sm:$0xff pattern:$0x75316420]
        %v1100 = vld.sshfl [vmem:[#allocation1 + $0x10] sm:$0xff pattern:$0x75316420]
        %v1101 = vld.sshfl [vmem:[#allocation1 + $0x18] sm:$0xff pattern:$0x75316420]
        %v1102 = vld.sshfl [vmem:[#allocation1 + $0x20] sm:$0xff pattern:$0x75316420]
        %v1103 = vld.sshfl [vmem:[#allocation1 + $0x28] sm:$0xff pattern:$0x75316420]
        %v1104 = vld.sshfl [vmem:[#allocation1 + $0x30] sm:$0xff pattern:$0x75316420]
        %v1105 = vld.sshfl [vmem:[#allocation1 + $0x38] sm:$0xff pattern:$0x75316420]
        %1106 = vst [vmem:[#allocation1] ss:$2 sm:$0xff] %v1083
        %1107 = vst [vmem:[%s1092] ss:$2 sm:$0xff] %v1084
        %v1108 = vld.sshfl [vmem:[#allocation1] sm:$0xff pattern:$0x75316420]
        %v1109 = vld.sshfl [vmem:[#allocation1 + $0x8] sm:$0xff pattern:$0x75316420]
        %v1110 = vld.sshfl [vmem:[#allocation1 + $0x10] sm:$0xff pattern:$0x75316420]
        %v1111 = vrot.slane %v1098, 6
        %v1112 = vrot.slane %v1099, 6
        %v1113 = vrot.slane %v1100, 6
        %v1114 = vrot.slane %v1101, 6
        %v1115 = vrot.slane %v1102, 6
        %v1116 = vrot.slane %v1103, 6
        %v1117 = vrot.slane %v1104, 6
        %v1118 = vrot.slane %v1105, 6
        %v1119 = vrot.slane %v1108, 6
        %v1120 = vrot.slane %v1109, 6
        %v1121 = vrot.slane %v1110, 6
        %1122 = vrot.lane.b32.xlu0 %v1111, 91
        %v1123 = vpop.permute.xlu0 %1122
        %1124 = vrot.lane.b32.xlu0 %v1112, 91
        %v1125 = vpop.permute.xlu0 %1124
        %1126 = vrot.lane.b32.xlu0 %v1113, 91
        %v1127 = vpop.permute.xlu0 %1126
        %1128 = vrot.lane.b32.xlu0 %v1114, 91
        %v1129 = vpop.permute.xlu0 %1128
        %1130 = vrot.lane.b32.xlu0 %v1115, 91
        %v1131 = vpop.permute.xlu0 %1130
        %1132 = vrot.lane.b32.xlu0 %v1116, 91
        %v1133 = vpop.permute.xlu0 %1132
        %1134 = vrot.lane.b32.xlu0 %v1117, 91
        %v1135 = vpop.permute.xlu0 %1134
        %1136 = vrot.lane.b32.xlu0 %v1118, 91
        %v1137 = vpop.permute.xlu0 %1136
        %1138 = vrot.lane.b32.xlu0 %v1119, 91
        %v1139 = vpop.permute.xlu0 %1138
        %1140 = vrot.lane.b32.xlu0 %v1120, 91
        %v1141 = vpop.permute.xlu0 %1140
        %1142 = vrot.lane.b32.xlu0 %v1121, 91
        %v1143 = vpop.permute.xlu0 %1142
        %vm1144 = vcmask 744448
        %v1145 = vsel %vm1144, %v1123, %v1125
        %v1146 = vsel %vm1144, %v1125, %v1127
        %v1147 = vsel %vm1144, %v1127, %v1129
        %v1148 = vsel %vm1144, %v1129, %v1131
        %v1149 = vsel %vm1144, %v1131, %v1133
        %v1150 = vsel %vm1144, %v1133, %v1135
        %v1151 = vsel %vm1144, %v1135, %v1137
        %v1152 = vsel %vm1144, %v1137, %v1139
        %v1153 = vsel %vm1144, %v1139, %v1141
        %v1154 = vsel %vm1144, %v1141, %v1143
        %1166 = vst [vmem:[#allocation2 + $0xb0] sm:$0x1c] %v1145
        %1167 = vst [vmem:[#allocation2 + $0xb8] sm:$0x1c] %v1146
        %1168 = vst [vmem:[#allocation2 + $0xc0] sm:$0x1c] %v1147
        %1169 = vst [vmem:[#allocation2 + $0xc8] sm:$0x1c] %v1148
        %1170 = vst [vmem:[#allocation2 + $0xd0] sm:$0x1c] %v1149
        %1171 = vst [vmem:[#allocation2 + $0xd8] sm:$0x1c] %v1150
        %1172 = vst [vmem:[#allocation2 + $0xe0] sm:$0x1c] %v1151
        %1173 = vst [vmem:[#allocation2 + $0xe8] sm:$0x1c] %v1152
        %1174 = vst [vmem:[#allocation2 + $0xf0] sm:$0x1c] %v1153
        %1175 = vst [vmem:[#allocation2 + $0xf8] sm:$0x1c] %v1154
        %vm1176 = vcmask 126978
        %1177 = vst.msk [vmem:[#allocation2 + $0x100] sm:$0x1c] %vm1176, %v1143
        %v1178 = vld [vmem:[%s514] sm:$0x77]
        %v1179 = vld [vmem:[%s514 + $0x8] sm:$0x77]
        %v1180 = vld [vmem:[%s514 + $0x10] sm:$0x77]
        %v1181 = vld [vmem:[%s514 + $0x18] sm:$0x77]
        %v1182 = vld [vmem:[%s514 + $0x20] sm:$0x77]
        %v1183 = vld [vmem:[%s514 + $0x28] sm:$0x7]
        %1190 = vst [vmem:[#allocation1] ss:$2 sm:$0xff] %v1178
        %s1191 = scalar_lea.vmem [#allocation1], 16
        %1192 = vst [vmem:[%s1191] ss:$2 sm:$0xff] %v1179
        %s1193 = scalar_lea.vmem [#allocation1], 32
        %1194 = vst [vmem:[%s1193] ss:$2 sm:$0xff] %v1180
        %s1195 = scalar_lea.vmem [#allocation1], 48
        %1196 = vst [vmem:[%s1195] ss:$2 sm:$0xff] %v1181
        %v1197 = vld.sshfl [vmem:[#allocation1] sm:$0xff pattern:$0x75316420]
        %v1198 = vld.sshfl [vmem:[#allocation1 + $0x8] sm:$0xff pattern:$0x75316420]
        %v1199 = vld.sshfl [vmem:[#allocation1 + $0x10] sm:$0xff pattern:$0x75316420]
        %v1200 = vld.sshfl [vmem:[#allocation1 + $0x18] sm:$0xff pattern:$0x75316420]
        %v1201 = vld.sshfl [vmem:[#allocation1 + $0x20] sm:$0xff pattern:$0x75316420]
        %v1202 = vld.sshfl [vmem:[#allocation1 + $0x28] sm:$0xff pattern:$0x75316420]
        %v1203 = vld.sshfl [vmem:[#allocation1 + $0x30] sm:$0xff pattern:$0x75316420]
        %v1204 = vld.sshfl [vmem:[#allocation1 + $0x38] sm:$0xff pattern:$0x75316420]
        %1205 = vst [vmem:[#allocation1] ss:$2 sm:$0xff] %v1182
        %1206 = vst [vmem:[%s1191] ss:$2 sm:$0xff] %v1183
        %v1207 = vld.sshfl [vmem:[#allocation1] sm:$0xff pattern:$0x75316420]
        %v1208 = vld.sshfl [vmem:[#allocation1 + $0x8] sm:$0xff pattern:$0x75316420]
        %v1209 = vld.sshfl [vmem:[#allocation1 + $0x10] sm:$0xff pattern:$0x75316420]
        %v1210 = vrot.slane %v1197, 3
        %v1211 = vrot.slane %v1198, 3
        %v1212 = vrot.slane %v1199, 3
        %v1213 = vrot.slane %v1200, 3
        %v1214 = vrot.slane %v1201, 3
        %v1215 = vrot.slane %v1202, 3
        %v1216 = vrot.slane %v1203, 3
        %v1217 = vrot.slane %v1204, 3
        %v1218 = vrot.slane %v1207, 3
        %v1219 = vrot.slane %v1208, 3
        %v1220 = vrot.slane %v1209, 3
        %1221 = vrot.lane.b32.xlu0 %v1210, 90
        %v1222 = vpop.permute.xlu0 %1221
        %1223 = vrot.lane.b32.xlu0 %v1211, 90
        %v1224 = vpop.permute.xlu0 %1223
        %1225 = vrot.lane.b32.xlu0 %v1212, 90
        %v1226 = vpop.permute.xlu0 %1225
        %1227 = vrot.lane.b32.xlu0 %v1213, 90
        %v1228 = vpop.permute.xlu0 %1227
        %1229 = vrot.lane.b32.xlu0 %v1214, 90
        %v1230 = vpop.permute.xlu0 %1229
        %1231 = vrot.lane.b32.xlu0 %v1215, 90
        %v1232 = vpop.permute.xlu0 %1231
        %1233 = vrot.lane.b32.xlu0 %v1216, 90
        %v1234 = vpop.permute.xlu0 %1233
        %1235 = vrot.lane.b32.xlu0 %v1217, 90
        %v1236 = vpop.permute.xlu0 %1235
        %1237 = vrot.lane.b32.xlu0 %v1218, 90
        %v1238 = vpop.permute.xlu0 %1237
        %1239 = vrot.lane.b32.xlu0 %v1219, 90
        %v1240 = vpop.permute.xlu0 %1239
        %1241 = vrot.lane.b32.xlu0 %v1220, 90
        %v1242 = vpop.permute.xlu0 %1241
        %vm1243 = vcmask 736256
        %v1244 = vsel %vm1243, %v1222, %v1224
        %v1245 = vsel %vm1243, %v1224, %v1226
        %v1246 = vsel %vm1243, %v1226, %v1228
        %v1247 = vsel %vm1243, %v1228, %v1230
        %v1248 = vsel %vm1243, %v1230, %v1232
        %v1249 = vsel %vm1243, %v1232, %v1234
        %v1250 = vsel %vm1243, %v1234, %v1236
        %v1251 = vsel %vm1243, %v1236, %v1238
        %v1252 = vsel %vm1243, %v1238, %v1240
        %v1253 = vsel %vm1243, %v1240, %v1242
        %1265 = vst [vmem:[#allocation2 + $0xb0] sm:$0xe0] %v1244
        %1266 = vst [vmem:[#allocation2 + $0xb8] sm:$0xe0] %v1245
        %1267 = vst [vmem:[#allocation2 + $0xc0] sm:$0xe0] %v1246
        %1268 = vst [vmem:[#allocation2 + $0xc8] sm:$0xe0] %v1247
        %1269 = vst [vmem:[#allocation2 + $0xd0] sm:$0xe0] %v1248
        %1270 = vst [vmem:[#allocation2 + $0xd8] sm:$0xe0] %v1249
        %1271 = vst [vmem:[#allocation2 + $0xe0] sm:$0xe0] %v1250
        %1272 = vst [vmem:[#allocation2 + $0xe8] sm:$0xe0] %v1251
        %1273 = vst [vmem:[#allocation2 + $0xf0] sm:$0xe0] %v1252
        %1274 = vst [vmem:[#allocation2 + $0xf8] sm:$0xe0] %v1253
        %vm1275 = vcmask 130053
        %1276 = vst.msk [vmem:[#allocation2 + $0x100] sm:$0xe0] %vm1275, %v1242
        %v1277 = vld [vmem:[%s514] sm:$0x77]
        %v1278 = vld [vmem:[%s514 + $0x8] sm:$0x77]
        %v1279 = vld [vmem:[%s514 + $0x10] sm:$0x77]
        %v1280 = vld [vmem:[%s514 + $0x18] sm:$0x77]
        %v1281 = vld [vmem:[%s514 + $0x20] sm:$0x77]
        %v1282 = vld [vmem:[%s514 + $0x28] sm:$0x7]
        %1289 = vst [vmem:[#allocation1] ss:$2 sm:$0xff] %v1277
        %s1290 = scalar_lea.vmem [#allocation1], 16
        %1291 = vst [vmem:[%s1290] ss:$2 sm:$0xff] %v1278
        %s1292 = scalar_lea.vmem [#allocation1], 32
        %1293 = vst [vmem:[%s1292] ss:$2 sm:$0xff] %v1279
        %s1294 = scalar_lea.vmem [#allocation1], 48
        %1295 = vst [vmem:[%s1294] ss:$2 sm:$0xff] %v1280
        %v1296 = vld.sshfl [vmem:[#allocation1] sm:$0xff pattern:$0x75316420]
        %v1297 = vld.sshfl [vmem:[#allocation1 + $0x8] sm:$0xff pattern:$0x75316420]
        %v1298 = vld.sshfl [vmem:[#allocation1 + $0x10] sm:$0xff pattern:$0x75316420]
        %v1299 = vld.sshfl [vmem:[#allocation1 + $0x18] sm:$0xff pattern:$0x75316420]
        %v1300 = vld.sshfl [vmem:[#allocation1 + $0x20] sm:$0xff pattern:$0x75316420]
        %v1301 = vld.sshfl [vmem:[#allocation1 + $0x28] sm:$0xff pattern:$0x75316420]
        %v1302 = vld.sshfl [vmem:[#allocation1 + $0x30] sm:$0xff pattern:$0x75316420]
        %v1303 = vld.sshfl [vmem:[#allocation1 + $0x38] sm:$0xff pattern:$0x75316420]
        %1304 = vst [vmem:[#allocation1] ss:$2 sm:$0xff] %v1281
        %1305 = vst [vmem:[%s1290] ss:$2 sm:$0xff] %v1282
        %v1306 = vld.sshfl [vmem:[#allocation1] sm:$0xff pattern:$0x75316420]
        %v1307 = vld.sshfl [vmem:[#allocation1 + $0x8] sm:$0xff pattern:$0x75316420]
        %v1308 = vld.sshfl [vmem:[#allocation1 + $0x10] sm:$0xff pattern:$0x75316420]
        %1309 = vrot.lane.b32.xlu0 %v1296, 89
        %v1310 = vpop.permute.xlu0 %1309
        %1311 = vrot.lane.b32.xlu0 %v1297, 89
        %v1312 = vpop.permute.xlu0 %1311
        %1313 = vrot.lane.b32.xlu0 %v1298, 89
        %v1314 = vpop.permute.xlu0 %1313
        %1315 = vrot.lane.b32.xlu0 %v1299, 89
        %v1316 = vpop.permute.xlu0 %1315
        %1317 = vrot.lane.b32.xlu0 %v1300, 89
        %v1318 = vpop.permute.xlu0 %1317
        %1319 = vrot.lane.b32.xlu0 %v1301, 89
        %v1320 = vpop.permute.xlu0 %1319
        %1321 = vrot.lane.b32.xlu0 %v1302, 89
        %v1322 = vpop.permute.xlu0 %1321
        %1323 = vrot.lane.b32.xlu0 %v1303, 89
        %v1324 = vpop.permute.xlu0 %1323
        %1325 = vrot.lane.b32.xlu0 %v1306, 89
        %v1326 = vpop.permute.xlu0 %1325
        %1327 = vrot.lane.b32.xlu0 %v1307, 89
        %v1328 = vpop.permute.xlu0 %1327
        %1329 = vrot.lane.b32.xlu0 %v1308, 89
        %v1330 = vpop.permute.xlu0 %1329
        %vm1331 = vcmask 728064
        %v1332 = vsel %vm1331, %v1310, %v1312
        %v1333 = vsel %vm1331, %v1312, %v1314
        %v1334 = vsel %vm1331, %v1314, %v1316
        %v1335 = vsel %vm1331, %v1316, %v1318
        %v1336 = vsel %vm1331, %v1318, %v1320
        %v1337 = vsel %vm1331, %v1320, %v1322
        %v1338 = vsel %vm1331, %v1322, %v1324
        %v1339 = vsel %vm1331, %v1324, %v1326
        %v1340 = vsel %vm1331, %v1326, %v1328
        %v1341 = vsel %vm1331, %v1328, %v1330
        %1353 = vst [vmem:[#allocation2 + $0x108] sm:$0x7] %v1332
        %1354 = vst [vmem:[#allocation2 + $0x110] sm:$0x7] %v1333
        %1355 = vst [vmem:[#allocation2 + $0x118] sm:$0x7] %v1334
        %1356 = vst [vmem:[#allocation2 + $0x120] sm:$0x7] %v1335
        %1357 = vst [vmem:[#allocation2 + $0x128] sm:$0x7] %v1336
        %1358 = vst [vmem:[#allocation2 + $0x130] sm:$0x7] %v1337
        %1359 = vst [vmem:[#allocation2 + $0x138] sm:$0x7] %v1338
        %1360 = vst [vmem:[#allocation2 + $0x140] sm:$0x7] %v1339
        %1361 = vst [vmem:[#allocation2 + $0x148] sm:$0x7] %v1340
        %1362 = vst [vmem:[#allocation2 + $0x150] sm:$0x7] %v1341
        %1363 = vst.msk [vmem:[#allocation2 + $0x158] sm:$0x7] %vm568, %v1330
        %v1364 = vld [vmem:[%s514] sm:$0x77]
        %v1365 = vld [vmem:[%s514 + $0x8] sm:$0x77]
        %v1366 = vld [vmem:[%s514 + $0x10] sm:$0x77]
        %v1367 = vld [vmem:[%s514 + $0x18] sm:$0x77]
        %v1368 = vld [vmem:[%s514 + $0x20] sm:$0x77]
        %v1369 = vld [vmem:[%s514 + $0x28] sm:$0x7]
        %1376 = vst [vmem:[#allocation1] ss:$2 sm:$0xff] %v1364
        %s1377 = scalar_lea.vmem [#allocation1], 16
        %1378 = vst [vmem:[%s1377] ss:$2 sm:$0xff] %v1365
        %s1379 = scalar_lea.vmem [#allocation1], 32
        %1380 = vst [vmem:[%s1379] ss:$2 sm:$0xff] %v1366
        %s1381 = scalar_lea.vmem [#allocation1], 48
        %1382 = vst [vmem:[%s1381] ss:$2 sm:$0xff] %v1367
        %v1383 = vld.sshfl [vmem:[#allocation1] sm:$0xff pattern:$0x75316420]
        %v1384 = vld.sshfl [vmem:[#allocation1 + $0x8] sm:$0xff pattern:$0x75316420]
        %v1385 = vld.sshfl [vmem:[#allocation1 + $0x10] sm:$0xff pattern:$0x75316420]
        %v1386 = vld.sshfl [vmem:[#allocation1 + $0x18] sm:$0xff pattern:$0x75316420]
        %v1387 = vld.sshfl [vmem:[#allocation1 + $0x20] sm:$0xff pattern:$0x75316420]
        %v1388 = vld.sshfl [vmem:[#allocation1 + $0x28] sm:$0xff pattern:$0x75316420]
        %v1389 = vld.sshfl [vmem:[#allocation1 + $0x30] sm:$0xff pattern:$0x75316420]
        %v1390 = vld.sshfl [vmem:[#allocation1 + $0x38] sm:$0xff pattern:$0x75316420]
        %1391 = vst [vmem:[#allocation1] ss:$2 sm:$0xff] %v1368
        %1392 = vst [vmem:[%s1377] ss:$2 sm:$0xff] %v1369
        %v1393 = vld.sshfl [vmem:[#allocation1] sm:$0xff pattern:$0x75316420]
        %v1394 = vld.sshfl [vmem:[#allocation1 + $0x8] sm:$0xff pattern:$0x75316420]
        %v1395 = vld.sshfl [vmem:[#allocation1 + $0x10] sm:$0xff pattern:$0x75316420]
        %v1396 = vrot.slane %v1383, 5
        %v1397 = vrot.slane %v1384, 5
        %v1398 = vrot.slane %v1385, 5
        %v1399 = vrot.slane %v1386, 5
        %v1400 = vrot.slane %v1387, 5
        %v1401 = vrot.slane %v1388, 5
        %v1402 = vrot.slane %v1389, 5
        %v1403 = vrot.slane %v1390, 5
        %v1404 = vrot.slane %v1393, 5
        %v1405 = vrot.slane %v1394, 5
        %v1406 = vrot.slane %v1395, 5
        %1407 = vrot.lane.b32.xlu0 %v1396, 88
        %v1408 = vpop.permute.xlu0 %1407
        %1409 = vrot.lane.b32.xlu0 %v1397, 88
        %v1410 = vpop.permute.xlu0 %1409
        %1411 = vrot.lane.b32.xlu0 %v1398, 88
        %v1412 = vpop.permute.xlu0 %1411
        %1413 = vrot.lane.b32.xlu0 %v1399, 88
        %v1414 = vpop.permute.xlu0 %1413
        %1415 = vrot.lane.b32.xlu0 %v1400, 88
        %v1416 = vpop.permute.xlu0 %1415
        %1417 = vrot.lane.b32.xlu0 %v1401, 88
        %v1418 = vpop.permute.xlu0 %1417
        %1419 = vrot.lane.b32.xlu0 %v1402, 88
        %v1420 = vpop.permute.xlu0 %1419
        %1421 = vrot.lane.b32.xlu0 %v1403, 88
        %v1422 = vpop.permute.xlu0 %1421
        %1423 = vrot.lane.b32.xlu0 %v1404, 88
        %v1424 = vpop.permute.xlu0 %1423
        %1425 = vrot.lane.b32.xlu0 %v1405, 88
        %v1426 = vpop.permute.xlu0 %1425
        %1427 = vrot.lane.b32.xlu0 %v1406, 88
        %v1428 = vpop.permute.xlu0 %1427
        %vm1429 = vcmask 719872
        %v1430 = vsel %vm1429, %v1408, %v1410
        %v1431 = vsel %vm1429, %v1410, %v1412
        %v1432 = vsel %vm1429, %v1412, %v1414
        %v1433 = vsel %vm1429, %v1414, %v1416
        %v1434 = vsel %vm1429, %v1416, %v1418
        %v1435 = vsel %vm1429, %v1418, %v1420
        %v1436 = vsel %vm1429, %v1420, %v1422
        %v1437 = vsel %vm1429, %v1422, %v1424
        %v1438 = vsel %vm1429, %v1424, %v1426
        %v1439 = vsel %vm1429, %v1426, %v1428
        %1451 = vst [vmem:[#allocation2 + $0x108] sm:$0x38] %v1430
        %1452 = vst [vmem:[#allocation2 + $0x110] sm:$0x38] %v1431
        %1453 = vst [vmem:[#allocation2 + $0x118] sm:$0x38] %v1432
        %1454 = vst [vmem:[#allocation2 + $0x120] sm:$0x38] %v1433
        %1455 = vst [vmem:[#allocation2 + $0x128] sm:$0x38] %v1434
        %1456 = vst [vmem:[#allocation2 + $0x130] sm:$0x38] %v1435
        %1457 = vst [vmem:[#allocation2 + $0x138] sm:$0x38] %v1436
        %1458 = vst [vmem:[#allocation2 + $0x140] sm:$0x38] %v1437
        %1459 = vst [vmem:[#allocation2 + $0x148] sm:$0x38] %v1438
        %1460 = vst [vmem:[#allocation2 + $0x150] sm:$0x38] %v1439
        %1461 = vst.msk [vmem:[#allocation2 + $0x158] sm:$0x38] %vm667, %v1428
        %v1462 = vld [vmem:[%s514] sm:$0x77]
        %v1463 = vld [vmem:[%s514 + $0x8] sm:$0x77]
        %v1464 = vld [vmem:[%s514 + $0x10] sm:$0x77]
        %v1465 = vld [vmem:[%s514 + $0x18] sm:$0x77]
        %v1466 = vld [vmem:[%s514 + $0x20] sm:$0x77]
        %v1467 = vld [vmem:[%s514 + $0x28] sm:$0x7]
        %1474 = vst [vmem:[#allocation1] ss:$2 sm:$0xff] %v1462
        %s1475 = scalar_lea.vmem [#allocation1], 16
        %1476 = vst [vmem:[%s1475] ss:$2 sm:$0xff] %v1463
        %s1477 = scalar_lea.vmem [#allocation1], 32
        %1478 = vst [vmem:[%s1477] ss:$2 sm:$0xff] %v1464
        %s1479 = scalar_lea.vmem [#allocation1], 48
        %1480 = vst [vmem:[%s1479] ss:$2 sm:$0xff] %v1465
        %v1481 = vld.sshfl [vmem:[#allocation1] sm:$0xff pattern:$0x75316420]
        %v1482 = vld.sshfl [vmem:[#allocation1 + $0x8] sm:$0xff pattern:$0x75316420]
        %v1483 = vld.sshfl [vmem:[#allocation1 + $0x10] sm:$0xff pattern:$0x75316420]
        %v1484 = vld.sshfl [vmem:[#allocation1 + $0x18] sm:$0xff pattern:$0x75316420]
        %v1485 = vld.sshfl [vmem:[#allocation1 + $0x20] sm:$0xff pattern:$0x75316420]
        %v1486 = vld.sshfl [vmem:[#allocation1 + $0x28] sm:$0xff pattern:$0x75316420]
        %v1487 = vld.sshfl [vmem:[#allocation1 + $0x30] sm:$0xff pattern:$0x75316420]
        %v1488 = vld.sshfl [vmem:[#allocation1 + $0x38] sm:$0xff pattern:$0x75316420]
        %1489 = vst [vmem:[#allocation1] ss:$2 sm:$0xff] %v1466
        %1490 = vst [vmem:[%s1475] ss:$2 sm:$0xff] %v1467
        %v1491 = vld.sshfl [vmem:[#allocation1] sm:$0xff pattern:$0x75316420]
        %v1492 = vld.sshfl [vmem:[#allocation1 + $0x8] sm:$0xff pattern:$0x75316420]
        %v1493 = vld.sshfl [vmem:[#allocation1 + $0x10] sm:$0xff pattern:$0x75316420]
        %v1494 = vrot.slane %v1481, 2
        %v1495 = vrot.slane %v1482, 2
        %v1496 = vrot.slane %v1483, 2
        %v1497 = vrot.slane %v1484, 2
        %v1498 = vrot.slane %v1485, 2
        %v1499 = vrot.slane %v1486, 2
        %v1500 = vrot.slane %v1487, 2
        %v1501 = vrot.slane %v1488, 2
        %v1502 = vrot.slane %v1491, 2
        %v1503 = vrot.slane %v1492, 2
        %v1504 = vrot.slane %v1493, 2
        %1505 = vrot.lane.b32.xlu0 %v1494, 56
        %v1506 = vpop.permute.xlu0 %1505
        %1507 = vrot.lane.b32.xlu0 %v1495, 56
        %v1508 = vpop.permute.xlu0 %1507
        %1509 = vrot.lane.b32.xlu0 %v1496, 56
        %v1510 = vpop.permute.xlu0 %1509
        %1511 = vrot.lane.b32.xlu0 %v1497, 56
        %v1512 = vpop.permute.xlu0 %1511
        %1513 = vrot.lane.b32.xlu0 %v1498, 56
        %v1514 = vpop.permute.xlu0 %1513
        %1515 = vrot.lane.b32.xlu0 %v1499, 56
        %v1516 = vpop.permute.xlu0 %1515
        %1517 = vrot.lane.b32.xlu0 %v1500, 56
        %v1518 = vpop.permute.xlu0 %1517
        %1519 = vrot.lane.b32.xlu0 %v1501, 56
        %v1520 = vpop.permute.xlu0 %1519
        %1521 = vrot.lane.b32.xlu0 %v1502, 56
        %v1522 = vpop.permute.xlu0 %1521
        %1523 = vrot.lane.b32.xlu0 %v1503, 56
        %v1524 = vpop.permute.xlu0 %1523
        %1525 = vrot.lane.b32.xlu0 %v1504, 56
        %v1526 = vpop.permute.xlu0 %1525
        %vm1527 = vcmask 457728
        %v1528 = vsel %vm1527, %v1506, %v1508
        %v1529 = vsel %vm1527, %v1508, %v1510
        %v1530 = vsel %vm1527, %v1510, %v1512
        %v1531 = vsel %vm1527, %v1512, %v1514
        %v1532 = vsel %vm1527, %v1514, %v1516
        %v1533 = vsel %vm1527, %v1516, %v1518
        %v1534 = vsel %vm1527, %v1518, %v1520
        %v1535 = vsel %vm1527, %v1520, %v1522
        %v1536 = vsel %vm1527, %v1522, %v1524
        %v1537 = vsel %vm1527, %v1524, %v1526
        %1549 = vst [vmem:[#allocation2 + $0x108] sm:$0xc0] %v1528
        %1550 = vst [vmem:[#allocation2 + $0x110] sm:$0xc0] %v1529
        %1551 = vst [vmem:[#allocation2 + $0x118] sm:$0xc0] %v1530
        %1552 = vst [vmem:[#allocation2 + $0x120] sm:$0xc0] %v1531
        %1553 = vst [vmem:[#allocation2 + $0x128] sm:$0xc0] %v1532
        %1554 = vst [vmem:[#allocation2 + $0x130] sm:$0xc0] %v1533
        %1555 = vst [vmem:[#allocation2 + $0x138] sm:$0xc0] %v1534
        %1556 = vst [vmem:[#allocation2 + $0x140] sm:$0xc0] %v1535
        %1557 = vst [vmem:[#allocation2 + $0x148] sm:$0xc0] %v1536
        %1558 = vst [vmem:[#allocation2 + $0x150] sm:$0xc0] %v1537
        %1559 = vst.msk [vmem:[#allocation2 + $0x158] sm:$0xc0] %vm766, %v1526
        %1560 = vst [vmem:[#allocation2 + $0x160] sm:$0x1] %v1528
        %1561 = vst [vmem:[#allocation2 + $0x168] sm:$0x1] %v1529
        %1562 = vst [vmem:[#allocation2 + $0x170] sm:$0x1] %v1530
        %1563 = vst [vmem:[#allocation2 + $0x178] sm:$0x1] %v1531
        %1564 = vst [vmem:[#allocation2 + $0x180] sm:$0x1] %v1532
        %1565 = vst [vmem:[#allocation2 + $0x188] sm:$0x1] %v1533
        %1566 = vst [vmem:[#allocation2 + $0x190] sm:$0x1] %v1534
        %1567 = vst [vmem:[#allocation2 + $0x198] sm:$0x1] %v1535
        %1568 = vst [vmem:[#allocation2 + $0x1a0] sm:$0x1] %v1536
        %1569 = vst [vmem:[#allocation2 + $0x1a8] sm:$0x1] %v1537
        %1570 = vst.msk [vmem:[#allocation2 + $0x1b0] sm:$0x1] %vm778, %v1526
        %v1571 = vld [vmem:[%s514] sm:$0x77]
        %v1572 = vld [vmem:[%s514 + $0x8] sm:$0x77]
        %v1573 = vld [vmem:[%s514 + $0x10] sm:$0x77]
        %v1574 = vld [vmem:[%s514 + $0x18] sm:$0x77]
        %v1575 = vld [vmem:[%s514 + $0x20] sm:$0x77]
        %v1576 = vld [vmem:[%s514 + $0x28] sm:$0x7]
        %1583 = vst [vmem:[#allocation1] ss:$2 sm:$0xff] %v1571
        %s1584 = scalar_lea.vmem [#allocation1], 16
        %1585 = vst [vmem:[%s1584] ss:$2 sm:$0xff] %v1572
        %s1586 = scalar_lea.vmem [#allocation1], 32
        %1587 = vst [vmem:[%s1586] ss:$2 sm:$0xff] %v1573
        %s1588 = scalar_lea.vmem [#allocation1], 48
        %1589 = vst [vmem:[%s1588] ss:$2 sm:$0xff] %v1574
        %v1590 = vld.sshfl [vmem:[#allocation1] sm:$0xff pattern:$0x75316420]
        %v1591 = vld.sshfl [vmem:[#allocation1 + $0x8] sm:$0xff pattern:$0x75316420]
        %v1592 = vld.sshfl [vmem:[#allocation1 + $0x10] sm:$0xff pattern:$0x75316420]
        %v1593 = vld.sshfl [vmem:[#allocation1 + $0x18] sm:$0xff pattern:$0x75316420]
        %v1594 = vld.sshfl [vmem:[#allocation1 + $0x20] sm:$0xff pattern:$0x75316420]
        %v1595 = vld.sshfl [vmem:[#allocation1 + $0x28] sm:$0xff pattern:$0x75316420]
        %v1596 = vld.sshfl [vmem:[#allocation1 + $0x30] sm:$0xff pattern:$0x75316420]
        %v1597 = vld.sshfl [vmem:[#allocation1 + $0x38] sm:$0xff pattern:$0x75316420]
        %1598 = vst [vmem:[#allocation1] ss:$2 sm:$0xff] %v1575
        %1599 = vst [vmem:[%s1584] ss:$2 sm:$0xff] %v1576
        %v1600 = vld.sshfl [vmem:[#allocation1] sm:$0xff pattern:$0x75316420]
        %v1601 = vld.sshfl [vmem:[#allocation1 + $0x8] sm:$0xff pattern:$0x75316420]
        %v1602 = vld.sshfl [vmem:[#allocation1 + $0x10] sm:$0xff pattern:$0x75316420]
        %v1603 = vrot.slane %v1590, 7
        %v1604 = vrot.slane %v1591, 7
        %v1605 = vrot.slane %v1592, 7
        %v1606 = vrot.slane %v1593, 7
        %v1607 = vrot.slane %v1594, 7
        %v1608 = vrot.slane %v1595, 7
        %v1609 = vrot.slane %v1596, 7
        %v1610 = vrot.slane %v1597, 7
        %v1611 = vrot.slane %v1600, 7
        %v1612 = vrot.slane %v1601, 7
        %v1613 = vrot.slane %v1602, 7
        %1614 = vrot.lane.b32.xlu0 %v1603, 55
        %v1615 = vpop.permute.xlu0 %1614
        %1616 = vrot.lane.b32.xlu0 %v1604, 55
        %v1617 = vpop.permute.xlu0 %1616
        %1618 = vrot.lane.b32.xlu0 %v1605, 55
        %v1619 = vpop.permute.xlu0 %1618
        %1620 = vrot.lane.b32.xlu0 %v1606, 55
        %v1621 = vpop.permute.xlu0 %1620
        %1622 = vrot.lane.b32.xlu0 %v1607, 55
        %v1623 = vpop.permute.xlu0 %1622
        %1624 = vrot.lane.b32.xlu0 %v1608, 55
        %v1625 = vpop.permute.xlu0 %1624
        %1626 = vrot.lane.b32.xlu0 %v1609, 55
        %v1627 = vpop.permute.xlu0 %1626
        %1628 = vrot.lane.b32.xlu0 %v1610, 55
        %v1629 = vpop.permute.xlu0 %1628
        %1630 = vrot.lane.b32.xlu0 %v1611, 55
        %v1631 = vpop.permute.xlu0 %1630
        %1632 = vrot.lane.b32.xlu0 %v1612, 55
        %v1633 = vpop.permute.xlu0 %1632
        %1634 = vrot.lane.b32.xlu0 %v1613, 55
        %v1635 = vpop.permute.xlu0 %1634
        %vm1636 = vcmask 449536
        %v1637 = vsel %vm1636, %v1615, %v1617
        %v1638 = vsel %vm1636, %v1617, %v1619
        %v1639 = vsel %vm1636, %v1619, %v1621
        %v1640 = vsel %vm1636, %v1621, %v1623
        %v1641 = vsel %vm1636, %v1623, %v1625
        %v1642 = vsel %vm1636, %v1625, %v1627
        %v1643 = vsel %vm1636, %v1627, %v1629
        %v1644 = vsel %vm1636, %v1629, %v1631
        %v1645 = vsel %vm1636, %v1631, %v1633
        %v1646 = vsel %vm1636, %v1633, %v1635
        %1658 = vst [vmem:[#allocation2 + $0x160] sm:$0xe] %v1637
        %1659 = vst [vmem:[#allocation2 + $0x168] sm:$0xe] %v1638
        %1660 = vst [vmem:[#allocation2 + $0x170] sm:$0xe] %v1639
        %1661 = vst [vmem:[#allocation2 + $0x178] sm:$0xe] %v1640
        %1662 = vst [vmem:[#allocation2 + $0x180] sm:$0xe] %v1641
        %1663 = vst [vmem:[#allocation2 + $0x188] sm:$0xe] %v1642
        %1664 = vst [vmem:[#allocation2 + $0x190] sm:$0xe] %v1643
        %1665 = vst [vmem:[#allocation2 + $0x198] sm:$0xe] %v1644
        %1666 = vst [vmem:[#allocation2 + $0x1a0] sm:$0xe] %v1645
        %1667 = vst [vmem:[#allocation2 + $0x1a8] sm:$0xe] %v1646
        %1668 = vst.msk [vmem:[#allocation2 + $0x1b0] sm:$0xe] %vm877, %v1635
        %v1669 = vld [vmem:[%s514] sm:$0x77]
        %v1670 = vld [vmem:[%s514 + $0x8] sm:$0x77]
        %v1671 = vld [vmem:[%s514 + $0x10] sm:$0x77]
        %v1672 = vld [vmem:[%s514 + $0x18] sm:$0x77]
        %v1673 = vld [vmem:[%s514 + $0x20] sm:$0x77]
        %v1674 = vld [vmem:[%s514 + $0x28] sm:$0x7]
        %s1681 = scalar_lea.vmem [#allocation1], 1
        %1682 = vst [vmem:[%s1681] ss:$2 sm:$0xff] %v1669
        %s1683 = scalar_lea.vmem [#allocation1], 17
        %1684 = vst [vmem:[%s1683] ss:$2 sm:$0xff] %v1670
        %s1685 = scalar_lea.vmem [#allocation1], 33
        %1686 = vst [vmem:[%s1685] ss:$2 sm:$0xff] %v1671
        %s1687 = scalar_lea.vmem [#allocation1], 49
        %1688 = vst [vmem:[%s1687] ss:$2 sm:$0xff] %v1672
        %v1689 = vld.sshfl [vmem:[#allocation1] sm:$0xff pattern:$0x75316420]
        %v1690 = vld.sshfl [vmem:[#allocation1 + $0x8] sm:$0xff pattern:$0x75316420]
        %v1691 = vld.sshfl [vmem:[#allocation1 + $0x10] sm:$0xff pattern:$0x75316420]
        %v1692 = vld.sshfl [vmem:[#allocation1 + $0x18] sm:$0xff pattern:$0x75316420]
        %v1693 = vld.sshfl [vmem:[#allocation1 + $0x20] sm:$0xff pattern:$0x75316420]
        %v1694 = vld.sshfl [vmem:[#allocation1 + $0x28] sm:$0xff pattern:$0x75316420]
        %v1695 = vld.sshfl [vmem:[#allocation1 + $0x30] sm:$0xff pattern:$0x75316420]
        %v1696 = vld.sshfl [vmem:[#allocation1 + $0x38] sm:$0xff pattern:$0x75316420]
        %1697 = vst [vmem:[%s1681] ss:$2 sm:$0xff] %v1673
        %1698 = vst [vmem:[%s1683] ss:$2 sm:$0xff] %v1674
        %v1699 = vld.sshfl [vmem:[#allocation1] sm:$0xff pattern:$0x75316420]
        %v1700 = vld.sshfl [vmem:[#allocation1 + $0x8] sm:$0xff pattern:$0x75316420]
        %v1701 = vld.sshfl [vmem:[#allocation1 + $0x10] sm:$0xff pattern:$0x75316420]
        %1702 = vrot.lane.b32.xlu0 %v1689, 54
        %v1703 = vpop.permute.xlu0 %1702
        %1704 = vrot.lane.b32.xlu0 %v1690, 54
        %v1705 = vpop.permute.xlu0 %1704
        %1706 = vrot.lane.b32.xlu0 %v1691, 54
        %v1707 = vpop.permute.xlu0 %1706
        %1708 = vrot.lane.b32.xlu0 %v1692, 54
        %v1709 = vpop.permute.xlu0 %1708
        %1710 = vrot.lane.b32.xlu0 %v1693, 54
        %v1711 = vpop.permute.xlu0 %1710
        %1712 = vrot.lane.b32.xlu0 %v1694, 54
        %v1713 = vpop.permute.xlu0 %1712
        %1714 = vrot.lane.b32.xlu0 %v1695, 54
        %v1715 = vpop.permute.xlu0 %1714
        %1716 = vrot.lane.b32.xlu0 %v1696, 54
        %v1717 = vpop.permute.xlu0 %1716
        %1718 = vrot.lane.b32.xlu0 %v1699, 54
        %v1719 = vpop.permute.xlu0 %1718
        %1720 = vrot.lane.b32.xlu0 %v1700, 54
        %v1721 = vpop.permute.xlu0 %1720
        %1722 = vrot.lane.b32.xlu0 %v1701, 54
        %v1723 = vpop.permute.xlu0 %1722
        %vm1724 = vcmask 441344
        %v1725 = vsel %vm1724, %v1703, %v1705
        %v1726 = vsel %vm1724, %v1705, %v1707
        %v1727 = vsel %vm1724, %v1707, %v1709
        %v1728 = vsel %vm1724, %v1709, %v1711
        %v1729 = vsel %vm1724, %v1711, %v1713
        %v1730 = vsel %vm1724, %v1713, %v1715
        %v1731 = vsel %vm1724, %v1715, %v1717
        %v1732 = vsel %vm1724, %v1717, %v1719
        %v1733 = vsel %vm1724, %v1719, %v1721
        %v1734 = vsel %vm1724, %v1721, %v1723
        %1746 = vst [vmem:[#allocation2 + $0x160] sm:$0x70] %v1725
        %1747 = vst [vmem:[#allocation2 + $0x168] sm:$0x70] %v1726
        %1748 = vst [vmem:[#allocation2 + $0x170] sm:$0x70] %v1727
        %1749 = vst [vmem:[#allocation2 + $0x178] sm:$0x70] %v1728
        %1750 = vst [vmem:[#allocation2 + $0x180] sm:$0x70] %v1729
        %1751 = vst [vmem:[#allocation2 + $0x188] sm:$0x70] %v1730
        %1752 = vst [vmem:[#allocation2 + $0x190] sm:$0x70] %v1731
        %1753 = vst [vmem:[#allocation2 + $0x198] sm:$0x70] %v1732
        %1754 = vst [vmem:[#allocation2 + $0x1a0] sm:$0x70] %v1733
        %1755 = vst [vmem:[#allocation2 + $0x1a8] sm:$0x70] %v1734
        %1756 = vst.msk [vmem:[#allocation2 + $0x1b0] sm:$0x70] %vm966, %v1723
        %v1757 = vld [vmem:[%s514] sm:$0x77]
        %v1758 = vld [vmem:[%s514 + $0x8] sm:$0x77]
        %v1759 = vld [vmem:[%s514 + $0x10] sm:$0x77]
        %v1760 = vld [vmem:[%s514 + $0x18] sm:$0x77]
        %v1761 = vld [vmem:[%s514 + $0x20] sm:$0x77]
        %v1762 = vld [vmem:[%s514 + $0x28] sm:$0x7]
        %1769 = vst [vmem:[#allocation1] ss:$2 sm:$0xff] %v1757
        %s1770 = scalar_lea.vmem [#allocation1], 16
        %1771 = vst [vmem:[%s1770] ss:$2 sm:$0xff] %v1758
        %s1772 = scalar_lea.vmem [#allocation1], 32
        %1773 = vst [vmem:[%s1772] ss:$2 sm:$0xff] %v1759
        %s1774 = scalar_lea.vmem [#allocation1], 48
        %1775 = vst [vmem:[%s1774] ss:$2 sm:$0xff] %v1760
        %v1776 = vld.sshfl [vmem:[#allocation1] sm:$0xff pattern:$0x75316420]
        %v1777 = vld.sshfl [vmem:[#allocation1 + $0x8] sm:$0xff pattern:$0x75316420]
        %v1778 = vld.sshfl [vmem:[#allocation1 + $0x10] sm:$0xff pattern:$0x75316420]
        %v1779 = vld.sshfl [vmem:[#allocation1 + $0x18] sm:$0xff pattern:$0x75316420]
        %v1780 = vld.sshfl [vmem:[#allocation1 + $0x20] sm:$0xff pattern:$0x75316420]
        %v1781 = vld.sshfl [vmem:[#allocation1 + $0x28] sm:$0xff pattern:$0x75316420]
        %v1782 = vld.sshfl [vmem:[#allocation1 + $0x30] sm:$0xff pattern:$0x75316420]
        %v1783 = vld.sshfl [vmem:[#allocation1 + $0x38] sm:$0xff pattern:$0x75316420]
        %1784 = vst [vmem:[#allocation1] ss:$2 sm:$0xff] %v1761
        %1785 = vst [vmem:[%s1770] ss:$2 sm:$0xff] %v1762
        %v1786 = vld.sshfl [vmem:[#allocation1] sm:$0xff pattern:$0x75316420]
        %v1787 = vld.sshfl [vmem:[#allocation1 + $0x8] sm:$0xff pattern:$0x75316420]
        %v1788 = vld.sshfl [vmem:[#allocation1 + $0x10] sm:$0xff pattern:$0x75316420]
        %v1789 = vrot.slane %v1776, 1
        %v1790 = vrot.slane %v1777, 1
        %v1791 = vrot.slane %v1778, 1
        %v1792 = vrot.slane %v1779, 1
        %v1793 = vrot.slane %v1780, 1
        %v1794 = vrot.slane %v1781, 1
        %v1795 = vrot.slane %v1782, 1
        %v1796 = vrot.slane %v1783, 1
        %v1797 = vrot.slane %v1786, 1
        %v1798 = vrot.slane %v1787, 1
        %v1799 = vrot.slane %v1788, 1
        %1800 = vrot.lane.b32.xlu0 %v1789, 53
        %v1801 = vpop.permute.xlu0 %1800
        %1802 = vrot.lane.b32.xlu0 %v1790, 53
        %v1803 = vpop.permute.xlu0 %1802
        %1804 = vrot.lane.b32.xlu0 %v1791, 53
        %v1805 = vpop.permute.xlu0 %1804
        %1806 = vrot.lane.b32.xlu0 %v1792, 53
        %v1807 = vpop.permute.xlu0 %1806
        %1808 = vrot.lane.b32.xlu0 %v1793, 53
        %v1809 = vpop.permute.xlu0 %1808
        %1810 = vrot.lane.b32.xlu0 %v1794, 53
        %v1811 = vpop.permute.xlu0 %1810
        %1812 = vrot.lane.b32.xlu0 %v1795, 53
        %v1813 = vpop.permute.xlu0 %1812
        %1814 = vrot.lane.b32.xlu0 %v1796, 53
        %v1815 = vpop.permute.xlu0 %1814
        %1816 = vrot.lane.b32.xlu0 %v1797, 53
        %v1817 = vpop.permute.xlu0 %1816
        %1818 = vrot.lane.b32.xlu0 %v1798, 53
        %v1819 = vpop.permute.xlu0 %1818
        %1820 = vrot.lane.b32.xlu0 %v1799, 53
        %v1821 = vpop.permute.xlu0 %1820
        %vm1822 = vcmask 433152
        %v1823 = vsel %vm1822, %v1801, %v1803
        %v1824 = vsel %vm1822, %v1803, %v1805
        %v1825 = vsel %vm1822, %v1805, %v1807
        %v1826 = vsel %vm1822, %v1807, %v1809
        %v1827 = vsel %vm1822, %v1809, %v1811
        %v1828 = vsel %vm1822, %v1811, %v1813
        %v1829 = vsel %vm1822, %v1813, %v1815
        %v1830 = vsel %vm1822, %v1815, %v1817
        %v1831 = vsel %vm1822, %v1817, %v1819
        %v1832 = vsel %vm1822, %v1819, %v1821
        %1844 = vst [vmem:[#allocation2 + $0x160] sm:$0x80] %v1823
        %1845 = vst [vmem:[#allocation2 + $0x168] sm:$0x80] %v1824
        %1846 = vst [vmem:[#allocation2 + $0x170] sm:$0x80] %v1825
        %1847 = vst [vmem:[#allocation2 + $0x178] sm:$0x80] %v1826
        %1848 = vst [vmem:[#allocation2 + $0x180] sm:$0x80] %v1827
        %1849 = vst [vmem:[#allocation2 + $0x188] sm:$0x80] %v1828
        %1850 = vst [vmem:[#allocation2 + $0x190] sm:$0x80] %v1829
        %1851 = vst [vmem:[#allocation2 + $0x198] sm:$0x80] %v1830
        %1852 = vst [vmem:[#allocation2 + $0x1a0] sm:$0x80] %v1831
        %1853 = vst [vmem:[#allocation2 + $0x1a8] sm:$0x80] %v1832
        %1854 = vst.msk [vmem:[#allocation2 + $0x1b0] sm:$0x80] %vm1065, %v1821
        %1855 = vst [vmem:[#allocation2 + $0x1b8] sm:$0x3] %v1823
        %1856 = vst [vmem:[#allocation2 + $0x1c0] sm:$0x3] %v1824
        %1857 = vst [vmem:[#allocation2 + $0x1c8] sm:$0x3] %v1825
        %1858 = vst [vmem:[#allocation2 + $0x1d0] sm:$0x3] %v1826
        %1859 = vst [vmem:[#allocation2 + $0x1d8] sm:$0x3] %v1827
        %1860 = vst [vmem:[#allocation2 + $0x1e0] sm:$0x3] %v1828
        %1861 = vst [vmem:[#allocation2 + $0x1e8] sm:$0x3] %v1829
        %1862 = vst [vmem:[#allocation2 + $0x1f0] sm:$0x3] %v1830
        %1863 = vst [vmem:[#allocation2 + $0x1f8] sm:$0x3] %v1831
        %1864 = vst [vmem:[#allocation2 + $0x200] sm:$0x3] %v1832
        %1865 = vst.msk [vmem:[#allocation2 + $0x208] sm:$0x3] %vm1077, %v1821
        %v1866 = vld [vmem:[%s514] sm:$0x77]
        %v1867 = vld [vmem:[%s514 + $0x8] sm:$0x77]
        %v1868 = vld [vmem:[%s514 + $0x10] sm:$0x77]
        %v1869 = vld [vmem:[%s514 + $0x18] sm:$0x77]
        %v1870 = vld [vmem:[%s514 + $0x20] sm:$0x77]
        %v1871 = vld [vmem:[%s514 + $0x28] sm:$0x7]
        %1878 = vst [vmem:[#allocation1] ss:$2 sm:$0xff] %v1866
        %s1879 = scalar_lea.vmem [#allocation1], 16
        %1880 = vst [vmem:[%s1879] ss:$2 sm:$0xff] %v1867
        %s1881 = scalar_lea.vmem [#allocation1], 32
        %1882 = vst [vmem:[%s1881] ss:$2 sm:$0xff] %v1868
        %s1883 = scalar_lea.vmem [#allocation1], 48
        %1884 = vst [vmem:[%s1883] ss:$2 sm:$0xff] %v1869
        %v1885 = vld.sshfl [vmem:[#allocation1] sm:$0xff pattern:$0x75316420]
        %v1886 = vld.sshfl [vmem:[#allocation1 + $0x8] sm:$0xff pattern:$0x75316420]
        %v1887 = vld.sshfl [vmem:[#allocation1 + $0x10] sm:$0xff pattern:$0x75316420]
        %v1888 = vld.sshfl [vmem:[#allocation1 + $0x18] sm:$0xff pattern:$0x75316420]
        %v1889 = vld.sshfl [vmem:[#allocation1 + $0x20] sm:$0xff pattern:$0x75316420]
        %v1890 = vld.sshfl [vmem:[#allocation1 + $0x28] sm:$0xff pattern:$0x75316420]
        %v1891 = vld.sshfl [vmem:[#allocation1 + $0x30] sm:$0xff pattern:$0x75316420]
        %v1892 = vld.sshfl [vmem:[#allocation1 + $0x38] sm:$0xff pattern:$0x75316420]
        %1893 = vst [vmem:[#allocation1] ss:$2 sm:$0xff] %v1870
        %1894 = vst [vmem:[%s1879] ss:$2 sm:$0xff] %v1871
        %v1895 = vld.sshfl [vmem:[#allocation1] sm:$0xff pattern:$0x75316420]
        %v1896 = vld.sshfl [vmem:[#allocation1 + $0x8] sm:$0xff pattern:$0x75316420]
        %v1897 = vld.sshfl [vmem:[#allocation1 + $0x10] sm:$0xff pattern:$0x75316420]
        %v1898 = vrot.slane %v1885, 6
        %v1899 = vrot.slane %v1886, 6
        %v1900 = vrot.slane %v1887, 6
        %v1901 = vrot.slane %v1888, 6
        %v1902 = vrot.slane %v1889, 6
        %v1903 = vrot.slane %v1890, 6
        %v1904 = vrot.slane %v1891, 6
        %v1905 = vrot.slane %v1892, 6
        %v1906 = vrot.slane %v1895, 6
        %v1907 = vrot.slane %v1896, 6
        %v1908 = vrot.slane %v1897, 6
        %1909 = vrot.lane.b32.xlu0 %v1898, 52
        %v1910 = vpop.permute.xlu0 %1909
        %1911 = vrot.lane.b32.xlu0 %v1899, 52
        %v1912 = vpop.permute.xlu0 %1911
        %1913 = vrot.lane.b32.xlu0 %v1900, 52
        %v1914 = vpop.permute.xlu0 %1913
        %1915 = vrot.lane.b32.xlu0 %v1901, 52
        %v1916 = vpop.permute.xlu0 %1915
        %1917 = vrot.lane.b32.xlu0 %v1902, 52
        %v1918 = vpop.permute.xlu0 %1917
        %1919 = vrot.lane.b32.xlu0 %v1903, 52
        %v1920 = vpop.permute.xlu0 %1919
        %1921 = vrot.lane.b32.xlu0 %v1904, 52
        %v1922 = vpop.permute.xlu0 %1921
        %1923 = vrot.lane.b32.xlu0 %v1905, 52
        %v1924 = vpop.permute.xlu0 %1923
        %1925 = vrot.lane.b32.xlu0 %v1906, 52
        %v1926 = vpop.permute.xlu0 %1925
        %1927 = vrot.lane.b32.xlu0 %v1907, 52
        %v1928 = vpop.permute.xlu0 %1927
        %1929 = vrot.lane.b32.xlu0 %v1908, 52
        %v1930 = vpop.permute.xlu0 %1929
        %vm1931 = vcmask 424960
        %v1932 = vsel %vm1931, %v1910, %v1912
        %v1933 = vsel %vm1931, %v1912, %v1914
        %v1934 = vsel %vm1931, %v1914, %v1916
        %v1935 = vsel %vm1931, %v1916, %v1918
        %v1936 = vsel %vm1931, %v1918, %v1920
        %v1937 = vsel %vm1931, %v1920, %v1922
        %v1938 = vsel %vm1931, %v1922, %v1924
        %v1939 = vsel %vm1931, %v1924, %v1926
        %v1940 = vsel %vm1931, %v1926, %v1928
        %v1941 = vsel %vm1931, %v1928, %v1930
        %1953 = vst [vmem:[#allocation2 + $0x1b8] sm:$0x1c] %v1932
        %1954 = vst [vmem:[#allocation2 + $0x1c0] sm:$0x1c] %v1933
        %1955 = vst [vmem:[#allocation2 + $0x1c8] sm:$0x1c] %v1934
        %1956 = vst [vmem:[#allocation2 + $0x1d0] sm:$0x1c] %v1935
        %1957 = vst [vmem:[#allocation2 + $0x1d8] sm:$0x1c] %v1936
        %1958 = vst [vmem:[#allocation2 + $0x1e0] sm:$0x1c] %v1937
        %1959 = vst [vmem:[#allocation2 + $0x1e8] sm:$0x1c] %v1938
        %1960 = vst [vmem:[#allocation2 + $0x1f0] sm:$0x1c] %v1939
        %1961 = vst [vmem:[#allocation2 + $0x1f8] sm:$0x1c] %v1940
        %1962 = vst [vmem:[#allocation2 + $0x200] sm:$0x1c] %v1941
        %1963 = vst.msk [vmem:[#allocation2 + $0x208] sm:$0x1c] %vm1176, %v1930
        %v1964 = vld [vmem:[%s514] sm:$0x77]
        %v1965 = vld [vmem:[%s514 + $0x8] sm:$0x77]
        %v1966 = vld [vmem:[%s514 + $0x10] sm:$0x77]
        %v1967 = vld [vmem:[%s514 + $0x18] sm:$0x77]
        %v1968 = vld [vmem:[%s514 + $0x20] sm:$0x77]
        %v1969 = vld [vmem:[%s514 + $0x28] sm:$0x7]
        %1976 = vst [vmem:[#allocation1] ss:$2 sm:$0xff] %v1964
        %s1977 = scalar_lea.vmem [#allocation1], 16
        %1978 = vst [vmem:[%s1977] ss:$2 sm:$0xff] %v1965
        %s1979 = scalar_lea.vmem [#allocation1], 32
        %1980 = vst [vmem:[%s1979] ss:$2 sm:$0xff] %v1966
        %s1981 = scalar_lea.vmem [#allocation1], 48
        %1982 = vst [vmem:[%s1981] ss:$2 sm:$0xff] %v1967
        %v1983 = vld.sshfl [vmem:[#allocation1] sm:$0xff pattern:$0x75316420]
        %v1984 = vld.sshfl [vmem:[#allocation1 + $0x8] sm:$0xff pattern:$0x75316420]
        %v1985 = vld.sshfl [vmem:[#allocation1 + $0x10] sm:$0xff pattern:$0x75316420]
        %v1986 = vld.sshfl [vmem:[#allocation1 + $0x18] sm:$0xff pattern:$0x75316420]
        %v1987 = vld.sshfl [vmem:[#allocation1 + $0x20] sm:$0xff pattern:$0x75316420]
        %v1988 = vld.sshfl [vmem:[#allocation1 + $0x28] sm:$0xff pattern:$0x75316420]
        %v1989 = vld.sshfl [vmem:[#allocation1 + $0x30] sm:$0xff pattern:$0x75316420]
        %v1990 = vld.sshfl [vmem:[#allocation1 + $0x38] sm:$0xff pattern:$0x75316420]
        %1991 = vst [vmem:[#allocation1] ss:$2 sm:$0xff] %v1968
        %1992 = vst [vmem:[%s1977] ss:$2 sm:$0xff] %v1969
        %v1993 = vld.sshfl [vmem:[#allocation1] sm:$0xff pattern:$0x75316420]
        %v1994 = vld.sshfl [vmem:[#allocation1 + $0x8] sm:$0xff pattern:$0x75316420]
        %v1995 = vld.sshfl [vmem:[#allocation1 + $0x10] sm:$0xff pattern:$0x75316420]
        %v1996 = vrot.slane %v1983, 3
        %v1997 = vrot.slane %v1984, 3
        %v1998 = vrot.slane %v1985, 3
        %v1999 = vrot.slane %v1986, 3
        %v2000 = vrot.slane %v1987, 3
        %v2001 = vrot.slane %v1988, 3
        %v2002 = vrot.slane %v1989, 3
        %v2003 = vrot.slane %v1990, 3
        %v2004 = vrot.slane %v1993, 3
        %v2005 = vrot.slane %v1994, 3
        %v2006 = vrot.slane %v1995, 3
        %2007 = vrot.lane.b32.xlu0 %v1996, 20
        %v2008 = vpop.permute.xlu0 %2007
        %2009 = vrot.lane.b32.xlu0 %v1997, 20
        %v2010 = vpop.permute.xlu0 %2009
        %2011 = vrot.lane.b32.xlu0 %v1998, 20
        %v2012 = vpop.permute.xlu0 %2011
        %2013 = vrot.lane.b32.xlu0 %v1999, 20
        %v2014 = vpop.permute.xlu0 %2013
        %2015 = vrot.lane.b32.xlu0 %v2000, 20
        %v2016 = vpop.permute.xlu0 %2015
        %2017 = vrot.lane.b32.xlu0 %v2001, 20
        %v2018 = vpop.permute.xlu0 %2017
        %2019 = vrot.lane.b32.xlu0 %v2002, 20
        %v2020 = vpop.permute.xlu0 %2019
        %2021 = vrot.lane.b32.xlu0 %v2003, 20
        %v2022 = vpop.permute.xlu0 %2021
        %2023 = vrot.lane.b32.xlu0 %v2004, 20
        %v2024 = vpop.permute.xlu0 %2023
        %2025 = vrot.lane.b32.xlu0 %v2005, 20
        %v2026 = vpop.permute.xlu0 %2025
        %2027 = vrot.lane.b32.xlu0 %v2006, 20
        %v2028 = vpop.permute.xlu0 %2027
        %vm2029 = vcmask 162816
        %v2030 = vsel %vm2029, %v2008, %v2010
        %v2031 = vsel %vm2029, %v2010, %v2012
        %v2032 = vsel %vm2029, %v2012, %v2014
        %v2033 = vsel %vm2029, %v2014, %v2016
        %v2034 = vsel %vm2029, %v2016, %v2018
        %v2035 = vsel %vm2029, %v2018, %v2020
        %v2036 = vsel %vm2029, %v2020, %v2022
        %v2037 = vsel %vm2029, %v2022, %v2024
        %v2038 = vsel %vm2029, %v2024, %v2026
        %v2039 = vsel %vm2029, %v2026, %v2028
        %2051 = vst [vmem:[#allocation2 + $0x1b8] sm:$0xe0] %v2030
        %2052 = vst [vmem:[#allocation2 + $0x1c0] sm:$0xe0] %v2031
        %2053 = vst [vmem:[#allocation2 + $0x1c8] sm:$0xe0] %v2032
        %2054 = vst [vmem:[#allocation2 + $0x1d0] sm:$0xe0] %v2033
        %2055 = vst [vmem:[#allocation2 + $0x1d8] sm:$0xe0] %v2034
        %2056 = vst [vmem:[#allocation2 + $0x1e0] sm:$0xe0] %v2035
        %2057 = vst [vmem:[#allocation2 + $0x1e8] sm:$0xe0] %v2036
        %2058 = vst [vmem:[#allocation2 + $0x1f0] sm:$0xe0] %v2037
        %2059 = vst [vmem:[#allocation2 + $0x1f8] sm:$0xe0] %v2038
        %2060 = vst [vmem:[#allocation2 + $0x200] sm:$0xe0] %v2039
        %2061 = vst.msk [vmem:[#allocation2 + $0x208] sm:$0xe0] %vm1275, %v2028
        %v2062 = vld [vmem:[%s514] sm:$0x77]
        %v2063 = vld [vmem:[%s514 + $0x8] sm:$0x77]
        %v2064 = vld [vmem:[%s514 + $0x10] sm:$0x77]
        %v2065 = vld [vmem:[%s514 + $0x18] sm:$0x77]
        %v2066 = vld [vmem:[%s514 + $0x20] sm:$0x77]
        %v2067 = vld [vmem:[%s514 + $0x28] sm:$0x7]
        %2074 = vst [vmem:[#allocation1] ss:$2 sm:$0xff] %v2062
        %s2075 = scalar_lea.vmem [#allocation1], 16
        %2076 = vst [vmem:[%s2075] ss:$2 sm:$0xff] %v2063
        %s2077 = scalar_lea.vmem [#allocation1], 32
        %2078 = vst [vmem:[%s2077] ss:$2 sm:$0xff] %v2064
        %s2079 = scalar_lea.vmem [#allocation1], 48
        %2080 = vst [vmem:[%s2079] ss:$2 sm:$0xff] %v2065
        %v2081 = vld.sshfl [vmem:[#allocation1] sm:$0xff pattern:$0x75316420]
        %v2082 = vld.sshfl [vmem:[#allocation1 + $0x8] sm:$0xff pattern:$0x75316420]
        %v2083 = vld.sshfl [vmem:[#allocation1 + $0x10] sm:$0xff pattern:$0x75316420]
        %v2084 = vld.sshfl [vmem:[#allocation1 + $0x18] sm:$0xff pattern:$0x75316420]
        %v2085 = vld.sshfl [vmem:[#allocation1 + $0x20] sm:$0xff pattern:$0x75316420]
        %v2086 = vld.sshfl [vmem:[#allocation1 + $0x28] sm:$0xff pattern:$0x75316420]
        %v2087 = vld.sshfl [vmem:[#allocation1 + $0x30] sm:$0xff pattern:$0x75316420]
        %v2088 = vld.sshfl [vmem:[#allocation1 + $0x38] sm:$0xff pattern:$0x75316420]
        %2089 = vst [vmem:[#allocation1] ss:$2 sm:$0xff] %v2066
        %2090 = vst [vmem:[%s2075] ss:$2 sm:$0xff] %v2067
        %v2091 = vld.sshfl [vmem:[#allocation1] sm:$0xff pattern:$0x75316420]
        %v2092 = vld.sshfl [vmem:[#allocation1 + $0x8] sm:$0xff pattern:$0x75316420]
        %v2093 = vld.sshfl [vmem:[#allocation1 + $0x10] sm:$0xff pattern:$0x75316420]
        %2094 = vrot.lane.b32.xlu0 %v2081, 19
        %v2095 = vpop.permute.xlu0 %2094
        %2096 = vrot.lane.b32.xlu0 %v2082, 19
        %v2097 = vpop.permute.xlu0 %2096
        %2098 = vrot.lane.b32.xlu0 %v2083, 19
        %v2099 = vpop.permute.xlu0 %2098
        %2100 = vrot.lane.b32.xlu0 %v2084, 19
        %v2101 = vpop.permute.xlu0 %2100
        %2102 = vrot.lane.b32.xlu0 %v2085, 19
        %v2103 = vpop.permute.xlu0 %2102
        %2104 = vrot.lane.b32.xlu0 %v2086, 19
        %v2105 = vpop.permute.xlu0 %2104
        %2106 = vrot.lane.b32.xlu0 %v2087, 19
        %v2107 = vpop.permute.xlu0 %2106
        %2108 = vrot.lane.b32.xlu0 %v2088, 19
        %v2109 = vpop.permute.xlu0 %2108
        %2110 = vrot.lane.b32.xlu0 %v2091, 19
        %v2111 = vpop.permute.xlu0 %2110
        %2112 = vrot.lane.b32.xlu0 %v2092, 19
        %v2113 = vpop.permute.xlu0 %2112
        %2114 = vrot.lane.b32.xlu0 %v2093, 19
        %v2115 = vpop.permute.xlu0 %2114
        %vm2116 = vcmask 154624
        %v2117 = vsel %vm2116, %v2095, %v2097
        %v2118 = vsel %vm2116, %v2097, %v2099
        %v2119 = vsel %vm2116, %v2099, %v2101
        %v2120 = vsel %vm2116, %v2101, %v2103
        %v2121 = vsel %vm2116, %v2103, %v2105
        %v2122 = vsel %vm2116, %v2105, %v2107
        %v2123 = vsel %vm2116, %v2107, %v2109
        %v2124 = vsel %vm2116, %v2109, %v2111
        %v2125 = vsel %vm2116, %v2111, %v2113
        %v2126 = vsel %vm2116, %v2113, %v2115
        %2138 = vst [vmem:[#allocation2 + $0x210] sm:$0x7] %v2117
        %2139 = vst [vmem:[#allocation2 + $0x218] sm:$0x7] %v2118
        %2140 = vst [vmem:[#allocation2 + $0x220] sm:$0x7] %v2119
        %2141 = vst [vmem:[#allocation2 + $0x228] sm:$0x7] %v2120
        %2142 = vst [vmem:[#allocation2 + $0x230] sm:$0x7] %v2121
        %2143 = vst [vmem:[#allocation2 + $0x238] sm:$0x7] %v2122
        %2144 = vst [vmem:[#allocation2 + $0x240] sm:$0x7] %v2123
        %2145 = vst [vmem:[#allocation2 + $0x248] sm:$0x7] %v2124
        %2146 = vst [vmem:[#allocation2 + $0x250] sm:$0x7] %v2125
        %2147 = vst [vmem:[#allocation2 + $0x258] sm:$0x7] %v2126
        %2148 = vst.msk [vmem:[#allocation2 + $0x260] sm:$0x7] %vm568, %v2115
        %v2149 = vld [vmem:[%s514] sm:$0x77]
        %v2150 = vld [vmem:[%s514 + $0x8] sm:$0x77]
        %v2151 = vld [vmem:[%s514 + $0x10] sm:$0x77]
        %v2152 = vld [vmem:[%s514 + $0x18] sm:$0x77]
        %v2153 = vld [vmem:[%s514 + $0x20] sm:$0x77]
        %v2154 = vld [vmem:[%s514 + $0x28] sm:$0x7]
        %2161 = vst [vmem:[#allocation1] ss:$2 sm:$0xff] %v2149
        %s2162 = scalar_lea.vmem [#allocation1], 16
        %2163 = vst [vmem:[%s2162] ss:$2 sm:$0xff] %v2150
        %s2164 = scalar_lea.vmem [#allocation1], 32
        %2165 = vst [vmem:[%s2164] ss:$2 sm:$0xff] %v2151
        %s2166 = scalar_lea.vmem [#allocation1], 48
        %2167 = vst [vmem:[%s2166] ss:$2 sm:$0xff] %v2152
        %v2168 = vld.sshfl [vmem:[#allocation1] sm:$0xff pattern:$0x75316420]
        %v2169 = vld.sshfl [vmem:[#allocation1 + $0x8] sm:$0xff pattern:$0x75316420]
        %v2170 = vld.sshfl [vmem:[#allocation1 + $0x10] sm:$0xff pattern:$0x75316420]
        %v2171 = vld.sshfl [vmem:[#allocation1 + $0x18] sm:$0xff pattern:$0x75316420]
        %v2172 = vld.sshfl [vmem:[#allocation1 + $0x20] sm:$0xff pattern:$0x75316420]
        %v2173 = vld.sshfl [vmem:[#allocation1 + $0x28] sm:$0xff pattern:$0x75316420]
        %v2174 = vld.sshfl [vmem:[#allocation1 + $0x30] sm:$0xff pattern:$0x75316420]
        %v2175 = vld.sshfl [vmem:[#allocation1 + $0x38] sm:$0xff pattern:$0x75316420]
        %2176 = vst [vmem:[#allocation1] ss:$2 sm:$0xff] %v2153
        %2177 = vst [vmem:[%s2162] ss:$2 sm:$0xff] %v2154
        %v2178 = vld.sshfl [vmem:[#allocation1] sm:$0xff pattern:$0x75316420]
        %v2179 = vld.sshfl [vmem:[#allocation1 + $0x8] sm:$0xff pattern:$0x75316420]
        %v2180 = vld.sshfl [vmem:[#allocation1 + $0x10] sm:$0xff pattern:$0x75316420]
        %v2181 = vrot.slane %v2168, 5
        %v2182 = vrot.slane %v2169, 5
        %v2183 = vrot.slane %v2170, 5
        %v2184 = vrot.slane %v2171, 5
        %v2185 = vrot.slane %v2172, 5
        %v2186 = vrot.slane %v2173, 5
        %v2187 = vrot.slane %v2174, 5
        %v2188 = vrot.slane %v2175, 5
        %v2189 = vrot.slane %v2178, 5
        %v2190 = vrot.slane %v2179, 5
        %v2191 = vrot.slane %v2180, 5
        %2192 = vrot.lane.b32.xlu0 %v2181, 18
        %v2193 = vpop.permute.xlu0 %2192
        %2194 = vrot.lane.b32.xlu0 %v2182, 18
        %v2195 = vpop.permute.xlu0 %2194
        %2196 = vrot.lane.b32.xlu0 %v2183, 18
        %v2197 = vpop.permute.xlu0 %2196
        %2198 = vrot.lane.b32.xlu0 %v2184, 18
        %v2199 = vpop.permute.xlu0 %2198
        %2200 = vrot.lane.b32.xlu0 %v2185, 18
        %v2201 = vpop.permute.xlu0 %2200
        %2202 = vrot.lane.b32.xlu0 %v2186, 18
        %v2203 = vpop.permute.xlu0 %2202
        %2204 = vrot.lane.b32.xlu0 %v2187, 18
        %v2205 = vpop.permute.xlu0 %2204
        %2206 = vrot.lane.b32.xlu0 %v2188, 18
        %v2207 = vpop.permute.xlu0 %2206
        %2208 = vrot.lane.b32.xlu0 %v2189, 18
        %v2209 = vpop.permute.xlu0 %2208
        %2210 = vrot.lane.b32.xlu0 %v2190, 18
        %v2211 = vpop.permute.xlu0 %2210
        %2212 = vrot.lane.b32.xlu0 %v2191, 18
        %v2213 = vpop.permute.xlu0 %2212
        %vm2214 = vcmask 146432
        %v2215 = vsel %vm2214, %v2193, %v2195
        %v2216 = vsel %vm2214, %v2195, %v2197
        %v2217 = vsel %vm2214, %v2197, %v2199
        %v2218 = vsel %vm2214, %v2199, %v2201
        %v2219 = vsel %vm2214, %v2201, %v2203
        %v2220 = vsel %vm2214, %v2203, %v2205
        %v2221 = vsel %vm2214, %v2205, %v2207
        %v2222 = vsel %vm2214, %v2207, %v2209
        %v2223 = vsel %vm2214, %v2209, %v2211
        %v2224 = vsel %vm2214, %v2211, %v2213
        %2236 = vst [vmem:[#allocation2 + $0x210] sm:$0x38] %v2215
        %2237 = vst [vmem:[#allocation2 + $0x218] sm:$0x38] %v2216
        %2238 = vst [vmem:[#allocation2 + $0x220] sm:$0x38] %v2217
        %2239 = vst [vmem:[#allocation2 + $0x228] sm:$0x38] %v2218
        %2240 = vst [vmem:[#allocation2 + $0x230] sm:$0x38] %v2219
        %2241 = vst [vmem:[#allocation2 + $0x238] sm:$0x38] %v2220
        %2242 = vst [vmem:[#allocation2 + $0x240] sm:$0x38] %v2221
        %2243 = vst [vmem:[#allocation2 + $0x248] sm:$0x38] %v2222
        %2244 = vst [vmem:[#allocation2 + $0x250] sm:$0x38] %v2223
        %2245 = vst [vmem:[#allocation2 + $0x258] sm:$0x38] %v2224
        %2246 = vst.msk [vmem:[#allocation2 + $0x260] sm:$0x38] %vm667, %v2213
        %v2247 = vld [vmem:[%s514] sm:$0x77]
        %v2248 = vld [vmem:[%s514 + $0x8] sm:$0x77]
        %v2249 = vld [vmem:[%s514 + $0x10] sm:$0x77]
        %v2250 = vld [vmem:[%s514 + $0x18] sm:$0x77]
        %v2251 = vld [vmem:[%s514 + $0x20] sm:$0x77]
        %v2252 = vld [vmem:[%s514 + $0x28] sm:$0x7]
        %2259 = vst [vmem:[#allocation1] ss:$2 sm:$0xff] %v2247
        %s2260 = scalar_lea.vmem [#allocation1], 16
        %2261 = vst [vmem:[%s2260] ss:$2 sm:$0xff] %v2248
        %s2262 = scalar_lea.vmem [#allocation1], 32
        %2263 = vst [vmem:[%s2262] ss:$2 sm:$0xff] %v2249
        %s2264 = scalar_lea.vmem [#allocation1], 48
        %2265 = vst [vmem:[%s2264] ss:$2 sm:$0xff] %v2250
        %v2266 = vld.sshfl [vmem:[#allocation1] sm:$0xff pattern:$0x75316420]
        %v2267 = vld.sshfl [vmem:[#allocation1 + $0x8] sm:$0xff pattern:$0x75316420]
        %v2268 = vld.sshfl [vmem:[#allocation1 + $0x10] sm:$0xff pattern:$0x75316420]
        %v2269 = vld.sshfl [vmem:[#allocation1 + $0x18] sm:$0xff pattern:$0x75316420]
        %v2270 = vld.sshfl [vmem:[#allocation1 + $0x20] sm:$0xff pattern:$0x75316420]
        %v2271 = vld.sshfl [vmem:[#allocation1 + $0x28] sm:$0xff pattern:$0x75316420]
        %v2272 = vld.sshfl [vmem:[#allocation1 + $0x30] sm:$0xff pattern:$0x75316420]
        %v2273 = vld.sshfl [vmem:[#allocation1 + $0x38] sm:$0xff pattern:$0x75316420]
        %2274 = vst [vmem:[#allocation1] ss:$2 sm:$0xff] %v2251
        %2275 = vst [vmem:[%s2260] ss:$2 sm:$0xff] %v2252
        %v2276 = vld.sshfl [vmem:[#allocation1] sm:$0xff pattern:$0x75316420]
        %v2277 = vld.sshfl [vmem:[#allocation1 + $0x8] sm:$0xff pattern:$0x75316420]
        %v2278 = vld.sshfl [vmem:[#allocation1 + $0x10] sm:$0xff pattern:$0x75316420]
        %v2279 = vrot.slane %v2266, 2
        %v2280 = vrot.slane %v2267, 2
        %v2281 = vrot.slane %v2268, 2
        %v2282 = vrot.slane %v2269, 2
        %v2283 = vrot.slane %v2270, 2
        %v2284 = vrot.slane %v2271, 2
        %v2285 = vrot.slane %v2272, 2
        %v2286 = vrot.slane %v2273, 2
        %v2287 = vrot.slane %v2276, 2
        %v2288 = vrot.slane %v2277, 2
        %v2289 = vrot.slane %v2278, 2
        %2290 = vrot.lane.b32.xlu0 %v2279, 17
        %v2291 = vpop.permute.xlu0 %2290
        %2292 = vrot.lane.b32.xlu0 %v2280, 17
        %v2293 = vpop.permute.xlu0 %2292
        %2294 = vrot.lane.b32.xlu0 %v2281, 17
        %v2295 = vpop.permute.xlu0 %2294
        %2296 = vrot.lane.b32.xlu0 %v2282, 17
        %v2297 = vpop.permute.xlu0 %2296
        %2298 = vrot.lane.b32.xlu0 %v2283, 17
        %v2299 = vpop.permute.xlu0 %2298
        %2300 = vrot.lane.b32.xlu0 %v2284, 17
        %v2301 = vpop.permute.xlu0 %2300
        %2302 = vrot.lane.b32.xlu0 %v2285, 17
        %v2303 = vpop.permute.xlu0 %2302
        %2304 = vrot.lane.b32.xlu0 %v2286, 17
        %v2305 = vpop.permute.xlu0 %2304
        %2306 = vrot.lane.b32.xlu0 %v2287, 17
        %v2307 = vpop.permute.xlu0 %2306
        %2308 = vrot.lane.b32.xlu0 %v2288, 17
        %v2309 = vpop.permute.xlu0 %2308
        %2310 = vrot.lane.b32.xlu0 %v2289, 17
        %v2311 = vpop.permute.xlu0 %2310
        %vm2312 = vcmask 138240
        %v2313 = vsel %vm2312, %v2291, %v2293
        %v2314 = vsel %vm2312, %v2293, %v2295
        %v2315 = vsel %vm2312, %v2295, %v2297
        %v2316 = vsel %vm2312, %v2297, %v2299
        %v2317 = vsel %vm2312, %v2299, %v2301
        %v2318 = vsel %vm2312, %v2301, %v2303
        %v2319 = vsel %vm2312, %v2303, %v2305
        %v2320 = vsel %vm2312, %v2305, %v2307
        %v2321 = vsel %vm2312, %v2307, %v2309
        %v2322 = vsel %vm2312, %v2309, %v2311
        %2334 = vst [vmem:[#allocation2 + $0x210] sm:$0xc0] %v2313
        %2335 = vst [vmem:[#allocation2 + $0x218] sm:$0xc0] %v2314
        %2336 = vst [vmem:[#allocation2 + $0x220] sm:$0xc0] %v2315
        %2337 = vst [vmem:[#allocation2 + $0x228] sm:$0xc0] %v2316
        %2338 = vst [vmem:[#allocation2 + $0x230] sm:$0xc0] %v2317
        %2339 = vst [vmem:[#allocation2 + $0x238] sm:$0xc0] %v2318
        %2340 = vst [vmem:[#allocation2 + $0x240] sm:$0xc0] %v2319
        %2341 = vst [vmem:[#allocation2 + $0x248] sm:$0xc0] %v2320
        %2342 = vst [vmem:[#allocation2 + $0x250] sm:$0xc0] %v2321
        %2343 = vst [vmem:[#allocation2 + $0x258] sm:$0xc0] %v2322
        %2344 = vst.msk [vmem:[#allocation2 + $0x260] sm:$0xc0] %vm766, %v2311
        %2345 = vst [vmem:[#allocation2 + $0x268] sm:$0x1] %v2313
        %2346 = vst [vmem:[#allocation2 + $0x270] sm:$0x1] %v2314
        %2347 = vst [vmem:[#allocation2 + $0x278] sm:$0x1] %v2315
        %2348 = vst [vmem:[#allocation2 + $0x280] sm:$0x1] %v2316
        %2349 = vst [vmem:[#allocation2 + $0x288] sm:$0x1] %v2317
        %2350 = vst [vmem:[#allocation2 + $0x290] sm:$0x1] %v2318
        %2351 = vst [vmem:[#allocation2 + $0x298] sm:$0x1] %v2319
        %2352 = vst [vmem:[#allocation2 + $0x2a0] sm:$0x1] %v2320
        %2353 = vst [vmem:[#allocation2 + $0x2a8] sm:$0x1] %v2321
        %2354 = vst [vmem:[#allocation2 + $0x2b0] sm:$0x1] %v2322
        %2355 = vst.msk [vmem:[#allocation2 + $0x2b8] sm:$0x1] %vm778, %v2311
        %v2356 = vld [vmem:[%s514] sm:$0x77]
        %v2357 = vld [vmem:[%s514 + $0x8] sm:$0x77]
        %v2358 = vld [vmem:[%s514 + $0x10] sm:$0x77]
        %v2359 = vld [vmem:[%s514 + $0x18] sm:$0x77]
        %v2360 = vld [vmem:[%s514 + $0x20] sm:$0x77]
        %v2361 = vld [vmem:[%s514 + $0x28] sm:$0x7]
        %2368 = vst [vmem:[#allocation1] ss:$2 sm:$0xff] %v2356
        %s2369 = scalar_lea.vmem [#allocation1], 16
        %2370 = vst [vmem:[%s2369] ss:$2 sm:$0xff] %v2357
        %s2371 = scalar_lea.vmem [#allocation1], 32
        %2372 = vst [vmem:[%s2371] ss:$2 sm:$0xff] %v2358
        %s2373 = scalar_lea.vmem [#allocation1], 48
        %2374 = vst [vmem:[%s2373] ss:$2 sm:$0xff] %v2359
        %v2375 = vld.sshfl [vmem:[#allocation1] sm:$0xff pattern:$0x75316420]
        %v2376 = vld.sshfl [vmem:[#allocation1 + $0x8] sm:$0xff pattern:$0x75316420]
        %v2377 = vld.sshfl [vmem:[#allocation1 + $0x10] sm:$0xff pattern:$0x75316420]
        %v2378 = vld.sshfl [vmem:[#allocation1 + $0x18] sm:$0xff pattern:$0x75316420]
        %v2379 = vld.sshfl [vmem:[#allocation1 + $0x20] sm:$0xff pattern:$0x75316420]
        %v2380 = vld.sshfl [vmem:[#allocation1 + $0x28] sm:$0xff pattern:$0x75316420]
        %v2381 = vld.sshfl [vmem:[#allocation1 + $0x30] sm:$0xff pattern:$0x75316420]
        %v2382 = vld.sshfl [vmem:[#allocation1 + $0x38] sm:$0xff pattern:$0x75316420]
        %2383 = vst [vmem:[#allocation1] ss:$2 sm:$0xff] %v2360
        %2384 = vst [vmem:[%s2369] ss:$2 sm:$0xff] %v2361
        %v2385 = vld.sshfl [vmem:[#allocation1] sm:$0xff pattern:$0x75316420]
        %v2386 = vld.sshfl [vmem:[#allocation1 + $0x8] sm:$0xff pattern:$0x75316420]
        %v2387 = vld.sshfl [vmem:[#allocation1 + $0x10] sm:$0xff pattern:$0x75316420]
        %v2388 = vrot.slane %v2375, 7
        %v2389 = vrot.slane %v2376, 7
        %v2390 = vrot.slane %v2377, 7
        %v2391 = vrot.slane %v2378, 7
        %v2392 = vrot.slane %v2379, 7
        %v2393 = vrot.slane %v2380, 7
        %v2394 = vrot.slane %v2381, 7
        %v2395 = vrot.slane %v2382, 7
        %v2396 = vrot.slane %v2385, 7
        %v2397 = vrot.slane %v2386, 7
        %v2398 = vrot.slane %v2387, 7
        %2399 = vrot.lane.b32.xlu0 %v2388, 16
        %v2400 = vpop.permute.xlu0 %2399
        %2401 = vrot.lane.b32.xlu0 %v2389, 16
        %v2402 = vpop.permute.xlu0 %2401
        %2403 = vrot.lane.b32.xlu0 %v2390, 16
        %v2404 = vpop.permute.xlu0 %2403
        %2405 = vrot.lane.b32.xlu0 %v2391, 16
        %v2406 = vpop.permute.xlu0 %2405
        %2407 = vrot.lane.b32.xlu0 %v2392, 16
        %v2408 = vpop.permute.xlu0 %2407
        %2409 = vrot.lane.b32.xlu0 %v2393, 16
        %v2410 = vpop.permute.xlu0 %2409
        %2411 = vrot.lane.b32.xlu0 %v2394, 16
        %v2412 = vpop.permute.xlu0 %2411
        %2413 = vrot.lane.b32.xlu0 %v2395, 16
        %v2414 = vpop.permute.xlu0 %2413
        %2415 = vrot.lane.b32.xlu0 %v2396, 16
        %v2416 = vpop.permute.xlu0 %2415
        %2417 = vrot.lane.b32.xlu0 %v2397, 16
        %v2418 = vpop.permute.xlu0 %2417
        %2419 = vrot.lane.b32.xlu0 %v2398, 16
        %v2420 = vpop.permute.xlu0 %2419
        %vm2421 = vcmask 130048
        %v2422 = vsel %vm2421, %v2400, %v2402
        %v2423 = vsel %vm2421, %v2402, %v2404
        %v2424 = vsel %vm2421, %v2404, %v2406
        %v2425 = vsel %vm2421, %v2406, %v2408
        %v2426 = vsel %vm2421, %v2408, %v2410
        %v2427 = vsel %vm2421, %v2410, %v2412
        %v2428 = vsel %vm2421, %v2412, %v2414
        %v2429 = vsel %vm2421, %v2414, %v2416
        %v2430 = vsel %vm2421, %v2416, %v2418
        %v2431 = vsel %vm2421, %v2418, %v2420
        %2443 = vst [vmem:[#allocation2 + $0x268] sm:$0xe] %v2422
        %2444 = vst [vmem:[#allocation2 + $0x270] sm:$0xe] %v2423
        %2445 = vst [vmem:[#allocation2 + $0x278] sm:$0xe] %v2424
        %2446 = vst [vmem:[#allocation2 + $0x280] sm:$0xe] %v2425
        %2447 = vst [vmem:[#allocation2 + $0x288] sm:$0xe] %v2426
        %2448 = vst [vmem:[#allocation2 + $0x290] sm:$0xe] %v2427
        %2449 = vst [vmem:[#allocation2 + $0x298] sm:$0xe] %v2428
        %2450 = vst [vmem:[#allocation2 + $0x2a0] sm:$0xe] %v2429
        %2451 = vst [vmem:[#allocation2 + $0x2a8] sm:$0xe] %v2430
        %2452 = vst [vmem:[#allocation2 + $0x2b0] sm:$0xe] %v2431
        %2453 = vst.msk [vmem:[#allocation2 + $0x2b8] sm:$0xe] %vm877, %v2420
        %v2454 = vld [vmem:[%s514 + $0x4] sm:$0x77]
        %v2455 = vld [vmem:[%s514 + $0xc] sm:$0x77]
        %v2456 = vld [vmem:[%s514 + $0x14] sm:$0x77]
        %v2457 = vld [vmem:[%s514 + $0x1c] sm:$0x77]
        %v2458 = vld [vmem:[%s514 + $0x24] sm:$0x77]
        %v2459 = vld [vmem:[%s514 + $0x2c] sm:$0x7]
        %s2466 = scalar_lea.vmem [#allocation1], 1
        %2467 = vst [vmem:[%s2466] ss:$2 sm:$0xff] %v2454
        %s2468 = scalar_lea.vmem [#allocation1], 17
        %2469 = vst [vmem:[%s2468] ss:$2 sm:$0xff] %v2455
        %s2470 = scalar_lea.vmem [#allocation1], 33
        %2471 = vst [vmem:[%s2470] ss:$2 sm:$0xff] %v2456
        %s2472 = scalar_lea.vmem [#allocation1], 49
        %2473 = vst [vmem:[%s2472] ss:$2 sm:$0xff] %v2457
        %v2474 = vld.sshfl [vmem:[#allocation1] sm:$0xff pattern:$0x75316420]
        %v2475 = vld.sshfl [vmem:[#allocation1 + $0x8] sm:$0xff pattern:$0x75316420]
        %v2476 = vld.sshfl [vmem:[#allocation1 + $0x10] sm:$0xff pattern:$0x75316420]
        %v2477 = vld.sshfl [vmem:[#allocation1 + $0x18] sm:$0xff pattern:$0x75316420]
        %v2478 = vld.sshfl [vmem:[#allocation1 + $0x20] sm:$0xff pattern:$0x75316420]
        %v2479 = vld.sshfl [vmem:[#allocation1 + $0x28] sm:$0xff pattern:$0x75316420]
        %v2480 = vld.sshfl [vmem:[#allocation1 + $0x30] sm:$0xff pattern:$0x75316420]
        %v2481 = vld.sshfl [vmem:[#allocation1 + $0x38] sm:$0xff pattern:$0x75316420]
        %2482 = vst [vmem:[%s2466] ss:$2 sm:$0xff] %v2458
        %2483 = vst [vmem:[%s2468] ss:$2 sm:$0xff] %v2459
        %v2484 = vld.sshfl [vmem:[#allocation1] sm:$0xff pattern:$0x75316420]
        %v2485 = vld.sshfl [vmem:[#allocation1 + $0x8] sm:$0xff pattern:$0x75316420]
        %v2486 = vld.sshfl [vmem:[#allocation1 + $0x10] sm:$0xff pattern:$0x75316420]
        %2487 = vrot.lane.b32.xlu0 %v2474, 112
        %v2488 = vpop.permute.xlu0 %2487
        %2489 = vrot.lane.b32.xlu0 %v2475, 112
        %v2490 = vpop.permute.xlu0 %2489
        %2491 = vrot.lane.b32.xlu0 %v2476, 112
        %v2492 = vpop.permute.xlu0 %2491
        %2493 = vrot.lane.b32.xlu0 %v2477, 112
        %v2494 = vpop.permute.xlu0 %2493
        %2495 = vrot.lane.b32.xlu0 %v2478, 112
        %v2496 = vpop.permute.xlu0 %2495
        %2497 = vrot.lane.b32.xlu0 %v2479, 112
        %v2498 = vpop.permute.xlu0 %2497
        %2499 = vrot.lane.b32.xlu0 %v2480, 112
        %v2500 = vpop.permute.xlu0 %2499
        %2501 = vrot.lane.b32.xlu0 %v2481, 112
        %v2502 = vpop.permute.xlu0 %2501
        %2503 = vrot.lane.b32.xlu0 %v2484, 112
        %v2504 = vpop.permute.xlu0 %2503
        %2505 = vrot.lane.b32.xlu0 %v2485, 112
        %v2506 = vpop.permute.xlu0 %2505
        %2507 = vrot.lane.b32.xlu0 %v2486, 112
        %v2508 = vpop.permute.xlu0 %2507
        %vm2509 = vcmask 916480
        %v2510 = vsel %vm2509, %v2488, %v2490
        %v2511 = vsel %vm2509, %v2490, %v2492
        %v2512 = vsel %vm2509, %v2492, %v2494
        %v2513 = vsel %vm2509, %v2494, %v2496
        %v2514 = vsel %vm2509, %v2496, %v2498
        %v2515 = vsel %vm2509, %v2498, %v2500
        %v2516 = vsel %vm2509, %v2500, %v2502
        %v2517 = vsel %vm2509, %v2502, %v2504
        %v2518 = vsel %vm2509, %v2504, %v2506
        %v2519 = vsel %vm2509, %v2506, %v2508
        %2531 = vst [vmem:[#allocation2 + $0x268] sm:$0x70] %v2510
        %2532 = vst [vmem:[#allocation2 + $0x270] sm:$0x70] %v2511
        %2533 = vst [vmem:[#allocation2 + $0x278] sm:$0x70] %v2512
        %2534 = vst [vmem:[#allocation2 + $0x280] sm:$0x70] %v2513
        %2535 = vst [vmem:[#allocation2 + $0x288] sm:$0x70] %v2514
        %2536 = vst [vmem:[#allocation2 + $0x290] sm:$0x70] %v2515
        %2537 = vst [vmem:[#allocation2 + $0x298] sm:$0x70] %v2516
        %2538 = vst [vmem:[#allocation2 + $0x2a0] sm:$0x70] %v2517
        %2539 = vst [vmem:[#allocation2 + $0x2a8] sm:$0x70] %v2518
        %2540 = vst [vmem:[#allocation2 + $0x2b0] sm:$0x70] %v2519
        %2541 = vst.msk [vmem:[#allocation2 + $0x2b8] sm:$0x70] %vm966, %v2508
        %v2542 = vld [vmem:[%s514 + $0x4] sm:$0x77]
        %v2543 = vld [vmem:[%s514 + $0xc] sm:$0x77]
        %v2544 = vld [vmem:[%s514 + $0x14] sm:$0x77]
        %v2545 = vld [vmem:[%s514 + $0x1c] sm:$0x77]
        %v2546 = vld [vmem:[%s514 + $0x24] sm:$0x77]
        %v2547 = vld [vmem:[%s514 + $0x2c] sm:$0x7]
        %2554 = vst [vmem:[#allocation1] ss:$2 sm:$0xff] %v2542
        %s2555 = scalar_lea.vmem [#allocation1], 16
        %2556 = vst [vmem:[%s2555] ss:$2 sm:$0xff] %v2543
        %s2557 = scalar_lea.vmem [#allocation1], 32
        %2558 = vst [vmem:[%s2557] ss:$2 sm:$0xff] %v2544
        %s2559 = scalar_lea.vmem [#allocation1], 48
        %2560 = vst [vmem:[%s2559] ss:$2 sm:$0xff] %v2545
        %v2561 = vld.sshfl [vmem:[#allocation1] sm:$0xff pattern:$0x75316420]
        %v2562 = vld.sshfl [vmem:[#allocation1 + $0x8] sm:$0xff pattern:$0x75316420]
        %v2563 = vld.sshfl [vmem:[#allocation1 + $0x10] sm:$0xff pattern:$0x75316420]
        %v2564 = vld.sshfl [vmem:[#allocation1 + $0x18] sm:$0xff pattern:$0x75316420]
        %v2565 = vld.sshfl [vmem:[#allocation1 + $0x20] sm:$0xff pattern:$0x75316420]
        %v2566 = vld.sshfl [vmem:[#allocation1 + $0x28] sm:$0xff pattern:$0x75316420]
        %v2567 = vld.sshfl [vmem:[#allocation1 + $0x30] sm:$0xff pattern:$0x75316420]
        %v2568 = vld.sshfl [vmem:[#allocation1 + $0x38] sm:$0xff pattern:$0x75316420]
        %2569 = vst [vmem:[#allocation1] ss:$2 sm:$0xff] %v2546
        %2570 = vst [vmem:[%s2555] ss:$2 sm:$0xff] %v2547
        %v2571 = vld.sshfl [vmem:[#allocation1] sm:$0xff pattern:$0x75316420]
        %v2572 = vld.sshfl [vmem:[#allocation1 + $0x8] sm:$0xff pattern:$0x75316420]
        %v2573 = vld.sshfl [vmem:[#allocation1 + $0x10] sm:$0xff pattern:$0x75316420]
        %v2574 = vrot.slane %v2561, 1
        %v2575 = vrot.slane %v2562, 1
        %v2576 = vrot.slane %v2563, 1
        %v2577 = vrot.slane %v2564, 1
        %v2578 = vrot.slane %v2565, 1
        %v2579 = vrot.slane %v2566, 1
        %v2580 = vrot.slane %v2567, 1
        %v2581 = vrot.slane %v2568, 1
        %v2582 = vrot.slane %v2571, 1
        %v2583 = vrot.slane %v2572, 1
        %v2584 = vrot.slane %v2573, 1
        %2585 = vrot.lane.b32.xlu0 %v2574, 111
        %v2586 = vpop.permute.xlu0 %2585
        %2587 = vrot.lane.b32.xlu0 %v2575, 111
        %v2588 = vpop.permute.xlu0 %2587
        %2589 = vrot.lane.b32.xlu0 %v2576, 111
        %v2590 = vpop.permute.xlu0 %2589
        %2591 = vrot.lane.b32.xlu0 %v2577, 111
        %v2592 = vpop.permute.xlu0 %2591
        %2593 = vrot.lane.b32.xlu0 %v2578, 111
        %v2594 = vpop.permute.xlu0 %2593
        %2595 = vrot.lane.b32.xlu0 %v2579, 111
        %v2596 = vpop.permute.xlu0 %2595
        %2597 = vrot.lane.b32.xlu0 %v2580, 111
        %v2598 = vpop.permute.xlu0 %2597
        %2599 = vrot.lane.b32.xlu0 %v2581, 111
        %v2600 = vpop.permute.xlu0 %2599
        %2601 = vrot.lane.b32.xlu0 %v2582, 111
        %v2602 = vpop.permute.xlu0 %2601
        %2603 = vrot.lane.b32.xlu0 %v2583, 111
        %v2604 = vpop.permute.xlu0 %2603
        %2605 = vrot.lane.b32.xlu0 %v2584, 111
        %v2606 = vpop.permute.xlu0 %2605
        %vm2607 = vcmask 908288
        %v2608 = vsel %vm2607, %v2586, %v2588
        %v2609 = vsel %vm2607, %v2588, %v2590
        %v2610 = vsel %vm2607, %v2590, %v2592
        %v2611 = vsel %vm2607, %v2592, %v2594
        %v2612 = vsel %vm2607, %v2594, %v2596
        %v2613 = vsel %vm2607, %v2596, %v2598
        %v2614 = vsel %vm2607, %v2598, %v2600
        %v2615 = vsel %vm2607, %v2600, %v2602
        %v2616 = vsel %vm2607, %v2602, %v2604
        %v2617 = vsel %vm2607, %v2604, %v2606
        %2629 = vst [vmem:[#allocation2 + $0x268] sm:$0x80] %v2608
        %2630 = vst [vmem:[#allocation2 + $0x270] sm:$0x80] %v2609
        %2631 = vst [vmem:[#allocation2 + $0x278] sm:$0x80] %v2610
        %2632 = vst [vmem:[#allocation2 + $0x280] sm:$0x80] %v2611
        %2633 = vst [vmem:[#allocation2 + $0x288] sm:$0x80] %v2612
        %2634 = vst [vmem:[#allocation2 + $0x290] sm:$0x80] %v2613
        %2635 = vst [vmem:[#allocation2 + $0x298] sm:$0x80] %v2614
        %2636 = vst [vmem:[#allocation2 + $0x2a0] sm:$0x80] %v2615
        %2637 = vst [vmem:[#allocation2 + $0x2a8] sm:$0x80] %v2616
        %2638 = vst [vmem:[#allocation2 + $0x2b0] sm:$0x80] %v2617
        %2639 = vst.msk [vmem:[#allocation2 + $0x2b8] sm:$0x80] %vm1065, %v2606
        %2640 = vst [vmem:[#allocation2 + $0x2c0] sm:$0x3] %v2608
        %2641 = vst [vmem:[#allocation2 + $0x2c8] sm:$0x3] %v2609
        %2642 = vst [vmem:[#allocation2 + $0x2d0] sm:$0x3] %v2610
        %2643 = vst [vmem:[#allocation2 + $0x2d8] sm:$0x3] %v2611
        %2644 = vst [vmem:[#allocation2 + $0x2e0] sm:$0x3] %v2612
        %2645 = vst [vmem:[#allocation2 + $0x2e8] sm:$0x3] %v2613
        %2646 = vst [vmem:[#allocation2 + $0x2f0] sm:$0x3] %v2614
        %2647 = vst [vmem:[#allocation2 + $0x2f8] sm:$0x3] %v2615
        %2648 = vst [vmem:[#allocation2 + $0x300] sm:$0x3] %v2616
        %2649 = vst [vmem:[#allocation2 + $0x308] sm:$0x3] %v2617
        %2650 = vst.msk [vmem:[#allocation2 + $0x310] sm:$0x3] %vm1077, %v2606
        %v2651 = vld [vmem:[%s514 + $0x4] sm:$0x77]
        %v2652 = vld [vmem:[%s514 + $0xc] sm:$0x77]
        %v2653 = vld [vmem:[%s514 + $0x14] sm:$0x77]
        %v2654 = vld [vmem:[%s514 + $0x1c] sm:$0x77]
        %v2655 = vld [vmem:[%s514 + $0x24] sm:$0x77]
        %v2656 = vld [vmem:[%s514 + $0x2c] sm:$0x7]
        %2663 = vst [vmem:[#allocation1] ss:$2 sm:$0xff] %v2651
        %s2664 = scalar_lea.vmem [#allocation1], 16
        %2665 = vst [vmem:[%s2664] ss:$2 sm:$0xff] %v2652
        %s2666 = scalar_lea.vmem [#allocation1], 32
        %2667 = vst [vmem:[%s2666] ss:$2 sm:$0xff] %v2653
        %s2668 = scalar_lea.vmem [#allocation1], 48
        %2669 = vst [vmem:[%s2668] ss:$2 sm:$0xff] %v2654
        %v2670 = vld.sshfl [vmem:[#allocation1] sm:$0xff pattern:$0x75316420]
        %v2671 = vld.sshfl [vmem:[#allocation1 + $0x8] sm:$0xff pattern:$0x75316420]
        %v2672 = vld.sshfl [vmem:[#allocation1 + $0x10] sm:$0xff pattern:$0x75316420]
        %v2673 = vld.sshfl [vmem:[#allocation1 + $0x18] sm:$0xff pattern:$0x75316420]
        %v2674 = vld.sshfl [vmem:[#allocation1 + $0x20] sm:$0xff pattern:$0x75316420]
        %v2675 = vld.sshfl [vmem:[#allocation1 + $0x28] sm:$0xff pattern:$0x75316420]
        %v2676 = vld.sshfl [vmem:[#allocation1 + $0x30] sm:$0xff pattern:$0x75316420]
        %v2677 = vld.sshfl [vmem:[#allocation1 + $0x38] sm:$0xff pattern:$0x75316420]
        %2678 = vst [vmem:[#allocation1] ss:$2 sm:$0xff] %v2655
        %2679 = vst [vmem:[%s2664] ss:$2 sm:$0xff] %v2656
        %v2680 = vld.sshfl [vmem:[#allocation1] sm:$0xff pattern:$0x75316420]
        %v2681 = vld.sshfl [vmem:[#allocation1 + $0x8] sm:$0xff pattern:$0x75316420]
        %v2682 = vld.sshfl [vmem:[#allocation1 + $0x10] sm:$0xff pattern:$0x75316420]
        %v2683 = vrot.slane %v2670, 6
        %v2684 = vrot.slane %v2671, 6
        %v2685 = vrot.slane %v2672, 6
        %v2686 = vrot.slane %v2673, 6
        %v2687 = vrot.slane %v2674, 6
        %v2688 = vrot.slane %v2675, 6
        %v2689 = vrot.slane %v2676, 6
        %v2690 = vrot.slane %v2677, 6
        %v2691 = vrot.slane %v2680, 6
        %v2692 = vrot.slane %v2681, 6
        %v2693 = vrot.slane %v2682, 6
        %2694 = vrot.lane.b32.xlu0 %v2683, 110
        %v2695 = vpop.permute.xlu0 %2694
        %2696 = vrot.lane.b32.xlu0 %v2684, 110
        %v2697 = vpop.permute.xlu0 %2696
        %2698 = vrot.lane.b32.xlu0 %v2685, 110
        %v2699 = vpop.permute.xlu0 %2698
        %2700 = vrot.lane.b32.xlu0 %v2686, 110
        %v2701 = vpop.permute.xlu0 %2700
        %2702 = vrot.lane.b32.xlu0 %v2687, 110
        %v2703 = vpop.permute.xlu0 %2702
        %2704 = vrot.lane.b32.xlu0 %v2688, 110
        %v2705 = vpop.permute.xlu0 %2704
        %2706 = vrot.lane.b32.xlu0 %v2689, 110
        %v2707 = vpop.permute.xlu0 %2706
        %2708 = vrot.lane.b32.xlu0 %v2690, 110
        %v2709 = vpop.permute.xlu0 %2708
        %2710 = vrot.lane.b32.xlu0 %v2691, 110
        %v2711 = vpop.permute.xlu0 %2710
        %2712 = vrot.lane.b32.xlu0 %v2692, 110
        %v2713 = vpop.permute.xlu0 %2712
        %2714 = vrot.lane.b32.xlu0 %v2693, 110
        %v2715 = vpop.permute.xlu0 %2714
        %vm2716 = vcmask 900096
        %v2717 = vsel %vm2716, %v2695, %v2697
        %v2718 = vsel %vm2716, %v2697, %v2699
        %v2719 = vsel %vm2716, %v2699, %v2701
        %v2720 = vsel %vm2716, %v2701, %v2703
        %v2721 = vsel %vm2716, %v2703, %v2705
        %v2722 = vsel %vm2716, %v2705, %v2707
        %v2723 = vsel %vm2716, %v2707, %v2709
        %v2724 = vsel %vm2716, %v2709, %v2711
        %v2725 = vsel %vm2716, %v2711, %v2713
        %v2726 = vsel %vm2716, %v2713, %v2715
        %2738 = vst [vmem:[#allocation2 + $0x2c0] sm:$0x1c] %v2717
        %2739 = vst [vmem:[#allocation2 + $0x2c8] sm:$0x1c] %v2718
        %2740 = vst [vmem:[#allocation2 + $0x2d0] sm:$0x1c] %v2719
        %2741 = vst [vmem:[#allocation2 + $0x2d8] sm:$0x1c] %v2720
        %2742 = vst [vmem:[#allocation2 + $0x2e0] sm:$0x1c] %v2721
        %2743 = vst [vmem:[#allocation2 + $0x2e8] sm:$0x1c] %v2722
        %2744 = vst [vmem:[#allocation2 + $0x2f0] sm:$0x1c] %v2723
        %2745 = vst [vmem:[#allocation2 + $0x2f8] sm:$0x1c] %v2724
        %2746 = vst [vmem:[#allocation2 + $0x300] sm:$0x1c] %v2725
        %2747 = vst [vmem:[#allocation2 + $0x308] sm:$0x1c] %v2726
        %2748 = vst.msk [vmem:[#allocation2 + $0x310] sm:$0x1c] %vm1176, %v2715
        %v2749 = vld [vmem:[%s514 + $0x4] sm:$0x77]
        %v2750 = vld [vmem:[%s514 + $0xc] sm:$0x77]
        %v2751 = vld [vmem:[%s514 + $0x14] sm:$0x77]
        %v2752 = vld [vmem:[%s514 + $0x1c] sm:$0x77]
        %v2753 = vld [vmem:[%s514 + $0x24] sm:$0x77]
        %v2754 = vld [vmem:[%s514 + $0x2c] sm:$0x7]
        %2761 = vst [vmem:[#allocation1] ss:$2 sm:$0xff] %v2749
        %s2762 = scalar_lea.vmem [#allocation1], 16
        %2763 = vst [vmem:[%s2762] ss:$2 sm:$0xff] %v2750
        %s2764 = scalar_lea.vmem [#allocation1], 32
        %2765 = vst [vmem:[%s2764] ss:$2 sm:$0xff] %v2751
        %s2766 = scalar_lea.vmem [#allocation1], 48
        %2767 = vst [vmem:[%s2766] ss:$2 sm:$0xff] %v2752
        %v2768 = vld.sshfl [vmem:[#allocation1] sm:$0xff pattern:$0x75316420]
        %v2769 = vld.sshfl [vmem:[#allocation1 + $0x8] sm:$0xff pattern:$0x75316420]
        %v2770 = vld.sshfl [vmem:[#allocation1 + $0x10] sm:$0xff pattern:$0x75316420]
        %v2771 = vld.sshfl [vmem:[#allocation1 + $0x18] sm:$0xff pattern:$0x75316420]
        %v2772 = vld.sshfl [vmem:[#allocation1 + $0x20] sm:$0xff pattern:$0x75316420]
        %v2773 = vld.sshfl [vmem:[#allocation1 + $0x28] sm:$0xff pattern:$0x75316420]
        %v2774 = vld.sshfl [vmem:[#allocation1 + $0x30] sm:$0xff pattern:$0x75316420]
        %v2775 = vld.sshfl [vmem:[#allocation1 + $0x38] sm:$0xff pattern:$0x75316420]
        %2776 = vst [vmem:[#allocation1] ss:$2 sm:$0xff] %v2753
        %2777 = vst [vmem:[%s2762] ss:$2 sm:$0xff] %v2754
        %v2778 = vld.sshfl [vmem:[#allocation1] sm:$0xff pattern:$0x75316420]
        %v2779 = vld.sshfl [vmem:[#allocation1 + $0x8] sm:$0xff pattern:$0x75316420]
        %v2780 = vld.sshfl [vmem:[#allocation1 + $0x10] sm:$0xff pattern:$0x75316420]
        %v2781 = vrot.slane %v2768, 3
        %v2782 = vrot.slane %v2769, 3
        %v2783 = vrot.slane %v2770, 3
        %v2784 = vrot.slane %v2771, 3
        %v2785 = vrot.slane %v2772, 3
        %v2786 = vrot.slane %v2773, 3
        %v2787 = vrot.slane %v2774, 3
        %v2788 = vrot.slane %v2775, 3
        %v2789 = vrot.slane %v2778, 3
        %v2790 = vrot.slane %v2779, 3
        %v2791 = vrot.slane %v2780, 3
        %2792 = vrot.lane.b32.xlu0 %v2781, 109
        %v2793 = vpop.permute.xlu0 %2792
        %2794 = vrot.lane.b32.xlu0 %v2782, 109
        %v2795 = vpop.permute.xlu0 %2794
        %2796 = vrot.lane.b32.xlu0 %v2783, 109
        %v2797 = vpop.permute.xlu0 %2796
        %2798 = vrot.lane.b32.xlu0 %v2784, 109
        %v2799 = vpop.permute.xlu0 %2798
        %2800 = vrot.lane.b32.xlu0 %v2785, 109
        %v2801 = vpop.permute.xlu0 %2800
        %2802 = vrot.lane.b32.xlu0 %v2786, 109
        %v2803 = vpop.permute.xlu0 %2802
        %2804 = vrot.lane.b32.xlu0 %v2787, 109
        %v2805 = vpop.permute.xlu0 %2804
        %2806 = vrot.lane.b32.xlu0 %v2788, 109
        %v2807 = vpop.permute.xlu0 %2806
        %2808 = vrot.lane.b32.xlu0 %v2789, 109
        %v2809 = vpop.permute.xlu0 %2808
        %2810 = vrot.lane.b32.xlu0 %v2790, 109
        %v2811 = vpop.permute.xlu0 %2810
        %2812 = vrot.lane.b32.xlu0 %v2791, 109
        %v2813 = vpop.permute.xlu0 %2812
        %vm2814 = vcmask 891904
        %v2815 = vsel %vm2814, %v2793, %v2795
        %v2816 = vsel %vm2814, %v2795, %v2797
        %v2817 = vsel %vm2814, %v2797, %v2799
        %v2818 = vsel %vm2814, %v2799, %v2801
        %v2819 = vsel %vm2814, %v2801, %v2803
        %v2820 = vsel %vm2814, %v2803, %v2805
        %v2821 = vsel %vm2814, %v2805, %v2807
        %v2822 = vsel %vm2814, %v2807, %v2809
        %v2823 = vsel %vm2814, %v2809, %v2811
        %v2824 = vsel %vm2814, %v2811, %v2813
        %2836 = vst [vmem:[#allocation2 + $0x2c0] sm:$0xe0] %v2815
        %2837 = vst [vmem:[#allocation2 + $0x2c8] sm:$0xe0] %v2816
        %2838 = vst [vmem:[#allocation2 + $0x2d0] sm:$0xe0] %v2817
        %2839 = vst [vmem:[#allocation2 + $0x2d8] sm:$0xe0] %v2818
        %2840 = vst [vmem:[#allocation2 + $0x2e0] sm:$0xe0] %v2819
        %2841 = vst [vmem:[#allocation2 + $0x2e8] sm:$0xe0] %v2820
        %2842 = vst [vmem:[#allocation2 + $0x2f0] sm:$0xe0] %v2821
        %2843 = vst [vmem:[#allocation2 + $0x2f8] sm:$0xe0] %v2822
        %2844 = vst [vmem:[#allocation2 + $0x300] sm:$0xe0] %v2823
        %2845 = vst [vmem:[#allocation2 + $0x308] sm:$0xe0] %v2824
        %2846 = vst.msk [vmem:[#allocation2 + $0x310] sm:$0xe0] %vm1275, %v2813
        %v2847 = vld [vmem:[%s514 + $0x4] sm:$0x77]
        %v2848 = vld [vmem:[%s514 + $0xc] sm:$0x77]
        %v2849 = vld [vmem:[%s514 + $0x14] sm:$0x77]
        %v2850 = vld [vmem:[%s514 + $0x1c] sm:$0x77]
        %v2851 = vld [vmem:[%s514 + $0x24] sm:$0x77]
        %v2852 = vld [vmem:[%s514 + $0x2c] sm:$0x7]
        %2859 = vst [vmem:[#allocation1] ss:$2 sm:$0xff] %v2847
        %s2860 = scalar_lea.vmem [#allocation1], 16
        %2861 = vst [vmem:[%s2860] ss:$2 sm:$0xff] %v2848
        %s2862 = scalar_lea.vmem [#allocation1], 32
        %2863 = vst [vmem:[%s2862] ss:$2 sm:$0xff] %v2849
        %s2864 = scalar_lea.vmem [#allocation1], 48
        %2865 = vst [vmem:[%s2864] ss:$2 sm:$0xff] %v2850
        %v2866 = vld.sshfl [vmem:[#allocation1] sm:$0xff pattern:$0x75316420]
        %v2867 = vld.sshfl [vmem:[#allocation1 + $0x8] sm:$0xff pattern:$0x75316420]
        %v2868 = vld.sshfl [vmem:[#allocation1 + $0x10] sm:$0xff pattern:$0x75316420]
        %v2869 = vld.sshfl [vmem:[#allocation1 + $0x18] sm:$0xff pattern:$0x75316420]
        %v2870 = vld.sshfl [vmem:[#allocation1 + $0x20] sm:$0xff pattern:$0x75316420]
        %v2871 = vld.sshfl [vmem:[#allocation1 + $0x28] sm:$0xff pattern:$0x75316420]
        %v2872 = vld.sshfl [vmem:[#allocation1 + $0x30] sm:$0xff pattern:$0x75316420]
        %v2873 = vld.sshfl [vmem:[#allocation1 + $0x38] sm:$0xff pattern:$0x75316420]
        %2874 = vst [vmem:[#allocation1] ss:$2 sm:$0xff] %v2851
        %2875 = vst [vmem:[%s2860] ss:$2 sm:$0xff] %v2852
        %v2876 = vld.sshfl [vmem:[#allocation1] sm:$0xff pattern:$0x75316420]
        %v2877 = vld.sshfl [vmem:[#allocation1 + $0x8] sm:$0xff pattern:$0x75316420]
        %v2878 = vld.sshfl [vmem:[#allocation1 + $0x10] sm:$0xff pattern:$0x75316420]
        %2879 = vrot.lane.b32.xlu0 %v2866, 108
        %v2880 = vpop.permute.xlu0 %2879
        %2881 = vrot.lane.b32.xlu0 %v2867, 108
        %v2882 = vpop.permute.xlu0 %2881
        %2883 = vrot.lane.b32.xlu0 %v2868, 108
        %v2884 = vpop.permute.xlu0 %2883
        %2885 = vrot.lane.b32.xlu0 %v2869, 108
        %v2886 = vpop.permute.xlu0 %2885
        %2887 = vrot.lane.b32.xlu0 %v2870, 108
        %v2888 = vpop.permute.xlu0 %2887
        %2889 = vrot.lane.b32.xlu0 %v2871, 108
        %v2890 = vpop.permute.xlu0 %2889
        %2891 = vrot.lane.b32.xlu0 %v2872, 108
        %v2892 = vpop.permute.xlu0 %2891
        %2893 = vrot.lane.b32.xlu0 %v2873, 108
        %v2894 = vpop.permute.xlu0 %2893
        %2895 = vrot.lane.b32.xlu0 %v2876, 108
        %v2896 = vpop.permute.xlu0 %2895
        %2897 = vrot.lane.b32.xlu0 %v2877, 108
        %v2898 = vpop.permute.xlu0 %2897
        %2899 = vrot.lane.b32.xlu0 %v2878, 108
        %v2900 = vpop.permute.xlu0 %2899
        %vm2901 = vcmask 883712
        %v2902 = vsel %vm2901, %v2880, %v2882
        %v2903 = vsel %vm2901, %v2882, %v2884
        %v2904 = vsel %vm2901, %v2884, %v2886
        %v2905 = vsel %vm2901, %v2886, %v2888
        %v2906 = vsel %vm2901, %v2888, %v2890
        %v2907 = vsel %vm2901, %v2890, %v2892
        %v2908 = vsel %vm2901, %v2892, %v2894
        %v2909 = vsel %vm2901, %v2894, %v2896
        %v2910 = vsel %vm2901, %v2896, %v2898
        %v2911 = vsel %vm2901, %v2898, %v2900
        %2923 = vst [vmem:[#allocation2 + $0x318] sm:$0x7] %v2902
        %2924 = vst [vmem:[#allocation2 + $0x320] sm:$0x7] %v2903
        %2925 = vst [vmem:[#allocation2 + $0x328] sm:$0x7] %v2904
        %2926 = vst [vmem:[#allocation2 + $0x330] sm:$0x7] %v2905
        %2927 = vst [vmem:[#allocation2 + $0x338] sm:$0x7] %v2906
        %2928 = vst [vmem:[#allocation2 + $0x340] sm:$0x7] %v2907
        %2929 = vst [vmem:[#allocation2 + $0x348] sm:$0x7] %v2908
        %2930 = vst [vmem:[#allocation2 + $0x350] sm:$0x7] %v2909
        %2931 = vst [vmem:[#allocation2 + $0x358] sm:$0x7] %v2910
        %2932 = vst [vmem:[#allocation2 + $0x360] sm:$0x7] %v2911
        %2933 = vst.msk [vmem:[#allocation2 + $0x368] sm:$0x7] %vm568, %v2900
        %v2934 = vld [vmem:[%s1] sm:$0x3f]
        %v2935 = vld [vmem:[#allocation2] sm:$0xff]
        %v2936 = vld [vmem:[#allocation2 + $0x8] sm:$0xff]
        %v2937 = vld [vmem:[#allocation2 + $0x10] sm:$0xff]
        %v2938 = vld [vmem:[#allocation2 + $0x18] sm:$0xff]
        %v2939 = vld [vmem:[#allocation2 + $0x20] sm:$0xff]
        %v2940 = vld [vmem:[#allocation2 + $0x28] sm:$0xff]
        %v2941 = vld [vmem:[#allocation2 + $0x30] sm:$0xff]
        %v2942 = vld [vmem:[#allocation2 + $0x38] sm:$0xff]
        %v2943 = vld [vmem:[#allocation2 + $0x40] sm:$0xff]
        %v2944 = vld [vmem:[#allocation2 + $0x48] sm:$0xff]
        %v2945 = vld [vmem:[#allocation2 + $0x50] sm:$0xff]
        %v2946 = vld [vmem:[#allocation2 + $0x58] sm:$0xff]
        %v2947 = vld [vmem:[#allocation2 + $0x60] sm:$0xff]
        %v2948 = vld [vmem:[#allocation2 + $0x68] sm:$0xff]
        %v2949 = vld [vmem:[#allocation2 + $0x70] sm:$0xff]
        %v2950 = vld [vmem:[#allocation2 + $0x78] sm:$0xff]
        %v2951 = vld [vmem:[#allocation2 + $0x80] sm:$0xff]
        %v2952 = vld [vmem:[#allocation2 + $0x88] sm:$0xff]
        %v2953 = vld [vmem:[#allocation2 + $0x90] sm:$0xff]
        %v2954 = vld [vmem:[#allocation2 + $0x98] sm:$0xff]
        %v2955 = vld [vmem:[#allocation2 + $0xa0] sm:$0xff]
        %v2956 = vld [vmem:[#allocation2 + $0xa8] sm:$0xff]
        %v2957 = vld [vmem:[#allocation2 + $0xb0] sm:$0xff]
        %v2958 = vld [vmem:[#allocation2 + $0xb8] sm:$0xff]
        %v2959 = vld [vmem:[#allocation2 + $0xc0] sm:$0xff]
        %v2960 = vld [vmem:[#allocation2 + $0xc8] sm:$0xff]
        %v2961 = vld [vmem:[#allocation2 + $0xd0] sm:$0xff]
        %v2962 = vld [vmem:[#allocation2 + $0xd8] sm:$0xff]
        %v2963 = vld [vmem:[#allocation2 + $0xe0] sm:$0xff]
        %v2964 = vld [vmem:[#allocation2 + $0xe8] sm:$0xff]
        %v2965 = vld [vmem:[#allocation2 + $0xf0] sm:$0xff]
        %v2966 = vld [vmem:[#allocation2 + $0xf8] sm:$0xff]
        %v2967 = vld [vmem:[#allocation2 + $0x100] sm:$0xff]
        %v2968 = vld [vmem:[#allocation2 + $0x108] sm:$0xff]
        %v2969 = vld [vmem:[#allocation2 + $0x110] sm:$0xff]
        %v2970 = vld [vmem:[#allocation2 + $0x118] sm:$0xff]
        %v2971 = vld [vmem:[#allocation2 + $0x120] sm:$0xff]
        %v2972 = vld [vmem:[#allocation2 + $0x128] sm:$0xff]
        %v2973 = vld [vmem:[#allocation2 + $0x130] sm:$0xff]
        %v2974 = vld [vmem:[#allocation2 + $0x138] sm:$0xff]
        %v2975 = vld [vmem:[#allocation2 + $0x140] sm:$0xff]
        %v2976 = vld [vmem:[#allocation2 + $0x148] sm:$0xff]
        %v2977 = vld [vmem:[#allocation2 + $0x150] sm:$0xff]
        %v2978 = vld [vmem:[#allocation2 + $0x158] sm:$0xff]
        %v2979 = vld [vmem:[#allocation2 + $0x160] sm:$0xff]
        %v2980 = vld [vmem:[#allocation2 + $0x168] sm:$0xff]
        %v2981 = vld [vmem:[#allocation2 + $0x170] sm:$0xff]
        %v2982 = vld [vmem:[#allocation2 + $0x178] sm:$0xff]
        %v2983 = vld [vmem:[#allocation2 + $0x180] sm:$0xff]
        %v2984 = vld [vmem:[#allocation2 + $0x188] sm:$0xff]
        %v2985 = vld [vmem:[#allocation2 + $0x190] sm:$0xff]
        %v2986 = vld [vmem:[#allocation2 + $0x198] sm:$0xff]
        %v2987 = vld [vmem:[#allocation2 + $0x1a0] sm:$0xff]
        %v2988 = vld [vmem:[#allocation2 + $0x1a8] sm:$0xff]
        %v2989 = vld [vmem:[#allocation2 + $0x1b0] sm:$0xff]
        %v2990 = vld [vmem:[#allocation2 + $0x1b8] sm:$0xff]
        %v2991 = vld [vmem:[#allocation2 + $0x1c0] sm:$0xff]
        %v2992 = vld [vmem:[#allocation2 + $0x1c8] sm:$0xff]
        %v2993 = vld [vmem:[#allocation2 + $0x1d0] sm:$0xff]
        %v2994 = vld [vmem:[#allocation2 + $0x1d8] sm:$0xff]
        %v2995 = vld [vmem:[#allocation2 + $0x1e0] sm:$0xff]
        %v2996 = vld [vmem:[#allocation2 + $0x1e8] sm:$0xff]
        %v2997 = vld [vmem:[#allocation2 + $0x1f0] sm:$0xff]
        %v2998 = vld [vmem:[#allocation2 + $0x1f8] sm:$0xff]
        %v2999 = vld [vmem:[#allocation2 + $0x200] sm:$0xff]
        %v3000 = vld [vmem:[#allocation2 + $0x208] sm:$0xff]
        %v3001 = vld [vmem:[#allocation2 + $0x210] sm:$0xff]
        %v3002 = vld [vmem:[#allocation2 + $0x218] sm:$0xff]
        %v3003 = vld [vmem:[#allocation2 + $0x220] sm:$0xff]
        %v3004 = vld [vmem:[#allocation2 + $0x228] sm:$0xff]
        %v3005 = vld [vmem:[#allocation2 + $0x230] sm:$0xff]
        %v3006 = vld [vmem:[#allocation2 + $0x238] sm:$0xff]
        %v3007 = vld [vmem:[#allocation2 + $0x240] sm:$0xff]
        %v3008 = vld [vmem:[#allocation2 + $0x248] sm:$0xff]
        %v3009 = vld [vmem:[#allocation2 + $0x250] sm:$0xff]
        %v3010 = vld [vmem:[#allocation2 + $0x258] sm:$0xff]
        %v3011 = vld [vmem:[#allocation2 + $0x260] sm:$0xff]
        %v3012 = vld [vmem:[#allocation2 + $0x268] sm:$0xff]
        %v3013 = vld [vmem:[#allocation2 + $0x270] sm:$0xff]
        %v3014 = vld [vmem:[#allocation2 + $0x278] sm:$0xff]
        %v3015 = vld [vmem:[#allocation2 + $0x280] sm:$0xff]
        %v3016 = vld [vmem:[#allocation2 + $0x288] sm:$0xff]
        %v3017 = vld [vmem:[#allocation2 + $0x290] sm:$0xff]
        %v3018 = vld [vmem:[#allocation2 + $0x298] sm:$0xff]
        %v3019 = vld [vmem:[#allocation2 + $0x2a0] sm:$0xff]
        %v3020 = vld [vmem:[#allocation2 + $0x2a8] sm:$0xff]
        %v3021 = vld [vmem:[#allocation2 + $0x2b0] sm:$0xff]
        %v3022 = vld [vmem:[#allocation2 + $0x2b8] sm:$0xff]
        %v3023 = vld [vmem:[#allocation2 + $0x2c0] sm:$0xff]
        %v3024 = vld [vmem:[#allocation2 + $0x2c8] sm:$0xff]
        %v3025 = vld [vmem:[#allocation2 + $0x2d0] sm:$0xff]
        %v3026 = vld [vmem:[#allocation2 + $0x2d8] sm:$0xff]
        %v3027 = vld [vmem:[#allocation2 + $0x2e0] sm:$0xff]
        %v3028 = vld [vmem:[#allocation2 + $0x2e8] sm:$0xff]
        %v3029 = vld [vmem:[#allocation2 + $0x2f0] sm:$0xff]
        %v3030 = vld [vmem:[#allocation2 + $0x2f8] sm:$0xff]
        %v3031 = vld [vmem:[#allocation2 + $0x300] sm:$0xff]
        %v3032 = vld [vmem:[#allocation2 + $0x308] sm:$0xff]
        %v3033 = vld [vmem:[#allocation2 + $0x310] sm:$0xff]
        %v3034 = vld [vmem:[#allocation2 + $0x318] sm:$0x7]
        %v3035 = vld [vmem:[#allocation2 + $0x320] sm:$0x7]
        %v3036 = vld [vmem:[#allocation2 + $0x328] sm:$0x7]
        %v3037 = vld [vmem:[#allocation2 + $0x330] sm:$0x7]
        %v3038 = vld [vmem:[#allocation2 + $0x338] sm:$0x7]
        %v3039 = vld [vmem:[#allocation2 + $0x340] sm:$0x7]
        %v3040 = vld [vmem:[#allocation2 + $0x348] sm:$0x7]
        %v3041 = vld [vmem:[#allocation2 + $0x350] sm:$0x7]
        %v3042 = vld [vmem:[#allocation2 + $0x358] sm:$0x7]
        %v3043 = vld [vmem:[#allocation2 + $0x360] sm:$0x7]
        %v3044 = vld [vmem:[#allocation2 + $0x368] sm:$0x7]
        %v3045 = vld [vmem:[%s2] sm:$0x3f]
        %3047 = vset.pattern.permute.xlu0 0
        %3048 = vperm.xlu0 %3047, %v3045
        %v3049 = vpop.permute.xlu0 %3048
        %vm3051 = vcmask 613376
        %v3053 = vsel %vm3051, %v2934, 0
        %vm3055 = vcmask 1042432
        %v3057 = vsel %vm3055, %v3034, 0
        %v3060 = vsel %vm3055, %v3035, 0
        %v3063 = vsel %vm3055, %v3036, 0
        %v3066 = vsel %vm3055, %v3037, 0
        %v3069 = vsel %vm3055, %v3038, 0
        %v3072 = vsel %vm3055, %v3039, 0
        %v3075 = vsel %vm3055, %v3040, 0
        %v3078 = vsel %vm3055, %v3041, 0
        %v3081 = vsel %vm3055, %v3042, 0
        %v3084 = vsel %vm3055, %v3043, 0
        %v3087 = vsel %vm3055, %v3044, 0
        %3089 = vmatpush.msra.mxu0 0.0
        %3090 = vmatpush.msra.mxu0 0.0
        %3091 = vmatpush.msra.mxu0 0.0
        %3092 = vmatpush.msra.mxu0 0.0
        %3093 = vmatpush.msra.mxu0 0.0
        %3094 = vmatpush.msra.mxu0 0.0
        %3095 = vmatpush.msra.mxu0 %v3057
        %3096 = vmatpush.msra.mxu0 %v3023
        %3097 = vmatpush.msra.mxu0 %v3012
        %3098 = vmatpush.msra.mxu0 %v3001
        %3099 = vmatpush.msra.mxu0 %v2990
        %3100 = vmatpush.msra.mxu0 %v2979
        %3101 = vmatpush.msra.mxu0 %v2968
        %3102 = vmatpush.msra.mxu0 %v2957
        %3103 = vmatpush.msra.mxu0 %v2946
        %3104 = vmatpush.msra.mxu0 %v2935
        %3105 = vmatmul.f32.gmra.mxu0 %v3053
        %v3106 = vpop.f32.mrf.mxu0
        %v3107 = vadd.f32 %v3049, %v3106
        %3108 = vdwg.mxu0
        %3109 = vmatpush.msra.mxu0 0.0
        %3110 = vmatpush.msra.mxu0 0.0
        %3111 = vmatpush.msra.mxu0 0.0
        %3112 = vmatpush.msra.mxu0 0.0
        %3113 = vmatpush.msra.mxu0 0.0
        %3114 = vmatpush.msra.mxu0 0.0
        %3115 = vmatpush.msra.mxu0 %v3060
        %3116 = vmatpush.msra.mxu0 %v3024
        %3117 = vmatpush.msra.mxu0 %v3013
        %3118 = vmatpush.msra.mxu0 %v3002
        %3119 = vmatpush.msra.mxu0 %v2991
        %3120 = vmatpush.msra.mxu0 %v2980
        %3121 = vmatpush.msra.mxu0 %v2969
        %3122 = vmatpush.msra.mxu0 %v2958
        %3123 = vmatpush.msra.mxu0 %v2947
        %3124 = vmatpush.msra.mxu0 %v2936
        %3125 = vmatmul.f32.gmra.mxu0 %v3053
        %v3126 = vpop.f32.mrf.mxu0
        %v3127 = vadd.f32 %v3049, %v3126
        %3128 = vdwg.mxu0
        %3129 = vmatpush.msra.mxu0 0.0
        %3130 = vmatpush.msra.mxu0 0.0
        %3131 = vmatpush.msra.mxu0 0.0
        %3132 = vmatpush.msra.mxu0 0.0
        %3133 = vmatpush.msra.mxu0 0.0
        %3134 = vmatpush.msra.mxu0 0.0
        %3135 = vmatpush.msra.mxu0 %v3063
        %3136 = vmatpush.msra.mxu0 %v3025
        %3137 = vmatpush.msra.mxu0 %v3014
        %3138 = vmatpush.msra.mxu0 %v3003
        %3139 = vmatpush.msra.mxu0 %v2992
        %3140 = vmatpush.msra.mxu0 %v2981
        %3141 = vmatpush.msra.mxu0 %v2970
        %3142 = vmatpush.msra.mxu0 %v2959
        %3143 = vmatpush.msra.mxu0 %v2948
        %3144 = vmatpush.msra.mxu0 %v2937
        %3145 = vmatmul.f32.gmra.mxu0 %v3053
        %v3146 = vpop.f32.mrf.mxu0
        %v3147 = vadd.f32 %v3049, %v3146
        %3148 = vdwg.mxu0
        %3149 = vmatpush.msra.mxu0 0.0
        %3150 = vmatpush.msra.mxu0 0.0
        %3151 = vmatpush.msra.mxu0 0.0
        %3152 = vmatpush.msra.mxu0 0.0
        %3153 = vmatpush.msra.mxu0 0.0
        %3154 = vmatpush.msra.mxu0 0.0
        %3155 = vmatpush.msra.mxu0 %v3066
        %3156 = vmatpush.msra.mxu0 %v3026
        %3157 = vmatpush.msra.mxu0 %v3015
        %3158 = vmatpush.msra.mxu0 %v3004
        %3159 = vmatpush.msra.mxu0 %v2993
        %3160 = vmatpush.msra.mxu0 %v2982
        %3161 = vmatpush.msra.mxu0 %v2971
        %3162 = vmatpush.msra.mxu0 %v2960
        %3163 = vmatpush.msra.mxu0 %v2949
        %3164 = vmatpush.msra.mxu0 %v2938
        %3165 = vmatmul.f32.gmra.mxu0 %v3053
        %v3166 = vpop.f32.mrf.mxu0
        %v3167 = vadd.f32 %v3049, %v3166
        %3168 = vdwg.mxu0
        %3169 = vmatpush.msra.mxu0 0.0
        %3170 = vmatpush.msra.mxu0 0.0
        %3171 = vmatpush.msra.mxu0 0.0
        %3172 = vmatpush.msra.mxu0 0.0
        %3173 = vmatpush.msra.mxu0 0.0
        %3174 = vmatpush.msra.mxu0 0.0
        %3175 = vmatpush.msra.mxu0 %v3069
        %3176 = vmatpush.msra.mxu0 %v3027
        %3177 = vmatpush.msra.mxu0 %v3016
        %3178 = vmatpush.msra.mxu0 %v3005
        %3179 = vmatpush.msra.mxu0 %v2994
        %3180 = vmatpush.msra.mxu0 %v2983
        %3181 = vmatpush.msra.mxu0 %v2972
        %3182 = vmatpush.msra.mxu0 %v2961
        %3183 = vmatpush.msra.mxu0 %v2950
        %3184 = vmatpush.msra.mxu0 %v2939
        %3185 = vmatmul.f32.gmra.mxu0 %v3053
        %v3186 = vpop.f32.mrf.mxu0
        %v3187 = vadd.f32 %v3049, %v3186
        %3188 = vdwg.mxu0
        %3189 = vmatpush.msra.mxu0 0.0
        %3190 = vmatpush.msra.mxu0 0.0
        %3191 = vmatpush.msra.mxu0 0.0
        %3192 = vmatpush.msra.mxu0 0.0
        %3193 = vmatpush.msra.mxu0 0.0
        %3194 = vmatpush.msra.mxu0 0.0
        %3195 = vmatpush.msra.mxu0 %v3072
        %3196 = vmatpush.msra.mxu0 %v3028
        %3197 = vmatpush.msra.mxu0 %v3017
        %3198 = vmatpush.msra.mxu0 %v3006
        %3199 = vmatpush.msra.mxu0 %v2995
        %3200 = vmatpush.msra.mxu0 %v2984
        %3201 = vmatpush.msra.mxu0 %v2973
        %3202 = vmatpush.msra.mxu0 %v2962
        %3203 = vmatpush.msra.mxu0 %v2951
        %3204 = vmatpush.msra.mxu0 %v2940
        %3205 = vmatmul.f32.gmra.mxu0 %v3053
        %v3206 = vpop.f32.mrf.mxu0
        %v3207 = vadd.f32 %v3049, %v3206
        %3208 = vdwg.mxu0
        %3209 = vmatpush.msra.mxu0 0.0
        %3210 = vmatpush.msra.mxu0 0.0
        %3211 = vmatpush.msra.mxu0 0.0
        %3212 = vmatpush.msra.mxu0 0.0
        %3213 = vmatpush.msra.mxu0 0.0
        %3214 = vmatpush.msra.mxu0 0.0
        %3215 = vmatpush.msra.mxu0 %v3075
        %3216 = vmatpush.msra.mxu0 %v3029
        %3217 = vmatpush.msra.mxu0 %v3018
        %3218 = vmatpush.msra.mxu0 %v3007
        %3219 = vmatpush.msra.mxu0 %v2996
        %3220 = vmatpush.msra.mxu0 %v2985
        %3221 = vmatpush.msra.mxu0 %v2974
        %3222 = vmatpush.msra.mxu0 %v2963
        %3223 = vmatpush.msra.mxu0 %v2952
        %3224 = vmatpush.msra.mxu0 %v2941
        %3225 = vmatmul.f32.gmra.mxu0 %v3053
        %v3226 = vpop.f32.mrf.mxu0
        %v3227 = vadd.f32 %v3049, %v3226
        %3228 = vdwg.mxu0
        %3229 = vmatpush.msra.mxu0 0.0
        %3230 = vmatpush.msra.mxu0 0.0
        %3231 = vmatpush.msra.mxu0 0.0
        %3232 = vmatpush.msra.mxu0 0.0
        %3233 = vmatpush.msra.mxu0 0.0
        %3234 = vmatpush.msra.mxu0 0.0
        %3235 = vmatpush.msra.mxu0 %v3078
        %3236 = vmatpush.msra.mxu0 %v3030
        %3237 = vmatpush.msra.mxu0 %v3019
        %3238 = vmatpush.msra.mxu0 %v3008
        %3239 = vmatpush.msra.mxu0 %v2997
        %3240 = vmatpush.msra.mxu0 %v2986
        %3241 = vmatpush.msra.mxu0 %v2975
        %3242 = vmatpush.msra.mxu0 %v2964
        %3243 = vmatpush.msra.mxu0 %v2953
        %3244 = vmatpush.msra.mxu0 %v2942
        %3245 = vmatmul.f32.gmra.mxu0 %v3053
        %v3246 = vpop.f32.mrf.mxu0
        %v3247 = vadd.f32 %v3049, %v3246
        %3248 = vdwg.mxu0
        %3249 = vmatpush.msra.mxu0 0.0
        %3250 = vmatpush.msra.mxu0 0.0
        %3251 = vmatpush.msra.mxu0 0.0
        %3252 = vmatpush.msra.mxu0 0.0
        %3253 = vmatpush.msra.mxu0 0.0
        %3254 = vmatpush.msra.mxu0 0.0
        %3255 = vmatpush.msra.mxu0 %v3081
        %3256 = vmatpush.msra.mxu0 %v3031
        %3257 = vmatpush.msra.mxu0 %v3020
        %3258 = vmatpush.msra.mxu0 %v3009
        %3259 = vmatpush.msra.mxu0 %v2998
        %3260 = vmatpush.msra.mxu0 %v2987
        %3261 = vmatpush.msra.mxu0 %v2976
        %3262 = vmatpush.msra.mxu0 %v2965
        %3263 = vmatpush.msra.mxu0 %v2954
        %3264 = vmatpush.msra.mxu0 %v2943
        %3265 = vmatmul.f32.gmra.mxu0 %v3053
        %v3266 = vpop.f32.mrf.mxu0
        %v3267 = vadd.f32 %v3049, %v3266
        %3268 = vdwg.mxu0
        %3269 = vmatpush.msra.mxu0 0.0
        %3270 = vmatpush.msra.mxu0 0.0
        %3271 = vmatpush.msra.mxu0 0.0
        %3272 = vmatpush.msra.mxu0 0.0
        %3273 = vmatpush.msra.mxu0 0.0
        %3274 = vmatpush.msra.mxu0 0.0
        %3275 = vmatpush.msra.mxu0 %v3084
        %3276 = vmatpush.msra.mxu0 %v3032
        %3277 = vmatpush.msra.mxu0 %v3021
        %3278 = vmatpush.msra.mxu0 %v3010
        %3279 = vmatpush.msra.mxu0 %v2999
        %3280 = vmatpush.msra.mxu0 %v2988
        %3281 = vmatpush.msra.mxu0 %v2977
        %3282 = vmatpush.msra.mxu0 %v2966
        %3283 = vmatpush.msra.mxu0 %v2955
        %3284 = vmatpush.msra.mxu0 %v2944
        %3285 = vmatmul.f32.gmra.mxu0 %v3053
        %v3286 = vpop.f32.mrf.mxu0
        %v3287 = vadd.f32 %v3049, %v3286
        %3288 = vdwg.mxu0
        %3289 = vmatpush.msra.mxu0 0.0
        %3290 = vmatpush.msra.mxu0 0.0
        %3291 = vmatpush.msra.mxu0 0.0
        %3292 = vmatpush.msra.mxu0 0.0
        %3293 = vmatpush.msra.mxu0 0.0
        %3294 = vmatpush.msra.mxu0 0.0
        %3295 = vmatpush.msra.mxu0 %v3087
        %3296 = vmatpush.msra.mxu0 %v3033
        %3297 = vmatpush.msra.mxu0 %v3022
        %3298 = vmatpush.msra.mxu0 %v3011
        %3299 = vmatpush.msra.mxu0 %v3000
        %3300 = vmatpush.msra.mxu0 %v2989
        %3301 = vmatpush.msra.mxu0 %v2978
        %3302 = vmatpush.msra.mxu0 %v2967
        %3303 = vmatpush.msra.mxu0 %v2956
        %3304 = vmatpush.msra.mxu0 %v2945
        %3305 = vmatmul.f32.gmra.mxu0 %v3053
        %v3306 = vpop.f32.mrf.mxu0
        %v3307 = vadd.f32 %v3049, %v3306
        %3308 = vdwg.mxu0
        %v3309 = vmax.f32 %v3107, 0.0
        %v3310 = vmax.f32 %v3127, 0.0
        %v3311 = vmax.f32 %v3147, 0.0
        %v3312 = vmax.f32 %v3167, 0.0
        %v3313 = vmax.f32 %v3187, 0.0
        %v3314 = vmax.f32 %v3207, 0.0
        %v3315 = vmax.f32 %v3227, 0.0
        %v3316 = vmax.f32 %v3247, 0.0
        %v3317 = vmax.f32 %v3267, 0.0
        %v3318 = vmax.f32 %v3287, 0.0
        %v3319 = vmax.f32 %v3307, 0.0
        %3330 = vrot.lane.b32.xlu0 %v3309, 127
        %v3331 = vpop.permute.xlu0 %3330
        %3332 = vrot.lane.b32.xlu0 %v3310, 127
        %v3333 = vpop.permute.xlu0 %3332
        %3334 = vrot.lane.b32.xlu0 %v3311, 127
        %v3335 = vpop.permute.xlu0 %3334
        %3336 = vrot.lane.b32.xlu0 %v3312, 127
        %v3337 = vpop.permute.xlu0 %3336
        %3338 = vrot.lane.b32.xlu0 %v3313, 127
        %v3339 = vpop.permute.xlu0 %3338
        %3340 = vrot.lane.b32.xlu0 %v3314, 127
        %v3341 = vpop.permute.xlu0 %3340
        %3342 = vrot.lane.b32.xlu0 %v3315, 127
        %v3343 = vpop.permute.xlu0 %3342
        %3344 = vrot.lane.b32.xlu0 %v3316, 127
        %v3345 = vpop.permute.xlu0 %3344
        %3346 = vrot.lane.b32.xlu0 %v3317, 127
        %v3347 = vpop.permute.xlu0 %3346
        %3348 = vrot.lane.b32.xlu0 %v3318, 127
        %v3349 = vpop.permute.xlu0 %3348
        %v3350 = vsel %vm635, %v3331, %v3333
        %v3351 = vsel %vm635, %v3333, %v3335
        %v3352 = vsel %vm635, %v3335, %v3337
        %v3353 = vsel %vm635, %v3337, %v3339
        %v3354 = vsel %vm635, %v3339, %v3341
        %v3355 = vsel %vm635, %v3341, %v3343
        %v3356 = vsel %vm635, %v3343, %v3345
        %v3357 = vsel %vm635, %v3345, %v3347
        %v3358 = vsel %vm635, %v3347, %v3349
        %v3369 = vmax.f32 %v3309, %v3350
        %v3370 = vmax.f32 %v3310, %v3351
        %v3371 = vmax.f32 %v3311, %v3352
        %v3372 = vmax.f32 %v3312, %v3353
        %v3373 = vmax.f32 %v3313, %v3354
        %v3374 = vmax.f32 %v3314, %v3355
        %v3375 = vmax.f32 %v3315, %v3356
        %v3376 = vmax.f32 %v3316, %v3357
        %v3377 = vmax.f32 %v3317, %v3358
        %v3378 = vmax.f32 %v3318, %v3349
        %3380 = vrot.lane.b32.xlu0 %v3319, 127
        %v3381 = vpop.permute.xlu0 %3380
        %v3382 = vsel %vm635, %v3349, %v3381
        %v3385 = vmax.f32 %v3318, %v3382
        %v3386 = vmax.f32 %v3319, %v3381
        %3398 = vrot.lane.b32.xlu0 %v3369, 92
        %v3399 = vpop.permute.xlu0 %3398
        %3400 = vrot.lane.b32.xlu0 %v3370, 92
        %v3401 = vpop.permute.xlu0 %3400
        %3402 = vrot.lane.b32.xlu0 %v3371, 92
        %v3403 = vpop.permute.xlu0 %3402
        %3404 = vrot.lane.b32.xlu0 %v3372, 92
        %v3405 = vpop.permute.xlu0 %3404
        %3406 = vrot.lane.b32.xlu0 %v3373, 92
        %v3407 = vpop.permute.xlu0 %3406
        %3408 = vrot.lane.b32.xlu0 %v3374, 92
        %v3409 = vpop.permute.xlu0 %3408
        %3410 = vrot.lane.b32.xlu0 %v3375, 92
        %v3411 = vpop.permute.xlu0 %3410
        %3412 = vrot.lane.b32.xlu0 %v3376, 92
        %v3413 = vpop.permute.xlu0 %3412
        %3414 = vrot.lane.b32.xlu0 %v3377, 92
        %v3415 = vpop.permute.xlu0 %3414
        %3416 = vrot.lane.b32.xlu0 %v3385, 92
        %v3417 = vpop.permute.xlu0 %3416
        %3418 = vrot.lane.b32.xlu0 %v3386, 92
        %v3419 = vpop.permute.xlu0 %3418
        %v3420 = vsel %vm1033, %v3399, %v3401
        %v3421 = vsel %vm1033, %v3401, %v3403
        %v3422 = vsel %vm1033, %v3403, %v3405
        %v3423 = vsel %vm1033, %v3405, %v3407
        %v3424 = vsel %vm1033, %v3407, %v3409
        %v3425 = vsel %vm1033, %v3409, %v3411
        %v3426 = vsel %vm1033, %v3411, %v3413
        %v3427 = vsel %vm1033, %v3413, %v3415
        %v3428 = vsel %vm1033, %v3415, %v3417
        %v3429 = vsel %vm1033, %v3417, %v3419
        %v3440 = vmax.f32 %v3369, %v3420
        %v3441 = vmax.f32 %v3370, %v3421
        %v3442 = vmax.f32 %v3371, %v3422
        %v3443 = vmax.f32 %v3372, %v3423
        %v3444 = vmax.f32 %v3373, %v3424
        %v3445 = vmax.f32 %v3374, %v3425
        %v3446 = vmax.f32 %v3375, %v3426
        %v3447 = vmax.f32 %v3376, %v3427
        %v3448 = vmax.f32 %v3377, %v3428
        %v3449 = vmax.f32 %v3378, %v3429
        %v3450 = vld [vmem:[#allocation4] sm:$0xff]
        %v3451 = vld [vmem:[#allocation4 + $0x8] sm:$0xff]
        %v3452 = vld [vmem:[#allocation4 + $0x10] sm:$0xff]
        %v3453 = vld [vmem:[#allocation4 + $0x18] sm:$0xff]
        %v3454 = vld [vmem:[#allocation4 + $0x20] sm:$0xff]
        %v3455 = vld [vmem:[#allocation4 + $0x28] sm:$0xff]
        %v3456 = vld [vmem:[#allocation4 + $0x30] sm:$0xff]
        %v3457 = vld [vmem:[#allocation4 + $0x38] sm:$0xff]
        %v3458 = vld [vmem:[#allocation4 + $0x40] sm:$0xff]
        %v3459 = vld [vmem:[#allocation4 + $0x48] sm:$0xff]
        %v3460 = vld [vmem:[#allocation4 + $0x50] sm:$0xff]
        %v3461 = vld [vmem:[#allocation4 + $0x58] sm:$0xff]
        %v3462 = vld [vmem:[#allocation4 + $0x60] sm:$0xff]
        %v3463 = vld [vmem:[#allocation4 + $0x68] sm:$0xff]
        %v3464 = vld [vmem:[#allocation4 + $0x70] sm:$0xff]
        %v3465 = vld [vmem:[#allocation4 + $0x78] sm:$0xff]
        %v3466 = vld [vmem:[#allocation4 + $0x80] sm:$0xff]
        %v3467 = vld [vmem:[#allocation4 + $0x88] sm:$0xff]
        %v3468 = vld [vmem:[#allocation4 + $0x90] sm:$0xff]
        %v3469 = vld [vmem:[#allocation4 + $0x98] sm:$0xff]
        %v3470 = vld [vmem:[#allocation4 + $0xa0] sm:$0xff]
        %v3471 = vld [vmem:[#allocation4 + $0xa8] sm:$0xff]
        %v3472 = vld [vmem:[#allocation4 + $0xb0] sm:$0xff]
        %v3473 = vld [vmem:[#allocation4 + $0xb8] sm:$0xff]
        %v3474 = vld [vmem:[#allocation4 + $0xc0] sm:$0xff]
        %v3475 = vld [vmem:[#allocation4 + $0xc8] sm:$0xff]
        %v3476 = vld [vmem:[#allocation4 + $0xd0] sm:$0xff]
        %v3477 = vld [vmem:[#allocation4 + $0xd8] sm:$0xff]
        %v3478 = vld [vmem:[#allocation4 + $0xe0] sm:$0xff]
        %v3479 = vld [vmem:[#allocation4 + $0xe8] sm:$0xff]
        %v3480 = vld [vmem:[#allocation4 + $0xf0] sm:$0xff]
        %v3481 = vld [vmem:[#allocation4 + $0xf8] sm:$0xff]
        %v3482 = vld [vmem:[#allocation4 + $0x100] sm:$0xff]
        %v3483 = vld [vmem:[#allocation4 + $0x108] sm:$0xff]
        %v3484 = vld [vmem:[#allocation4 + $0x110] sm:$0xff]
        %v3485 = vld [vmem:[#allocation4 + $0x118] sm:$0xff]
        %v3486 = vld [vmem:[#allocation4 + $0x120] sm:$0xff]
        %v3487 = vld [vmem:[#allocation4 + $0x128] sm:$0xff]
        %v3488 = vld [vmem:[#allocation4 + $0x130] sm:$0xff]
        %v3489 = vld [vmem:[#allocation4 + $0x138] sm:$0xff]
        %v3490 = vld [vmem:[#allocation4 + $0x140] sm:$0xff]
        %v3491 = vld [vmem:[#allocation4 + $0x148] sm:$0xff]
        %v3492 = vld [vmem:[#allocation4 + $0x150] sm:$0xff]
        %v3493 = vld [vmem:[#allocation4 + $0x158] sm:$0xff]
        %v3494 = vld [vmem:[#allocation4 + $0x160] sm:$0xff]
        %v3495 = vld [vmem:[#allocation4 + $0x168] sm:$0xff]
        %v3496 = vld [vmem:[#allocation4 + $0x170] sm:$0xff]
        %v3497 = vld [vmem:[#allocation4 + $0x178] sm:$0xff]
        %v3498 = vld [vmem:[#allocation4 + $0x180] sm:$0xff]
        %v3499 = vld [vmem:[#allocation4 + $0x188] sm:$0xff]
        %v3500 = vld [vmem:[#allocation4 + $0x190] sm:$0xff]
        %v3501 = vld [vmem:[#allocation4 + $0x198] sm:$0xff]
        %v3502 = vld [vmem:[#allocation4 + $0x1a0] sm:$0xff]
        %v3503 = vld [vmem:[#allocation4 + $0x1a8] sm:$0xff]
        %v3504 = vld [vmem:[#allocation4 + $0x1b0] sm:$0xff]
        %v3505 = vld [vmem:[#allocation4 + $0x1b8] sm:$0xff]
        %v3506 = vld [vmem:[#allocation4 + $0x1c0] sm:$0xff]
        %v3507 = vld [vmem:[#allocation4 + $0x1c8] sm:$0xff]
        %v3508 = vld [vmem:[#allocation4 + $0x1d0] sm:$0xff]
        %v3509 = vld [vmem:[#allocation4 + $0x1d8] sm:$0xff]
        %v3510 = vld [vmem:[#allocation4 + $0x1e0] sm:$0xff]
        %v3511 = vld [vmem:[#allocation4 + $0x1e8] sm:$0xff]
        %v3512 = vld [vmem:[#allocation4 + $0x1f0] sm:$0xff]
        %v3513 = vld [vmem:[#allocation4 + $0x1f8] sm:$0xff]
        %v3514 = vld [vmem:[#allocation4 + $0x200] sm:$0xff]
        %v3515 = vld [vmem:[#allocation4 + $0x208] sm:$0xff]
        %v3516 = vld [vmem:[#allocation4 + $0x210] sm:$0xff]
        %v3517 = vld [vmem:[#allocation4 + $0x218] sm:$0xff]
        %v3518 = vld [vmem:[#allocation4 + $0x220] sm:$0xff]
        %v3519 = vld [vmem:[#allocation4 + $0x228] sm:$0xff]
        %v3520 = vld [vmem:[#allocation4 + $0x230] sm:$0xff]
        %v3521 = vld [vmem:[#allocation4 + $0x238] sm:$0xff]
        %v3522 = vld [vmem:[#allocation4 + $0x240] sm:$0xff]
        %v3523 = vld [vmem:[#allocation4 + $0x248] sm:$0xff]
        %v3524 = vld [vmem:[#allocation4 + $0x250] sm:$0xff]
        %v3525 = vld [vmem:[#allocation4 + $0x258] sm:$0xff]
        %v3526 = vld [vmem:[#allocation4 + $0x260] sm:$0xff]
        %v3527 = vld [vmem:[#allocation4 + $0x268] sm:$0xff]
        %v3528 = vld [vmem:[#allocation4 + $0x270] sm:$0xff]
        %v3529 = vld [vmem:[#allocation4 + $0x278] sm:$0xff]
        %v3530 = vld [vmem:[#allocation4 + $0x280] sm:$0xff]
        %v3531 = vld [vmem:[#allocation4 + $0x288] sm:$0xff]
        %v3532 = vld [vmem:[#allocation4 + $0x290] sm:$0xff]
        %v3533 = vld [vmem:[#allocation4 + $0x298] sm:$0xff]
        %v3534 = vld [vmem:[#allocation4 + $0x2a0] sm:$0xff]
        %v3535 = vld [vmem:[#allocation4 + $0x2a8] sm:$0xff]
        %v3536 = vld [vmem:[#allocation4 + $0x2b0] sm:$0xff]
        %v3537 = vld [vmem:[#allocation4 + $0x2b8] sm:$0xff]
        %v3538 = vld [vmem:[#allocation4 + $0x2c0] sm:$0xff]
        %v3539 = vld [vmem:[#allocation4 + $0x2c8] sm:$0xff]
        %v3540 = vld [vmem:[#allocation4 + $0x2d0] sm:$0xff]
        %v3541 = vld [vmem:[#allocation4 + $0x2d8] sm:$0xff]
        %v3542 = vld [vmem:[#allocation4 + $0x2e0] sm:$0xff]
        %v3543 = vld [vmem:[#allocation4 + $0x2e8] sm:$0xff]
        %v3544 = vld [vmem:[#allocation4 + $0x2f0] sm:$0xff]
        %v3545 = vld [vmem:[#allocation4 + $0x2f8] sm:$0xff]
        %v3546 = vld [vmem:[#allocation4 + $0x300] sm:$0xff]
        %v3547 = vld [vmem:[#allocation4 + $0x308] sm:$0xff]
        %v3548 = vld [vmem:[#allocation4 + $0x310] sm:$0xff]
        %v3549 = vld [vmem:[#allocation4 + $0x318] sm:$0xff]
        %v3550 = vld [vmem:[#allocation4 + $0x320] sm:$0xff]
        %v3551 = vld [vmem:[#allocation4 + $0x328] sm:$0xff]
        %v3552 = vld [vmem:[#allocation4 + $0x330] sm:$0xff]
        %v3553 = vld [vmem:[#allocation4 + $0x338] sm:$0xff]
        %v3554 = vld [vmem:[#allocation4 + $0x340] sm:$0xff]
        %v3555 = vld [vmem:[#allocation4 + $0x348] sm:$0xff]
        %v3556 = vld [vmem:[#allocation4 + $0x350] sm:$0xff]
        %v3557 = vld [vmem:[#allocation4 + $0x358] sm:$0xff]
        %v3558 = vld [vmem:[#allocation4 + $0x360] sm:$0xff]
        %v3559 = vld [vmem:[#allocation4 + $0x368] sm:$0xff]
        %v3560 = vld [vmem:[#allocation4 + $0x370] sm:$0xff]
        %v3561 = vld [vmem:[#allocation4 + $0x378] sm:$0xff]
        %v3562 = vld [vmem:[#allocation4 + $0x380] sm:$0xff]
        %v3563 = vld [vmem:[#allocation4 + $0x388] sm:$0xff]
        %v3564 = vld [vmem:[#allocation4 + $0x390] sm:$0xff]
        %v3565 = vld [vmem:[#allocation4 + $0x398] sm:$0xff]
        %v3566 = vld [vmem:[#allocation4 + $0x3a0] sm:$0xff]
        %v3567 = vld [vmem:[#allocation4 + $0x3a8] sm:$0xff]
        %v3568 = vld [vmem:[#allocation4 + $0x3b0] sm:$0xff]
        %v3569 = vld [vmem:[#allocation4 + $0x3b8] sm:$0xff]
        %v3570 = vld [vmem:[#allocation4 + $0x3c0] sm:$0xff]
        %v3571 = vld [vmem:[#allocation4 + $0x3c8] sm:$0xff]
        %v3572 = vld [vmem:[#allocation4 + $0x3d0] sm:$0xff]
        %v3573 = vld [vmem:[#allocation4 + $0x3d8] sm:$0xff]
        %v3574 = vld [vmem:[#allocation4 + $0x3e0] sm:$0xff]
        %v3575 = vld [vmem:[#allocation4 + $0x3e8] sm:$0xff]
        %v3576 = vld [vmem:[#allocation4 + $0x3f0] sm:$0xff]
        %v3577 = vld [vmem:[#allocation4 + $0x3f8] sm:$0xff]
        %v3578 = vld [vmem:[#allocation4 + $0x400] sm:$0xff]
        %v3579 = vld [vmem:[#allocation4 + $0x408] sm:$0xff]
        %v3580 = vld [vmem:[#allocation4 + $0x410] sm:$0xff]
        %v3581 = vld [vmem:[#allocation4 + $0x418] sm:$0xff]
        %v3582 = vld [vmem:[#allocation4 + $0x420] sm:$0xff]
        %v3583 = vld [vmem:[#allocation4 + $0x428] sm:$0xff]
        %v3584 = vld [vmem:[#allocation4 + $0x430] sm:$0xff]
        %v3585 = vld [vmem:[#allocation4 + $0x438] sm:$0xff]
        %v3586 = vld [vmem:[#allocation4 + $0x440] sm:$0xff]
        %v3587 = vld [vmem:[#allocation4 + $0x448] sm:$0xff]
        %v3588 = vld [vmem:[#allocation4 + $0x450] sm:$0xff]
        %v3589 = vld [vmem:[#allocation4 + $0x458] sm:$0xff]
        %v3590 = vld [vmem:[#allocation4 + $0x460] sm:$0xff]
        %v3591 = vld [vmem:[#allocation4 + $0x468] sm:$0xff]
        %v3592 = vld [vmem:[#allocation4 + $0x470] sm:$0xff]
        %v3593 = vld [vmem:[#allocation4 + $0x478] sm:$0xff]
        %v3594 = vld [vmem:[#allocation4 + $0x480] sm:$0xff]
        %v3595 = vld [vmem:[#allocation4 + $0x488] sm:$0xff]
        %v3596 = vld [vmem:[#allocation4 + $0x490] sm:$0xff]
        %v3597 = vld [vmem:[#allocation4 + $0x498] sm:$0xff]
        %v3598 = vld [vmem:[#allocation4 + $0x4a0] sm:$0xff]
        %v3599 = vld [vmem:[#allocation4 + $0x4a8] sm:$0xff]
        %v3600 = vld [vmem:[#allocation4 + $0x4b0] sm:$0xff]
        %v3601 = vld [vmem:[#allocation4 + $0x4b8] sm:$0xff]
        %v3602 = vld [vmem:[#allocation4 + $0x4c0] sm:$0xff]
        %v3603 = vld [vmem:[#allocation4 + $0x4c8] sm:$0xff]
        %v3604 = vld [vmem:[#allocation4 + $0x4d0] sm:$0xff]
        %v3605 = vld [vmem:[#allocation4 + $0x4d8] sm:$0xff]
        %v3606 = vld [vmem:[#allocation4 + $0x4e0] sm:$0xff]
        %v3607 = vld [vmem:[#allocation4 + $0x4e8] sm:$0xff]
        %v3608 = vld [vmem:[#allocation4 + $0x4f0] sm:$0xff]
        %v3609 = vld [vmem:[#allocation4 + $0x4f8] sm:$0xff]
        %v3610 = vld [vmem:[#allocation4 + $0x500] sm:$0xff]
        %v3611 = vld [vmem:[#allocation4 + $0x508] sm:$0xff]
        %v3612 = vld [vmem:[#allocation4 + $0x510] sm:$0xff]
        %v3613 = vld [vmem:[#allocation4 + $0x518] sm:$0xff]
        %v3614 = vld [vmem:[#allocation4 + $0x520] sm:$0xff]
        %v3615 = vld [vmem:[#allocation4 + $0x528] sm:$0xff]
        %v3616 = vld [vmem:[#allocation4 + $0x530] sm:$0xff]
        %v3617 = vld [vmem:[#allocation4 + $0x538] sm:$0xff]
        %v3618 = vld [vmem:[#allocation4 + $0x540] sm:$0xff]
        %v3619 = vld [vmem:[#allocation4 + $0x548] sm:$0xff]
        %v3620 = vld [vmem:[#allocation4 + $0x550] sm:$0xff]
        %v3621 = vld [vmem:[#allocation4 + $0x558] sm:$0xff]
        %v3622 = vld [vmem:[#allocation4 + $0x560] sm:$0xff]
        %v3623 = vld [vmem:[#allocation4 + $0x568] sm:$0xff]
        %v3624 = vld [vmem:[#allocation4 + $0x570] sm:$0xff]
        %v3625 = vld [vmem:[#allocation4 + $0x578] sm:$0xff]
        %v3626 = vld [vmem:[#allocation4 + $0x580] sm:$0xff]
        %v3627 = vld [vmem:[#allocation4 + $0x588] sm:$0xff]
        %v3628 = vld [vmem:[#allocation4 + $0x590] sm:$0xff]
        %v3629 = vld [vmem:[#allocation4 + $0x598] sm:$0xff]
        %v3630 = vld [vmem:[#allocation4 + $0x5a0] sm:$0xff]
        %v3631 = vld [vmem:[#allocation4 + $0x5a8] sm:$0xff]
        %v3632 = vld [vmem:[#allocation4 + $0x5b0] sm:$0xff]
        %v3633 = vld [vmem:[#allocation4 + $0x5b8] sm:$0xff]
        %v3634 = vld [vmem:[#allocation4 + $0x5c0] sm:$0xff]
        %v3635 = vld [vmem:[#allocation4 + $0x5c8] sm:$0xff]
        %v3636 = vld [vmem:[#allocation4 + $0x5d0] sm:$0xff]
        %v3637 = vld [vmem:[#allocation4 + $0x5d8] sm:$0xff]
        %v3638 = vld [vmem:[#allocation4 + $0x5e0] sm:$0xff]
        %v3639 = vld [vmem:[#allocation4 + $0x5e8] sm:$0xff]
        %v3640 = vld [vmem:[#allocation4 + $0x5f0] sm:$0xff]
        %v3641 = vld [vmem:[#allocation4 + $0x5f8] sm:$0xff]
        %v3642 = vld [vmem:[#allocation4 + $0x600] sm:$0xff]
        %v3643 = vld [vmem:[#allocation4 + $0x608] sm:$0xff]
        %v3644 = vld [vmem:[#allocation4 + $0x610] sm:$0xff]
        %v3645 = vld [vmem:[#allocation4 + $0x618] sm:$0xff]
        %v3646 = vld [vmem:[#allocation4 + $0x620] sm:$0xff]
        %v3647 = vld [vmem:[#allocation4 + $0x628] sm:$0xff]
        %v3648 = vld [vmem:[#allocation4 + $0x630] sm:$0xff]
        %v3649 = vld [vmem:[#allocation4 + $0x638] sm:$0xff]
        %v3650 = vld [vmem:[#allocation4 + $0x640] sm:$0xff]
        %v3651 = vld [vmem:[#allocation4 + $0x648] sm:$0xff]
        %v3652 = vld [vmem:[#allocation4 + $0x650] sm:$0xff]
        %v3653 = vld [vmem:[#allocation4 + $0x658] sm:$0xff]
        %v3654 = vld [vmem:[#allocation4 + $0x660] sm:$0xff]
        %v3655 = vld [vmem:[#allocation4 + $0x668] sm:$0xff]
        %v3656 = vld [vmem:[#allocation4 + $0x670] sm:$0xff]
        %v3657 = vld [vmem:[#allocation4 + $0x678] sm:$0xff]
        %v3658 = vld [vmem:[#allocation4 + $0x680] sm:$0xff]
        %v3659 = vld [vmem:[#allocation4 + $0x688] sm:$0xff]
        %v3660 = vld [vmem:[#allocation4 + $0x690] sm:$0xff]
        %v3661 = vld [vmem:[#allocation4 + $0x698] sm:$0xff]
        %v3662 = vld [vmem:[#allocation4 + $0x6a0] sm:$0xff]
        %v3663 = vld [vmem:[#allocation4 + $0x6a8] sm:$0xff]
        %v3664 = vld [vmem:[#allocation4 + $0x6b0] sm:$0xff]
        %v3665 = vld [vmem:[#allocation4 + $0x6b8] sm:$0xff]
        %v3666 = vld [vmem:[#allocation4 + $0x6c0] sm:$0xff]
        %v3667 = vld [vmem:[#allocation4 + $0x6c8] sm:$0xff]
        %v3668 = vld [vmem:[#allocation4 + $0x6d0] sm:$0xff]
        %v3669 = vld [vmem:[#allocation4 + $0x6d8] sm:$0xff]
        %v3670 = vld [vmem:[#allocation4 + $0x6e0] sm:$0xff]
        %v3671 = vld [vmem:[#allocation4 + $0x6e8] sm:$0xff]
        %v3672 = vld [vmem:[#allocation4 + $0x6f0] sm:$0xff]
        %v3673 = vld [vmem:[#allocation4 + $0x6f8] sm:$0xff]
        %v3674 = vld [vmem:[#allocation4 + $0x700] sm:$0xff]
        %v3675 = vld [vmem:[#allocation4 + $0x708] sm:$0xff]
        %v3676 = vld [vmem:[#allocation4 + $0x710] sm:$0xff]
        %v3677 = vld [vmem:[#allocation4 + $0x718] sm:$0xff]
        %v3678 = vld [vmem:[#allocation4 + $0x720] sm:$0xff]
        %v3679 = vld [vmem:[#allocation4 + $0x728] sm:$0xff]
        %v3680 = vld [vmem:[#allocation4 + $0x730] sm:$0xff]
        %v3681 = vld [vmem:[#allocation4 + $0x738] sm:$0xff]
        %v3682 = vld [vmem:[#allocation4 + $0x740] sm:$0xff]
        %v3683 = vld [vmem:[#allocation4 + $0x748] sm:$0xff]
        %v3684 = vld [vmem:[#allocation4 + $0x750] sm:$0xff]
        %v3685 = vld [vmem:[#allocation4 + $0x758] sm:$0xff]
        %v3686 = vld [vmem:[#allocation4 + $0x760] sm:$0xff]
        %v3687 = vld [vmem:[#allocation4 + $0x768] sm:$0xff]
        %v3688 = vld [vmem:[#allocation4 + $0x770] sm:$0xff]
        %v3689 = vld [vmem:[#allocation4 + $0x778] sm:$0xff]
        %v3690 = vld [vmem:[#allocation4 + $0x780] sm:$0xff]
        %v3691 = vld [vmem:[#allocation4 + $0x788] sm:$0xff]
        %v3692 = vld [vmem:[#allocation4 + $0x790] sm:$0xff]
        %v3693 = vld [vmem:[#allocation4 + $0x798] sm:$0xff]
        %v3694 = vld [vmem:[#allocation4 + $0x7a0] sm:$0xff]
        %v3695 = vld [vmem:[#allocation4 + $0x7a8] sm:$0xff]
        %v3696 = vld [vmem:[#allocation4 + $0x7b0] sm:$0xff]
        %v3697 = vld [vmem:[#allocation4 + $0x7b8] sm:$0xff]
        %v3698 = vld [vmem:[#allocation4 + $0x7c0] sm:$0xff]
        %v3699 = vld [vmem:[#allocation4 + $0x7c8] sm:$0xff]
        %v3700 = vld [vmem:[#allocation4 + $0x7d0] sm:$0xff]
        %v3701 = vld [vmem:[#allocation4 + $0x7d8] sm:$0xff]
        %v3702 = vld [vmem:[#allocation4 + $0x7e0] sm:$0xff]
        %v3703 = vld [vmem:[#allocation4 + $0x7e8] sm:$0xff]
        %v3704 = vld [vmem:[#allocation4 + $0x7f0] sm:$0xff]
        %v3705 = vld [vmem:[#allocation4 + $0x7f8] sm:$0xff]
        %v3706 = vld [vmem:[#allocation4 + $0x800] sm:$0xff]
        %v3707 = vld [vmem:[#allocation4 + $0x808] sm:$0xff]
        %v3708 = vld [vmem:[#allocation4 + $0x810] sm:$0xff]
        %v3709 = vld [vmem:[#allocation4 + $0x818] sm:$0xff]
        %v3710 = vld [vmem:[#allocation4 + $0x820] sm:$0xff]
        %v3711 = vld [vmem:[#allocation4 + $0x828] sm:$0xff]
        %v3712 = vld [vmem:[#allocation4 + $0x830] sm:$0xff]
        %v3713 = vld [vmem:[#allocation4 + $0x838] sm:$0xff]
        %v3714 = vld [vmem:[#allocation4 + $0x840] sm:$0xff]
        %v3715 = vld [vmem:[#allocation4 + $0x848] sm:$0xff]
        %v3716 = vld [vmem:[#allocation4 + $0x850] sm:$0xff]
        %v3717 = vld [vmem:[#allocation4 + $0x858] sm:$0xff]
        %v3718 = vld [vmem:[#allocation4 + $0x860] sm:$0xff]
        %v3719 = vld [vmem:[#allocation4 + $0x868] sm:$0xff]
        %v3720 = vld [vmem:[#allocation4 + $0x870] sm:$0xff]
        %v3721 = vld [vmem:[#allocation4 + $0x878] sm:$0xff]
        %v3722 = vld [vmem:[#allocation4 + $0x880] sm:$0xff]
        %v3723 = vld [vmem:[#allocation4 + $0x888] sm:$0xff]
        %v3724 = vld [vmem:[#allocation4 + $0x890] sm:$0xff]
        %v3725 = vld [vmem:[#allocation4 + $0x898] sm:$0xff]
        %v3726 = vld [vmem:[#allocation4 + $0x8a0] sm:$0xff]
        %v3727 = vld [vmem:[#allocation4 + $0x8a8] sm:$0xff]
        %v3728 = vld [vmem:[#allocation4 + $0x8b0] sm:$0xff]
        %v3729 = vld [vmem:[#allocation4 + $0x8b8] sm:$0xff]
        %v3730 = vld [vmem:[#allocation4 + $0x8c0] sm:$0xff]
        %v3731 = vld [vmem:[#allocation4 + $0x8c8] sm:$0xff]
        %v3732 = vld [vmem:[#allocation4 + $0x8d0] sm:$0xff]
        %v3733 = vld [vmem:[#allocation4 + $0x8d8] sm:$0xff]
        %v3734 = vld [vmem:[#allocation4 + $0x8e0] sm:$0xff]
        %v3735 = vld [vmem:[#allocation4 + $0x8e8] sm:$0xff]
        %v3736 = vld [vmem:[#allocation4 + $0x8f0] sm:$0xff]
        %v3737 = vld [vmem:[#allocation4 + $0x8f8] sm:$0xff]
        %v3738 = vld [vmem:[#allocation4 + $0x900] sm:$0xff]
        %v3739 = vld [vmem:[#allocation4 + $0x908] sm:$0xff]
        %v3740 = vld [vmem:[#allocation4 + $0x910] sm:$0xff]
        %v3741 = vld [vmem:[#allocation4 + $0x918] sm:$0xff]
        %v3742 = vld [vmem:[#allocation4 + $0x920] sm:$0xff]
        %v3743 = vld [vmem:[#allocation4 + $0x928] sm:$0xff]
        %v3744 = vld [vmem:[#allocation4 + $0x930] sm:$0xff]
        %v3745 = vld [vmem:[#allocation4 + $0x938] sm:$0xff]
        %v3746 = vld [vmem:[#allocation4 + $0x940] sm:$0xff]
        %v3747 = vld [vmem:[#allocation4 + $0x948] sm:$0xff]
        %v3748 = vld [vmem:[#allocation4 + $0x950] sm:$0xff]
        %v3749 = vld [vmem:[#allocation4 + $0x958] sm:$0xff]
        %v3750 = vld [vmem:[#allocation4 + $0x960] sm:$0xff]
        %v3751 = vld [vmem:[#allocation4 + $0x968] sm:$0xff]
        %v3752 = vld [vmem:[#allocation4 + $0x970] sm:$0xff]
        %v3753 = vld [vmem:[#allocation4 + $0x978] sm:$0xff]
        %v3754 = vld [vmem:[#allocation4 + $0x980] sm:$0xff]
        %v3755 = vld [vmem:[#allocation4 + $0x988] sm:$0xff]
        %v3756 = vld [vmem:[#allocation4 + $0x990] sm:$0xff]
        %v3757 = vld [vmem:[#allocation4 + $0x998] sm:$0xff]
        %v3758 = vld [vmem:[#allocation4 + $0x9a0] sm:$0xff]
        %v3759 = vld [vmem:[#allocation4 + $0x9a8] sm:$0xff]
        %v3760 = vld [vmem:[#allocation4 + $0x9b0] sm:$0xff]
        %v3761 = vld [vmem:[#allocation4 + $0x9b8] sm:$0xff]
        %v3762 = vld [vmem:[#allocation4 + $0x9c0] sm:$0xff]
        %v3763 = vld [vmem:[#allocation4 + $0x9c8] sm:$0xff]
        %v3764 = vld [vmem:[#allocation4 + $0x9d0] sm:$0xff]
        %v3765 = vld [vmem:[#allocation4 + $0x9d8] sm:$0xff]
        %v3766 = vld [vmem:[#allocation4 + $0x9e0] sm:$0xff]
        %v3767 = vld [vmem:[#allocation4 + $0x9e8] sm:$0xff]
        %v3768 = vld [vmem:[#allocation4 + $0x9f0] sm:$0xff]
        %v3769 = vld [vmem:[#allocation4 + $0x9f8] sm:$0xff]
        %v3770 = vld [vmem:[#allocation4 + $0xa00] sm:$0xff]
        %v3771 = vld [vmem:[#allocation4 + $0xa08] sm:$0xff]
        %v3772 = vld [vmem:[#allocation4 + $0xa10] sm:$0xff]
        %v3773 = vld [vmem:[#allocation4 + $0xa18] sm:$0xff]
        %v3774 = vld [vmem:[#allocation4 + $0xa20] sm:$0xff]
        %v3775 = vld [vmem:[#allocation4 + $0xa28] sm:$0xff]
        %v3776 = vld [vmem:[#allocation4 + $0xa30] sm:$0xff]
        %v3777 = vld [vmem:[#allocation4 + $0xa38] sm:$0xff]
        %v3778 = vld [vmem:[#allocation4 + $0xa40] sm:$0xff]
        %v3779 = vld [vmem:[#allocation4 + $0xa48] sm:$0xff]
        %v3780 = vld [vmem:[#allocation4 + $0xa50] sm:$0xff]
        %v3781 = vld [vmem:[#allocation4 + $0xa58] sm:$0xff]
        %v3782 = vld [vmem:[#allocation4 + $0xa60] sm:$0xff]
        %v3783 = vld [vmem:[#allocation4 + $0xa68] sm:$0xff]
        %v3784 = vld [vmem:[#allocation4 + $0xa70] sm:$0xff]
        %v3785 = vld [vmem:[#allocation4 + $0xa78] sm:$0xff]
        %v3786 = vld [vmem:[#allocation4 + $0xa80] sm:$0xff]
        %v3787 = vld [vmem:[#allocation4 + $0xa88] sm:$0xff]
        %v3788 = vld [vmem:[#allocation4 + $0xa90] sm:$0xff]
        %v3789 = vld [vmem:[#allocation4 + $0xa98] sm:$0xff]
        %v3790 = vld [vmem:[#allocation4 + $0xaa0] sm:$0xff]
        %v3791 = vld [vmem:[#allocation4 + $0xaa8] sm:$0xff]
        %v3792 = vld [vmem:[#allocation4 + $0xab0] sm:$0xff]
        %v3793 = vld [vmem:[#allocation4 + $0xab8] sm:$0xff]
        %v3794 = vld [vmem:[#allocation4 + $0xac0] sm:$0xff]
        %v3795 = vld [vmem:[#allocation4 + $0xac8] sm:$0xff]
        %v3796 = vld [vmem:[#allocation4 + $0xad0] sm:$0xff]
        %v3797 = vld [vmem:[#allocation4 + $0xad8] sm:$0xff]
        %v3798 = vld [vmem:[#allocation4 + $0xae0] sm:$0xff]
        %v3799 = vld [vmem:[#allocation4 + $0xae8] sm:$0xff]
        %v3800 = vld [vmem:[#allocation4 + $0xaf0] sm:$0xff]
        %v3801 = vld [vmem:[#allocation4 + $0xaf8] sm:$0xff]
        %v3802 = vld [vmem:[#allocation4 + $0xb00] sm:$0xff]
        %v3803 = vld [vmem:[#allocation4 + $0xb08] sm:$0xff]
        %v3804 = vld [vmem:[#allocation4 + $0xb10] sm:$0xff]
        %v3805 = vld [vmem:[#allocation4 + $0xb18] sm:$0xff]
        %v3806 = vld [vmem:[#allocation4 + $0xb20] sm:$0xff]
        %v3807 = vld [vmem:[#allocation4 + $0xb28] sm:$0xff]
        %v3808 = vld [vmem:[#allocation4 + $0xb30] sm:$0xff]
        %v3809 = vld [vmem:[#allocation4 + $0xb38] sm:$0xff]
        %v3810 = vld [vmem:[#allocation4 + $0xb40] sm:$0xff]
        %v3811 = vld [vmem:[#allocation4 + $0xb48] sm:$0xff]
        %v3812 = vld [vmem:[#allocation4 + $0xb50] sm:$0xff]
        %v3813 = vld [vmem:[#allocation4 + $0xb58] sm:$0xff]
        %v3814 = vld [vmem:[#allocation4 + $0xb60] sm:$0xff]
        %v3815 = vld [vmem:[#allocation4 + $0xb68] sm:$0xff]
        %v3816 = vld [vmem:[#allocation4 + $0xb70] sm:$0xff]
        %v3817 = vld [vmem:[#allocation4 + $0xb78] sm:$0xff]
        %v3818 = vld [vmem:[#allocation4 + $0xb80] sm:$0xff]
        %v3819 = vld [vmem:[#allocation4 + $0xb88] sm:$0xff]
        %v3820 = vld [vmem:[#allocation4 + $0xb90] sm:$0xff]
        %v3821 = vld [vmem:[#allocation4 + $0xb98] sm:$0xff]
        %v3822 = vld [vmem:[#allocation4 + $0xba0] sm:$0xff]
        %v3823 = vld [vmem:[#allocation4 + $0xba8] sm:$0xff]
        %v3824 = vld [vmem:[#allocation4 + $0xbb0] sm:$0xff]
        %v3825 = vld [vmem:[#allocation4 + $0xbb8] sm:$0xff]
        %v3826 = vld [vmem:[#allocation4 + $0xbc0] sm:$0xff]
        %v3827 = vld [vmem:[#allocation4 + $0xbc8] sm:$0xff]
        %v3828 = vld [vmem:[#allocation4 + $0xbd0] sm:$0xff]
        %v3829 = vld [vmem:[#allocation4 + $0xbd8] sm:$0xff]
        %v3830 = vld [vmem:[#allocation4 + $0xbe0] sm:$0xff]
        %v3831 = vld [vmem:[#allocation4 + $0xbe8] sm:$0xff]
        %v3832 = vld [vmem:[#allocation4 + $0xbf0] sm:$0xff]
        %v3833 = vld [vmem:[#allocation4 + $0xbf8] sm:$0xff]
        %v3834 = vld [vmem:[#allocation4 + $0xc00] sm:$0xff]
        %v3835 = vld [vmem:[#allocation4 + $0xc08] sm:$0xff]
        %v3836 = vld [vmem:[#allocation4 + $0xc10] sm:$0xff]
        %v3837 = vld [vmem:[#allocation4 + $0xc18] sm:$0xff]
        %v3838 = vld [vmem:[#allocation4 + $0xc20] sm:$0xff]
        %v3839 = vld [vmem:[#allocation4 + $0xc28] sm:$0xff]
        %v3840 = vld [vmem:[#allocation4 + $0xc30] sm:$0xff]
        %v3841 = vld [vmem:[#allocation4 + $0xc38] sm:$0xff]
        %v3842 = vld [vmem:[#allocation4 + $0xc40] sm:$0xff]
        %v3843 = vld [vmem:[#allocation4 + $0xc48] sm:$0xff]
        %v3844 = vld [vmem:[#allocation4 + $0xc50] sm:$0xff]
        %v3845 = vld [vmem:[#allocation4 + $0xc58] sm:$0xff]
        %v3846 = vld [vmem:[#allocation4 + $0xc60] sm:$0xff]
        %v3847 = vld [vmem:[#allocation4 + $0xc68] sm:$0xff]
        %v3848 = vld [vmem:[#allocation4 + $0xc70] sm:$0xff]
        %v3849 = vld [vmem:[#allocation4 + $0xc78] sm:$0xff]
        %v3850 = vld [vmem:[#allocation4 + $0xc80] sm:$0xff]
        %v3851 = vld [vmem:[#allocation4 + $0xc88] sm:$0xff]
        %v3852 = vld [vmem:[#allocation4 + $0xc90] sm:$0xff]
        %v3853 = vld [vmem:[#allocation4 + $0xc98] sm:$0xff]
        %v3854 = vld [vmem:[#allocation4 + $0xca0] sm:$0xff]
        %v3855 = vld [vmem:[#allocation4 + $0xca8] sm:$0xff]
        %v3856 = vld [vmem:[#allocation4 + $0xcb0] sm:$0xff]
        %v3857 = vld [vmem:[#allocation4 + $0xcb8] sm:$0xff]
        %v3858 = vld [vmem:[#allocation4 + $0xcc0] sm:$0xff]
        %v3859 = vld [vmem:[#allocation4 + $0xcc8] sm:$0xff]
        %v3860 = vld [vmem:[#allocation4 + $0xcd0] sm:$0xff]
        %v3861 = vld [vmem:[#allocation4 + $0xcd8] sm:$0xff]
        %v3862 = vld [vmem:[#allocation4 + $0xce0] sm:$0xff]
        %v3863 = vld [vmem:[#allocation4 + $0xce8] sm:$0xff]
        %v3864 = vld [vmem:[#allocation4 + $0xcf0] sm:$0xff]
        %v3865 = vld [vmem:[#allocation4 + $0xcf8] sm:$0xff]
        %v3866 = vld [vmem:[#allocation4 + $0xd00] sm:$0xff]
        %v3867 = vld [vmem:[#allocation4 + $0xd08] sm:$0xff]
        %v3868 = vld [vmem:[#allocation4 + $0xd10] sm:$0xff]
        %v3869 = vld [vmem:[#allocation4 + $0xd18] sm:$0xff]
        %v3870 = vld [vmem:[#allocation4 + $0xd20] sm:$0xff]
        %v3871 = vld [vmem:[#allocation4 + $0xd28] sm:$0xff]
        %v3872 = vld [vmem:[#allocation4 + $0xd30] sm:$0xff]
        %v3873 = vld [vmem:[#allocation4 + $0xd38] sm:$0xff]
        %v3874 = vld [vmem:[#allocation4 + $0xd40] sm:$0xff]
        %v3875 = vld [vmem:[#allocation4 + $0xd48] sm:$0xff]
        %v3876 = vld [vmem:[#allocation4 + $0xd50] sm:$0xff]
        %v3877 = vld [vmem:[#allocation4 + $0xd58] sm:$0xff]
        %v3878 = vld [vmem:[#allocation4 + $0xd60] sm:$0xff]
        %v3879 = vld [vmem:[#allocation4 + $0xd68] sm:$0xff]
        %v3880 = vld [vmem:[#allocation4 + $0xd70] sm:$0xff]
        %v3881 = vld [vmem:[#allocation4 + $0xd78] sm:$0xff]
        %v3882 = vld [vmem:[#allocation4 + $0xd80] sm:$0xff]
        %v3883 = vld [vmem:[#allocation4 + $0xd88] sm:$0xff]
        %v3884 = vld [vmem:[#allocation4 + $0xd90] sm:$0xff]
        %v3885 = vld [vmem:[#allocation4 + $0xd98] sm:$0xff]
        %v3886 = vld [vmem:[#allocation4 + $0xda0] sm:$0xff]
        %v3887 = vld [vmem:[#allocation4 + $0xda8] sm:$0xff]
        %v3888 = vld [vmem:[#allocation4 + $0xdb0] sm:$0xff]
        %v3889 = vld [vmem:[#allocation4 + $0xdb8] sm:$0xff]
        %v3890 = vld [vmem:[#allocation4 + $0xdc0] sm:$0xff]
        %v3891 = vld [vmem:[#allocation4 + $0xdc8] sm:$0xff]
        %v3892 = vld [vmem:[#allocation4 + $0xdd0] sm:$0xff]
        %v3893 = vld [vmem:[#allocation4 + $0xdd8] sm:$0xff]
        %v3894 = vld [vmem:[#allocation4 + $0xde0] sm:$0xff]
        %v3895 = vld [vmem:[#allocation4 + $0xde8] sm:$0xff]
        %v3896 = vld [vmem:[#allocation4 + $0xdf0] sm:$0xff]
        %v3897 = vld [vmem:[#allocation4 + $0xdf8] sm:$0xff]
        %v3898 = vld [vmem:[#allocation4 + $0xe00] sm:$0xff]
        %v3899 = vld [vmem:[#allocation4 + $0xe08] sm:$0xff]
        %v3900 = vld [vmem:[#allocation4 + $0xe10] sm:$0xff]
        %v3901 = vld [vmem:[#allocation4 + $0xe18] sm:$0xff]
        %v3902 = vld [vmem:[#allocation4 + $0xe20] sm:$0xff]
        %v3903 = vld [vmem:[#allocation4 + $0xe28] sm:$0xff]
        %v3904 = vld [vmem:[#allocation4 + $0xe30] sm:$0xff]
        %v3905 = vld [vmem:[#allocation4 + $0xe38] sm:$0xff]
        %v3906 = vld [vmem:[#allocation4 + $0xe40] sm:$0xff]
        %v3907 = vld [vmem:[#allocation4 + $0xe48] sm:$0xff]
        %v3908 = vld [vmem:[#allocation4 + $0xe50] sm:$0xff]
        %v3909 = vld [vmem:[#allocation4 + $0xe58] sm:$0xff]
        %v3910 = vld [vmem:[#allocation4 + $0xe60] sm:$0xff]
        %v3911 = vld [vmem:[#allocation4 + $0xe68] sm:$0xff]
        %v3912 = vld [vmem:[#allocation4 + $0xe70] sm:$0xff]
        %v3913 = vld [vmem:[#allocation4 + $0xe78] sm:$0xff]
        %v3914 = vld [vmem:[#allocation4 + $0xe80] sm:$0xff]
        %v3915 = vld [vmem:[#allocation4 + $0xe88] sm:$0xff]
        %v3916 = vld [vmem:[#allocation4 + $0xe90] sm:$0xff]
        %v3917 = vld [vmem:[#allocation4 + $0xe98] sm:$0xff]
        %v3918 = vld [vmem:[#allocation4 + $0xea0] sm:$0xff]
        %v3919 = vld [vmem:[#allocation4 + $0xea8] sm:$0xff]
        %v3920 = vld [vmem:[#allocation4 + $0xeb0] sm:$0xff]
        %v3921 = vld [vmem:[#allocation4 + $0xeb8] sm:$0xff]
        %v3922 = vld [vmem:[#allocation4 + $0xec0] sm:$0xff]
        %v3923 = vld [vmem:[#allocation4 + $0xec8] sm:$0xff]
        %v3924 = vld [vmem:[#allocation4 + $0xed0] sm:$0xff]
        %v3925 = vld [vmem:[#allocation4 + $0xed8] sm:$0xff]
        %v3926 = vld [vmem:[#allocation4 + $0xee0] sm:$0xff]
        %v3927 = vld [vmem:[#allocation4 + $0xee8] sm:$0xff]
        %v3928 = vld [vmem:[#allocation4 + $0xef0] sm:$0xff]
        %v3929 = vld [vmem:[#allocation4 + $0xef8] sm:$0xff]
        %v3930 = vld [vmem:[#allocation4 + $0xf00] sm:$0xff]
        %v3931 = vld [vmem:[#allocation4 + $0xf08] sm:$0xff]
        %v3932 = vld [vmem:[#allocation4 + $0xf10] sm:$0xff]
        %v3933 = vld [vmem:[#allocation4 + $0xf18] sm:$0xff]
        %v3934 = vld [vmem:[#allocation4 + $0xf20] sm:$0xff]
        %v3935 = vld [vmem:[#allocation4 + $0xf28] sm:$0xff]
        %v3936 = vld [vmem:[#allocation4 + $0xf30] sm:$0xff]
        %v3937 = vld [vmem:[#allocation4 + $0xf38] sm:$0xff]
        %v3938 = vld [vmem:[#allocation4 + $0xf40] sm:$0xff]
        %v3939 = vld [vmem:[#allocation4 + $0xf48] sm:$0xff]
        %v3940 = vld [vmem:[#allocation4 + $0xf50] sm:$0xff]
        %v3941 = vld [vmem:[#allocation4 + $0xf58] sm:$0xff]
        %v3942 = vld [vmem:[#allocation4 + $0xf60] sm:$0xff]
        %v3943 = vld [vmem:[#allocation4 + $0xf68] sm:$0xff]
        %v3944 = vld [vmem:[#allocation4 + $0xf70] sm:$0xff]
        %v3945 = vld [vmem:[#allocation4 + $0xf78] sm:$0xff]
        %v3946 = vld [vmem:[#allocation4 + $0xf80] sm:$0xff]
        %v3947 = vld [vmem:[#allocation4 + $0xf88] sm:$0xff]
        %v3948 = vld [vmem:[#allocation4 + $0xf90] sm:$0xff]
        %v3949 = vld [vmem:[#allocation4 + $0xf98] sm:$0xff]
        %v3950 = vld [vmem:[#allocation4 + $0xfa0] sm:$0xff]
        %v3951 = vld [vmem:[#allocation4 + $0xfa8] sm:$0xff]
        %v3952 = vld [vmem:[#allocation4 + $0xfb0] sm:$0xff]
        %v3953 = vld [vmem:[#allocation4 + $0xfb8] sm:$0xff]
        %v3954 = vld [vmem:[#allocation4 + $0xfc0] sm:$0xff]
        %v3955 = vld [vmem:[#allocation4 + $0xfc8] sm:$0xff]
        %v3956 = vld [vmem:[#allocation4 + $0xfd0] sm:$0xff]
        %v3957 = vld [vmem:[#allocation4 + $0xfd8] sm:$0xff]
        %v3958 = vld [vmem:[#allocation4 + $0xfe0] sm:$0xff]
        %v3959 = vld [vmem:[#allocation4 + $0xfe8] sm:$0xff]
        %v3960 = vld [vmem:[#allocation4 + $0xff0] sm:$0xff]
        %v3961 = vld [vmem:[#allocation4 + $0xff8] sm:$0xff]
        %v3962 = vld [vmem:[#allocation4 + $0x1000] sm:$0xff]
        %v3963 = vld [vmem:[#allocation4 + $0x1008] sm:$0xff]
        %v3964 = vld [vmem:[#allocation4 + $0x1010] sm:$0xff]
        %v3965 = vld [vmem:[#allocation4 + $0x1018] sm:$0xff]
        %v3966 = vld [vmem:[#allocation4 + $0x1020] sm:$0xff]
        %v3967 = vld [vmem:[#allocation4 + $0x1028] sm:$0xff]
        %v3968 = vld [vmem:[#allocation4 + $0x1030] sm:$0xff]
        %v3969 = vld [vmem:[#allocation4 + $0x1038] sm:$0xff]
        %v3970 = vld [vmem:[#allocation4 + $0x1040] sm:$0xff]
        %v3971 = vld [vmem:[#allocation4 + $0x1048] sm:$0xff]
        %v3972 = vld [vmem:[#allocation4 + $0x1050] sm:$0xff]
        %v3973 = vld [vmem:[#allocation4 + $0x1058] sm:$0xff]
        %v3974 = vld [vmem:[#allocation4 + $0x1060] sm:$0xff]
        %v3975 = vld [vmem:[#allocation4 + $0x1068] sm:$0xff]
        %v3976 = vld [vmem:[#allocation4 + $0x1070] sm:$0xff]
        %v3977 = vld [vmem:[#allocation4 + $0x1078] sm:$0xff]
        %v3978 = vld [vmem:[#allocation4 + $0x1080] sm:$0xff]
        %v3979 = vld [vmem:[#allocation4 + $0x1088] sm:$0xff]
        %v3980 = vld [vmem:[#allocation4 + $0x1090] sm:$0xff]
        %v3981 = vld [vmem:[#allocation4 + $0x1098] sm:$0xff]
        %v3982 = vld [vmem:[#allocation4 + $0x10a0] sm:$0xff]
        %v3983 = vld [vmem:[#allocation4 + $0x10a8] sm:$0xff]
        %v3984 = vld [vmem:[#allocation4 + $0x10b0] sm:$0xff]
        %v3985 = vld [vmem:[#allocation4 + $0x10b8] sm:$0xff]
        %v3986 = vld [vmem:[#allocation4 + $0x10c0] sm:$0xff]
        %v3987 = vld [vmem:[#allocation4 + $0x10c8] sm:$0xff]
        %v3988 = vld [vmem:[#allocation4 + $0x10d0] sm:$0xff]
        %v3989 = vld [vmem:[#allocation4 + $0x10d8] sm:$0xff]
        %v3990 = vld [vmem:[#allocation4 + $0x10e0] sm:$0xff]
        %v3991 = vld [vmem:[#allocation4 + $0x10e8] sm:$0xff]
        %v3992 = vld [vmem:[#allocation4 + $0x10f0] sm:$0xff]
        %v3993 = vld [vmem:[#allocation4 + $0x10f8] sm:$0xff]
        %v3994 = vld [vmem:[#allocation4 + $0x1100] sm:$0xff]
        %v3995 = vld [vmem:[#allocation4 + $0x1108] sm:$0xff]
        %v3996 = vld [vmem:[#allocation4 + $0x1110] sm:$0xff]
        %v3997 = vld [vmem:[#allocation4 + $0x1118] sm:$0xff]
        %v3998 = vld [vmem:[#allocation4 + $0x1120] sm:$0xff]
        %v3999 = vld [vmem:[#allocation4 + $0x1128] sm:$0xff]
        %v4000 = vld [vmem:[#allocation4 + $0x1130] sm:$0xff]
        %v4001 = vld [vmem:[#allocation4 + $0x1138] sm:$0xff]
        %v4002 = vld [vmem:[#allocation4 + $0x1140] sm:$0xff]
        %v4003 = vld [vmem:[#allocation4 + $0x1148] sm:$0xff]
        %v4004 = vld [vmem:[#allocation4 + $0x1150] sm:$0xff]
        %v4005 = vld [vmem:[#allocation4 + $0x1158] sm:$0xff]
        %v4006 = vld [vmem:[#allocation4 + $0x1160] sm:$0xff]
        %v4007 = vld [vmem:[#allocation4 + $0x1168] sm:$0xff]
        %v4008 = vld [vmem:[#allocation4 + $0x1170] sm:$0xff]
        %v4009 = vld [vmem:[#allocation4 + $0x1178] sm:$0xff]
        %v4010 = vld [vmem:[#allocation4 + $0x1180] sm:$0xff]
        %v4011 = vld [vmem:[#allocation4 + $0x1188] sm:$0xff]
        %v4012 = vld [vmem:[#allocation4 + $0x1190] sm:$0xff]
        %v4013 = vld [vmem:[#allocation4 + $0x1198] sm:$0xff]
        %v4014 = vld [vmem:[#allocation4 + $0x11a0] sm:$0xff]
        %v4015 = vld [vmem:[#allocation4 + $0x11a8] sm:$0xff]
        %v4016 = vld [vmem:[#allocation4 + $0x11b0] sm:$0xff]
        %v4017 = vld [vmem:[#allocation4 + $0x11b8] sm:$0xff]
        %v4018 = vld [vmem:[#allocation4 + $0x11c0] sm:$0xff]
        %v4019 = vld [vmem:[#allocation4 + $0x11c8] sm:$0xff]
        %v4020 = vld [vmem:[#allocation4 + $0x11d0] sm:$0xff]
        %v4021 = vld [vmem:[#allocation4 + $0x11d8] sm:$0xff]
        %v4022 = vld [vmem:[#allocation4 + $0x11e0] sm:$0xff]
        %v4023 = vld [vmem:[#allocation4 + $0x11e8] sm:$0xff]
        %v4024 = vld [vmem:[#allocation4 + $0x11f0] sm:$0xff]
        %v4025 = vld [vmem:[#allocation4 + $0x11f8] sm:$0xff]
        %v4026 = vld [vmem:[#allocation4 + $0x1200] sm:$0xff]
        %v4027 = vld [vmem:[#allocation4 + $0x1208] sm:$0xff]
        %v4028 = vld [vmem:[#allocation4 + $0x1210] sm:$0xff]
        %v4029 = vld [vmem:[#allocation4 + $0x1218] sm:$0xff]
        %v4030 = vld [vmem:[#allocation4 + $0x1220] sm:$0xff]
        %v4031 = vld [vmem:[#allocation4 + $0x1228] sm:$0xff]
        %v4032 = vld [vmem:[#allocation4 + $0x1230] sm:$0xff]
        %v4033 = vld [vmem:[#allocation4 + $0x1238] sm:$0xff]
        %v4034 = vld [vmem:[#allocation4 + $0x1240] sm:$0xff]
        %v4035 = vld [vmem:[#allocation4 + $0x1248] sm:$0xff]
        %v4036 = vld [vmem:[#allocation4 + $0x1250] sm:$0xff]
        %v4037 = vld [vmem:[#allocation4 + $0x1258] sm:$0xff]
        %v4038 = vld [vmem:[#allocation4 + $0x1260] sm:$0xff]
        %v4039 = vld [vmem:[#allocation4 + $0x1268] sm:$0xff]
        %v4040 = vld [vmem:[#allocation4 + $0x1270] sm:$0xff]
        %v4041 = vld [vmem:[#allocation4 + $0x1278] sm:$0xff]
        %v4042 = vld [vmem:[#allocation4 + $0x1280] sm:$0xff]
        %v4043 = vld [vmem:[#allocation4 + $0x1288] sm:$0xff]
        %v4044 = vld [vmem:[#allocation4 + $0x1290] sm:$0xff]
        %v4045 = vld [vmem:[#allocation4 + $0x1298] sm:$0xff]
        %v4046 = vld [vmem:[#allocation4 + $0x12a0] sm:$0xff]
        %v4047 = vld [vmem:[#allocation4 + $0x12a8] sm:$0xff]
        %v4048 = vld [vmem:[#allocation4 + $0x12b0] sm:$0xff]
        %v4049 = vld [vmem:[#allocation4 + $0x12b8] sm:$0xff]
        %v4050 = vld [vmem:[#allocation4 + $0x12c0] sm:$0xff]
        %v4051 = vld [vmem:[#allocation4 + $0x12c8] sm:$0xff]
        %v4052 = vld [vmem:[#allocation4 + $0x12d0] sm:$0xff]
        %v4053 = vld [vmem:[#allocation4 + $0x12d8] sm:$0xff]
        %v4054 = vld [vmem:[#allocation4 + $0x12e0] sm:$0xff]
        %v4055 = vld [vmem:[#allocation4 + $0x12e8] sm:$0xff]
        %v4056 = vld [vmem:[#allocation4 + $0x12f0] sm:$0xff]
        %v4057 = vld [vmem:[#allocation4 + $0x12f8] sm:$0xff]
        %v4058 = vld [vmem:[#allocation4 + $0x1300] sm:$0xff]
        %v4059 = vld [vmem:[#allocation4 + $0x1308] sm:$0xff]
        %v4060 = vld [vmem:[#allocation4 + $0x1310] sm:$0xff]
        %v4061 = vld [vmem:[#allocation4 + $0x1318] sm:$0xff]
        %v4062 = vld [vmem:[#allocation4 + $0x1320] sm:$0xff]
        %v4063 = vld [vmem:[#allocation4 + $0x1328] sm:$0xff]
        %v4064 = vld [vmem:[#allocation4 + $0x1330] sm:$0xff]
        %v4065 = vld [vmem:[#allocation4 + $0x1338] sm:$0xff]
        %v4066 = vld [vmem:[#allocation4 + $0x1340] sm:$0xff]
        %v4067 = vld [vmem:[#allocation4 + $0x1348] sm:$0xff]
        %v4068 = vld [vmem:[#allocation4 + $0x1350] sm:$0xff]
        %v4069 = vld [vmem:[#allocation4 + $0x1358] sm:$0xff]
        %v4070 = vld [vmem:[#allocation4 + $0x1360] sm:$0xff]
        %v4071 = vld [vmem:[#allocation4 + $0x1368] sm:$0xff]
        %v4072 = vld [vmem:[#allocation4 + $0x1370] sm:$0xff]
        %v4073 = vld [vmem:[#allocation4 + $0x1378] sm:$0xff]
        %v4074 = vld [vmem:[#allocation4 + $0x1380] sm:$0xff]
        %v4075 = vld [vmem:[#allocation4 + $0x1388] sm:$0xff]
        %v4076 = vld [vmem:[#allocation4 + $0x1390] sm:$0xff]
        %v4077 = vld [vmem:[#allocation4 + $0x1398] sm:$0xff]
        %v4078 = vld [vmem:[#allocation4 + $0x13a0] sm:$0x7]
        %v4079 = vld [vmem:[#allocation4 + $0x13a8] sm:$0x7]
        %v4080 = vld [vmem:[#allocation4 + $0x13b0] sm:$0x7]
        %v4081 = vld [vmem:[#allocation4 + $0x13b8] sm:$0x7]
        %vm4082 = vcmask 875520
        %v4084 = vsel %vm4082, %v3449, 0
        %v4087 = vsel %vm3055, %v4078, 0
        %v4090 = vsel %vm3055, %v4079, 0
        %v4093 = vsel %vm3055, %v4080, 0
        %v4096 = vsel %vm3055, %v4081, 0
        %4098 = vmatpush.msra.mxu0 %v3510
        %4099 = vmatpush.msra.mxu0 %v3506
        %4100 = vmatpush.msra.mxu0 %v3502
        %4101 = vmatpush.msra.mxu0 %v3498
        %4102 = vmatpush.msra.mxu0 %v3494
        %4103 = vmatpush.msra.mxu0 %v3490
        %4104 = vmatpush.msra.mxu0 %v3486
        %4105 = vmatpush.msra.mxu0 %v3482
        %4106 = vmatpush.msra.mxu0 %v3478
        %4107 = vmatpush.msra.mxu0 %v3474
        %4108 = vmatpush.msra.mxu0 %v3470
        %4109 = vmatpush.msra.mxu0 %v3466
        %4110 = vmatpush.msra.mxu0 %v3462
        %4111 = vmatpush.msra.mxu0 %v3458
        %4112 = vmatpush.msra.mxu0 %v3454
        %4113 = vmatpush.msra.mxu0 %v3450
        %4114 = vmatmul.f32.gmra.mxu0 %v3440
        %v4115 = vpop.f32.mrf.mxu0
        %v4116 = vadd.f32 0.0, %v4115
        %4117 = vdwg.mxu0
        %4118 = vmatpush.msra.mxu0 %v3574
        %4119 = vmatpush.msra.mxu0 %v3570
        %4120 = vmatpush.msra.mxu0 %v3566
        %4121 = vmatpush.msra.mxu0 %v3562
        %4122 = vmatpush.msra.mxu0 %v3558
        %4123 = vmatpush.msra.mxu0 %v3554
        %4124 = vmatpush.msra.mxu0 %v3550
        %4125 = vmatpush.msra.mxu0 %v3546
        %4126 = vmatpush.msra.mxu0 %v3542
        %4127 = vmatpush.msra.mxu0 %v3538
        %4128 = vmatpush.msra.mxu0 %v3534
        %4129 = vmatpush.msra.mxu0 %v3530
        %4130 = vmatpush.msra.mxu0 %v3526
        %4131 = vmatpush.msra.mxu0 %v3522
        %4132 = vmatpush.msra.mxu0 %v3518
        %4133 = vmatpush.msra.mxu0 %v3514
        %4134 = vmatmul.f32.gmra.mxu0 %v3441
        %v4135 = vpop.f32.mrf.mxu0
        %v4136 = vadd.f32 %v4116, %v4135
        %4137 = vdwg.mxu0
        %4138 = vmatpush.msra.mxu0 %v3638
        %4139 = vmatpush.msra.mxu0 %v3634
        %4140 = vmatpush.msra.mxu0 %v3630
        %4141 = vmatpush.msra.mxu0 %v3626
        %4142 = vmatpush.msra.mxu0 %v3622
        %4143 = vmatpush.msra.mxu0 %v3618
        %4144 = vmatpush.msra.mxu0 %v3614
        %4145 = vmatpush.msra.mxu0 %v3610
        %4146 = vmatpush.msra.mxu0 %v3606
        %4147 = vmatpush.msra.mxu0 %v3602
        %4148 = vmatpush.msra.mxu0 %v3598
        %4149 = vmatpush.msra.mxu0 %v3594
        %4150 = vmatpush.msra.mxu0 %v3590
        %4151 = vmatpush.msra.mxu0 %v3586
        %4152 = vmatpush.msra.mxu0 %v3582
        %4153 = vmatpush.msra.mxu0 %v3578
        %4154 = vmatmul.f32.gmra.mxu0 %v3442
        %v4155 = vpop.f32.mrf.mxu0
        %v4156 = vadd.f32 %v4136, %v4155
        %4157 = vdwg.mxu0
        %4158 = vmatpush.msra.mxu0 %v3702
        %4159 = vmatpush.msra.mxu0 %v3698
        %4160 = vmatpush.msra.mxu0 %v3694
        %4161 = vmatpush.msra.mxu0 %v3690
        %4162 = vmatpush.msra.mxu0 %v3686
        %4163 = vmatpush.msra.mxu0 %v3682
        %4164 = vmatpush.msra.mxu0 %v3678
        %4165 = vmatpush.msra.mxu0 %v3674
        %4166 = vmatpush.msra.mxu0 %v3670
        %4167 = vmatpush.msra.mxu0 %v3666
        %4168 = vmatpush.msra.mxu0 %v3662
        %4169 = vmatpush.msra.mxu0 %v3658
        %4170 = vmatpush.msra.mxu0 %v3654
        %4171 = vmatpush.msra.mxu0 %v3650
        %4172 = vmatpush.msra.mxu0 %v3646
        %4173 = vmatpush.msra.mxu0 %v3642
        %4174 = vmatmul.f32.gmra.mxu0 %v3443
        %v4175 = vpop.f32.mrf.mxu0
        %v4176 = vadd.f32 %v4156, %v4175
        %4177 = vdwg.mxu0
        %4178 = vmatpush.msra.mxu0 %v3766
        %4179 = vmatpush.msra.mxu0 %v3762
        %4180 = vmatpush.msra.mxu0 %v3758
        %4181 = vmatpush.msra.mxu0 %v3754
        %4182 = vmatpush.msra.mxu0 %v3750
        %4183 = vmatpush.msra.mxu0 %v3746
        %4184 = vmatpush.msra.mxu0 %v3742
        %4185 = vmatpush.msra.mxu0 %v3738
        %4186 = vmatpush.msra.mxu0 %v3734
        %4187 = vmatpush.msra.mxu0 %v3730
        %4188 = vmatpush.msra.mxu0 %v3726
        %4189 = vmatpush.msra.mxu0 %v3722
        %4190 = vmatpush.msra.mxu0 %v3718
        %4191 = vmatpush.msra.mxu0 %v3714
        %4192 = vmatpush.msra.mxu0 %v3710
        %4193 = vmatpush.msra.mxu0 %v3706
        %4194 = vmatmul.f32.gmra.mxu0 %v3444
        %v4195 = vpop.f32.mrf.mxu0
        %v4196 = vadd.f32 %v4176, %v4195
        %4197 = vdwg.mxu0
        %4198 = vmatpush.msra.mxu0 %v3830
        %4199 = vmatpush.msra.mxu0 %v3826
        %4200 = vmatpush.msra.mxu0 %v3822
        %4201 = vmatpush.msra.mxu0 %v3818
        %4202 = vmatpush.msra.mxu0 %v3814
        %4203 = vmatpush.msra.mxu0 %v3810
        %4204 = vmatpush.msra.mxu0 %v3806
        %4205 = vmatpush.msra.mxu0 %v3802
        %4206 = vmatpush.msra.mxu0 %v3798
        %4207 = vmatpush.msra.mxu0 %v3794
        %4208 = vmatpush.msra.mxu0 %v3790
        %4209 = vmatpush.msra.mxu0 %v3786
        %4210 = vmatpush.msra.mxu0 %v3782
        %4211 = vmatpush.msra.mxu0 %v3778
        %4212 = vmatpush.msra.mxu0 %v3774
        %4213 = vmatpush.msra.mxu0 %v3770
        %4214 = vmatmul.f32.gmra.mxu0 %v3445
        %v4215 = vpop.f32.mrf.mxu0
        %v4216 = vadd.f32 %v4196, %v4215
        %4217 = vdwg.mxu0
        %4218 = vmatpush.msra.mxu0 %v3894
        %4219 = vmatpush.msra.mxu0 %v3890
        %4220 = vmatpush.msra.mxu0 %v3886
        %4221 = vmatpush.msra.mxu0 %v3882
        %4222 = vmatpush.msra.mxu0 %v3878
        %4223 = vmatpush.msra.mxu0 %v3874
        %4224 = vmatpush.msra.mxu0 %v3870
        %4225 = vmatpush.msra.mxu0 %v3866
        %4226 = vmatpush.msra.mxu0 %v3862
        %4227 = vmatpush.msra.mxu0 %v3858
        %4228 = vmatpush.msra.mxu0 %v3854
        %4229 = vmatpush.msra.mxu0 %v3850
        %4230 = vmatpush.msra.mxu0 %v3846
        %4231 = vmatpush.msra.mxu0 %v3842
        %4232 = vmatpush.msra.mxu0 %v3838
        %4233 = vmatpush.msra.mxu0 %v3834
        %4234 = vmatmul.f32.gmra.mxu0 %v3446
        %v4235 = vpop.f32.mrf.mxu0
        %v4236 = vadd.f32 %v4216, %v4235
        %4237 = vdwg.mxu0
        %4238 = vmatpush.msra.mxu0 %v3958
        %4239 = vmatpush.msra.mxu0 %v3954
        %4240 = vmatpush.msra.mxu0 %v3950
        %4241 = vmatpush.msra.mxu0 %v3946
        %4242 = vmatpush.msra.mxu0 %v3942
        %4243 = vmatpush.msra.mxu0 %v3938
        %4244 = vmatpush.msra.mxu0 %v3934
        %4245 = vmatpush.msra.mxu0 %v3930
        %4246 = vmatpush.msra.mxu0 %v3926
        %4247 = vmatpush.msra.mxu0 %v3922
        %4248 = vmatpush.msra.mxu0 %v3918
        %4249 = vmatpush.msra.mxu0 %v3914
        %4250 = vmatpush.msra.mxu0 %v3910
        %4251 = vmatpush.msra.mxu0 %v3906
        %4252 = vmatpush.msra.mxu0 %v3902
        %4253 = vmatpush.msra.mxu0 %v3898
        %4254 = vmatmul.f32.gmra.mxu0 %v3447
        %v4255 = vpop.f32.mrf.mxu0
        %v4256 = vadd.f32 %v4236, %v4255
        %4257 = vdwg.mxu0
        %4258 = vmatpush.msra.mxu0 %v4022
        %4259 = vmatpush.msra.mxu0 %v4018
        %4260 = vmatpush.msra.mxu0 %v4014
        %4261 = vmatpush.msra.mxu0 %v4010
        %4262 = vmatpush.msra.mxu0 %v4006
        %4263 = vmatpush.msra.mxu0 %v4002
        %4264 = vmatpush.msra.mxu0 %v3998
        %4265 = vmatpush.msra.mxu0 %v3994
        %4266 = vmatpush.msra.mxu0 %v3990
        %4267 = vmatpush.msra.mxu0 %v3986
        %4268 = vmatpush.msra.mxu0 %v3982
        %4269 = vmatpush.msra.mxu0 %v3978
        %4270 = vmatpush.msra.mxu0 %v3974
        %4271 = vmatpush.msra.mxu0 %v3970
        %4272 = vmatpush.msra.mxu0 %v3966
        %4273 = vmatpush.msra.mxu0 %v3962
        %4274 = vmatmul.f32.gmra.mxu0 %v3448
        %v4275 = vpop.f32.mrf.mxu0
        %v4276 = vadd.f32 %v4256, %v4275
        %4277 = vdwg.mxu0
        %4278 = vmatpush.msra.mxu0 0.0
        %4279 = vmatpush.msra.mxu0 0.0
        %4280 = vmatpush.msra.mxu0 %v4087
        %4281 = vmatpush.msra.mxu0 %v4074
        %4282 = vmatpush.msra.mxu0 %v4070
        %4283 = vmatpush.msra.mxu0 %v4066
        %4284 = vmatpush.msra.mxu0 %v4062
        %4285 = vmatpush.msra.mxu0 %v4058
        %4286 = vmatpush.msra.mxu0 %v4054
        %4287 = vmatpush.msra.mxu0 %v4050
        %4288 = vmatpush.msra.mxu0 %v4046
        %4289 = vmatpush.msra.mxu0 %v4042
        %4290 = vmatpush.msra.mxu0 %v4038
        %4291 = vmatpush.msra.mxu0 %v4034
        %4292 = vmatpush.msra.mxu0 %v4030
        %4293 = vmatpush.msra.mxu0 %v4026
        %4294 = vmatmul.f32.gmra.mxu0 %v4084
        %v4295 = vpop.f32.mrf.mxu0
        %v4296 = vadd.f32 %v4276, %v4295
        %4297 = vdwg.mxu0
        %4298 = vmatpush.msra.mxu0 %v3511
        %4299 = vmatpush.msra.mxu0 %v3507
        %4300 = vmatpush.msra.mxu0 %v3503
        %4301 = vmatpush.msra.mxu0 %v3499
        %4302 = vmatpush.msra.mxu0 %v3495
        %4303 = vmatpush.msra.mxu0 %v3491
        %4304 = vmatpush.msra.mxu0 %v3487
        %4305 = vmatpush.msra.mxu0 %v3483
        %4306 = vmatpush.msra.mxu0 %v3479
        %4307 = vmatpush.msra.mxu0 %v3475
        %4308 = vmatpush.msra.mxu0 %v3471
        %4309 = vmatpush.msra.mxu0 %v3467
        %4310 = vmatpush.msra.mxu0 %v3463
        %4311 = vmatpush.msra.mxu0 %v3459
        %4312 = vmatpush.msra.mxu0 %v3455
        %4313 = vmatpush.msra.mxu0 %v3451
        %4314 = vmatmul.f32.gmra.mxu0 %v3440
        %v4315 = vpop.f32.mrf.mxu0
        %v4316 = vadd.f32 0.0, %v4315
        %4317 = vdwg.mxu0
        %4318 = vmatpush.msra.mxu0 %v3575
        %4319 = vmatpush.msra.mxu0 %v3571
        %4320 = vmatpush.msra.mxu0 %v3567
        %4321 = vmatpush.msra.mxu0 %v3563
        %4322 = vmatpush.msra.mxu0 %v3559
        %4323 = vmatpush.msra.mxu0 %v3555
        %4324 = vmatpush.msra.mxu0 %v3551
        %4325 = vmatpush.msra.mxu0 %v3547
        %4326 = vmatpush.msra.mxu0 %v3543
        %4327 = vmatpush.msra.mxu0 %v3539
        %4328 = vmatpush.msra.mxu0 %v3535
        %4329 = vmatpush.msra.mxu0 %v3531
        %4330 = vmatpush.msra.mxu0 %v3527
        %4331 = vmatpush.msra.mxu0 %v3523
        %4332 = vmatpush.msra.mxu0 %v3519
        %4333 = vmatpush.msra.mxu0 %v3515
        %4334 = vmatmul.f32.gmra.mxu0 %v3441
        %v4335 = vpop.f32.mrf.mxu0
        %v4336 = vadd.f32 %v4316, %v4335
        %4337 = vdwg.mxu0
        %4338 = vmatpush.msra.mxu0 %v3639
        %4339 = vmatpush.msra.mxu0 %v3635
        %4340 = vmatpush.msra.mxu0 %v3631
        %4341 = vmatpush.msra.mxu0 %v3627
        %4342 = vmatpush.msra.mxu0 %v3623
        %4343 = vmatpush.msra.mxu0 %v3619
        %4344 = vmatpush.msra.mxu0 %v3615
        %4345 = vmatpush.msra.mxu0 %v3611
        %4346 = vmatpush.msra.mxu0 %v3607
        %4347 = vmatpush.msra.mxu0 %v3603
        %4348 = vmatpush.msra.mxu0 %v3599
        %4349 = vmatpush.msra.mxu0 %v3595
        %4350 = vmatpush.msra.mxu0 %v3591
        %4351 = vmatpush.msra.mxu0 %v3587
        %4352 = vmatpush.msra.mxu0 %v3583
        %4353 = vmatpush.msra.mxu0 %v3579
        %4354 = vmatmul.f32.gmra.mxu0 %v3442
        %v4355 = vpop.f32.mrf.mxu0
        %v4356 = vadd.f32 %v4336, %v4355
        %4357 = vdwg.mxu0
        %4358 = vmatpush.msra.mxu0 %v3703
        %4359 = vmatpush.msra.mxu0 %v3699
        %4360 = vmatpush.msra.mxu0 %v3695
        %4361 = vmatpush.msra.mxu0 %v3691
        %4362 = vmatpush.msra.mxu0 %v3687
        %4363 = vmatpush.msra.mxu0 %v3683
        %4364 = vmatpush.msra.mxu0 %v3679
        %4365 = vmatpush.msra.mxu0 %v3675
        %4366 = vmatpush.msra.mxu0 %v3671
        %4367 = vmatpush.msra.mxu0 %v3667
        %4368 = vmatpush.msra.mxu0 %v3663
        %4369 = vmatpush.msra.mxu0 %v3659
        %4370 = vmatpush.msra.mxu0 %v3655
        %4371 = vmatpush.msra.mxu0 %v3651
        %4372 = vmatpush.msra.mxu0 %v3647
        %4373 = vmatpush.msra.mxu0 %v3643
        %4374 = vmatmul.f32.gmra.mxu0 %v3443
        %v4375 = vpop.f32.mrf.mxu0
        %v4376 = vadd.f32 %v4356, %v4375
        %4377 = vdwg.mxu0
        %4378 = vmatpush.msra.mxu0 %v3767
        %4379 = vmatpush.msra.mxu0 %v3763
        %4380 = vmatpush.msra.mxu0 %v3759
        %4381 = vmatpush.msra.mxu0 %v3755
        %4382 = vmatpush.msra.mxu0 %v3751
        %4383 = vmatpush.msra.mxu0 %v3747
        %4384 = vmatpush.msra.mxu0 %v3743
        %4385 = vmatpush.msra.mxu0 %v3739
        %4386 = vmatpush.msra.mxu0 %v3735
        %4387 = vmatpush.msra.mxu0 %v3731
        %4388 = vmatpush.msra.mxu0 %v3727
        %4389 = vmatpush.msra.mxu0 %v3723
        %4390 = vmatpush.msra.mxu0 %v3719
        %4391 = vmatpush.msra.mxu0 %v3715
        %4392 = vmatpush.msra.mxu0 %v3711
        %4393 = vmatpush.msra.mxu0 %v3707
        %4394 = vmatmul.f32.gmra.mxu0 %v3444
        %v4395 = vpop.f32.mrf.mxu0
        %v4396 = vadd.f32 %v4376, %v4395
        %4397 = vdwg.mxu0
        %4398 = vmatpush.msra.mxu0 %v3831
        %4399 = vmatpush.msra.mxu0 %v3827
        %4400 = vmatpush.msra.mxu0 %v3823
        %4401 = vmatpush.msra.mxu0 %v3819
        %4402 = vmatpush.msra.mxu0 %v3815
        %4403 = vmatpush.msra.mxu0 %v3811
        %4404 = vmatpush.msra.mxu0 %v3807
        %4405 = vmatpush.msra.mxu0 %v3803
        %4406 = vmatpush.msra.mxu0 %v3799
        %4407 = vmatpush.msra.mxu0 %v3795
        %4408 = vmatpush.msra.mxu0 %v3791
        %4409 = vmatpush.msra.mxu0 %v3787
        %4410 = vmatpush.msra.mxu0 %v3783
        %4411 = vmatpush.msra.mxu0 %v3779
        %4412 = vmatpush.msra.mxu0 %v3775
        %4413 = vmatpush.msra.mxu0 %v3771
        %4414 = vmatmul.f32.gmra.mxu0 %v3445
        %v4415 = vpop.f32.mrf.mxu0
        %v4416 = vadd.f32 %v4396, %v4415
        %4417 = vdwg.mxu0
        %4418 = vmatpush.msra.mxu0 %v3895
        %4419 = vmatpush.msra.mxu0 %v3891
        %4420 = vmatpush.msra.mxu0 %v3887
        %4421 = vmatpush.msra.mxu0 %v3883
        %4422 = vmatpush.msra.mxu0 %v3879
        %4423 = vmatpush.msra.mxu0 %v3875
        %4424 = vmatpush.msra.mxu0 %v3871
        %4425 = vmatpush.msra.mxu0 %v3867
        %4426 = vmatpush.msra.mxu0 %v3863
        %4427 = vmatpush.msra.mxu0 %v3859
        %4428 = vmatpush.msra.mxu0 %v3855
        %4429 = vmatpush.msra.mxu0 %v3851
        %4430 = vmatpush.msra.mxu0 %v3847
        %4431 = vmatpush.msra.mxu0 %v3843
        %4432 = vmatpush.msra.mxu0 %v3839
        %4433 = vmatpush.msra.mxu0 %v3835
        %4434 = vmatmul.f32.gmra.mxu0 %v3446
        %v4435 = vpop.f32.mrf.mxu0
        %v4436 = vadd.f32 %v4416, %v4435
        %4437 = vdwg.mxu0
        %4438 = vmatpush.msra.mxu0 %v3959
        %4439 = vmatpush.msra.mxu0 %v3955
        %4440 = vmatpush.msra.mxu0 %v3951
        %4441 = vmatpush.msra.mxu0 %v3947
        %4442 = vmatpush.msra.mxu0 %v3943
        %4443 = vmatpush.msra.mxu0 %v3939
        %4444 = vmatpush.msra.mxu0 %v3935
        %4445 = vmatpush.msra.mxu0 %v3931
        %4446 = vmatpush.msra.mxu0 %v3927
        %4447 = vmatpush.msra.mxu0 %v3923
        %4448 = vmatpush.msra.mxu0 %v3919
        %4449 = vmatpush.msra.mxu0 %v3915
        %4450 = vmatpush.msra.mxu0 %v3911
        %4451 = vmatpush.msra.mxu0 %v3907
        %4452 = vmatpush.msra.mxu0 %v3903
        %4453 = vmatpush.msra.mxu0 %v3899
        %4454 = vmatmul.f32.gmra.mxu0 %v3447
        %v4455 = vpop.f32.mrf.mxu0
        %v4456 = vadd.f32 %v4436, %v4455
        %4457 = vdwg.mxu0
        %4458 = vmatpush.msra.mxu0 %v4023
        %4459 = vmatpush.msra.mxu0 %v4019
        %4460 = vmatpush.msra.mxu0 %v4015
        %4461 = vmatpush.msra.mxu0 %v4011
        %4462 = vmatpush.msra.mxu0 %v4007
        %4463 = vmatpush.msra.mxu0 %v4003
        %4464 = vmatpush.msra.mxu0 %v3999
        %4465 = vmatpush.msra.mxu0 %v3995
        %4466 = vmatpush.msra.mxu0 %v3991
        %4467 = vmatpush.msra.mxu0 %v3987
        %4468 = vmatpush.msra.mxu0 %v3983
        %4469 = vmatpush.msra.mxu0 %v3979
        %4470 = vmatpush.msra.mxu0 %v3975
        %4471 = vmatpush.msra.mxu0 %v3971
        %4472 = vmatpush.msra.mxu0 %v3967
        %4473 = vmatpush.msra.mxu0 %v3963
        %4474 = vmatmul.f32.gmra.mxu0 %v3448
        %v4475 = vpop.f32.mrf.mxu0
        %v4476 = vadd.f32 %v4456, %v4475
        %4477 = vdwg.mxu0
        %4478 = vmatpush.msra.mxu0 0.0
        %4479 = vmatpush.msra.mxu0 0.0
        %4480 = vmatpush.msra.mxu0 %v4090
        %4481 = vmatpush.msra.mxu0 %v4075
        %4482 = vmatpush.msra.mxu0 %v4071
        %4483 = vmatpush.msra.mxu0 %v4067
        %4484 = vmatpush.msra.mxu0 %v4063
        %4485 = vmatpush.msra.mxu0 %v4059
        %4486 = vmatpush.msra.mxu0 %v4055
        %4487 = vmatpush.msra.mxu0 %v4051
        %4488 = vmatpush.msra.mxu0 %v4047
        %4489 = vmatpush.msra.mxu0 %v4043
        %4490 = vmatpush.msra.mxu0 %v4039
        %4491 = vmatpush.msra.mxu0 %v4035
        %4492 = vmatpush.msra.mxu0 %v4031
        %4493 = vmatpush.msra.mxu0 %v4027
        %4494 = vmatmul.f32.gmra.mxu0 %v4084
        %v4495 = vpop.f32.mrf.mxu0
        %v4496 = vadd.f32 %v4476, %v4495
        %4497 = vdwg.mxu0
        %4498 = vmatpush.msra.mxu0 %v3512
        %4499 = vmatpush.msra.mxu0 %v3508
        %4500 = vmatpush.msra.mxu0 %v3504
        %4501 = vmatpush.msra.mxu0 %v3500
        %4502 = vmatpush.msra.mxu0 %v3496
        %4503 = vmatpush.msra.mxu0 %v3492
        %4504 = vmatpush.msra.mxu0 %v3488
        %4505 = vmatpush.msra.mxu0 %v3484
        %4506 = vmatpush.msra.mxu0 %v3480
        %4507 = vmatpush.msra.mxu0 %v3476
        %4508 = vmatpush.msra.mxu0 %v3472
        %4509 = vmatpush.msra.mxu0 %v3468
        %4510 = vmatpush.msra.mxu0 %v3464
        %4511 = vmatpush.msra.mxu0 %v3460
        %4512 = vmatpush.msra.mxu0 %v3456
        %4513 = vmatpush.msra.mxu0 %v3452
        %4514 = vmatmul.f32.gmra.mxu0 %v3440
        %v4515 = vpop.f32.mrf.mxu0
        %v4516 = vadd.f32 0.0, %v4515
        %4517 = vdwg.mxu0
        %4518 = vmatpush.msra.mxu0 %v3576
        %4519 = vmatpush.msra.mxu0 %v3572
        %4520 = vmatpush.msra.mxu0 %v3568
        %4521 = vmatpush.msra.mxu0 %v3564
        %4522 = vmatpush.msra.mxu0 %v3560
        %4523 = vmatpush.msra.mxu0 %v3556
        %4524 = vmatpush.msra.mxu0 %v3552
        %4525 = vmatpush.msra.mxu0 %v3548
        %4526 = vmatpush.msra.mxu0 %v3544
        %4527 = vmatpush.msra.mxu0 %v3540
        %4528 = vmatpush.msra.mxu0 %v3536
        %4529 = vmatpush.msra.mxu0 %v3532
        %4530 = vmatpush.msra.mxu0 %v3528
        %4531 = vmatpush.msra.mxu0 %v3524
        %4532 = vmatpush.msra.mxu0 %v3520
        %4533 = vmatpush.msra.mxu0 %v3516
        %4534 = vmatmul.f32.gmra.mxu0 %v3441
        %v4535 = vpop.f32.mrf.mxu0
        %v4536 = vadd.f32 %v4516, %v4535
        %4537 = vdwg.mxu0
        %4538 = vmatpush.msra.mxu0 %v3640
        %4539 = vmatpush.msra.mxu0 %v3636
        %4540 = vmatpush.msra.mxu0 %v3632
        %4541 = vmatpush.msra.mxu0 %v3628
        %4542 = vmatpush.msra.mxu0 %v3624
        %4543 = vmatpush.msra.mxu0 %v3620
        %4544 = vmatpush.msra.mxu0 %v3616
        %4545 = vmatpush.msra.mxu0 %v3612
        %4546 = vmatpush.msra.mxu0 %v3608
        %4547 = vmatpush.msra.mxu0 %v3604
        %4548 = vmatpush.msra.mxu0 %v3600
        %4549 = vmatpush.msra.mxu0 %v3596
        %4550 = vmatpush.msra.mxu0 %v3592
        %4551 = vmatpush.msra.mxu0 %v3588
        %4552 = vmatpush.msra.mxu0 %v3584
        %4553 = vmatpush.msra.mxu0 %v3580
        %4554 = vmatmul.f32.gmra.mxu0 %v3442
        %v4555 = vpop.f32.mrf.mxu0
        %v4556 = vadd.f32 %v4536, %v4555
        %4557 = vdwg.mxu0
        %4558 = vmatpush.msra.mxu0 %v3704
        %4559 = vmatpush.msra.mxu0 %v3700
        %4560 = vmatpush.msra.mxu0 %v3696
        %4561 = vmatpush.msra.mxu0 %v3692
        %4562 = vmatpush.msra.mxu0 %v3688
        %4563 = vmatpush.msra.mxu0 %v3684
        %4564 = vmatpush.msra.mxu0 %v3680
        %4565 = vmatpush.msra.mxu0 %v3676
        %4566 = vmatpush.msra.mxu0 %v3672
        %4567 = vmatpush.msra.mxu0 %v3668
        %4568 = vmatpush.msra.mxu0 %v3664
        %4569 = vmatpush.msra.mxu0 %v3660
        %4570 = vmatpush.msra.mxu0 %v3656
        %4571 = vmatpush.msra.mxu0 %v3652
        %4572 = vmatpush.msra.mxu0 %v3648
        %4573 = vmatpush.msra.mxu0 %v3644
        %4574 = vmatmul.f32.gmra.mxu0 %v3443
        %v4575 = vpop.f32.mrf.mxu0
        %v4576 = vadd.f32 %v4556, %v4575
        %4577 = vdwg.mxu0
        %4578 = vmatpush.msra.mxu0 %v3768
        %4579 = vmatpush.msra.mxu0 %v3764
        %4580 = vmatpush.msra.mxu0 %v3760
        %4581 = vmatpush.msra.mxu0 %v3756
        %4582 = vmatpush.msra.mxu0 %v3752
        %4583 = vmatpush.msra.mxu0 %v3748
        %4584 = vmatpush.msra.mxu0 %v3744
        %4585 = vmatpush.msra.mxu0 %v3740
        %4586 = vmatpush.msra.mxu0 %v3736
        %4587 = vmatpush.msra.mxu0 %v3732
        %4588 = vmatpush.msra.mxu0 %v3728
        %4589 = vmatpush.msra.mxu0 %v3724
        %4590 = vmatpush.msra.mxu0 %v3720
        %4591 = vmatpush.msra.mxu0 %v3716
        %4592 = vmatpush.msra.mxu0 %v3712
        %4593 = vmatpush.msra.mxu0 %v3708
        %4594 = vmatmul.f32.gmra.mxu0 %v3444
        %v4595 = vpop.f32.mrf.mxu0
        %v4596 = vadd.f32 %v4576, %v4595
        %4597 = vdwg.mxu0
        %4598 = vmatpush.msra.mxu0 %v3832
        %4599 = vmatpush.msra.mxu0 %v3828
        %4600 = vmatpush.msra.mxu0 %v3824
        %4601 = vmatpush.msra.mxu0 %v3820
        %4602 = vmatpush.msra.mxu0 %v3816
        %4603 = vmatpush.msra.mxu0 %v3812
        %4604 = vmatpush.msra.mxu0 %v3808
        %4605 = vmatpush.msra.mxu0 %v3804
        %4606 = vmatpush.msra.mxu0 %v3800
        %4607 = vmatpush.msra.mxu0 %v3796
        %4608 = vmatpush.msra.mxu0 %v3792
        %4609 = vmatpush.msra.mxu0 %v3788
        %4610 = vmatpush.msra.mxu0 %v3784
        %4611 = vmatpush.msra.mxu0 %v3780
        %4612 = vmatpush.msra.mxu0 %v3776
        %4613 = vmatpush.msra.mxu0 %v3772
        %4614 = vmatmul.f32.gmra.mxu0 %v3445
        %v4615 = vpop.f32.mrf.mxu0
        %v4616 = vadd.f32 %v4596, %v4615
        %4617 = vdwg.mxu0
        %4618 = vmatpush.msra.mxu0 %v3896
        %4619 = vmatpush.msra.mxu0 %v3892
        %4620 = vmatpush.msra.mxu0 %v3888
        %4621 = vmatpush.msra.mxu0 %v3884
        %4622 = vmatpush.msra.mxu0 %v3880
        %4623 = vmatpush.msra.mxu0 %v3876
        %4624 = vmatpush.msra.mxu0 %v3872
        %4625 = vmatpush.msra.mxu0 %v3868
        %4626 = vmatpush.msra.mxu0 %v3864
        %4627 = vmatpush.msra.mxu0 %v3860
        %4628 = vmatpush.msra.mxu0 %v3856
        %4629 = vmatpush.msra.mxu0 %v3852
        %4630 = vmatpush.msra.mxu0 %v3848
        %4631 = vmatpush.msra.mxu0 %v3844
        %4632 = vmatpush.msra.mxu0 %v3840
        %4633 = vmatpush.msra.mxu0 %v3836
        %4634 = vmatmul.f32.gmra.mxu0 %v3446
        %v4635 = vpop.f32.mrf.mxu0
        %v4636 = vadd.f32 %v4616, %v4635
        %4637 = vdwg.mxu0
        %4638 = vmatpush.msra.mxu0 %v3960
        %4639 = vmatpush.msra.mxu0 %v3956
        %4640 = vmatpush.msra.mxu0 %v3952
        %4641 = vmatpush.msra.mxu0 %v3948
        %4642 = vmatpush.msra.mxu0 %v3944
        %4643 = vmatpush.msra.mxu0 %v3940
        %4644 = vmatpush.msra.mxu0 %v3936
        %4645 = vmatpush.msra.mxu0 %v3932
        %4646 = vmatpush.msra.mxu0 %v3928
        %4647 = vmatpush.msra.mxu0 %v3924
        %4648 = vmatpush.msra.mxu0 %v3920
        %4649 = vmatpush.msra.mxu0 %v3916
        %4650 = vmatpush.msra.mxu0 %v3912
        %4651 = vmatpush.msra.mxu0 %v3908
        %4652 = vmatpush.msra.mxu0 %v3904
        %4653 = vmatpush.msra.mxu0 %v3900
        %4654 = vmatmul.f32.gmra.mxu0 %v3447
        %v4655 = vpop.f32.mrf.mxu0
        %v4656 = vadd.f32 %v4636, %v4655
        %4657 = vdwg.mxu0
        %4658 = vmatpush.msra.mxu0 %v4024
        %4659 = vmatpush.msra.mxu0 %v4020
        %4660 = vmatpush.msra.mxu0 %v4016
        %4661 = vmatpush.msra.mxu0 %v4012
        %4662 = vmatpush.msra.mxu0 %v4008
        %4663 = vmatpush.msra.mxu0 %v4004
        %4664 = vmatpush.msra.mxu0 %v4000
        %4665 = vmatpush.msra.mxu0 %v3996
        %4666 = vmatpush.msra.mxu0 %v3992
        %4667 = vmatpush.msra.mxu0 %v3988
        %4668 = vmatpush.msra.mxu0 %v3984
        %4669 = vmatpush.msra.mxu0 %v3980
        %4670 = vmatpush.msra.mxu0 %v3976
        %4671 = vmatpush.msra.mxu0 %v3972
        %4672 = vmatpush.msra.mxu0 %v3968
        %4673 = vmatpush.msra.mxu0 %v3964
        %4674 = vmatmul.f32.gmra.mxu0 %v3448
        %v4675 = vpop.f32.mrf.mxu0
        %v4676 = vadd.f32 %v4656, %v4675
        %4677 = vdwg.mxu0
        %4678 = vmatpush.msra.mxu0 0.0
        %4679 = vmatpush.msra.mxu0 0.0
        %4680 = vmatpush.msra.mxu0 %v4093
        %4681 = vmatpush.msra.mxu0 %v4076
        %4682 = vmatpush.msra.mxu0 %v4072
        %4683 = vmatpush.msra.mxu0 %v4068
        %4684 = vmatpush.msra.mxu0 %v4064
        %4685 = vmatpush.msra.mxu0 %v4060
        %4686 = vmatpush.msra.mxu0 %v4056
        %4687 = vmatpush.msra.mxu0 %v4052
        %4688 = vmatpush.msra.mxu0 %v4048
        %4689 = vmatpush.msra.mxu0 %v4044
        %4690 = vmatpush.msra.mxu0 %v4040
        %4691 = vmatpush.msra.mxu0 %v4036
        %4692 = vmatpush.msra.mxu0 %v4032
        %4693 = vmatpush.msra.mxu0 %v4028
        %4694 = vmatmul.f32.gmra.mxu0 %v4084
        %v4695 = vpop.f32.mrf.mxu0
        %v4696 = vadd.f32 %v4676, %v4695
        %4697 = vdwg.mxu0
        %4698 = vmatpush.msra.mxu0 %v3513
        %4699 = vmatpush.msra.mxu0 %v3509
        %4700 = vmatpush.msra.mxu0 %v3505
        %4701 = vmatpush.msra.mxu0 %v3501
        %4702 = vmatpush.msra.mxu0 %v3497
        %4703 = vmatpush.msra.mxu0 %v3493
        %4704 = vmatpush.msra.mxu0 %v3489
        %4705 = vmatpush.msra.mxu0 %v3485
        %4706 = vmatpush.msra.mxu0 %v3481
        %4707 = vmatpush.msra.mxu0 %v3477
        %4708 = vmatpush.msra.mxu0 %v3473
        %4709 = vmatpush.msra.mxu0 %v3469
        %4710 = vmatpush.msra.mxu0 %v3465
        %4711 = vmatpush.msra.mxu0 %v3461
        %4712 = vmatpush.msra.mxu0 %v3457
        %4713 = vmatpush.msra.mxu0 %v3453
        %4714 = vmatmul.f32.gmra.mxu0 %v3440
        %v4715 = vpop.f32.mrf.mxu0
        %v4716 = vadd.f32 0.0, %v4715
        %4717 = vdwg.mxu0
        %4718 = vmatpush.msra.mxu0 %v3577
        %4719 = vmatpush.msra.mxu0 %v3573
        %4720 = vmatpush.msra.mxu0 %v3569
        %4721 = vmatpush.msra.mxu0 %v3565
        %4722 = vmatpush.msra.mxu0 %v3561
        %4723 = vmatpush.msra.mxu0 %v3557
        %4724 = vmatpush.msra.mxu0 %v3553
        %4725 = vmatpush.msra.mxu0 %v3549
        %4726 = vmatpush.msra.mxu0 %v3545
        %4727 = vmatpush.msra.mxu0 %v3541
        %4728 = vmatpush.msra.mxu0 %v3537
        %4729 = vmatpush.msra.mxu0 %v3533
        %4730 = vmatpush.msra.mxu0 %v3529
        %4731 = vmatpush.msra.mxu0 %v3525
        %4732 = vmatpush.msra.mxu0 %v3521
        %4733 = vmatpush.msra.mxu0 %v3517
        %4734 = vmatmul.f32.gmra.mxu0 %v3441
        %v4735 = vpop.f32.mrf.mxu0
        %v4736 = vadd.f32 %v4716, %v4735
        %4737 = vdwg.mxu0
        %4738 = vmatpush.msra.mxu0 %v3641
        %4739 = vmatpush.msra.mxu0 %v3637
        %4740 = vmatpush.msra.mxu0 %v3633
        %4741 = vmatpush.msra.mxu0 %v3629
        %4742 = vmatpush.msra.mxu0 %v3625
        %4743 = vmatpush.msra.mxu0 %v3621
        %4744 = vmatpush.msra.mxu0 %v3617
        %4745 = vmatpush.msra.mxu0 %v3613
        %4746 = vmatpush.msra.mxu0 %v3609
        %4747 = vmatpush.msra.mxu0 %v3605
        %4748 = vmatpush.msra.mxu0 %v3601
        %4749 = vmatpush.msra.mxu0 %v3597
        %4750 = vmatpush.msra.mxu0 %v3593
        %4751 = vmatpush.msra.mxu0 %v3589
        %4752 = vmatpush.msra.mxu0 %v3585
        %4753 = vmatpush.msra.mxu0 %v3581
        %4754 = vmatmul.f32.gmra.mxu0 %v3442
        %v4755 = vpop.f32.mrf.mxu0
        %v4756 = vadd.f32 %v4736, %v4755
        %4757 = vdwg.mxu0
        %4758 = vmatpush.msra.mxu0 %v3705
        %4759 = vmatpush.msra.mxu0 %v3701
        %4760 = vmatpush.msra.mxu0 %v3697
        %4761 = vmatpush.msra.mxu0 %v3693
        %4762 = vmatpush.msra.mxu0 %v3689
        %4763 = vmatpush.msra.mxu0 %v3685
        %4764 = vmatpush.msra.mxu0 %v3681
        %4765 = vmatpush.msra.mxu0 %v3677
        %4766 = vmatpush.msra.mxu0 %v3673
        %4767 = vmatpush.msra.mxu0 %v3669
        %4768 = vmatpush.msra.mxu0 %v3665
        %4769 = vmatpush.msra.mxu0 %v3661
        %4770 = vmatpush.msra.mxu0 %v3657
        %4771 = vmatpush.msra.mxu0 %v3653
        %4772 = vmatpush.msra.mxu0 %v3649
        %4773 = vmatpush.msra.mxu0 %v3645
        %4774 = vmatmul.f32.gmra.mxu0 %v3443
        %v4775 = vpop.f32.mrf.mxu0
        %v4776 = vadd.f32 %v4756, %v4775
        %4777 = vdwg.mxu0
        %4778 = vmatpush.msra.mxu0 %v3769
        %4779 = vmatpush.msra.mxu0 %v3765
        %4780 = vmatpush.msra.mxu0 %v3761
        %4781 = vmatpush.msra.mxu0 %v3757
        %4782 = vmatpush.msra.mxu0 %v3753
        %4783 = vmatpush.msra.mxu0 %v3749
        %4784 = vmatpush.msra.mxu0 %v3745
        %4785 = vmatpush.msra.mxu0 %v3741
        %4786 = vmatpush.msra.mxu0 %v3737
        %4787 = vmatpush.msra.mxu0 %v3733
        %4788 = vmatpush.msra.mxu0 %v3729
        %4789 = vmatpush.msra.mxu0 %v3725
        %4790 = vmatpush.msra.mxu0 %v3721
        %4791 = vmatpush.msra.mxu0 %v3717
        %4792 = vmatpush.msra.mxu0 %v3713
        %4793 = vmatpush.msra.mxu0 %v3709
        %4794 = vmatmul.f32.gmra.mxu0 %v3444
        %v4795 = vpop.f32.mrf.mxu0
        %v4796 = vadd.f32 %v4776, %v4795
        %4797 = vdwg.mxu0
        %4798 = vmatpush.msra.mxu0 %v3833
        %4799 = vmatpush.msra.mxu0 %v3829
        %4800 = vmatpush.msra.mxu0 %v3825
        %4801 = vmatpush.msra.mxu0 %v3821
        %4802 = vmatpush.msra.mxu0 %v3817
        %4803 = vmatpush.msra.mxu0 %v3813
        %4804 = vmatpush.msra.mxu0 %v3809
        %4805 = vmatpush.msra.mxu0 %v3805
        %4806 = vmatpush.msra.mxu0 %v3801
        %4807 = vmatpush.msra.mxu0 %v3797
        %4808 = vmatpush.msra.mxu0 %v3793
        %4809 = vmatpush.msra.mxu0 %v3789
        %4810 = vmatpush.msra.mxu0 %v3785
        %4811 = vmatpush.msra.mxu0 %v3781
        %4812 = vmatpush.msra.mxu0 %v3777
        %4813 = vmatpush.msra.mxu0 %v3773
        %4814 = vmatmul.f32.gmra.mxu0 %v3445
        %v4815 = vpop.f32.mrf.mxu0
        %v4816 = vadd.f32 %v4796, %v4815
        %4817 = vdwg.mxu0
        %4818 = vmatpush.msra.mxu0 %v3897
        %4819 = vmatpush.msra.mxu0 %v3893
        %4820 = vmatpush.msra.mxu0 %v3889
        %4821 = vmatpush.msra.mxu0 %v3885
        %4822 = vmatpush.msra.mxu0 %v3881
        %4823 = vmatpush.msra.mxu0 %v3877
        %4824 = vmatpush.msra.mxu0 %v3873
        %4825 = vmatpush.msra.mxu0 %v3869
        %4826 = vmatpush.msra.mxu0 %v3865
        %4827 = vmatpush.msra.mxu0 %v3861
        %4828 = vmatpush.msra.mxu0 %v3857
        %4829 = vmatpush.msra.mxu0 %v3853
        %4830 = vmatpush.msra.mxu0 %v3849
        %4831 = vmatpush.msra.mxu0 %v3845
        %4832 = vmatpush.msra.mxu0 %v3841
        %4833 = vmatpush.msra.mxu0 %v3837
        %4834 = vmatmul.f32.gmra.mxu0 %v3446
        %v4835 = vpop.f32.mrf.mxu0
        %v4836 = vadd.f32 %v4816, %v4835
        %4837 = vdwg.mxu0
        %4838 = vmatpush.msra.mxu0 %v3961
        %4839 = vmatpush.msra.mxu0 %v3957
        %4840 = vmatpush.msra.mxu0 %v3953
        %4841 = vmatpush.msra.mxu0 %v3949
        %4842 = vmatpush.msra.mxu0 %v3945
        %4843 = vmatpush.msra.mxu0 %v3941
        %4844 = vmatpush.msra.mxu0 %v3937
        %4845 = vmatpush.msra.mxu0 %v3933
        %4846 = vmatpush.msra.mxu0 %v3929
        %4847 = vmatpush.msra.mxu0 %v3925
        %4848 = vmatpush.msra.mxu0 %v3921
        %4849 = vmatpush.msra.mxu0 %v3917
        %4850 = vmatpush.msra.mxu0 %v3913
        %4851 = vmatpush.msra.mxu0 %v3909
        %4852 = vmatpush.msra.mxu0 %v3905
        %4853 = vmatpush.msra.mxu0 %v3901
        %4854 = vmatmul.f32.gmra.mxu0 %v3447
        %v4855 = vpop.f32.mrf.mxu0
        %v4856 = vadd.f32 %v4836, %v4855
        %4857 = vdwg.mxu0
        %4858 = vmatpush.msra.mxu0 %v4025
        %4859 = vmatpush.msra.mxu0 %v4021
        %4860 = vmatpush.msra.mxu0 %v4017
        %4861 = vmatpush.msra.mxu0 %v4013
        %4862 = vmatpush.msra.mxu0 %v4009
        %4863 = vmatpush.msra.mxu0 %v4005
        %4864 = vmatpush.msra.mxu0 %v4001
        %4865 = vmatpush.msra.mxu0 %v3997
        %4866 = vmatpush.msra.mxu0 %v3993
        %4867 = vmatpush.msra.mxu0 %v3989
        %4868 = vmatpush.msra.mxu0 %v3985
        %4869 = vmatpush.msra.mxu0 %v3981
        %4870 = vmatpush.msra.mxu0 %v3977
        %4871 = vmatpush.msra.mxu0 %v3973
        %4872 = vmatpush.msra.mxu0 %v3969
        %4873 = vmatpush.msra.mxu0 %v3965
        %4874 = vmatmul.f32.gmra.mxu0 %v3448
        %v4875 = vpop.f32.mrf.mxu0
        %v4876 = vadd.f32 %v4856, %v4875
        %4877 = vdwg.mxu0
        %4878 = vmatpush.msra.mxu0 0.0
        %4879 = vmatpush.msra.mxu0 0.0
        %4880 = vmatpush.msra.mxu0 %v4096
        %4881 = vmatpush.msra.mxu0 %v4077
        %4882 = vmatpush.msra.mxu0 %v4073
        %4883 = vmatpush.msra.mxu0 %v4069
        %4884 = vmatpush.msra.mxu0 %v4065
        %4885 = vmatpush.msra.mxu0 %v4061
        %4886 = vmatpush.msra.mxu0 %v4057
        %4887 = vmatpush.msra.mxu0 %v4053
        %4888 = vmatpush.msra.mxu0 %v4049
        %4889 = vmatpush.msra.mxu0 %v4045
        %4890 = vmatpush.msra.mxu0 %v4041
        %4891 = vmatpush.msra.mxu0 %v4037
        %4892 = vmatpush.msra.mxu0 %v4033
        %4893 = vmatpush.msra.mxu0 %v4029
        %4894 = vmatmul.f32.gmra.mxu0 %v4084
        %v4895 = vpop.f32.mrf.mxu0
        %v4896 = vadd.f32 %v4876, %v4895
        %4897 = vdwg.mxu0
        %4898 = vst [vmem:[#allocation3] sm:$0x3f] %v4296
        %4899 = vst [vmem:[#allocation3 + $0x8] sm:$0x3f] %v4496
        %4900 = vst [vmem:[#allocation3 + $0x10] sm:$0x3f] %v4696
        %vm4901 = vcmask 128000
        %4902 = vst.msk [vmem:[#allocation3 + $0x18] sm:$0x3f] %vm4901, %v4896
        %v4907 = vrot.slane %v4296, 2
        %v4908 = vrot.slane %v4496, 2
        %v4909 = vrot.slane %v4696, 2
        %v4910 = vrot.slane %v4896, 2
        %4911 = vrot.lane.b32.xlu0 %v4907, 127
        %v4912 = vpop.permute.xlu0 %4911
        %4913 = vrot.lane.b32.xlu0 %v4908, 127
        %v4914 = vpop.permute.xlu0 %4913
        %4915 = vrot.lane.b32.xlu0 %v4909, 127
        %v4916 = vpop.permute.xlu0 %4915
        %4917 = vrot.lane.b32.xlu0 %v4910, 127
        %v4918 = vpop.permute.xlu0 %4917
        %v4919 = vsel %vm635, %v4912, %v4914
        %v4920 = vsel %vm635, %v4914, %v4916
        %v4921 = vsel %vm635, %v4916, %v4918
        %4926 = vst [vmem:[#allocation3] sm:$0xc0] %v4919
        %4927 = vst [vmem:[#allocation3 + $0x8] sm:$0xc0] %v4920
        %4928 = vst [vmem:[#allocation3 + $0x10] sm:$0xc0] %v4921
        %4929 = vst.msk [vmem:[#allocation3 + $0x18] sm:$0xc0] %vm766, %v4918
        %4930 = vst [vmem:[#allocation3 + $0x20] sm:$0xf] %v4919
        %4931 = vst [vmem:[#allocation3 + $0x28] sm:$0xf] %v4920
        %4932 = vst [vmem:[#allocation3 + $0x30] sm:$0xf] %v4921
        %vm4933 = vcmask 125952
        %4934 = vst.msk [vmem:[#allocation3 + $0x38] sm:$0xf] %vm4933, %v4918
        %v4935 = vrot.slane %v4296, 4
        %v4936 = vrot.slane %v4496, 4
        %v4937 = vrot.slane %v4696, 4
        %v4938 = vrot.slane %v4896, 4
        %4939 = vrot.lane.b32.xlu0 %v4935, 126
        %v4940 = vpop.permute.xlu0 %4939
        %4941 = vrot.lane.b32.xlu0 %v4936, 126
        %v4942 = vpop.permute.xlu0 %4941
        %4943 = vrot.lane.b32.xlu0 %v4937, 126
        %v4944 = vpop.permute.xlu0 %4943
        %4945 = vrot.lane.b32.xlu0 %v4938, 126
        %v4946 = vpop.permute.xlu0 %4945
        %v4947 = vsel %vm734, %v4940, %v4942
        %v4948 = vsel %vm734, %v4942, %v4944
        %v4949 = vsel %vm734, %v4944, %v4946
        %4954 = vst [vmem:[#allocation3 + $0x20] sm:$0xf0] %v4947
        %4955 = vst [vmem:[#allocation3 + $0x28] sm:$0xf0] %v4948
        %4956 = vst [vmem:[#allocation3 + $0x30] sm:$0xf0] %v4949
        %vm4957 = vcmask 130052
        %4958 = vst.msk [vmem:[#allocation3 + $0x38] sm:$0xf0] %vm4957, %v4946
        %4959 = vst [vmem:[#allocation3 + $0x40] sm:$0x3] %v4947
        %4960 = vst [vmem:[#allocation3 + $0x48] sm:$0x3] %v4948
        %4961 = vst [vmem:[#allocation3 + $0x50] sm:$0x3] %v4949
        %4962 = vst.msk [vmem:[#allocation3 + $0x58] sm:$0x3] %vm1077, %v4946
        %v4963 = vrot.slane %v4296, 6
        %v4964 = vrot.slane %v4496, 6
        %v4965 = vrot.slane %v4696, 6
        %v4966 = vrot.slane %v4896, 6
        %4967 = vrot.lane.b32.xlu0 %v4963, 125
        %v4968 = vpop.permute.xlu0 %4967
        %4969 = vrot.lane.b32.xlu0 %v4964, 125
        %v4970 = vpop.permute.xlu0 %4969
        %4971 = vrot.lane.b32.xlu0 %v4965, 125
        %v4972 = vpop.permute.xlu0 %4971
        %4973 = vrot.lane.b32.xlu0 %v4966, 125
        %v4974 = vpop.permute.xlu0 %4973
        %v4975 = vsel %vm845, %v4968, %v4970
        %v4976 = vsel %vm845, %v4970, %v4972
        %v4977 = vsel %vm845, %v4972, %v4974
        %4982 = vst [vmem:[#allocation3 + $0x40] sm:$0xfc] %v4975
        %4983 = vst [vmem:[#allocation3 + $0x48] sm:$0xfc] %v4976
        %4984 = vst [vmem:[#allocation3 + $0x50] sm:$0xfc] %v4977
        %vm4985 = vcmask 130050
        %4986 = vst.msk [vmem:[#allocation3 + $0x58] sm:$0xfc] %vm4985, %v4974
        %4987 = vrot.lane.b32.xlu0 %v4296, 124
        %v4988 = vpop.permute.xlu0 %4987
        %4989 = vrot.lane.b32.xlu0 %v4496, 124
        %v4990 = vpop.permute.xlu0 %4989
        %4991 = vrot.lane.b32.xlu0 %v4696, 124
        %v4992 = vpop.permute.xlu0 %4991
        %4993 = vrot.lane.b32.xlu0 %v4896, 124
        %v4994 = vpop.permute.xlu0 %4993
        %v4995 = vsel %vm934, %v4988, %v4990
        %v4996 = vsel %vm934, %v4990, %v4992
        %v4997 = vsel %vm934, %v4992, %v4994
        %5002 = vst [vmem:[#allocation3 + $0x60] sm:$0x3f] %v4995
        %5003 = vst [vmem:[#allocation3 + $0x68] sm:$0x3f] %v4996
        %5004 = vst [vmem:[#allocation3 + $0x70] sm:$0x3f] %v4997
        %5005 = vst.msk [vmem:[#allocation3 + $0x78] sm:$0x3f] %vm4901, %v4994
        %5006 = vrot.lane.b32.xlu0 %v4907, 108
        %v5007 = vpop.permute.xlu0 %5006
        %5008 = vrot.lane.b32.xlu0 %v4908, 108
        %v5009 = vpop.permute.xlu0 %5008
        %5010 = vrot.lane.b32.xlu0 %v4909, 108
        %v5011 = vpop.permute.xlu0 %5010
        %5012 = vrot.lane.b32.xlu0 %v4910, 108
        %v5013 = vpop.permute.xlu0 %5012
        %v5014 = vsel %vm2901, %v5007, %v5009
        %v5015 = vsel %vm2901, %v5009, %v5011
        %v5016 = vsel %vm2901, %v5011, %v5013
        %5021 = vst [vmem:[#allocation3 + $0x60] sm:$0xc0] %v5014
        %5022 = vst [vmem:[#allocation3 + $0x68] sm:$0xc0] %v5015
        %5023 = vst [vmem:[#allocation3 + $0x70] sm:$0xc0] %v5016
        %5024 = vst.msk [vmem:[#allocation3 + $0x78] sm:$0xc0] %vm766, %v5013
        %5025 = vst [vmem:[#allocation3 + $0x80] sm:$0xf] %v5014
        %5026 = vst [vmem:[#allocation3 + $0x88] sm:$0xf] %v5015
        %5027 = vst [vmem:[#allocation3 + $0x90] sm:$0xf] %v5016
        %5028 = vst.msk [vmem:[#allocation3 + $0x98] sm:$0xf] %vm4933, %v5013
        %5029 = vrot.lane.b32.xlu0 %v4935, 107
        %v5030 = vpop.permute.xlu0 %5029
        %5031 = vrot.lane.b32.xlu0 %v4936, 107
        %v5032 = vpop.permute.xlu0 %5031
        %5033 = vrot.lane.b32.xlu0 %v4937, 107
        %v5034 = vpop.permute.xlu0 %5033
        %5035 = vrot.lane.b32.xlu0 %v4938, 107
        %v5036 = vpop.permute.xlu0 %5035
        %v5037 = vsel %vm4082, %v5030, %v5032
        %v5038 = vsel %vm4082, %v5032, %v5034
        %v5039 = vsel %vm4082, %v5034, %v5036
        %5044 = vst [vmem:[#allocation3 + $0x80] sm:$0xf0] %v5037
        %5045 = vst [vmem:[#allocation3 + $0x88] sm:$0xf0] %v5038
        %5046 = vst [vmem:[#allocation3 + $0x90] sm:$0xf0] %v5039
        %5047 = vst.msk [vmem:[#allocation3 + $0x98] sm:$0xf0] %vm4957, %v5036
        %5048 = vst [vmem:[#allocation3 + $0xa0] sm:$0x3] %v5037
        %5049 = vst [vmem:[#allocation3 + $0xa8] sm:$0x3] %v5038
        %5050 = vst [vmem:[#allocation3 + $0xb0] sm:$0x3] %v5039
        %5051 = vst.msk [vmem:[#allocation3 + $0xb8] sm:$0x3] %vm1077, %v5036
        %5052 = vrot.lane.b32.xlu0 %v4963, 106
        %v5053 = vpop.permute.xlu0 %5052
        %5054 = vrot.lane.b32.xlu0 %v4964, 106
        %v5055 = vpop.permute.xlu0 %5054
        %5056 = vrot.lane.b32.xlu0 %v4965, 106
        %v5057 = vpop.permute.xlu0 %5056
        %5058 = vrot.lane.b32.xlu0 %v4966, 106
        %v5059 = vpop.permute.xlu0 %5058
        %vm5060 = vcmask 867328
        %v5061 = vsel %vm5060, %v5053, %v5055
        %v5062 = vsel %vm5060, %v5055, %v5057
        %v5063 = vsel %vm5060, %v5057, %v5059
        %5068 = vst [vmem:[#allocation3 + $0xa0] sm:$0xfc] %v5061
        %5069 = vst [vmem:[#allocation3 + $0xa8] sm:$0xfc] %v5062
        %5070 = vst [vmem:[#allocation3 + $0xb0] sm:$0xfc] %v5063
        %5071 = vst.msk [vmem:[#allocation3 + $0xb8] sm:$0xfc] %vm4985, %v5059
        %5072 = vrot.lane.b32.xlu0 %v4296, 105
        %v5073 = vpop.permute.xlu0 %5072
        %5074 = vrot.lane.b32.xlu0 %v4496, 105
        %v5075 = vpop.permute.xlu0 %5074
        %5076 = vrot.lane.b32.xlu0 %v4696, 105
        %v5077 = vpop.permute.xlu0 %5076
        %5078 = vrot.lane.b32.xlu0 %v4896, 105
        %v5079 = vpop.permute.xlu0 %5078
        %vm5080 = vcmask 859136
        %v5081 = vsel %vm5080, %v5073, %v5075
        %v5082 = vsel %vm5080, %v5075, %v5077
        %v5083 = vsel %vm5080, %v5077, %v5079
        %5088 = vst [vmem:[#allocation3 + $0xc0] sm:$0x3f] %v5081
        %5089 = vst [vmem:[#allocation3 + $0xc8] sm:$0x3f] %v5082
        %5090 = vst [vmem:[#allocation3 + $0xd0] sm:$0x3f] %v5083
        %5091 = vst.msk [vmem:[#allocation3 + $0xd8] sm:$0x3f] %vm4901, %v5079
        %5092 = vrot.lane.b32.xlu0 %v4907, 104
        %v5093 = vpop.permute.xlu0 %5092
        %5094 = vrot.lane.b32.xlu0 %v4908, 104
        %v5095 = vpop.permute.xlu0 %5094
        %5096 = vrot.lane.b32.xlu0 %v4909, 104
        %v5097 = vpop.permute.xlu0 %5096
        %5098 = vrot.lane.b32.xlu0 %v4910, 104
        %v5099 = vpop.permute.xlu0 %5098
        %vm5100 = vcmask 850944
        %v5101 = vsel %vm5100, %v5093, %v5095
        %v5102 = vsel %vm5100, %v5095, %v5097
        %v5103 = vsel %vm5100, %v5097, %v5099
        %5108 = vst [vmem:[#allocation3 + $0xc0] sm:$0xc0] %v5101
        %5109 = vst [vmem:[#allocation3 + $0xc8] sm:$0xc0] %v5102
        %5110 = vst [vmem:[#allocation3 + $0xd0] sm:$0xc0] %v5103
        %5111 = vst.msk [vmem:[#allocation3 + $0xd8] sm:$0xc0] %vm766, %v5099
        %5112 = vst [vmem:[#allocation3 + $0xe0] sm:$0xf] %v5101
        %5113 = vst [vmem:[#allocation3 + $0xe8] sm:$0xf] %v5102
        %5114 = vst [vmem:[#allocation3 + $0xf0] sm:$0xf] %v5103
        %5115 = vst.msk [vmem:[#allocation3 + $0xf8] sm:$0xf] %vm4933, %v5099
        %5116 = vrot.lane.b32.xlu0 %v4935, 88
        %v5117 = vpop.permute.xlu0 %5116
        %5118 = vrot.lane.b32.xlu0 %v4936, 88
        %v5119 = vpop.permute.xlu0 %5118
        %5120 = vrot.lane.b32.xlu0 %v4937, 88
        %v5121 = vpop.permute.xlu0 %5120
        %5122 = vrot.lane.b32.xlu0 %v4938, 88
        %v5123 = vpop.permute.xlu0 %5122
        %v5124 = vsel %vm1429, %v5117, %v5119
        %v5125 = vsel %vm1429, %v5119, %v5121
        %v5126 = vsel %vm1429, %v5121, %v5123
        %5131 = vst [vmem:[#allocation3 + $0xe0] sm:$0xf0] %v5124
        %5132 = vst [vmem:[#allocation3 + $0xe8] sm:$0xf0] %v5125
        %5133 = vst [vmem:[#allocation3 + $0xf0] sm:$0xf0] %v5126
        %5134 = vst.msk [vmem:[#allocation3 + $0xf8] sm:$0xf0] %vm4957, %v5123
        %5135 = vst [vmem:[#allocation3 + $0x100] sm:$0x3] %v5124
        %5136 = vst [vmem:[#allocation3 + $0x108] sm:$0x3] %v5125
        %5137 = vst [vmem:[#allocation3 + $0x110] sm:$0x3] %v5126
        %5138 = vst.msk [vmem:[#allocation3 + $0x118] sm:$0x3] %vm1077, %v5123
        %5139 = vrot.lane.b32.xlu0 %v4963, 87
        %v5140 = vpop.permute.xlu0 %5139
        %5141 = vrot.lane.b32.xlu0 %v4964, 87
        %v5142 = vpop.permute.xlu0 %5141
        %5143 = vrot.lane.b32.xlu0 %v4965, 87
        %v5144 = vpop.permute.xlu0 %5143
        %5145 = vrot.lane.b32.xlu0 %v4966, 87
        %v5146 = vpop.permute.xlu0 %5145
        %vm5147 = vcmask 711680
        %v5148 = vsel %vm5147, %v5140, %v5142
        %v5149 = vsel %vm5147, %v5142, %v5144
        %v5150 = vsel %vm5147, %v5144, %v5146
        %5155 = vst [vmem:[#allocation3 + $0x100] sm:$0xfc] %v5148
        %5156 = vst [vmem:[#allocation3 + $0x108] sm:$0xfc] %v5149
        %5157 = vst [vmem:[#allocation3 + $0x110] sm:$0xfc] %v5150
        %5158 = vst.msk [vmem:[#allocation3 + $0x118] sm:$0xfc] %vm4985, %v5146
        %5159 = vrot.lane.b32.xlu0 %v4296, 86
        %v5160 = vpop.permute.xlu0 %5159
        %5161 = vrot.lane.b32.xlu0 %v4496, 86
        %v5162 = vpop.permute.xlu0 %5161
        %5163 = vrot.lane.b32.xlu0 %v4696, 86
        %v5164 = vpop.permute.xlu0 %5163
        %5165 = vrot.lane.b32.xlu0 %v4896, 86
        %v5166 = vpop.permute.xlu0 %5165
        %vm5167 = vcmask 703488
        %v5168 = vsel %vm5167, %v5160, %v5162
        %v5169 = vsel %vm5167, %v5162, %v5164
        %v5170 = vsel %vm5167, %v5164, %v5166
        %5175 = vst [vmem:[#allocation3 + $0x120] sm:$0x3f] %v5168
        %5176 = vst [vmem:[#allocation3 + $0x128] sm:$0x3f] %v5169
        %5177 = vst [vmem:[#allocation3 + $0x130] sm:$0x3f] %v5170
        %5178 = vst.msk [vmem:[#allocation3 + $0x138] sm:$0x3f] %vm4901, %v5166
        %5179 = vrot.lane.b32.xlu0 %v4907, 85
        %v5180 = vpop.permute.xlu0 %5179
        %5181 = vrot.lane.b32.xlu0 %v4908, 85
        %v5182 = vpop.permute.xlu0 %5181
        %5183 = vrot.lane.b32.xlu0 %v4909, 85
        %v5184 = vpop.permute.xlu0 %5183
        %5185 = vrot.lane.b32.xlu0 %v4910, 85
        %v5186 = vpop.permute.xlu0 %5185
        %vm5187 = vcmask 695296
        %v5188 = vsel %vm5187, %v5180, %v5182
        %v5189 = vsel %vm5187, %v5182, %v5184
        %v5190 = vsel %vm5187, %v5184, %v5186
        %5195 = vst [vmem:[#allocation3 + $0x120] sm:$0xc0] %v5188
        %5196 = vst [vmem:[#allocation3 + $0x128] sm:$0xc0] %v5189
        %5197 = vst [vmem:[#allocation3 + $0x130] sm:$0xc0] %v5190
        %5198 = vst.msk [vmem:[#allocation3 + $0x138] sm:$0xc0] %vm766, %v5186
        %5199 = vst [vmem:[#allocation3 + $0x140] sm:$0xf] %v5188
        %5200 = vst [vmem:[#allocation3 + $0x148] sm:$0xf] %v5189
        %5201 = vst [vmem:[#allocation3 + $0x150] sm:$0xf] %v5190
        %5202 = vst.msk [vmem:[#allocation3 + $0x158] sm:$0xf] %vm4933, %v5186
        %5203 = vrot.lane.b32.xlu0 %v4935, 84
        %v5204 = vpop.permute.xlu0 %5203
        %5205 = vrot.lane.b32.xlu0 %v4936, 84
        %v5206 = vpop.permute.xlu0 %5205
        %5207 = vrot.lane.b32.xlu0 %v4937, 84
        %v5208 = vpop.permute.xlu0 %5207
        %5209 = vrot.lane.b32.xlu0 %v4938, 84
        %v5210 = vpop.permute.xlu0 %5209
        %vm5211 = vcmask 687104
        %v5212 = vsel %vm5211, %v5204, %v5206
        %v5213 = vsel %vm5211, %v5206, %v5208
        %v5214 = vsel %vm5211, %v5208, %v5210
        %5219 = vst [vmem:[#allocation3 + $0x140] sm:$0xf0] %v5212
        %5220 = vst [vmem:[#allocation3 + $0x148] sm:$0xf0] %v5213
        %5221 = vst [vmem:[#allocation3 + $0x150] sm:$0xf0] %v5214
        %5222 = vst.msk [vmem:[#allocation3 + $0x158] sm:$0xf0] %vm4957, %v5210
        %5223 = vst [vmem:[#allocation3 + $0x160] sm:$0x3] %v5212
        %5224 = vst [vmem:[#allocation3 + $0x168] sm:$0x3] %v5213
        %5225 = vst [vmem:[#allocation3 + $0x170] sm:$0x3] %v5214
        %5226 = vst.msk [vmem:[#allocation3 + $0x178] sm:$0x3] %vm1077, %v5210
        %5227 = vrot.lane.b32.xlu0 %v4963, 68
        %v5228 = vpop.permute.xlu0 %5227
        %5229 = vrot.lane.b32.xlu0 %v4964, 68
        %v5230 = vpop.permute.xlu0 %5229
        %5231 = vrot.lane.b32.xlu0 %v4965, 68
        %v5232 = vpop.permute.xlu0 %5231
        %5233 = vrot.lane.b32.xlu0 %v4966, 68
        %v5234 = vpop.permute.xlu0 %5233
        %vm5235 = vcmask 556032
        %v5236 = vsel %vm5235, %v5228, %v5230
        %v5237 = vsel %vm5235, %v5230, %v5232
        %v5238 = vsel %vm5235, %v5232, %v5234
        %5243 = vst [vmem:[#allocation3 + $0x160] sm:$0xfc] %v5236
        %5244 = vst [vmem:[#allocation3 + $0x168] sm:$0xfc] %v5237
        %5245 = vst [vmem:[#allocation3 + $0x170] sm:$0xfc] %v5238
        %5246 = vst.msk [vmem:[#allocation3 + $0x178] sm:$0xfc] %vm4985, %v5234
        %5247 = vrot.lane.b32.xlu0 %v4296, 67
        %v5248 = vpop.permute.xlu0 %5247
        %5249 = vrot.lane.b32.xlu0 %v4496, 67
        %v5250 = vpop.permute.xlu0 %5249
        %5251 = vrot.lane.b32.xlu0 %v4696, 67
        %v5252 = vpop.permute.xlu0 %5251
        %5253 = vrot.lane.b32.xlu0 %v4896, 67
        %v5254 = vpop.permute.xlu0 %5253
        %vm5255 = vcmask 547840
        %v5256 = vsel %vm5255, %v5248, %v5250
        %v5257 = vsel %vm5255, %v5250, %v5252
        %v5258 = vsel %vm5255, %v5252, %v5254
        %5263 = vst [vmem:[#allocation3 + $0x180] sm:$0x3f] %v5256
        %5264 = vst [vmem:[#allocation3 + $0x188] sm:$0x3f] %v5257
        %5265 = vst [vmem:[#allocation3 + $0x190] sm:$0x3f] %v5258
        %5266 = vst.msk [vmem:[#allocation3 + $0x198] sm:$0x3f] %vm4901, %v5254
        %5267 = vrot.lane.b32.xlu0 %v4907, 66
        %v5268 = vpop.permute.xlu0 %5267
        %5269 = vrot.lane.b32.xlu0 %v4908, 66
        %v5270 = vpop.permute.xlu0 %5269
        %5271 = vrot.lane.b32.xlu0 %v4909, 66
        %v5272 = vpop.permute.xlu0 %5271
        %5273 = vrot.lane.b32.xlu0 %v4910, 66
        %v5274 = vpop.permute.xlu0 %5273
        %vm5275 = vcmask 539648
        %v5276 = vsel %vm5275, %v5268, %v5270
        %v5277 = vsel %vm5275, %v5270, %v5272
        %v5278 = vsel %vm5275, %v5272, %v5274
        %5283 = vst [vmem:[#allocation3 + $0x180] sm:$0xc0] %v5276
        %5284 = vst [vmem:[#allocation3 + $0x188] sm:$0xc0] %v5277
        %5285 = vst [vmem:[#allocation3 + $0x190] sm:$0xc0] %v5278
        %5286 = vst.msk [vmem:[#allocation3 + $0x198] sm:$0xc0] %vm766, %v5274
        %5287 = vst [vmem:[#allocation3 + $0x1a0] sm:$0xf] %v5276
        %5288 = vst [vmem:[#allocation3 + $0x1a8] sm:$0xf] %v5277
        %5289 = vst [vmem:[#allocation3 + $0x1b0] sm:$0xf] %v5278
        %5290 = vst.msk [vmem:[#allocation3 + $0x1b8] sm:$0xf] %vm4933, %v5274
        %5291 = vrot.lane.b32.xlu0 %v4935, 65
        %v5292 = vpop.permute.xlu0 %5291
        %5293 = vrot.lane.b32.xlu0 %v4936, 65
        %v5294 = vpop.permute.xlu0 %5293
        %5295 = vrot.lane.b32.xlu0 %v4937, 65
        %v5296 = vpop.permute.xlu0 %5295
        %5297 = vrot.lane.b32.xlu0 %v4938, 65
        %v5298 = vpop.permute.xlu0 %5297
        %vm5299 = vcmask 531456
        %v5300 = vsel %vm5299, %v5292, %v5294
        %v5301 = vsel %vm5299, %v5294, %v5296
        %v5302 = vsel %vm5299, %v5296, %v5298
        %5307 = vst [vmem:[#allocation3 + $0x1a0] sm:$0xf0] %v5300
        %5308 = vst [vmem:[#allocation3 + $0x1a8] sm:$0xf0] %v5301
        %5309 = vst [vmem:[#allocation3 + $0x1b0] sm:$0xf0] %v5302
        %5310 = vst.msk [vmem:[#allocation3 + $0x1b8] sm:$0xf0] %vm4957, %v5298
        %5311 = vst [vmem:[#allocation3 + $0x1c0] sm:$0x3] %v5300
        %5312 = vst [vmem:[#allocation3 + $0x1c8] sm:$0x3] %v5301
        %5313 = vst [vmem:[#allocation3 + $0x1d0] sm:$0x3] %v5302
        %5314 = vst.msk [vmem:[#allocation3 + $0x1d8] sm:$0x3] %vm1077, %v5298
        %5315 = vrot.lane.b32.xlu0 %v4963, 64
        %v5316 = vpop.permute.xlu0 %5315
        %5317 = vrot.lane.b32.xlu0 %v4964, 64
        %v5318 = vpop.permute.xlu0 %5317
        %5319 = vrot.lane.b32.xlu0 %v4965, 64
        %v5320 = vpop.permute.xlu0 %5319
        %5321 = vrot.lane.b32.xlu0 %v4966, 64
        %v5322 = vpop.permute.xlu0 %5321
        %vm5323 = vcmask 523264
        %v5324 = vsel %vm5323, %v5316, %v5318
        %v5325 = vsel %vm5323, %v5318, %v5320
        %v5326 = vsel %vm5323, %v5320, %v5322
        %5331 = vst [vmem:[#allocation3 + $0x1c0] sm:$0xfc] %v5324
        %5332 = vst [vmem:[#allocation3 + $0x1c8] sm:$0xfc] %v5325
        %5333 = vst [vmem:[#allocation3 + $0x1d0] sm:$0xfc] %v5326
        %5334 = vst.msk [vmem:[#allocation3 + $0x1d8] sm:$0xfc] %vm4985, %v5322
        %5335 = vrot.lane.b32.xlu0 %v4296, 48
        %v5336 = vpop.permute.xlu0 %5335
        %5337 = vrot.lane.b32.xlu0 %v4496, 48
        %v5338 = vpop.permute.xlu0 %5337
        %5339 = vrot.lane.b32.xlu0 %v4696, 48
        %v5340 = vpop.permute.xlu0 %5339
        %5341 = vrot.lane.b32.xlu0 %v4896, 48
        %v5342 = vpop.permute.xlu0 %5341
        %vm5343 = vcmask 392192
        %v5344 = vsel %vm5343, %v5336, %v5338
        %v5345 = vsel %vm5343, %v5338, %v5340
        %v5346 = vsel %vm5343, %v5340, %v5342
        %5351 = vst [vmem:[#allocation3 + $0x1e0] sm:$0x3f] %v5344
        %5352 = vst [vmem:[#allocation3 + $0x1e8] sm:$0x3f] %v5345
        %5353 = vst [vmem:[#allocation3 + $0x1f0] sm:$0x3f] %v5346
        %5354 = vst.msk [vmem:[#allocation3 + $0x1f8] sm:$0x3f] %vm4901, %v5342
        %5355 = vrot.lane.b32.xlu0 %v4907, 47
        %v5356 = vpop.permute.xlu0 %5355
        %5357 = vrot.lane.b32.xlu0 %v4908, 47
        %v5358 = vpop.permute.xlu0 %5357
        %5359 = vrot.lane.b32.xlu0 %v4909, 47
        %v5360 = vpop.permute.xlu0 %5359
        %5361 = vrot.lane.b32.xlu0 %v4910, 47
        %v5362 = vpop.permute.xlu0 %5361
        %vm5363 = vcmask 384000
        %v5364 = vsel %vm5363, %v5356, %v5358
        %v5365 = vsel %vm5363, %v5358, %v5360
        %v5366 = vsel %vm5363, %v5360, %v5362
        %5371 = vst [vmem:[#allocation3 + $0x1e0] sm:$0xc0] %v5364
        %5372 = vst [vmem:[#allocation3 + $0x1e8] sm:$0xc0] %v5365
        %5373 = vst [vmem:[#allocation3 + $0x1f0] sm:$0xc0] %v5366
        %5374 = vst.msk [vmem:[#allocation3 + $0x1f8] sm:$0xc0] %vm766, %v5362
        %5375 = vst [vmem:[#allocation3 + $0x200] sm:$0xf] %v5364
        %5376 = vst [vmem:[#allocation3 + $0x208] sm:$0xf] %v5365
        %5377 = vst [vmem:[#allocation3 + $0x210] sm:$0xf] %v5366
        %5378 = vst.msk [vmem:[#allocation3 + $0x218] sm:$0xf] %vm4933, %v5362
        %5379 = vrot.lane.b32.xlu0 %v4935, 46
        %v5380 = vpop.permute.xlu0 %5379
        %5381 = vrot.lane.b32.xlu0 %v4936, 46
        %v5382 = vpop.permute.xlu0 %5381
        %5383 = vrot.lane.b32.xlu0 %v4937, 46
        %v5384 = vpop.permute.xlu0 %5383
        %5385 = vrot.lane.b32.xlu0 %v4938, 46
        %v5386 = vpop.permute.xlu0 %5385
        %vm5387 = vcmask 375808
        %v5388 = vsel %vm5387, %v5380, %v5382
        %v5389 = vsel %vm5387, %v5382, %v5384
        %v5390 = vsel %vm5387, %v5384, %v5386
        %5395 = vst [vmem:[#allocation3 + $0x200] sm:$0xf0] %v5388
        %5396 = vst [vmem:[#allocation3 + $0x208] sm:$0xf0] %v5389
        %5397 = vst [vmem:[#allocation3 + $0x210] sm:$0xf0] %v5390
        %5398 = vst.msk [vmem:[#allocation3 + $0x218] sm:$0xf0] %vm4957, %v5386
        %5399 = vst [vmem:[#allocation3 + $0x220] sm:$0x3] %v5388
        %5400 = vst [vmem:[#allocation3 + $0x228] sm:$0x3] %v5389
        %5401 = vst [vmem:[#allocation3 + $0x230] sm:$0x3] %v5390
        %5402 = vst.msk [vmem:[#allocation3 + $0x238] sm:$0x3] %vm1077, %v5386
        %5403 = vrot.lane.b32.xlu0 %v4963, 45
        %v5404 = vpop.permute.xlu0 %5403
        %5405 = vrot.lane.b32.xlu0 %v4964, 45
        %v5406 = vpop.permute.xlu0 %5405
        %5407 = vrot.lane.b32.xlu0 %v4965, 45
        %v5408 = vpop.permute.xlu0 %5407
        %5409 = vrot.lane.b32.xlu0 %v4966, 45
        %v5410 = vpop.permute.xlu0 %5409
        %vm5411 = vcmask 367616
        %v5412 = vsel %vm5411, %v5404, %v5406
        %v5413 = vsel %vm5411, %v5406, %v5408
        %v5414 = vsel %vm5411, %v5408, %v5410
        %5419 = vst [vmem:[#allocation3 + $0x220] sm:$0xfc] %v5412
        %5420 = vst [vmem:[#allocation3 + $0x228] sm:$0xfc] %v5413
        %5421 = vst [vmem:[#allocation3 + $0x230] sm:$0xfc] %v5414
        %5422 = vst.msk [vmem:[#allocation3 + $0x238] sm:$0xfc] %vm4985, %v5410
        %5423 = vrot.lane.b32.xlu0 %v4296, 44
        %v5424 = vpop.permute.xlu0 %5423
        %5425 = vrot.lane.b32.xlu0 %v4496, 44
        %v5426 = vpop.permute.xlu0 %5425
        %5427 = vrot.lane.b32.xlu0 %v4696, 44
        %v5428 = vpop.permute.xlu0 %5427
        %5429 = vrot.lane.b32.xlu0 %v4896, 44
        %v5430 = vpop.permute.xlu0 %5429
        %vm5431 = vcmask 359424
        %v5432 = vsel %vm5431, %v5424, %v5426
        %v5433 = vsel %vm5431, %v5426, %v5428
        %v5434 = vsel %vm5431, %v5428, %v5430
        %5439 = vst [vmem:[#allocation3 + $0x240] sm:$0x3f] %v5432
        %5440 = vst [vmem:[#allocation3 + $0x248] sm:$0x3f] %v5433
        %5441 = vst [vmem:[#allocation3 + $0x250] sm:$0x3f] %v5434
        %5442 = vst.msk [vmem:[#allocation3 + $0x258] sm:$0x3f] %vm4901, %v5430
        %v5443 = vld [vmem:[%s4] sm:$0xff]
        %v5444 = vld [vmem:[%s4 + $0x8] sm:$0xff]
        %v5445 = vld [vmem:[%s4 + $0x10] sm:$0xff]
        %v5446 = vld [vmem:[%s4 + $0x18] sm:$0xff]
        %v5447 = vld [vmem:[#allocation3] sm:$0xff]
        %v5448 = vld [vmem:[#allocation3 + $0x8] sm:$0xff]
        %v5449 = vld [vmem:[#allocation3 + $0x10] sm:$0xff]
        %v5450 = vld [vmem:[#allocation3 + $0x18] sm:$0xff]
        %v5451 = vld [vmem:[#allocation3 + $0x20] sm:$0xff]
        %v5452 = vld [vmem:[#allocation3 + $0x28] sm:$0xff]
        %v5453 = vld [vmem:[#allocation3 + $0x30] sm:$0xff]
        %v5454 = vld [vmem:[#allocation3 + $0x38] sm:$0xff]
        %v5455 = vld [vmem:[#allocation3 + $0x40] sm:$0xff]
        %v5456 = vld [vmem:[#allocation3 + $0x48] sm:$0xff]
        %v5457 = vld [vmem:[#allocation3 + $0x50] sm:$0xff]
        %v5458 = vld [vmem:[#allocation3 + $0x58] sm:$0xff]
        %v5459 = vld [vmem:[#allocation3 + $0x60] sm:$0xff]
        %v5460 = vld [vmem:[#allocation3 + $0x68] sm:$0xff]
        %v5461 = vld [vmem:[#allocation3 + $0x70] sm:$0xff]
        %v5462 = vld [vmem:[#allocation3 + $0x78] sm:$0xff]
        %v5463 = vld [vmem:[#allocation3 + $0x80] sm:$0xff]
        %v5464 = vld [vmem:[#allocation3 + $0x88] sm:$0xff]
        %v5465 = vld [vmem:[#allocation3 + $0x90] sm:$0xff]
        %v5466 = vld [vmem:[#allocation3 + $0x98] sm:$0xff]
        %v5467 = vld [vmem:[#allocation3 + $0xa0] sm:$0xff]
        %v5468 = vld [vmem:[#allocation3 + $0xa8] sm:$0xff]
        %v5469 = vld [vmem:[#allocation3 + $0xb0] sm:$0xff]
        %v5470 = vld [vmem:[#allocation3 + $0xb8] sm:$0xff]
        %v5471 = vld [vmem:[#allocation3 + $0xc0] sm:$0xff]
        %v5472 = vld [vmem:[#allocation3 + $0xc8] sm:$0xff]
        %v5473 = vld [vmem:[#allocation3 + $0xd0] sm:$0xff]
        %v5474 = vld [vmem:[#allocation3 + $0xd8] sm:$0xff]
        %v5475 = vld [vmem:[#allocation3 + $0xe0] sm:$0xff]
        %v5476 = vld [vmem:[#allocation3 + $0xe8] sm:$0xff]
        %v5477 = vld [vmem:[#allocation3 + $0xf0] sm:$0xff]
        %v5478 = vld [vmem:[#allocation3 + $0xf8] sm:$0xff]
        %v5479 = vld [vmem:[#allocation3 + $0x100] sm:$0xff]
        %v5480 = vld [vmem:[#allocation3 + $0x108] sm:$0xff]
        %v5481 = vld [vmem:[#allocation3 + $0x110] sm:$0xff]
        %v5482 = vld [vmem:[#allocation3 + $0x118] sm:$0xff]
        %v5483 = vld [vmem:[#allocation3 + $0x120] sm:$0xff]
        %v5484 = vld [vmem:[#allocation3 + $0x128] sm:$0xff]
        %v5485 = vld [vmem:[#allocation3 + $0x130] sm:$0xff]
        %v5486 = vld [vmem:[#allocation3 + $0x138] sm:$0xff]
        %v5487 = vld [vmem:[#allocation3 + $0x140] sm:$0xff]
        %v5488 = vld [vmem:[#allocation3 + $0x148] sm:$0xff]
        %v5489 = vld [vmem:[#allocation3 + $0x150] sm:$0xff]
        %v5490 = vld [vmem:[#allocation3 + $0x158] sm:$0xff]
        %v5491 = vld [vmem:[#allocation3 + $0x160] sm:$0xff]
        %v5492 = vld [vmem:[#allocation3 + $0x168] sm:$0xff]
        %v5493 = vld [vmem:[#allocation3 + $0x170] sm:$0xff]
        %v5494 = vld [vmem:[#allocation3 + $0x178] sm:$0xff]
        %v5495 = vld [vmem:[#allocation3 + $0x180] sm:$0xff]
        %v5496 = vld [vmem:[#allocation3 + $0x188] sm:$0xff]
        %v5497 = vld [vmem:[#allocation3 + $0x190] sm:$0xff]
        %v5498 = vld [vmem:[#allocation3 + $0x198] sm:$0xff]
        %v5499 = vld [vmem:[#allocation3 + $0x1a0] sm:$0xff]
        %v5500 = vld [vmem:[#allocation3 + $0x1a8] sm:$0xff]
        %v5501 = vld [vmem:[#allocation3 + $0x1b0] sm:$0xff]
        %v5502 = vld [vmem:[#allocation3 + $0x1b8] sm:$0xff]
        %v5503 = vld [vmem:[#allocation3 + $0x1c0] sm:$0xff]
        %v5504 = vld [vmem:[#allocation3 + $0x1c8] sm:$0xff]
        %v5505 = vld [vmem:[#allocation3 + $0x1d0] sm:$0xff]
        %v5506 = vld [vmem:[#allocation3 + $0x1d8] sm:$0xff]
        %v5507 = vld [vmem:[#allocation3 + $0x1e0] sm:$0xff]
        %v5508 = vld [vmem:[#allocation3 + $0x1e8] sm:$0xff]
        %v5509 = vld [vmem:[#allocation3 + $0x1f0] sm:$0xff]
        %v5510 = vld [vmem:[#allocation3 + $0x1f8] sm:$0xff]
        %v5511 = vld [vmem:[#allocation3 + $0x200] sm:$0xff]
        %v5512 = vld [vmem:[#allocation3 + $0x208] sm:$0xff]
        %v5513 = vld [vmem:[#allocation3 + $0x210] sm:$0xff]
        %v5514 = vld [vmem:[#allocation3 + $0x218] sm:$0xff]
        %v5515 = vld [vmem:[#allocation3 + $0x220] sm:$0xff]
        %v5516 = vld [vmem:[#allocation3 + $0x228] sm:$0xff]
        %v5517 = vld [vmem:[#allocation3 + $0x230] sm:$0xff]
        %v5518 = vld [vmem:[#allocation3 + $0x238] sm:$0xff]
        %v5519 = vld [vmem:[#allocation3 + $0x240] sm:$0x3f]
        %v5520 = vld [vmem:[#allocation3 + $0x248] sm:$0x3f]
        %v5521 = vld [vmem:[#allocation3 + $0x250] sm:$0x3f]
        %v5522 = vld [vmem:[#allocation3 + $0x258] sm:$0x3f]
        %v5523 = vld [vmem:[%s5] sm:$0xff]
        %v5524 = vld [vmem:[%s5 + $0x8] sm:$0xff]
        %5526 = vset.pattern.permute.xlu0 0
        %5527 = vperm.xlu0 %5526, %v5523
        %v5528 = vpop.permute.xlu0 %5527
        %5531 = vset.pattern.permute.xlu0 0
        %5532 = vperm.xlu0 %5531, %v5524
        %v5533 = vpop.permute.xlu0 %5532
        %vm5535 = vcmask 179200
        %v5537 = vsel %vm5535, %v5444, 0
        %v5540 = vsel %vm5535, %v5446, 0
        %vm5542 = vcmask 1045504
        %v5544 = vsel %vm5542, %v5519, 0
        %v5547 = vsel %vm5542, %v5520, 0
        %v5550 = vsel %vm5542, %v5521, 0
        %v5553 = vsel %vm5542, %v5522, 0
        %5555 = vmatpush.msra.mxu0 %v5507
        %5556 = vmatpush.msra.mxu0 %v5503
        %5557 = vmatpush.msra.mxu0 %v5499
        %5558 = vmatpush.msra.mxu0 %v5495
        %5559 = vmatpush.msra.mxu0 %v5491
        %5560 = vmatpush.msra.mxu0 %v5487
        %5561 = vmatpush.msra.mxu0 %v5483
        %5562 = vmatpush.msra.mxu0 %v5479
        %5563 = vmatpush.msra.mxu0 %v5475
        %5564 = vmatpush.msra.mxu0 %v5471
        %5565 = vmatpush.msra.mxu0 %v5467
        %5566 = vmatpush.msra.mxu0 %v5463
        %5567 = vmatpush.msra.mxu0 %v5459
        %5568 = vmatpush.msra.mxu0 %v5455
        %5569 = vmatpush.msra.mxu0 %v5451
        %5570 = vmatpush.msra.mxu0 %v5447
        %5571 = vmatmul.f32.gmra.mxu0 %v5443
        %v5572 = vpop.f32.mrf.mxu0
        %v5573 = vadd.f32 %v5528, %v5572
        %5574 = vmatmul.f32.gmra.mxu0 %v5445
        %v5575 = vpop.f32.mrf.mxu0
        %v5576 = vadd.f32 %v5533, %v5575
        %5577 = vdwg.mxu0
        %5578 = vmatpush.msra.mxu0 0.0
        %5579 = vmatpush.msra.mxu0 0.0
        %5580 = vmatpush.msra.mxu0 0.0
        %5581 = vmatpush.msra.mxu0 0.0
        %5582 = vmatpush.msra.mxu0 0.0
        %5583 = vmatpush.msra.mxu0 0.0
        %5584 = vmatpush.msra.mxu0 0.0
        %5585 = vmatpush.msra.mxu0 0.0
        %5586 = vmatpush.msra.mxu0 0.0
        %5587 = vmatpush.msra.mxu0 0.0
        %5588 = vmatpush.msra.mxu0 0.0
        %5589 = vmatpush.msra.mxu0 0.0
        %5590 = vmatpush.msra.mxu0 0.0
        %5591 = vmatpush.msra.mxu0 %v5544
        %5592 = vmatpush.msra.mxu0 %v5515
        %5593 = vmatpush.msra.mxu0 %v5511
        %5594 = vmatmul.f32.gmra.mxu0 %v5537
        %v5595 = vpop.f32.mrf.mxu0
        %v5596 = vadd.f32 %v5573, %v5595
        %5597 = vmatmul.f32.gmra.mxu0 %v5540
        %v5598 = vpop.f32.mrf.mxu0
        %v5599 = vadd.f32 %v5576, %v5598
        %5600 = vdwg.mxu0
        %5601 = vmatpush.msra.mxu0 %v5508
        %5602 = vmatpush.msra.mxu0 %v5504
        %5603 = vmatpush.msra.mxu0 %v5500
        %5604 = vmatpush.msra.mxu0 %v5496
        %5605 = vmatpush.msra.mxu0 %v5492
        %5606 = vmatpush.msra.mxu0 %v5488
        %5607 = vmatpush.msra.mxu0 %v5484
        %5608 = vmatpush.msra.mxu0 %v5480
        %5609 = vmatpush.msra.mxu0 %v5476
        %5610 = vmatpush.msra.mxu0 %v5472
        %5611 = vmatpush.msra.mxu0 %v5468
        %5612 = vmatpush.msra.mxu0 %v5464
        %5613 = vmatpush.msra.mxu0 %v5460
        %5614 = vmatpush.msra.mxu0 %v5456
        %5615 = vmatpush.msra.mxu0 %v5452
        %5616 = vmatpush.msra.mxu0 %v5448
        %5617 = vmatmul.f32.gmra.mxu0 %v5443
        %v5618 = vpop.f32.mrf.mxu0
        %v5619 = vadd.f32 %v5528, %v5618
        %5620 = vmatmul.f32.gmra.mxu0 %v5445
        %v5621 = vpop.f32.mrf.mxu0
        %v5622 = vadd.f32 %v5533, %v5621
        %5623 = vdwg.mxu0
        %5624 = vmatpush.msra.mxu0 0.0
        %5625 = vmatpush.msra.mxu0 0.0
        %5626 = vmatpush.msra.mxu0 0.0
        %5627 = vmatpush.msra.mxu0 0.0
        %5628 = vmatpush.msra.mxu0 0.0
        %5629 = vmatpush.msra.mxu0 0.0
        %5630 = vmatpush.msra.mxu0 0.0
        %5631 = vmatpush.msra.mxu0 0.0
        %5632 = vmatpush.msra.mxu0 0.0
        %5633 = vmatpush.msra.mxu0 0.0
        %5634 = vmatpush.msra.mxu0 0.0
        %5635 = vmatpush.msra.mxu0 0.0
        %5636 = vmatpush.msra.mxu0 0.0
        %5637 = vmatpush.msra.mxu0 %v5547
        %5638 = vmatpush.msra.mxu0 %v5516
        %5639 = vmatpush.msra.mxu0 %v5512
        %5640 = vmatmul.f32.gmra.mxu0 %v5537
        %v5641 = vpop.f32.mrf.mxu0
        %v5642 = vadd.f32 %v5619, %v5641
        %5643 = vmatmul.f32.gmra.mxu0 %v5540
        %v5644 = vpop.f32.mrf.mxu0
        %v5645 = vadd.f32 %v5622, %v5644
        %5646 = vdwg.mxu0
        %5647 = vmatpush.msra.mxu0 %v5509
        %5648 = vmatpush.msra.mxu0 %v5505
        %5649 = vmatpush.msra.mxu0 %v5501
        %5650 = vmatpush.msra.mxu0 %v5497
        %5651 = vmatpush.msra.mxu0 %v5493
        %5652 = vmatpush.msra.mxu0 %v5489
        %5653 = vmatpush.msra.mxu0 %v5485
        %5654 = vmatpush.msra.mxu0 %v5481
        %5655 = vmatpush.msra.mxu0 %v5477
        %5656 = vmatpush.msra.mxu0 %v5473
        %5657 = vmatpush.msra.mxu0 %v5469
        %5658 = vmatpush.msra.mxu0 %v5465
        %5659 = vmatpush.msra.mxu0 %v5461
        %5660 = vmatpush.msra.mxu0 %v5457
        %5661 = vmatpush.msra.mxu0 %v5453
        %5662 = vmatpush.msra.mxu0 %v5449
        %5663 = vmatmul.f32.gmra.mxu0 %v5443
        %v5664 = vpop.f32.mrf.mxu0
        %v5665 = vadd.f32 %v5528, %v5664
        %5666 = vmatmul.f32.gmra.mxu0 %v5445
        %v5667 = vpop.f32.mrf.mxu0
        %v5668 = vadd.f32 %v5533, %v5667
        %5669 = vdwg.mxu0
        %5670 = vmatpush.msra.mxu0 0.0
        %5671 = vmatpush.msra.mxu0 0.0
        %5672 = vmatpush.msra.mxu0 0.0
        %5673 = vmatpush.msra.mxu0 0.0
        %5674 = vmatpush.msra.mxu0 0.0
        %5675 = vmatpush.msra.mxu0 0.0
        %5676 = vmatpush.msra.mxu0 0.0
        %5677 = vmatpush.msra.mxu0 0.0
        %5678 = vmatpush.msra.mxu0 0.0
        %5679 = vmatpush.msra.mxu0 0.0
        %5680 = vmatpush.msra.mxu0 0.0
        %5681 = vmatpush.msra.mxu0 0.0
        %5682 = vmatpush.msra.mxu0 0.0
        %5683 = vmatpush.msra.mxu0 %v5550
        %5684 = vmatpush.msra.mxu0 %v5517
        %5685 = vmatpush.msra.mxu0 %v5513
        %5686 = vmatmul.f32.gmra.mxu0 %v5537
        %v5687 = vpop.f32.mrf.mxu0
        %v5688 = vadd.f32 %v5665, %v5687
        %5689 = vmatmul.f32.gmra.mxu0 %v5540
        %v5690 = vpop.f32.mrf.mxu0
        %v5691 = vadd.f32 %v5668, %v5690
        %5692 = vdwg.mxu0
        %5693 = vmatpush.msra.mxu0 %v5510
        %5694 = vmatpush.msra.mxu0 %v5506
        %5695 = vmatpush.msra.mxu0 %v5502
        %5696 = vmatpush.msra.mxu0 %v5498
        %5697 = vmatpush.msra.mxu0 %v5494
        %5698 = vmatpush.msra.mxu0 %v5490
        %5699 = vmatpush.msra.mxu0 %v5486
        %5700 = vmatpush.msra.mxu0 %v5482
        %5701 = vmatpush.msra.mxu0 %v5478
        %5702 = vmatpush.msra.mxu0 %v5474
        %5703 = vmatpush.msra.mxu0 %v5470
        %5704 = vmatpush.msra.mxu0 %v5466
        %5705 = vmatpush.msra.mxu0 %v5462
        %5706 = vmatpush.msra.mxu0 %v5458
        %5707 = vmatpush.msra.mxu0 %v5454
        %5708 = vmatpush.msra.mxu0 %v5450
        %5709 = vmatmul.f32.gmra.mxu0 %v5443
        %v5710 = vpop.f32.mrf.mxu0
        %v5711 = vadd.f32 %v5528, %v5710
        %5712 = vmatmul.f32.gmra.mxu0 %v5445
        %v5713 = vpop.f32.mrf.mxu0
        %v5714 = vadd.f32 %v5533, %v5713
        %5715 = vdwg.mxu0
        %5716 = vmatpush.msra.mxu0 0.0
        %5717 = vmatpush.msra.mxu0 0.0
        %5718 = vmatpush.msra.mxu0 0.0
        %5719 = vmatpush.msra.mxu0 0.0
        %5720 = vmatpush.msra.mxu0 0.0
        %5721 = vmatpush.msra.mxu0 0.0
        %5722 = vmatpush.msra.mxu0 0.0
        %5723 = vmatpush.msra.mxu0 0.0
        %5724 = vmatpush.msra.mxu0 0.0
        %5725 = vmatpush.msra.mxu0 0.0
        %5726 = vmatpush.msra.mxu0 0.0
        %5727 = vmatpush.msra.mxu0 0.0
        %5728 = vmatpush.msra.mxu0 0.0
        %5729 = vmatpush.msra.mxu0 %v5553
        %5730 = vmatpush.msra.mxu0 %v5518
        %5731 = vmatpush.msra.mxu0 %v5514
        %5732 = vmatmul.f32.gmra.mxu0 %v5537
        %v5733 = vpop.f32.mrf.mxu0
        %v5734 = vadd.f32 %v5711, %v5733
        %5735 = vmatmul.f32.gmra.mxu0 %v5540
        %v5736 = vpop.f32.mrf.mxu0
        %v5737 = vadd.f32 %v5714, %v5736
        %5738 = vdwg.mxu0
        %v5739 = vmax.f32 %v5596, 0.0
        %v5740 = vmax.f32 %v5642, 0.0
        %v5741 = vmax.f32 %v5688, 0.0
        %v5742 = vmax.f32 %v5734, 0.0
        %v5743 = vmax.f32 %v5599, 0.0
        %v5744 = vmax.f32 %v5645, 0.0
        %v5745 = vmax.f32 %v5691, 0.0
        %v5746 = vmax.f32 %v5737, 0.0
        %5753 = vrot.lane.b32.xlu0 %v5739, 127
        %v5754 = vpop.permute.xlu0 %5753
        %5755 = vrot.lane.b32.xlu0 %v5740, 127
        %v5756 = vpop.permute.xlu0 %5755
        %5757 = vrot.lane.b32.xlu0 %v5741, 127
        %v5758 = vpop.permute.xlu0 %5757
        %5759 = vrot.lane.b32.xlu0 %v5743, 127
        %v5760 = vpop.permute.xlu0 %5759
        %5761 = vrot.lane.b32.xlu0 %v5744, 127
        %v5762 = vpop.permute.xlu0 %5761
        %5763 = vrot.lane.b32.xlu0 %v5745, 127
        %v5764 = vpop.permute.xlu0 %5763
        %v5765 = vsel %vm635, %v5754, %v5756
        %v5766 = vsel %vm635, %v5756, %v5758
        %v5767 = vsel %vm635, %v5760, %v5762
        %v5768 = vsel %vm635, %v5762, %v5764
        %v5775 = vmax.f32 %v5739, %v5765
        %v5776 = vmax.f32 %v5740, %v5766
        %v5777 = vmax.f32 %v5741, %v5758
        %v5778 = vmax.f32 %v5743, %v5767
        %v5779 = vmax.f32 %v5744, %v5768
        %v5780 = vmax.f32 %v5745, %v5764
        %5783 = vrot.lane.b32.xlu0 %v5742, 127
        %v5784 = vpop.permute.xlu0 %5783
        %5785 = vrot.lane.b32.xlu0 %v5746, 127
        %v5786 = vpop.permute.xlu0 %5785
        %v5787 = vsel %vm635, %v5758, %v5784
        %v5788 = vsel %vm635, %v5764, %v5786
        %v5793 = vmax.f32 %v5741, %v5787
        %v5794 = vmax.f32 %v5742, %v5784
        %v5795 = vmax.f32 %v5745, %v5788
        %v5796 = vmax.f32 %v5746, %v5786
        %5805 = vrot.lane.b32.xlu0 %v5775, 108
        %v5806 = vpop.permute.xlu0 %5805
        %5807 = vrot.lane.b32.xlu0 %v5776, 108
        %v5808 = vpop.permute.xlu0 %5807
        %5809 = vrot.lane.b32.xlu0 %v5793, 108
        %v5810 = vpop.permute.xlu0 %5809
        %5811 = vrot.lane.b32.xlu0 %v5794, 108
        %v5812 = vpop.permute.xlu0 %5811
        %5813 = vrot.lane.b32.xlu0 %v5778, 108
        %v5814 = vpop.permute.xlu0 %5813
        %5815 = vrot.lane.b32.xlu0 %v5779, 108
        %v5816 = vpop.permute.xlu0 %5815
        %5817 = vrot.lane.b32.xlu0 %v5795, 108
        %v5818 = vpop.permute.xlu0 %5817
        %5819 = vrot.lane.b32.xlu0 %v5796, 108
        %v5820 = vpop.permute.xlu0 %5819
        %v5821 = vsel %vm2901, %v5806, %v5808
        %v5822 = vsel %vm2901, %v5808, %v5810
        %v5823 = vsel %vm2901, %v5810, %v5812
        %v5824 = vsel %vm2901, %v5814, %v5816
        %v5825 = vsel %vm2901, %v5816, %v5818
        %v5826 = vsel %vm2901, %v5818, %v5820
        %v5833 = vmax.f32 %v5775, %v5821
        %v5834 = vmax.f32 %v5776, %v5822
        %v5835 = vmax.f32 %v5777, %v5823
        %v5836 = vmax.f32 %v5778, %v5824
        %v5837 = vmax.f32 %v5779, %v5825
        %v5838 = vmax.f32 %v5780, %v5826
        %v5839 = vld [vmem:[#allocation7] sm:$0xff]
        %v5840 = vld [vmem:[#allocation7 + $0x8] sm:$0xff]
        %v5841 = vld [vmem:[#allocation7 + $0x10] sm:$0xff]
        %v5842 = vld [vmem:[#allocation7 + $0x18] sm:$0xff]
        %v5843 = vld [vmem:[#allocation7 + $0x20] sm:$0xff]
        %v5844 = vld [vmem:[#allocation7 + $0x28] sm:$0xff]
        %v5845 = vld [vmem:[#allocation7 + $0x30] sm:$0xff]
        %v5846 = vld [vmem:[#allocation7 + $0x38] sm:$0xff]
        %v5847 = vld [vmem:[#allocation7 + $0x40] sm:$0xff]
        %v5848 = vld [vmem:[#allocation7 + $0x48] sm:$0xff]
        %v5849 = vld [vmem:[#allocation7 + $0x50] sm:$0xff]
        %v5850 = vld [vmem:[#allocation7 + $0x58] sm:$0xff]
        %v5851 = vld [vmem:[#allocation7 + $0x60] sm:$0xff]
        %v5852 = vld [vmem:[#allocation7 + $0x68] sm:$0xff]
        %v5853 = vld [vmem:[#allocation7 + $0x70] sm:$0xff]
        %v5854 = vld [vmem:[#allocation7 + $0x78] sm:$0xff]
        %v5855 = vld [vmem:[#allocation7 + $0x80] sm:$0xff]
        %v5856 = vld [vmem:[#allocation7 + $0x88] sm:$0xff]
        %v5857 = vld [vmem:[#allocation7 + $0x90] sm:$0xff]
        %v5858 = vld [vmem:[#allocation7 + $0x98] sm:$0xff]
        %v5859 = vld [vmem:[#allocation7 + $0xa0] sm:$0xff]
        %v5860 = vld [vmem:[#allocation7 + $0xa8] sm:$0xff]
        %v5861 = vld [vmem:[#allocation7 + $0xb0] sm:$0xff]
        %v5862 = vld [vmem:[#allocation7 + $0xb8] sm:$0xff]
        %v5863 = vld [vmem:[#allocation7 + $0xc0] sm:$0xff]
        %v5864 = vld [vmem:[#allocation7 + $0xc8] sm:$0xff]
        %v5865 = vld [vmem:[#allocation7 + $0xd0] sm:$0xff]
        %v5866 = vld [vmem:[#allocation7 + $0xd8] sm:$0xff]
        %v5867 = vld [vmem:[#allocation7 + $0xe0] sm:$0xff]
        %v5868 = vld [vmem:[#allocation7 + $0xe8] sm:$0xff]
        %v5869 = vld [vmem:[#allocation7 + $0xf0] sm:$0xff]
        %v5870 = vld [vmem:[#allocation7 + $0xf8] sm:$0xff]
        %v5871 = vld [vmem:[#allocation7 + $0x100] sm:$0xff]
        %v5872 = vld [vmem:[#allocation7 + $0x108] sm:$0xff]
        %v5873 = vld [vmem:[#allocation7 + $0x110] sm:$0xff]
        %v5874 = vld [vmem:[#allocation7 + $0x118] sm:$0xff]
        %v5875 = vld [vmem:[#allocation7 + $0x120] sm:$0xff]
        %v5876 = vld [vmem:[#allocation7 + $0x128] sm:$0xff]
        %v5877 = vld [vmem:[#allocation7 + $0x130] sm:$0xff]
        %v5878 = vld [vmem:[#allocation7 + $0x138] sm:$0xff]
        %v5879 = vld [vmem:[#allocation7 + $0x140] sm:$0xff]
        %v5880 = vld [vmem:[#allocation7 + $0x148] sm:$0xff]
        %v5881 = vld [vmem:[#allocation7 + $0x150] sm:$0xff]
        %v5882 = vld [vmem:[#allocation7 + $0x158] sm:$0xff]
        %v5883 = vld [vmem:[#allocation7 + $0x160] sm:$0xff]
        %v5884 = vld [vmem:[#allocation7 + $0x168] sm:$0xff]
        %v5885 = vld [vmem:[#allocation7 + $0x170] sm:$0xff]
        %v5886 = vld [vmem:[#allocation7 + $0x178] sm:$0x7]
        %vm5887 = vcmask 1006592
        %v5889 = vsel %vm5887, %v5835, 0
        %v5892 = vsel %vm5887, %v5838, 0
        %v5895 = vsel %vm3055, %v5886, 0
        %5897 = vmatpush.msra.mxu0 %v5854
        %5898 = vmatpush.msra.mxu0 %v5853
        %5899 = vmatpush.msra.mxu0 %v5852
        %5900 = vmatpush.msra.mxu0 %v5851
        %5901 = vmatpush.msra.mxu0 %v5850
        %5902 = vmatpush.msra.mxu0 %v5849
        %5903 = vmatpush.msra.mxu0 %v5848
        %5904 = vmatpush.msra.mxu0 %v5847
        %5905 = vmatpush.msra.mxu0 %v5846
        %5906 = vmatpush.msra.mxu0 %v5845
        %5907 = vmatpush.msra.mxu0 %v5844
        %5908 = vmatpush.msra.mxu0 %v5843
        %5909 = vmatpush.msra.mxu0 %v5842
        %5910 = vmatpush.msra.mxu0 %v5841
        %5911 = vmatpush.msra.mxu0 %v5840
        %5912 = vmatpush.msra.mxu0 %v5839
        %5913 = vmatmul.f32.gmra.mxu0 %v5833
        %v5914 = vpop.f32.mrf.mxu0
        %v5915 = vadd.f32 0.0, %v5914
        %5916 = vmatmul.f32.gmra.mxu0 %v5836
        %v5917 = vpop.f32.mrf.mxu0
        %v5918 = vadd.f32 0.0, %v5917
        %5919 = vdwg.mxu0
        %5920 = vmatpush.msra.mxu0 %v5870
        %5921 = vmatpush.msra.mxu0 %v5869
        %5922 = vmatpush.msra.mxu0 %v5868
        %5923 = vmatpush.msra.mxu0 %v5867
        %5924 = vmatpush.msra.mxu0 %v5866
        %5925 = vmatpush.msra.mxu0 %v5865
        %5926 = vmatpush.msra.mxu0 %v5864
        %5927 = vmatpush.msra.mxu0 %v5863
        %5928 = vmatpush.msra.mxu0 %v5862
        %5929 = vmatpush.msra.mxu0 %v5861
        %5930 = vmatpush.msra.mxu0 %v5860
        %5931 = vmatpush.msra.mxu0 %v5859
        %5932 = vmatpush.msra.mxu0 %v5858
        %5933 = vmatpush.msra.mxu0 %v5857
        %5934 = vmatpush.msra.mxu0 %v5856
        %5935 = vmatpush.msra.mxu0 %v5855
        %5936 = vmatmul.f32.gmra.mxu0 %v5834
        %v5937 = vpop.f32.mrf.mxu0
        %v5938 = vadd.f32 %v5915, %v5937
        %5939 = vmatmul.f32.gmra.mxu0 %v5837
        %v5940 = vpop.f32.mrf.mxu0
        %v5941 = vadd.f32 %v5918, %v5940
        %5942 = vdwg.mxu0
        %5943 = vmatpush.msra.mxu0 %v5895
        %5944 = vmatpush.msra.mxu0 %v5885
        %5945 = vmatpush.msra.mxu0 %v5884
        %5946 = vmatpush.msra.mxu0 %v5883
        %5947 = vmatpush.msra.mxu0 %v5882
        %5948 = vmatpush.msra.mxu0 %v5881
        %5949 = vmatpush.msra.mxu0 %v5880
        %5950 = vmatpush.msra.mxu0 %v5879
        %5951 = vmatpush.msra.mxu0 %v5878
        %5952 = vmatpush.msra.mxu0 %v5877
        %5953 = vmatpush.msra.mxu0 %v5876
        %5954 = vmatpush.msra.mxu0 %v5875
        %5955 = vmatpush.msra.mxu0 %v5874
        %5956 = vmatpush.msra.mxu0 %v5873
        %5957 = vmatpush.msra.mxu0 %v5872
        %5958 = vmatpush.msra.mxu0 %v5871
        %5959 = vmatmul.f32.gmra.mxu0 %v5889
        %v5960 = vpop.f32.mrf.mxu0
        %v5961 = vadd.f32 %v5938, %v5960
        %5962 = vmatmul.f32.gmra.mxu0 %v5892
        %v5963 = vpop.f32.mrf.mxu0
        %v5964 = vadd.f32 %v5941, %v5963
        %5965 = vdwg.mxu0
        %v5966 = vld [vmem:[#allocation9] sm:$0x1]
        %v5967 = vld [vmem:[%s7] sm:$0xff]
        %v5968 = vld [vmem:[%s7 + $0x8] sm:$0xff]
        %v5969 = vld [vmem:[%s7 + $0x10] sm:$0xff]
        %v5970 = vld [vmem:[%s7 + $0x18] sm:$0xff]
        %v5971 = vld [vmem:[%s7 + $0x20] sm:$0xff]
        %v5972 = vld [vmem:[%s7 + $0x28] sm:$0xff]
        %v5973 = vld [vmem:[%s7 + $0x30] sm:$0xff]
        %v5974 = vld [vmem:[%s7 + $0x38] sm:$0xff]
        %v5976 = vsel %vm5323, %v5961, 0
        %5978 = vmatpush.msra.mxu0 0.0
        %5979 = vmatpush.msra.mxu0 0.0
        %5980 = vmatpush.msra.mxu0 0.0
        %5981 = vmatpush.msra.mxu0 0.0
        %5982 = vmatpush.msra.mxu0 0.0
        %5983 = vmatpush.msra.mxu0 0.0
        %5984 = vmatpush.msra.mxu0 0.0
        %5985 = vmatpush.msra.mxu0 0.0
        %5986 = vmatpush.msra.mxu0 %v5974
        %5987 = vmatpush.msra.mxu0 %v5973
        %5988 = vmatpush.msra.mxu0 %v5972
        %5989 = vmatpush.msra.mxu0 %v5971
        %5990 = vmatpush.msra.mxu0 %v5970
        %5991 = vmatpush.msra.mxu0 %v5969
        %5992 = vmatpush.msra.mxu0 %v5968
        %5993 = vmatpush.msra.mxu0 %v5967
        %5994 = vmatmul.f32.gmra.mxu0 %v5976
        %v5995 = vpop.f32.mrf.mxu0
        %v5996 = vadd.f32 0.0, %v5995
        %5997 = vdwg.mxu0
        %v5998 = vadd.f32 %v5966, %v5996
        %s5999 = scalar_lea.vmem %s7, 64
        %v6000 = vld [vmem:[%s5999] sm:$0xff]
        %v6001 = vld [vmem:[%s5999 + $0x8] sm:$0xff]
        %v6002 = vld [vmem:[%s5999 + $0x10] sm:$0xff]
        %v6003 = vld [vmem:[%s5999 + $0x18] sm:$0xff]
        %v6004 = vld [vmem:[%s5999 + $0x20] sm:$0xff]
        %v6005 = vld [vmem:[%s5999 + $0x28] sm:$0xff]
        %v6006 = vld [vmem:[%s5999 + $0x30] sm:$0xff]
        %v6007 = vld [vmem:[%s5999 + $0x38] sm:$0xff]
        %v6008 = vrot.slane %v5961, 1
        %v6009 = vsel %vm5323, %v6008, 0
        %6011 = vmatpush.msra.mxu0 0.0
        %6012 = vmatpush.msra.mxu0 0.0
        %6013 = vmatpush.msra.mxu0 0.0
        %6014 = vmatpush.msra.mxu0 0.0
        %6015 = vmatpush.msra.mxu0 0.0
        %6016 = vmatpush.msra.mxu0 0.0
        %6017 = vmatpush.msra.mxu0 0.0
        %6018 = vmatpush.msra.mxu0 0.0
        %6019 = vmatpush.msra.mxu0 %v6007
        %6020 = vmatpush.msra.mxu0 %v6006
        %6021 = vmatpush.msra.mxu0 %v6005
        %6022 = vmatpush.msra.mxu0 %v6004
        %6023 = vmatpush.msra.mxu0 %v6003
        %6024 = vmatpush.msra.mxu0 %v6002
        %6025 = vmatpush.msra.mxu0 %v6001
        %6026 = vmatpush.msra.mxu0 %v6000
        %6027 = vmatmul.f32.gmra.mxu0 %v6009
        %v6028 = vpop.f32.mrf.mxu0
        %v6029 = vadd.f32 0.0, %v6028
        %6030 = vdwg.mxu0
        %v6031 = vadd.f32 %v5998, %v6029
        %s6032 = scalar_lea.vmem %s7, 128
        %v6033 = vld [vmem:[%s6032] sm:$0xff]
        %v6034 = vld [vmem:[%s6032 + $0x8] sm:$0xff]
        %v6035 = vld [vmem:[%s6032 + $0x10] sm:$0xff]
        %v6036 = vld [vmem:[%s6032 + $0x18] sm:$0xff]
        %v6037 = vld [vmem:[%s6032 + $0x20] sm:$0xff]
        %v6038 = vld [vmem:[%s6032 + $0x28] sm:$0xff]
        %v6039 = vld [vmem:[%s6032 + $0x30] sm:$0xff]
        %v6040 = vld [vmem:[%s6032 + $0x38] sm:$0xff]
        %v6041 = vrot.slane %v5961, 2
        %v6042 = vsel %vm5323, %v6041, 0
        %6044 = vmatpush.msra.mxu0 0.0
        %6045 = vmatpush.msra.mxu0 0.0
        %6046 = vmatpush.msra.mxu0 0.0
        %6047 = vmatpush.msra.mxu0 0.0
        %6048 = vmatpush.msra.mxu0 0.0
        %6049 = vmatpush.msra.mxu0 0.0
        %6050 = vmatpush.msra.mxu0 0.0
        %6051 = vmatpush.msra.mxu0 0.0
        %6052 = vmatpush.msra.mxu0 %v6040
        %6053 = vmatpush.msra.mxu0 %v6039
        %6054 = vmatpush.msra.mxu0 %v6038
        %6055 = vmatpush.msra.mxu0 %v6037
        %6056 = vmatpush.msra.mxu0 %v6036
        %6057 = vmatpush.msra.mxu0 %v6035
        %6058 = vmatpush.msra.mxu0 %v6034
        %6059 = vmatpush.msra.mxu0 %v6033
        %6060 = vmatmul.f32.gmra.mxu0 %v6042
        %v6061 = vpop.f32.mrf.mxu0
        %v6062 = vadd.f32 0.0, %v6061
        %6063 = vdwg.mxu0
        %v6064 = vadd.f32 %v6031, %v6062
        %s6065 = scalar_lea.vmem %s7, 192
        %v6066 = vld [vmem:[%s6065] sm:$0xff]
        %v6067 = vld [vmem:[%s6065 + $0x8] sm:$0xff]
        %v6068 = vld [vmem:[%s6065 + $0x10] sm:$0xff]
        %v6069 = vld [vmem:[%s6065 + $0x18] sm:$0xff]
        %v6070 = vld [vmem:[%s6065 + $0x20] sm:$0xff]
        %v6071 = vld [vmem:[%s6065 + $0x28] sm:$0xff]
        %v6072 = vld [vmem:[%s6065 + $0x30] sm:$0xff]
        %v6073 = vld [vmem:[%s6065 + $0x38] sm:$0xff]
        %v6074 = vrot.slane %v5961, 3
        %v6075 = vsel %vm5323, %v6074, 0
        %6077 = vmatpush.msra.mxu0 0.0
        %6078 = vmatpush.msra.mxu0 0.0
        %6079 = vmatpush.msra.mxu0 0.0
        %6080 = vmatpush.msra.mxu0 0.0
        %6081 = vmatpush.msra.mxu0 0.0
        %6082 = vmatpush.msra.mxu0 0.0
        %6083 = vmatpush.msra.mxu0 0.0
        %6084 = vmatpush.msra.mxu0 0.0
        %6085 = vmatpush.msra.mxu0 %v6073
        %6086 = vmatpush.msra.mxu0 %v6072
        %6087 = vmatpush.msra.mxu0 %v6071
        %6088 = vmatpush.msra.mxu0 %v6070
        %6089 = vmatpush.msra.mxu0 %v6069
        %6090 = vmatpush.msra.mxu0 %v6068
        %6091 = vmatpush.msra.mxu0 %v6067
        %6092 = vmatpush.msra.mxu0 %v6066
        %6093 = vmatmul.f32.gmra.mxu0 %v6075
        %v6094 = vpop.f32.mrf.mxu0
        %v6095 = vadd.f32 0.0, %v6094
        %6096 = vdwg.mxu0
        %v6097 = vadd.f32 %v6064, %v6095
        %s6098 = scalar_lea.vmem %s7, 256
        %v6099 = vld [vmem:[%s6098] sm:$0xff]
        %v6100 = vld [vmem:[%s6098 + $0x8] sm:$0xff]
        %v6101 = vld [vmem:[%s6098 + $0x10] sm:$0xff]
        %v6102 = vld [vmem:[%s6098 + $0x18] sm:$0xff]
        %v6103 = vld [vmem:[%s6098 + $0x20] sm:$0xff]
        %v6104 = vld [vmem:[%s6098 + $0x28] sm:$0xff]
        %v6105 = vld [vmem:[%s6098 + $0x30] sm:$0xff]
        %v6106 = vld [vmem:[%s6098 + $0x38] sm:$0xff]
        %v6107 = vrot.slane %v5961, 4
        %v6108 = vsel %vm5323, %v6107, 0
        %6110 = vmatpush.msra.mxu0 0.0
        %6111 = vmatpush.msra.mxu0 0.0
        %6112 = vmatpush.msra.mxu0 0.0
        %6113 = vmatpush.msra.mxu0 0.0
        %6114 = vmatpush.msra.mxu0 0.0
        %6115 = vmatpush.msra.mxu0 0.0
        %6116 = vmatpush.msra.mxu0 0.0
        %6117 = vmatpush.msra.mxu0 0.0
        %6118 = vmatpush.msra.mxu0 %v6106
        %6119 = vmatpush.msra.mxu0 %v6105
        %6120 = vmatpush.msra.mxu0 %v6104
        %6121 = vmatpush.msra.mxu0 %v6103
        %6122 = vmatpush.msra.mxu0 %v6102
        %6123 = vmatpush.msra.mxu0 %v6101
        %6124 = vmatpush.msra.mxu0 %v6100
        %6125 = vmatpush.msra.mxu0 %v6099
        %6126 = vmatmul.f32.gmra.mxu0 %v6108
        %v6127 = vpop.f32.mrf.mxu0
        %v6128 = vadd.f32 0.0, %v6127
        %6129 = vdwg.mxu0
        %v6130 = vadd.f32 %v6097, %v6128
        %s6131 = scalar_lea.vmem %s7, 320
        %v6132 = vld [vmem:[%s6131] sm:$0xff]
        %v6133 = vld [vmem:[%s6131 + $0x8] sm:$0xff]
        %v6134 = vld [vmem:[%s6131 + $0x10] sm:$0xff]
        %v6135 = vld [vmem:[%s6131 + $0x18] sm:$0xff]
        %v6136 = vld [vmem:[%s6131 + $0x20] sm:$0xff]
        %v6137 = vld [vmem:[%s6131 + $0x28] sm:$0xff]
        %v6138 = vld [vmem:[%s6131 + $0x30] sm:$0xff]
        %v6139 = vld [vmem:[%s6131 + $0x38] sm:$0xff]
        %v6140 = vrot.slane %v5961, 5
        %v6141 = vsel %vm5323, %v6140, 0
        %6143 = vmatpush.msra.mxu0 0.0
        %6144 = vmatpush.msra.mxu0 0.0
        %6145 = vmatpush.msra.mxu0 0.0
        %6146 = vmatpush.msra.mxu0 0.0
        %6147 = vmatpush.msra.mxu0 0.0
        %6148 = vmatpush.msra.mxu0 0.0
        %6149 = vmatpush.msra.mxu0 0.0
        %6150 = vmatpush.msra.mxu0 0.0
        %6151 = vmatpush.msra.mxu0 %v6139
        %6152 = vmatpush.msra.mxu0 %v6138
        %6153 = vmatpush.msra.mxu0 %v6137
        %6154 = vmatpush.msra.mxu0 %v6136
        %6155 = vmatpush.msra.mxu0 %v6135
        %6156 = vmatpush.msra.mxu0 %v6134
        %6157 = vmatpush.msra.mxu0 %v6133
        %6158 = vmatpush.msra.mxu0 %v6132
        %6159 = vmatmul.f32.gmra.mxu0 %v6141
        %v6160 = vpop.f32.mrf.mxu0
        %v6161 = vadd.f32 0.0, %v6160
        %6162 = vdwg.mxu0
        %v6163 = vadd.f32 %v6130, %v6161
        %s6164 = scalar_lea.vmem %s7, 384
        %v6165 = vld [vmem:[%s6164] sm:$0xff]
        %v6166 = vld [vmem:[%s6164 + $0x8] sm:$0xff]
        %v6167 = vld [vmem:[%s6164 + $0x10] sm:$0xff]
        %v6168 = vld [vmem:[%s6164 + $0x18] sm:$0xff]
        %v6169 = vld [vmem:[%s6164 + $0x20] sm:$0xff]
        %v6170 = vld [vmem:[%s6164 + $0x28] sm:$0xff]
        %v6171 = vld [vmem:[%s6164 + $0x30] sm:$0xff]
        %v6172 = vld [vmem:[%s6164 + $0x38] sm:$0xff]
        %v6173 = vrot.slane %v5961, 6
        %v6174 = vsel %vm5323, %v6173, 0
        %6176 = vmatpush.msra.mxu0 0.0
        %6177 = vmatpush.msra.mxu0 0.0
        %6178 = vmatpush.msra.mxu0 0.0
        %6179 = vmatpush.msra.mxu0 0.0
        %6180 = vmatpush.msra.mxu0 0.0
        %6181 = vmatpush.msra.mxu0 0.0
        %6182 = vmatpush.msra.mxu0 0.0
        %6183 = vmatpush.msra.mxu0 0.0
        %6184 = vmatpush.msra.mxu0 %v6172
        %6185 = vmatpush.msra.mxu0 %v6171
        %6186 = vmatpush.msra.mxu0 %v6170
        %6187 = vmatpush.msra.mxu0 %v6169
        %6188 = vmatpush.msra.mxu0 %v6168
        %6189 = vmatpush.msra.mxu0 %v6167
        %6190 = vmatpush.msra.mxu0 %v6166
        %6191 = vmatpush.msra.mxu0 %v6165
        %6192 = vmatmul.f32.gmra.mxu0 %v6174
        %v6193 = vpop.f32.mrf.mxu0
        %v6194 = vadd.f32 0.0, %v6193
        %6195 = vdwg.mxu0
        %v6196 = vadd.f32 %v6163, %v6194
        %s6197 = scalar_lea.vmem %s7, 448
        %v6198 = vld [vmem:[%s6197] sm:$0xff]
        %v6199 = vld [vmem:[%s6197 + $0x8] sm:$0xff]
        %v6200 = vld [vmem:[%s6197 + $0x10] sm:$0xff]
        %v6201 = vld [vmem:[%s6197 + $0x18] sm:$0xff]
        %v6202 = vld [vmem:[%s6197 + $0x20] sm:$0xff]
        %v6203 = vld [vmem:[%s6197 + $0x28] sm:$0xff]
        %v6204 = vld [vmem:[%s6197 + $0x30] sm:$0xff]
        %v6205 = vld [vmem:[%s6197 + $0x38] sm:$0xff]
        %v6206 = vrot.slane %v5961, 7
        %v6207 = vsel %vm5323, %v6206, 0
        %6209 = vmatpush.msra.mxu0 0.0
        %6210 = vmatpush.msra.mxu0 0.0
        %6211 = vmatpush.msra.mxu0 0.0
        %6212 = vmatpush.msra.mxu0 0.0
        %6213 = vmatpush.msra.mxu0 0.0
        %6214 = vmatpush.msra.mxu0 0.0
        %6215 = vmatpush.msra.mxu0 0.0
        %6216 = vmatpush.msra.mxu0 0.0
        %6217 = vmatpush.msra.mxu0 %v6205
        %6218 = vmatpush.msra.mxu0 %v6204
        %6219 = vmatpush.msra.mxu0 %v6203
        %6220 = vmatpush.msra.mxu0 %v6202
        %6221 = vmatpush.msra.mxu0 %v6201
        %6222 = vmatpush.msra.mxu0 %v6200
        %6223 = vmatpush.msra.mxu0 %v6199
        %6224 = vmatpush.msra.mxu0 %v6198
        %6225 = vmatmul.f32.gmra.mxu0 %v6207
        %v6226 = vpop.f32.mrf.mxu0
        %v6227 = vadd.f32 0.0, %v6226
        %6228 = vdwg.mxu0
        %v6229 = vadd.f32 %v6196, %v6227
        %s6230 = scalar_lea.vmem %s7, 512
        %v6231 = vld [vmem:[%s6230] sm:$0xff]
        %v6232 = vld [vmem:[%s6230 + $0x8] sm:$0xff]
        %v6233 = vld [vmem:[%s6230 + $0x10] sm:$0xff]
        %v6234 = vld [vmem:[%s6230 + $0x18] sm:$0xff]
        %v6235 = vld [vmem:[%s6230 + $0x20] sm:$0xff]
        %v6236 = vld [vmem:[%s6230 + $0x28] sm:$0xff]
        %v6237 = vld [vmem:[%s6230 + $0x30] sm:$0xff]
        %v6238 = vld [vmem:[%s6230 + $0x38] sm:$0xff]
        %v6240 = vsel %vm5323, %v5964, 0
        %6242 = vmatpush.msra.mxu0 0.0
        %6243 = vmatpush.msra.mxu0 0.0
        %6244 = vmatpush.msra.mxu0 0.0
        %6245 = vmatpush.msra.mxu0 0.0
        %6246 = vmatpush.msra.mxu0 0.0
        %6247 = vmatpush.msra.mxu0 0.0
        %6248 = vmatpush.msra.mxu0 0.0
        %6249 = vmatpush.msra.mxu0 0.0
        %6250 = vmatpush.msra.mxu0 %v6238
        %6251 = vmatpush.msra.mxu0 %v6237
        %6252 = vmatpush.msra.mxu0 %v6236
        %6253 = vmatpush.msra.mxu0 %v6235
        %6254 = vmatpush.msra.mxu0 %v6234
        %6255 = vmatpush.msra.mxu0 %v6233
        %6256 = vmatpush.msra.mxu0 %v6232
        %6257 = vmatpush.msra.mxu0 %v6231
        %6258 = vmatmul.f32.gmra.mxu0 %v6240
        %v6259 = vpop.f32.mrf.mxu0
        %v6260 = vadd.f32 0.0, %v6259
        %6261 = vdwg.mxu0
        %v6262 = vadd.f32 %v6229, %v6260
        %s6263 = scalar_lea.vmem %s7, 576
        %v6264 = vld [vmem:[%s6263] sm:$0xff]
        %v6265 = vld [vmem:[%s6263 + $0x8] sm:$0xff]
        %v6266 = vld [vmem:[%s6263 + $0x10] sm:$0xff]
        %v6267 = vld [vmem:[%s6263 + $0x18] sm:$0xff]
        %v6268 = vld [vmem:[%s6263 + $0x20] sm:$0xff]
        %v6269 = vld [vmem:[%s6263 + $0x28] sm:$0xff]
        %v6270 = vld [vmem:[%s6263 + $0x30] sm:$0xff]
        %v6271 = vld [vmem:[%s6263 + $0x38] sm:$0xff]
        %v6272 = vrot.slane %v5964, 1
        %v6273 = vsel %vm5323, %v6272, 0
        %6275 = vmatpush.msra.mxu0 0.0
        %6276 = vmatpush.msra.mxu0 0.0
        %6277 = vmatpush.msra.mxu0 0.0
        %6278 = vmatpush.msra.mxu0 0.0
        %6279 = vmatpush.msra.mxu0 0.0
        %6280 = vmatpush.msra.mxu0 0.0
        %6281 = vmatpush.msra.mxu0 0.0
        %6282 = vmatpush.msra.mxu0 0.0
        %6283 = vmatpush.msra.mxu0 %v6271
        %6284 = vmatpush.msra.mxu0 %v6270
        %6285 = vmatpush.msra.mxu0 %v6269
        %6286 = vmatpush.msra.mxu0 %v6268
        %6287 = vmatpush.msra.mxu0 %v6267
        %6288 = vmatpush.msra.mxu0 %v6266
        %6289 = vmatpush.msra.mxu0 %v6265
        %6290 = vmatpush.msra.mxu0 %v6264
        %6291 = vmatmul.f32.gmra.mxu0 %v6273
        %v6292 = vpop.f32.mrf.mxu0
        %v6293 = vadd.f32 0.0, %v6292
        %6294 = vdwg.mxu0
        %v6295 = vadd.f32 %v6262, %v6293
        %s6296 = scalar_lea.vmem %s7, 640
        %v6297 = vld [vmem:[%s6296] sm:$0xff]
        %v6298 = vld [vmem:[%s6296 + $0x8] sm:$0xff]
        %v6299 = vld [vmem:[%s6296 + $0x10] sm:$0xff]
        %v6300 = vld [vmem:[%s6296 + $0x18] sm:$0xff]
        %v6301 = vld [vmem:[%s6296 + $0x20] sm:$0xff]
        %v6302 = vld [vmem:[%s6296 + $0x28] sm:$0xff]
        %v6303 = vld [vmem:[%s6296 + $0x30] sm:$0xff]
        %v6304 = vld [vmem:[%s6296 + $0x38] sm:$0xff]
        %v6305 = vrot.slane %v5964, 2
        %v6306 = vsel %vm5323, %v6305, 0
        %6308 = vmatpush.msra.mxu0 0.0
        %6309 = vmatpush.msra.mxu0 0.0
        %6310 = vmatpush.msra.mxu0 0.0
        %6311 = vmatpush.msra.mxu0 0.0
        %6312 = vmatpush.msra.mxu0 0.0
        %6313 = vmatpush.msra.mxu0 0.0
        %6314 = vmatpush.msra.mxu0 0.0
        %6315 = vmatpush.msra.mxu0 0.0
        %6316 = vmatpush.msra.mxu0 %v6304
        %6317 = vmatpush.msra.mxu0 %v6303
        %6318 = vmatpush.msra.mxu0 %v6302
        %6319 = vmatpush.msra.mxu0 %v6301
        %6320 = vmatpush.msra.mxu0 %v6300
        %6321 = vmatpush.msra.mxu0 %v6299
        %6322 = vmatpush.msra.mxu0 %v6298
        %6323 = vmatpush.msra.mxu0 %v6297
        %6324 = vmatmul.f32.gmra.mxu0 %v6306
        %v6325 = vpop.f32.mrf.mxu0
        %v6326 = vadd.f32 0.0, %v6325
        %6327 = vdwg.mxu0
        %v6328 = vadd.f32 %v6295, %v6326
        %s6329 = scalar_lea.vmem %s7, 704
        %v6330 = vld [vmem:[%s6329] sm:$0xff]
        %v6331 = vld [vmem:[%s6329 + $0x8] sm:$0xff]
        %v6332 = vld [vmem:[%s6329 + $0x10] sm:$0xff]
        %v6333 = vld [vmem:[%s6329 + $0x18] sm:$0xff]
        %v6334 = vld [vmem:[%s6329 + $0x20] sm:$0xff]
        %v6335 = vld [vmem:[%s6329 + $0x28] sm:$0xff]
        %v6336 = vld [vmem:[%s6329 + $0x30] sm:$0xff]
        %v6337 = vld [vmem:[%s6329 + $0x38] sm:$0xff]
        %v6338 = vrot.slane %v5964, 3
        %v6339 = vsel %vm5323, %v6338, 0
        %6341 = vmatpush.msra.mxu0 0.0
        %6342 = vmatpush.msra.mxu0 0.0
        %6343 = vmatpush.msra.mxu0 0.0
        %6344 = vmatpush.msra.mxu0 0.0
        %6345 = vmatpush.msra.mxu0 0.0
        %6346 = vmatpush.msra.mxu0 0.0
        %6347 = vmatpush.msra.mxu0 0.0
        %6348 = vmatpush.msra.mxu0 0.0
        %6349 = vmatpush.msra.mxu0 %v6337
        %6350 = vmatpush.msra.mxu0 %v6336
        %6351 = vmatpush.msra.mxu0 %v6335
        %6352 = vmatpush.msra.mxu0 %v6334
        %6353 = vmatpush.msra.mxu0 %v6333
        %6354 = vmatpush.msra.mxu0 %v6332
        %6355 = vmatpush.msra.mxu0 %v6331
        %6356 = vmatpush.msra.mxu0 %v6330
        %6357 = vmatmul.f32.gmra.mxu0 %v6339
        %v6358 = vpop.f32.mrf.mxu0
        %v6359 = vadd.f32 0.0, %v6358
        %6360 = vdwg.mxu0
        %v6361 = vadd.f32 %v6328, %v6359
        %s6362 = scalar_lea.vmem %s7, 768
        %v6363 = vld [vmem:[%s6362] sm:$0xff]
        %v6364 = vld [vmem:[%s6362 + $0x8] sm:$0xff]
        %v6365 = vld [vmem:[%s6362 + $0x10] sm:$0xff]
        %v6366 = vld [vmem:[%s6362 + $0x18] sm:$0xff]
        %v6367 = vld [vmem:[%s6362 + $0x20] sm:$0xff]
        %v6368 = vld [vmem:[%s6362 + $0x28] sm:$0xff]
        %v6369 = vld [vmem:[%s6362 + $0x30] sm:$0xff]
        %v6370 = vld [vmem:[%s6362 + $0x38] sm:$0xff]
        %v6371 = vrot.slane %v5964, 4
        %v6372 = vsel %vm5323, %v6371, 0
        %6374 = vmatpush.msra.mxu0 0.0
        %6375 = vmatpush.msra.mxu0 0.0
        %6376 = vmatpush.msra.mxu0 0.0
        %6377 = vmatpush.msra.mxu0 0.0
        %6378 = vmatpush.msra.mxu0 0.0
        %6379 = vmatpush.msra.mxu0 0.0
        %6380 = vmatpush.msra.mxu0 0.0
        %6381 = vmatpush.msra.mxu0 0.0
        %6382 = vmatpush.msra.mxu0 %v6370
        %6383 = vmatpush.msra.mxu0 %v6369
        %6384 = vmatpush.msra.mxu0 %v6368
        %6385 = vmatpush.msra.mxu0 %v6367
        %6386 = vmatpush.msra.mxu0 %v6366
        %6387 = vmatpush.msra.mxu0 %v6365
        %6388 = vmatpush.msra.mxu0 %v6364
        %6389 = vmatpush.msra.mxu0 %v6363
        %6390 = vmatmul.f32.gmra.mxu0 %v6372
        %v6391 = vpop.f32.mrf.mxu0
        %v6392 = vadd.f32 0.0, %v6391
        %6393 = vdwg.mxu0
        %v6394 = vadd.f32 %v6361, %v6392
        %s6395 = scalar_lea.vmem %s7, 832
        %v6396 = vld [vmem:[%s6395] sm:$0xff]
        %v6397 = vld [vmem:[%s6395 + $0x8] sm:$0xff]
        %v6398 = vld [vmem:[%s6395 + $0x10] sm:$0xff]
        %v6399 = vld [vmem:[%s6395 + $0x18] sm:$0xff]
        %v6400 = vld [vmem:[%s6395 + $0x20] sm:$0xff]
        %v6401 = vld [vmem:[%s6395 + $0x28] sm:$0xff]
        %v6402 = vld [vmem:[%s6395 + $0x30] sm:$0xff]
        %v6403 = vld [vmem:[%s6395 + $0x38] sm:$0xff]
        %v6404 = vrot.slane %v5964, 5
        %v6405 = vsel %vm5323, %v6404, 0
        %6407 = vmatpush.msra.mxu0 0.0
        %6408 = vmatpush.msra.mxu0 0.0
        %6409 = vmatpush.msra.mxu0 0.0
        %6410 = vmatpush.msra.mxu0 0.0
        %6411 = vmatpush.msra.mxu0 0.0
        %6412 = vmatpush.msra.mxu0 0.0
        %6413 = vmatpush.msra.mxu0 0.0
        %6414 = vmatpush.msra.mxu0 0.0
        %6415 = vmatpush.msra.mxu0 %v6403
        %6416 = vmatpush.msra.mxu0 %v6402
        %6417 = vmatpush.msra.mxu0 %v6401
        %6418 = vmatpush.msra.mxu0 %v6400
        %6419 = vmatpush.msra.mxu0 %v6399
        %6420 = vmatpush.msra.mxu0 %v6398
        %6421 = vmatpush.msra.mxu0 %v6397
        %6422 = vmatpush.msra.mxu0 %v6396
        %6423 = vmatmul.f32.gmra.mxu0 %v6405
        %v6424 = vpop.f32.mrf.mxu0
        %v6425 = vadd.f32 0.0, %v6424
        %6426 = vdwg.mxu0
        %v6427 = vadd.f32 %v6394, %v6425
        %s6428 = scalar_lea.vmem %s7, 896
        %v6429 = vld [vmem:[%s6428] sm:$0xff]
        %v6430 = vld [vmem:[%s6428 + $0x8] sm:$0xff]
        %v6431 = vld [vmem:[%s6428 + $0x10] sm:$0xff]
        %v6432 = vld [vmem:[%s6428 + $0x18] sm:$0xff]
        %v6433 = vld [vmem:[%s6428 + $0x20] sm:$0xff]
        %v6434 = vld [vmem:[%s6428 + $0x28] sm:$0xff]
        %v6435 = vld [vmem:[%s6428 + $0x30] sm:$0xff]
        %v6436 = vld [vmem:[%s6428 + $0x38] sm:$0xff]
        %v6437 = vrot.slane %v5964, 6
        %v6438 = vsel %vm5323, %v6437, 0
        %6440 = vmatpush.msra.mxu0 0.0
        %6441 = vmatpush.msra.mxu0 0.0
        %6442 = vmatpush.msra.mxu0 0.0
        %6443 = vmatpush.msra.mxu0 0.0
        %6444 = vmatpush.msra.mxu0 0.0
        %6445 = vmatpush.msra.mxu0 0.0
        %6446 = vmatpush.msra.mxu0 0.0
        %6447 = vmatpush.msra.mxu0 0.0
        %6448 = vmatpush.msra.mxu0 %v6436
        %6449 = vmatpush.msra.mxu0 %v6435
        %6450 = vmatpush.msra.mxu0 %v6434
        %6451 = vmatpush.msra.mxu0 %v6433
        %6452 = vmatpush.msra.mxu0 %v6432
        %6453 = vmatpush.msra.mxu0 %v6431
        %6454 = vmatpush.msra.mxu0 %v6430
        %6455 = vmatpush.msra.mxu0 %v6429
        %6456 = vmatmul.f32.gmra.mxu0 %v6438
        %v6457 = vpop.f32.mrf.mxu0
        %v6458 = vadd.f32 0.0, %v6457
        %6459 = vdwg.mxu0
        %v6460 = vadd.f32 %v6427, %v6458
        %s6461 = scalar_lea.vmem %s7, 960
        %v6462 = vld [vmem:[%s6461] sm:$0xff]
        %v6463 = vld [vmem:[%s6461 + $0x8] sm:$0xff]
        %v6464 = vld [vmem:[%s6461 + $0x10] sm:$0xff]
        %v6465 = vld [vmem:[%s6461 + $0x18] sm:$0xff]
        %v6466 = vld [vmem:[%s6461 + $0x20] sm:$0xff]
        %v6467 = vld [vmem:[%s6461 + $0x28] sm:$0xff]
        %v6468 = vld [vmem:[%s6461 + $0x30] sm:$0xff]
        %v6469 = vld [vmem:[%s6461 + $0x38] sm:$0xff]
        %v6470 = vrot.slane %v5964, 7
        %v6471 = vsel %vm5323, %v6470, 0
        %6473 = vmatpush.msra.mxu0 0.0
        %6474 = vmatpush.msra.mxu0 0.0
        %6475 = vmatpush.msra.mxu0 0.0
        %6476 = vmatpush.msra.mxu0 0.0
        %6477 = vmatpush.msra.mxu0 0.0
        %6478 = vmatpush.msra.mxu0 0.0
        %6479 = vmatpush.msra.mxu0 0.0
        %6480 = vmatpush.msra.mxu0 0.0
        %6481 = vmatpush.msra.mxu0 %v6469
        %6482 = vmatpush.msra.mxu0 %v6468
        %6483 = vmatpush.msra.mxu0 %v6467
        %6484 = vmatpush.msra.mxu0 %v6466
        %6485 = vmatpush.msra.mxu0 %v6465
        %6486 = vmatpush.msra.mxu0 %v6464
        %6487 = vmatpush.msra.mxu0 %v6463
        %6488 = vmatpush.msra.mxu0 %v6462
        %6489 = vmatmul.f32.gmra.mxu0 %v6471
        %v6490 = vpop.f32.mrf.mxu0
        %v6491 = vadd.f32 0.0, %v6490
        %6492 = vdwg.mxu0
        %v6493 = vadd.f32 %v6460, %v6491
        %v6494 = vmax.f32 %v6493, 0.0
        %v6495 = vld [vmem:[%s9] sm:$0xff]
        %v6496 = vld [vmem:[%s9 + $0x8] sm:$0xff]
        %v6497 = vld [vmem:[%s9 + $0x10] sm:$0xff]
        %v6498 = vld [vmem:[%s9 + $0x18] sm:$0xff]
        %v6499 = vld [vmem:[%s9 + $0x20] sm:$0xff]
        %v6500 = vld [vmem:[%s9 + $0x28] sm:$0xff]
        %v6501 = vld [vmem:[%s9 + $0x30] sm:$0xff]
        %v6502 = vld [vmem:[%s9 + $0x38] sm:$0xff]
        %v6503 = vld [vmem:[%s9 + $0x40] sm:$0xff]
        %v6504 = vld [vmem:[%s9 + $0x48] sm:$0xff]
        %v6505 = vld [vmem:[%s9 + $0x50] sm:$0xff]
        %v6506 = vld [vmem:[%s9 + $0x58] sm:$0xff]
        %v6507 = vld [vmem:[%s9 + $0x60] sm:$0xff]
        %v6508 = vld [vmem:[%s9 + $0x68] sm:$0xff]
        %v6509 = vld [vmem:[%s9 + $0x70] sm:$0xff]
        %v6510 = vld [vmem:[#allocation10] sm:$0x1]
        %vm6511 = vcmask 982016
        %v6513 = vsel %vm6511, %v6494, 0
        %6515 = vmatpush.msra.mxu0 0.0
        %6516 = vmatpush.msra.mxu0 %v6509
        %6517 = vmatpush.msra.mxu0 %v6508
        %6518 = vmatpush.msra.mxu0 %v6507
        %6519 = vmatpush.msra.mxu0 %v6506
        %6520 = vmatpush.msra.mxu0 %v6505
        %6521 = vmatpush.msra.mxu0 %v6504
        %6522 = vmatpush.msra.mxu0 %v6503
        %6523 = vmatpush.msra.mxu0 %v6502
        %6524 = vmatpush.msra.mxu0 %v6501
        %6525 = vmatpush.msra.mxu0 %v6500
        %6526 = vmatpush.msra.mxu0 %v6499
        %6527 = vmatpush.msra.mxu0 %v6498
        %6528 = vmatpush.msra.mxu0 %v6497
        %6529 = vmatpush.msra.mxu0 %v6496
        %6530 = vmatpush.msra.mxu0 %v6495
        %6531 = vmatmul.f32.gmra.mxu0 %v6513
        %v6532 = vpop.f32.mrf.mxu0
        %v6533 = vadd.f32 %v6510, %v6532
        %6534 = vdwg.mxu0
        %v6535 = vmax.f32 %v6533, 0.0
        %v6536 = vld [vmem:[%s11] sm:$0xff]
        %v6537 = vld [vmem:[%s11 + $0x8] sm:$0xff]
        %v6538 = vld [vmem:[%s11 + $0x10] sm:$0xff]
        %v6539 = vld [vmem:[%s11 + $0x18] sm:$0xff]
        %v6540 = vld [vmem:[%s11 + $0x20] sm:$0xff]
        %v6541 = vld [vmem:[%s11 + $0x28] sm:$0xff]
        %v6542 = vld [vmem:[%s11 + $0x30] sm:$0xff]
        %v6543 = vld [vmem:[%s11 + $0x38] sm:$0xff]
        %v6544 = vld [vmem:[%s11 + $0x40] sm:$0xff]
        %v6545 = vld [vmem:[%s11 + $0x48] sm:$0xff]
        %v6546 = vld [vmem:[%s11 + $0x50] sm:$0xf]
        %v6547 = vld [vmem:[#allocation12] sm:$0x1]
        %v6549 = vsel %vm5211, %v6535, 0
        %vm6551 = vcmask 1043456
        %v6553 = vsel %vm6551, %v6546, 0
        %6555 = vmatpush.msra.mxu0 0.0
        %6556 = vmatpush.msra.mxu0 0.0
        %6557 = vmatpush.msra.mxu0 0.0
        %6558 = vmatpush.msra.mxu0 0.0
        %6559 = vmatpush.msra.mxu0 0.0
        %6560 = vmatpush.msra.mxu0 %v6553
        %6561 = vmatpush.msra.mxu0 %v6545
        %6562 = vmatpush.msra.mxu0 %v6544
        %6563 = vmatpush.msra.mxu0 %v6543
        %6564 = vmatpush.msra.mxu0 %v6542
        %6565 = vmatpush.msra.mxu0 %v6541
        %6566 = vmatpush.msra.mxu0 %v6540
        %6567 = vmatpush.msra.mxu0 %v6539
        %6568 = vmatpush.msra.mxu0 %v6538
        %6569 = vmatpush.msra.mxu0 %v6537
        %6570 = vmatpush.msra.mxu0 %v6536
        %6571 = vmatmul.f32.gmra.mxu0 %v6549
        %v6572 = vpop.f32.mrf.mxu0
        %v6573 = vadd.f32 %v6547, %v6572
        %6574 = vdwg.mxu0
        %vm6575 = vcmask 73728
        %6576 = vst.msk [vmem:[%s509] sm:$0x1] %vm6575, %v6573
        %s6577 = sand.u32 %s316, 1
        %s6578 = scalar_lea.sflag [#allocation6], %s6577
        %s6579 = sand.u32 %s316, 1
        %s6580 = scalar_lea.vmem [#allocation13], %s6579
        // Predicated region
        $region93: #{net_forward.1} parent=71 // pred_check
          %p6581 = pneg %p326
        $region94: #{net_forward.1} parent=71 // pred_check_branch
          %6583 = sbr.rel (%p6581) target = $region96
        $region95: #{net_forward.1} parent=71 // pred_region
          %6585 = vsyncadd %s6578, 0
          %s6586 = scalar_lea.hbm %s13, %s30
          %s6588 = sshll.u32 %s6580, 4
          %s6589 = int_to_ptr.vmem [resolvable:$true] %s6588
          %s6590 = sshll.u32 %s6586, 4
          %s6591 = int_to_ptr.hbm [resolvable:$true] %s6590
          %6593 = dma.vmem_to_hbm [thread:$0]  %s6589, 16, %s6591, %s6578
        $region96: #{net_forward.1} parent=71 // pred_fallthru
          _
      $region72: #{net_forward.1} parent=5 // pred_fallthru
        _
      %p6594 = scmp.le.s32.totalorder 2, %s25
      // Predicated region
      $region97: #{net_forward.1} parent=5 // pred_check
        %p6595 = pneg %p6594
      $region98: #{net_forward.1} parent=5 // pred_check_branch
        %6597 = sbr.rel (%p6595) target = $region100
      $region99: #{net_forward.1} parent=5 // pred_region
        %s6598 = ssub.s32 %s25, 2
        // Predicated region
        $region101: #{net_forward.1} parent=99 // pred_check
          %p6599 = pneg %p332
        $region102: #{net_forward.1} parent=99 // pred_check_branch
          %6601 = sbr.rel (%p6599) target = $region104
        $region103: #{net_forward.1} parent=99 // pred_region
          %s6602 = sand.u32 %s317, 1
          %s6603 = scalar_lea.sflag [#allocation6], %s6602
          %s6604 = sand.u32 %s317, 1
          %s6605 = scalar_lea.vmem [#allocation13], %s6604
          %6607 = dma.done %s6603, 16
        $region104: #{net_forward.1} parent=99 // pred_fallthru
          _
      $region100: #{net_forward.1} parent=5 // pred_fallthru
        _
    $region6: #{net_forward.1} parent=1 // loop_footer
      %s29 = sadd.s32 1, %s25
    $region7: #{net_forward.1} parent=1 // loop_footer_branch
      %24 = sbr.rel target = $region3
    $region8: #{net_forward.1} parent=1 // loop_exit
      _
    %6608 = vsyncpa [#allocation5], 1
    %s6609 = scalar_lea.sflag [#allocation5], 1
    %6610 = vsyncpa %s6609, 1
    %6611 = vsyncpa [#allocation8], 1
    %6612 = vsyncpa [#allocation11], 1
    %6613 = vsyncpa [#allocation6], 1
    %s6614 = scalar_lea.sflag [#allocation6], 1
    %6615 = vsyncpa %s6614, 1

</llo_original>
